<compile_context>
chip_gen: v7x
topology: tpu7x:2x2x1
jax: 0.10.0
libtpu: 0.0.40
codegen_flags: <defaults>
</compile_context>

<pallas_src>
from functools import partial

import jax
import jax.numpy as jnp
from jax.experimental import pallas as pl
from jax.experimental.pallas import tpu as pltpu


def _round_up(v, m):
    return (v + m - 1) // m * m


# ----------------------------------------------------------------------------
# Kernel: one (batch element, time tile) per grid step.
# ----------------------------------------------------------------------------
def _filter_encoder_kernel(x_ref, m_ref, base_ref,
                           wc_ref, bc_ref, wi_ref, wrs_ref, brs_ref,
                           wproj_ref, bproj_ref,
                           out_ref, xbuf_ref,
                           *, n_layers, kernel_size, dilation_rate,
                           hidden, t_tile, r_eff, dmax_pad):
    f32, bf16 = jnp.float32, jnp.bfloat16
    H, K, L = hidden, kernel_size, n_layers
    W = t_tile + 2 * r_eff                       # haloed window length

    mask = m_ref[...]                            # (W, 1) f32

    # Zero the conv halo rows of the shift-scratch once; the centre region is
    # rewritten every layer, halos stay zero (== conv zero padding at window
    # edges; edge rows live in the discarded margin anyway).
    if dmax_pad > 0:
        halo0 = jnp.zeros((dmax_pad, H), bf16)
        xbuf_ref[0:dmax_pad, :] = halo0
        xbuf_ref[dmax_pad + W:dmax_pad + W + dmax_pad, :] = halo0

    # content_proj (1x1 conv == per-timestep matmul), then mask (as in torch).
    x = jnp.dot(x_ref[...], wc_ref[...], preferred_element_type=f32) + bc_ref[...]
    x = x * mask                                 # (W, H) f32

    skip = jnp.zeros((W, H), f32)

    for i in range(L):
        d = dilation_rate ** i

        # Store the residual stream once; shifted taps are static ref slices.
        xbuf_ref[dmax_pad:dmax_pad + W, :] = x.astype(bf16)

        # Fused tanh||sigmoid pre-activation: cond + bias (precomputed) plus
        # K dilated taps, each one (W,H)@(H,2H) bf16 matmul, f32 accumulate.
        acc = base_ref[i]                        # (1, 2H) f32
        for k in range(K):
            off = (k - K // 2) * d
            xs = xbuf_ref[dmax_pad + off:dmax_pad + off + W, :]    # (W,H) bf16
            acc = acc + jnp.dot(xs, wi_ref[i * K + k],
                                preferred_element_type=f32)

        # fused_add_tanh_sigmoid_multiply (dropout p=0 -> identity).
        acts = jnp.tanh(acc[:, :H]) * jax.nn.sigmoid(acc[:, H:])   # (W,H) f32

        # Fused res||skip 1x1 conv (last layer: res half is zero / unused).
        rs = jnp.dot(acts.astype(bf16), wrs_ref[i],
                     preferred_element_type=f32) + brs_ref[i]      # (W,2H)
        if i < L - 1:
            x = (x + rs[:, :H]) * mask
        skip = skip + rs[:, H:]

    z = skip * mask                              # WN returns output * x_mask
    out = jnp.dot(z.astype(bf16), wproj_ref[...],
                  preferred_element_type=f32) + bproj_ref[...]
    out = out * mask                             # proj(z) * x_mask
    # Write only the interior rows (halo margin discarded).
    out_ref[...] = out[r_eff:r_eff + t_tile, :].astype(out_ref.dtype)


# ----------------------------------------------------------------------------
# Jitted wrapper: layout plumbing + haloed windows + pallas_call.
# ----------------------------------------------------------------------------
@partial(jax.jit, static_argnames=("n_layers", "kernel_size", "dilation_rate",
                                   "t_tile"))
def _filter_encoder_jit(kp, w2v, espk, x_mask, *, n_layers, kernel_size,
                        dilation_rate, t_tile):
    B, C, T = w2v.shape
    H = kp["wc"].shape[1]
    L, K = n_layers, kernel_size
    TWOH = 2 * H

    # ---- static tiling geometry -------------------------------------------
    t_tile = max(128, (t_tile // 128) * 128)
    t_tile = min(t_tile, _round_up(T, 128))
    nT = pl.cdiv(T, t_tile)
    T_out = nT * t_tile
    r = (K // 2) * sum(dilation_rate ** i for i in range(L))   # receptive halo
    r_eff = _round_up(r, 8) if r > 0 else 0
    W = t_tile + 2 * r_eff
    dmax = (K // 2) * dilation_rate ** (L - 1)                 # largest tap
    dmax_pad = _round_up(dmax, 8) if dmax > 0 else 0

    # ---- layout plumbing: haloed, zero-padded overlapping windows ----------
    x_t = jnp.transpose(w2v, (0, 2, 1)).astype(jnp.bfloat16)   # (B, T, C)
    m_t = jnp.transpose(x_mask, (0, 2, 1)).astype(jnp.float32)  # (B, T, 1)
    pad_hi = T_out - T + r_eff
    x_pad = jnp.pad(x_t, ((0, 0), (r_eff, pad_hi), (0, 0)))
    m_pad = jnp.pad(m_t, ((0, 0), (r_eff, pad_hi), (0, 0)))
    idx = jnp.arange(nT)[:, None] * t_tile + jnp.arange(W)[None, :]
    x_win = jnp.take(x_pad, idx, axis=1)                       # (B, nT, W, C)
    m_win = jnp.take(m_pad, idx, axis=1)                       # (B, nT, W, 1)

    # ---- speaker conditioning hoisted out of the kernel (Tg == 1) ----------
    g = espk[:, :, 0].astype(jnp.float32)                      # (B, gin)
    cond = jnp.dot(g, kp["wcond"],
                   precision=jax.lax.Precision.HIGHEST) + kp["bcond"]
    base = cond.reshape(B, L, 1, TWOH) + kp["bi"]              # (B, L, 1, 2H)

    kernel = partial(_filter_encoder_kernel, n_layers=L, kernel_size=K,
                     dilation_rate=dilation_rate, hidden=H, t_tile=t_tile,
                     r_eff=r_eff, dmax_pad=dmax_pad)

    def wspec(arr):                      # full-array weight block, const index
        nd = arr.ndim
        return pl.BlockSpec(arr.shape, lambda b, t, nd=nd: (0,) * nd)

    # ---- VMEM budget: only raise the scoped limit when actually needed -----
    nbytes = lambda a: a.size * jnp.dtype(a.dtype).itemsize
    w_bytes = sum(nbytes(kp[k]) for k in
                  ("wc", "bc", "wi", "wrs", "brs", "wproj", "bproj"))
    io_bytes = W * C * 2 + W * 4 + t_tile * H * 4 + L * TWOH * 4
    tmp_bytes = 10 * W * TWOH * 4 + (W + 2 * dmax_pad) * H * 2
    vmem_est = 2 * (w_bytes + io_bytes) + tmp_bytes
    cp = dict(dimension_semantics=("parallel", "parallel"))
    if vmem_est > 24 * 1024 * 1024:
        cp["vmem_limit_bytes"] = int(min(vmem_est * 3 // 2, 120 * 1024 * 1024))

    out = pl.pallas_call(
        kernel,
        out_shape=jax.ShapeDtypeStruct((B, T_out, H), jnp.float32),
        grid=(B, nT),
        in_specs=[
            pl.BlockSpec((None, None, W, C), lambda b, t: (b, t, 0, 0)),
            pl.BlockSpec((None, None, W, 1), lambda b, t: (b, t, 0, 0)),
            pl.BlockSpec((None, L, 1, TWOH), lambda b, t: (b, 0, 0, 0)),
            wspec(kp["wc"]), wspec(kp["bc"]),
            wspec(kp["wi"]), wspec(kp["wrs"]), wspec(kp["brs"]),
            wspec(kp["wproj"]), wspec(kp["bproj"]),
        ],
        out_specs=pl.BlockSpec((None, t_tile, H), lambda b, t: (b, t, 0)),
        scratch_shapes=[pltpu.VMEM((W + 2 * dmax_pad, H), jnp.bfloat16)],
        compiler_params=pltpu.CompilerParams(**cp),
    )(x_win, m_win, base,
      kp["wc"], kp["bc"], kp["wi"], kp["wrs"], kp["brs"],
      kp["wproj"], kp["bproj"])

    # TODO(synk): let downstream consumers take (B, T, H) directly to save the
    #             output transpose pass (matters most on v5e HBM bandwidth).
    return jnp.transpose(out[:, :T, :], (0, 2, 1))              # (B, H, T)


def filter_encoder_forward(kp, w2v, espk, x_mask=None, *, n_layers,
                           kernel_size, dilation_rate, t_tile=256):
    """w2v: (B, content, T); espk: (B, gin, 1) or (B, gin); x_mask: (B, 1, T)
    or None.  Returns (B, hidden, T) float32 (same semantics as the module)."""
    assert kernel_size % 2 == 1
    B, _, T = w2v.shape
    if espk.ndim == 2:
        espk = espk[:, :, None]
    # TODO(synk): time-varying conditioning (espk T > 1) would need the cond
    #             matmul back inside the kernel (haloed cond windows per tile).
    assert espk.shape[2] == 1, "only a single conditioning frame supported"
    if x_mask is None:
        # x_mask=None <=> mask of all ones (same math as the unmasked branch).
        x_mask = jnp.ones((B, 1, T), jnp.float32)
    return _filter_encoder_jit(kp, w2v, espk, x_mask, n_layers=n_layers,
                               kernel_size=kernel_size,
                               dilation_rate=dilation_rate, t_tile=t_tile)


# ----------------------------------------------------------------------------
# Weight prep: PyTorch-layout params -> fused (in, 2*out) bf16 kernel weights.
# ----------------------------------------------------------------------------
def torch_params_to_kernel(tp, *, n_layers, kernel_size, hidden):
    H, K, L = hidden, kernel_size, n_layers
    f32, bf16 = jnp.float32, jnp.bfloat16
    kp = {}
    kp["wc"] = tp["content_w"][:, :, 0].T.astype(bf16)          # (C, H)
    kp["bc"] = tp["content_b"].reshape(1, H).astype(f32)

    kp["wcond"] = tp["cond_w"][:, :, 0].T.astype(f32)           # (gin, 2H*L)
    kp["bcond"] = tp["cond_b"].reshape(1, 2 * H * L).astype(f32)
    kp["bi"] = jnp.stack([tp["in_b"][i].reshape(1, 2 * H)
                          for i in range(L)]).astype(f32)       # (L, 1, 2H)

    wi = []
    for i in range(L):
        w = tp["in_w"][i]                                       # (2H, H, K)
        for k in range(K):
            wi.append(w[:, :, k].T)                             # (H, 2H)
    kp["wi"] = jnp.stack(wi).astype(bf16)                       # (L*K, H, 2H)

    wrs, brs = [], []
    for i in range(L):
        w, b = tp["rs_w"][i], tp["rs_b"][i]
        if i < L - 1:                                           # (2H, H, 1)
            wrs.append(w[:, :, 0].T)                            # (H, 2H)
            brs.append(b.reshape(1, 2 * H))
        else:                                                   # last: skip only
            wrs.append(jnp.concatenate(
                [jnp.zeros((H, H), f32), w[:, :, 0].T], axis=1))
            brs.append(jnp.concatenate(
                [jnp.zeros((1, H), f32), b.reshape(1, H)], axis=1))
    kp["wrs"] = jnp.stack(wrs).astype(bf16)                     # (L, H, 2H)
    kp["brs"] = jnp.stack(brs).astype(f32)                      # (L, 1, 2H)

    kp["wproj"] = tp["proj_w"][:, :, 0].T.astype(bf16)
    kp["bproj"] = tp["proj_b"].reshape(1, H).astype(f32)
    return kp


# ----------------------------------------------------------------------------
# Plain-JAX reference (mirrors the PyTorch module via lax convolutions).
# ----------------------------------------------------------------------------
def _conv1d_ref(x, w, b, dilation=1, padding=0):
    y = jax.lax.conv_general_dilated(
        x, w, window_strides=(1,), padding=[(padding, padding)],
        rhs_dilation=(dilation,), dimension_numbers=("NCH", "OIH", "NCH"),
        precision=jax.lax.Precision.HIGHEST)
    return y + b[None, :, None]


def filter_encoder_reference(tp, w2v, espk, x_mask, *, n_layers, kernel_size,
                             dilation_rate, hidden):
    H = hidden
    e = _conv1d_ref(w2v, tp["content_w"], tp["content_b"])
    x = e * x_mask
    g = _conv1d_ref(espk, tp["cond_w"], tp["cond_b"])
    output = jnp.zeros_like(x)
    for i in range(n_layers):
        d = dilation_rate ** i
        pad = (kernel_size * d - d) // 2
        x_in = _conv1d_ref(x, tp["in_w"][i], tp["in_b"][i],
                           dilation=d, padding=pad)
        g_l = g[:, i * 2 * H:(i + 1) * 2 * H, :]
        in_act = x_in + g_l
        acts = jnp.tanh(in_act[:, :H, :]) * jax.nn.sigmoid(in_act[:, H:, :])
        rsa = _conv1d_ref(acts, tp["rs_w"][i], tp["rs_b"][i])
        if i < n_layers - 1:
            x = (x + rsa[:, :H, :]) * x_mask
            output = output + rsa[:, H:, :]
        else:
            output = output + rsa
    z = output * x_mask
    return _conv1d_ref(z, tp["proj_w"], tp["proj_b"]) * x_mask


# ----------------------------------------------------------------------------
if __name__ == "__main__":
    B, T = 2, 200                     # T not a multiple of the tile -> tests tail
    content_channels = 192
    hidden_channels = 128             # lane-dense (multiple of 128)
    gin_channels = 64
    n_layers = 4
    kernel_size = 3
    dilation_rate = 2                 # exercises a real dilated-conv halo

    keys = iter(jax.random.split(jax.random.PRNGKey(0), 64))

    def nrm(shape, scale=0.1):
        return jax.random.normal(next(keys), shape, dtype=jnp.float32) * scale

    H = hidden_channels
    tp = {
        "content_w": nrm((H, content_channels, 1)),
        "content_b": nrm((H,)),
        "cond_w": nrm((2 * H * n_layers, gin_channels, 1)),
        "cond_b": nrm((2 * H * n_layers,)),
        "in_w": [nrm((2 * H, H, kernel_size)) for _ in range(n_layers)],
        "in_b": [nrm((2 * H,)) for _ in range(n_layers)],
        "rs_w": [nrm((2 * H, H, 1)) if i < n_layers - 1 else nrm((H, H, 1))
                 for i in range(n_layers)],
        "rs_b": [nrm((2 * H,)) if i < n_layers - 1 else nrm((H,))
                 for i in range(n_layers)],
        "proj_w": nrm((H, H, 1)),
        "proj_b": nrm((H,)),
    }

    w2v = jax.random.normal(next(keys), (B, content_channels, T),
                            dtype=jnp.float32)
    espk = jax.random.normal(next(keys), (B, gin_channels, 1),
                             dtype=jnp.float32)
    lengths = jnp.array([T, 150], dtype=jnp.int32)
    x_mask = (jnp.arange(T)[None, :] < lengths[:, None]
              ).astype(jnp.float32)[:, None, :]                  # (B, 1, T)

    kp = torch_params_to_kernel(tp, n_layers=n_layers,
                                kernel_size=kernel_size, hidden=H)

    out = filter_encoder_forward(kp, w2v, espk, x_mask, n_layers=n_layers,
                                 kernel_size=kernel_size,
                                 dilation_rate=dilation_rate, t_tile=128)
    out = jax.block_until_ready(out)

    ref = filter_encoder_reference(tp, w2v, espk, x_mask, n_layers=n_layers,
                                   kernel_size=kernel_size,
                                   dilation_rate=dilation_rate, hidden=H)

    assert out.shape == (B, H, T)
    max_err = float(jnp.max(jnp.abs(out - ref)))
    # bf16 matmul operands (f32 accumulate) -> relaxed tolerance vs f32 ref.
    assert jnp.allclose(out, ref, atol=5e-2, rtol=5e-2), max_err

    print("KERNEL_OK")
</pallas_src>

<mosaic_0001>
module attributes {stable_mosaic.version = 11 : i64} {
  func.func @_filter_encoder_kernel(%arg0: i32, %arg1: i32, %arg2: memref<1x1x160x192xbf16, #tpu.memory_space<vmem>>, %arg3: memref<1x1x160x1xf32, #tpu.memory_space<vmem>>, %arg4: memref<1x4x1x256xf32, #tpu.memory_space<vmem>>, %arg5: memref<192x128xbf16, #tpu.memory_space<vmem>>, %arg6: memref<1x128xf32, #tpu.memory_space<vmem>>, %arg7: memref<12x128x256xbf16, #tpu.memory_space<vmem>>, %arg8: memref<4x128x256xbf16, #tpu.memory_space<vmem>>, %arg9: memref<4x1x256xf32, #tpu.memory_space<vmem>>, %arg10: memref<128x128xbf16, #tpu.memory_space<vmem>>, %arg11: memref<1x128xf32, #tpu.memory_space<vmem>>, %arg12: memref<1x128x128xf32, #tpu.memory_space<vmem>>, %arg13: memref<176x128xbf16, #tpu.memory_space<vmem>>) attributes {dimension_semantics = [#tpu.dimension_semantics<parallel>, #tpu.dimension_semantics<parallel>], iteration_bounds = array<i64: 2, 2>, scalar_prefetch = 0 : i64, scratch_operands = 1 : i64, tpu.core_type = #tpu.core_type<tc>, window_params = [{transform_indices = @transform_0, window_bounds = array<i64: 1, 1, 160, 192>}, {transform_indices = @transform_1, window_bounds = array<i64: 1, 1, 160, 1>}, {transform_indices = @transform_2, window_bounds = array<i64: 1, 4, 1, 256>}, {pipeline_mode = #tpu.pipeline_mode<synchronous>, transform_indices = @transform_3, window_bounds = array<i64: 192, 128>}, {pipeline_mode = #tpu.pipeline_mode<synchronous>, transform_indices = @transform_4, window_bounds = array<i64: 1, 128>}, {pipeline_mode = #tpu.pipeline_mode<synchronous>, transform_indices = @transform_5, window_bounds = array<i64: 12, 128, 256>}, {pipeline_mode = #tpu.pipeline_mode<synchronous>, transform_indices = @transform_6, window_bounds = array<i64: 4, 128, 256>}, {pipeline_mode = #tpu.pipeline_mode<synchronous>, transform_indices = @transform_7, window_bounds = array<i64: 4, 1, 256>}, {pipeline_mode = #tpu.pipeline_mode<synchronous>, transform_indices = @transform_8, window_bounds = array<i64: 128, 128>}, {pipeline_mode = #tpu.pipeline_mode<synchronous>, transform_indices = @transform_9, window_bounds = array<i64: 1, 128>}, {transform_indices = @transform_10, window_bounds = array<i64: 1, 128, 128>}]} {
    %c0 = arith.constant 0 : index
    %c0_0 = arith.constant 0 : index
    %c0_1 = arith.constant 0 : index
    %c0_2 = arith.constant 0 : index
    %0 = vector.load %arg3[%c0, %c0_0, %c0_1, %c0_2] : memref<1x1x160x1xf32, #tpu.memory_space<vmem>>, vector<1x1x160x1xf32>
    %1 = vector.shape_cast %0 : vector<1x1x160x1xf32> to vector<160x1xf32>
    %cst = arith.constant 0.000000e+00 : bf16
    %2 = vector.broadcast %cst : bf16 to vector<8x128xbf16>
    %c0_3 = arith.constant 0 : index
    %c0_4 = arith.constant 0 : index
    %3 = vector.load %arg13[%c0_3, %c0_4] : memref<176x128xbf16, #tpu.memory_space<vmem>>, vector<8x128xbf16>
    tpu.vector_store %arg13[%c0_3, %c0_4], %2 {strides = array<i32>} : memref<176x128xbf16, #tpu.memory_space<vmem>>, vector<8x128xbf16>,
    %c168 = arith.constant 168 : index
    %c0_5 = arith.constant 0 : index
    %4 = vector.load %arg13[%c168, %c0_5] : memref<176x128xbf16, #tpu.memory_space<vmem>>, vector<8x128xbf16>
    tpu.vector_store %arg13[%c168, %c0_5], %2 {strides = array<i32>} : memref<176x128xbf16, #tpu.memory_space<vmem>>, vector<8x128xbf16>,
    %c0_6 = arith.constant 0 : index
    %c0_7 = arith.constant 0 : index
    %c0_8 = arith.constant 0 : index
    %c0_9 = arith.constant 0 : index
    %5 = vector.load %arg2[%c0_6, %c0_7, %c0_8, %c0_9] : memref<1x1x160x192xbf16, #tpu.memory_space<vmem>>, vector<1x1x160x192xbf16>
    %6 = vector.shape_cast %5 : vector<1x1x160x192xbf16> to vector<160x192xbf16>
    %c0_10 = arith.constant 0 : index
    %c0_11 = arith.constant 0 : index
    %7 = vector.load %arg5[%c0_10, %c0_11] : memref<192x128xbf16, #tpu.memory_space<vmem>>, vector<192x128xbf16>
    %cst_12 = arith.constant dense<0.000000e+00> : vector<160x128xf32>
    %8 = tpu.matmul %6, %7, %cst_12 {dimension_numbers = #tpu.dot_dimension_numbers<[1], [0], [0], [1], [0, 0, 1, 1], [], []>} : vector<160x192xbf16>, vector<192x128xbf16>, vector<160x128xf32> -> vector<160x128xf32>
    %c0_13 = arith.constant 0 : index
    %c0_14 = arith.constant 0 : index
    %9 = vector.load %arg6[%c0_13, %c0_14] : memref<1x128xf32, #tpu.memory_space<vmem>>, vector<1x128xf32>
    %10 = vector.broadcast %9 : vector<1x128xf32> to vector<160x128xf32>
    %11 = arith.addf %8, %10 : vector<160x128xf32>
    %12 = vector.broadcast %1 : vector<160x1xf32> to vector<160x128xf32>
    %13 = arith.mulf %11, %12 : vector<160x128xf32>
    %cst_15 = arith.constant 0.000000e+00 : f32
    %14 = vector.broadcast %cst_15 : f32 to vector<160x128xf32>
    %15 = arith.truncf %13 : vector<160x128xf32> to vector<160x128xbf16>
    %c8 = arith.constant 8 : index
    %c0_16 = arith.constant 0 : index
    %16 = vector.load %arg13[%c8, %c0_16] : memref<176x128xbf16, #tpu.memory_space<vmem>>, vector<160x128xbf16>
    tpu.vector_store %arg13[%c8, %c0_16], %15 {strides = array<i32>} : memref<176x128xbf16, #tpu.memory_space<vmem>>, vector<160x128xbf16>,
    %c0_17 = arith.constant 0 : index
    %c0_18 = arith.constant 0 : index
    %c0_19 = arith.constant 0 : index
    %c0_20 = arith.constant 0 : index
    %17 = vector.load %arg4[%c0_17, %c0_18, %c0_19, %c0_20] : memref<1x4x1x256xf32, #tpu.memory_space<vmem>>, vector<1x1x1x256xf32>
    %18 = vector.shape_cast %17 : vector<1x1x1x256xf32> to vector<1x256xf32>
    %c7 = arith.constant 7 : index
    %c0_21 = arith.constant 0 : index
    %19 = vector.load %arg13[%c7, %c0_21] : memref<176x128xbf16, #tpu.memory_space<vmem>>, vector<160x128xbf16>
    %c0_22 = arith.constant 0 : index
    %c0_23 = arith.constant 0 : index
    %c0_24 = arith.constant 0 : index
    %20 = vector.load %arg7[%c0_22, %c0_23, %c0_24] : memref<12x128x256xbf16, #tpu.memory_space<vmem>>, vector<1x128x256xbf16>
    %21 = vector.shape_cast %20 : vector<1x128x256xbf16> to vector<128x256xbf16>
    %cst_25 = arith.constant dense<0.000000e+00> : vector<160x256xf32>
    %22 = tpu.matmul %19, %21, %cst_25 {dimension_numbers = #tpu.dot_dimension_numbers<[1], [0], [0], [1], [0, 0, 1, 1], [], []>} : vector<160x128xbf16>, vector<128x256xbf16>, vector<160x256xf32> -> vector<160x256xf32>
    %23 = vector.broadcast %18 : vector<1x256xf32> to vector<160x256xf32>
    %24 = arith.addf %23, %22 : vector<160x256xf32>
    %c8_26 = arith.constant 8 : index
    %c0_27 = arith.constant 0 : index
    %25 = vector.load %arg13[%c8_26, %c0_27] : memref<176x128xbf16, #tpu.memory_space<vmem>>, vector<160x128xbf16>
    %c1 = arith.constant 1 : index
    %c0_28 = arith.constant 0 : index
    %c0_29 = arith.constant 0 : index
    %26 = vector.load %arg7[%c1, %c0_28, %c0_29] : memref<12x128x256xbf16, #tpu.memory_space<vmem>>, vector<1x128x256xbf16>
    %27 = vector.shape_cast %26 : vector<1x128x256xbf16> to vector<128x256xbf16>
    %cst_30 = arith.constant dense<0.000000e+00> : vector<160x256xf32>
    %28 = tpu.matmul %25, %27, %cst_30 {dimension_numbers = #tpu.dot_dimension_numbers<[1], [0], [0], [1], [0, 0, 1, 1], [], []>} : vector<160x128xbf16>, vector<128x256xbf16>, vector<160x256xf32> -> vector<160x256xf32>
    %29 = arith.addf %24, %28 : vector<160x256xf32>
    %c9 = arith.constant 9 : index
    %c0_31 = arith.constant 0 : index
    %30 = vector.load %arg13[%c9, %c0_31] : memref<176x128xbf16, #tpu.memory_space<vmem>>, vector<160x128xbf16>
    %c2 = arith.constant 2 : index
    %c0_32 = arith.constant 0 : index
    %c0_33 = arith.constant 0 : index
    %31 = vector.load %arg7[%c2, %c0_32, %c0_33] : memref<12x128x256xbf16, #tpu.memory_space<vmem>>, vector<1x128x256xbf16>
    %32 = vector.shape_cast %31 : vector<1x128x256xbf16> to vector<128x256xbf16>
    %cst_34 = arith.constant dense<0.000000e+00> : vector<160x256xf32>
    %33 = tpu.matmul %30, %32, %cst_34 {dimension_numbers = #tpu.dot_dimension_numbers<[1], [0], [0], [1], [0, 0, 1, 1], [], []>} : vector<160x128xbf16>, vector<128x256xbf16>, vector<160x256xf32> -> vector<160x256xf32>
    %34 = arith.addf %29, %33 : vector<160x256xf32>
    %35 = vector.extract_strided_slice %34 {offsets = [0, 0], sizes = [160, 128], strides = [1, 1]} : vector<160x256xf32> to vector<160x128xf32>
    %36 = math.tanh %35 : vector<160x128xf32>
    %37 = vector.extract_strided_slice %34 {offsets = [0, 128], sizes = [160, 128], strides = [1, 1]} : vector<160x256xf32> to vector<160x128xf32>
    %38 = arith.negf %37 : vector<160x128xf32>
    %39 = math.exp %38 : vector<160x128xf32>
    %cst_35 = arith.constant 1.000000e+00 : f32
    %40 = vector.broadcast %cst_35 : f32 to vector<160x128xf32>
    %41 = arith.addf %40, %39 : vector<160x128xf32>
    %42 = arith.divf %40, %41 : vector<160x128xf32>
    %43 = arith.mulf %36, %42 : vector<160x128xf32>
    %44 = arith.truncf %43 : vector<160x128xf32> to vector<160x128xbf16>
    %c0_36 = arith.constant 0 : index
    %c0_37 = arith.constant 0 : index
    %c0_38 = arith.constant 0 : index
    %45 = vector.load %arg8[%c0_36, %c0_37, %c0_38] : memref<4x128x256xbf16, #tpu.memory_space<vmem>>, vector<1x128x256xbf16>
    %46 = vector.shape_cast %45 : vector<1x128x256xbf16> to vector<128x256xbf16>
    %cst_39 = arith.constant dense<0.000000e+00> : vector<160x256xf32>
    %47 = tpu.matmul %44, %46, %cst_39 {dimension_numbers = #tpu.dot_dimension_numbers<[1], [0], [0], [1], [0, 0, 1, 1], [], []>} : vector<160x128xbf16>, vector<128x256xbf16>, vector<160x256xf32> -> vector<160x256xf32>
    %c0_40 = arith.constant 0 : index
    %c0_41 = arith.constant 0 : index
    %c0_42 = arith.constant 0 : index
    %48 = vector.load %arg9[%c0_40, %c0_41, %c0_42] : memref<4x1x256xf32, #tpu.memory_space<vmem>>, vector<1x1x256xf32>
    %49 = vector.shape_cast %48 : vector<1x1x256xf32> to vector<1x256xf32>
    %50 = vector.broadcast %49 : vector<1x256xf32> to vector<160x256xf32>
    %51 = arith.addf %47, %50 : vector<160x256xf32>
    %52 = vector.extract_strided_slice %51 {offsets = [0, 0], sizes = [160, 128], strides = [1, 1]} : vector<160x256xf32> to vector<160x128xf32>
    %53 = arith.addf %13, %52 : vector<160x128xf32>
    %54 = vector.broadcast %1 : vector<160x1xf32> to vector<160x128xf32>
    %55 = arith.mulf %53, %54 : vector<160x128xf32>
    %56 = vector.extract_strided_slice %51 {offsets = [0, 128], sizes = [160, 128], strides = [1, 1]} : vector<160x256xf32> to vector<160x128xf32>
    %57 = arith.addf %14, %56 : vector<160x128xf32>
    %58 = arith.truncf %55 : vector<160x128xf32> to vector<160x128xbf16>
    %c8_43 = arith.constant 8 : index
    %c0_44 = arith.constant 0 : index
    %59 = vector.load %arg13[%c8_43, %c0_44] : memref<176x128xbf16, #tpu.memory_space<vmem>>, vector<160x128xbf16>
    tpu.vector_store %arg13[%c8_43, %c0_44], %58 {strides = array<i32>} : memref<176x128xbf16, #tpu.memory_space<vmem>>, vector<160x128xbf16>,
    %c0_45 = arith.constant 0 : index
    %c1_46 = arith.constant 1 : index
    %c0_47 = arith.constant 0 : index
    %c0_48 = arith.constant 0 : index
    %60 = vector.load %arg4[%c0_45, %c1_46, %c0_47, %c0_48] : memref<1x4x1x256xf32, #tpu.memory_space<vmem>>, vector<1x1x1x256xf32>
    %61 = vector.shape_cast %60 : vector<1x1x1x256xf32> to vector<1x256xf32>
    %c6 = arith.constant 6 : index
    %c0_49 = arith.constant 0 : index
    %62 = vector.load %arg13[%c6, %c0_49] : memref<176x128xbf16, #tpu.memory_space<vmem>>, vector<160x128xbf16>
    %c3 = arith.constant 3 : index
    %c0_50 = arith.constant 0 : index
    %c0_51 = arith.constant 0 : index
    %63 = vector.load %arg7[%c3, %c0_50, %c0_51] : memref<12x128x256xbf16, #tpu.memory_space<vmem>>, vector<1x128x256xbf16>
    %64 = vector.shape_cast %63 : vector<1x128x256xbf16> to vector<128x256xbf16>
    %cst_52 = arith.constant dense<0.000000e+00> : vector<160x256xf32>
    %65 = tpu.matmul %62, %64, %cst_52 {dimension_numbers = #tpu.dot_dimension_numbers<[1], [0], [0], [1], [0, 0, 1, 1], [], []>} : vector<160x128xbf16>, vector<128x256xbf16>, vector<160x256xf32> -> vector<160x256xf32>
    %66 = vector.broadcast %61 : vector<1x256xf32> to vector<160x256xf32>
    %67 = arith.addf %66, %65 : vector<160x256xf32>
    %c8_53 = arith.constant 8 : index
    %c0_54 = arith.constant 0 : index
    %68 = vector.load %arg13[%c8_53, %c0_54] : memref<176x128xbf16, #tpu.memory_space<vmem>>, vector<160x128xbf16>
    %c4 = arith.constant 4 : index
    %c0_55 = arith.constant 0 : index
    %c0_56 = arith.constant 0 : index
    %69 = vector.load %arg7[%c4, %c0_55, %c0_56] : memref<12x128x256xbf16, #tpu.memory_space<vmem>>, vector<1x128x256xbf16>
    %70 = vector.shape_cast %69 : vector<1x128x256xbf16> to vector<128x256xbf16>
    %cst_57 = arith.constant dense<0.000000e+00> : vector<160x256xf32>
    %71 = tpu.matmul %68, %70, %cst_57 {dimension_numbers = #tpu.dot_dimension_numbers<[1], [0], [0], [1], [0, 0, 1, 1], [], []>} : vector<160x128xbf16>, vector<128x256xbf16>, vector<160x256xf32> -> vector<160x256xf32>
    %72 = arith.addf %67, %71 : vector<160x256xf32>
    %c10 = arith.constant 10 : index
    %c0_58 = arith.constant 0 : index
    %73 = vector.load %arg13[%c10, %c0_58] : memref<176x128xbf16, #tpu.memory_space<vmem>>, vector<160x128xbf16>
    %c5 = arith.constant 5 : index
    %c0_59 = arith.constant 0 : index
    %c0_60 = arith.constant 0 : index
    %74 = vector.load %arg7[%c5, %c0_59, %c0_60] : memref<12x128x256xbf16, #tpu.memory_space<vmem>>, vector<1x128x256xbf16>
    %75 = vector.shape_cast %74 : vector<1x128x256xbf16> to vector<128x256xbf16>
    %cst_61 = arith.constant dense<0.000000e+00> : vector<160x256xf32>
    %76 = tpu.matmul %73, %75, %cst_61 {dimension_numbers = #tpu.dot_dimension_numbers<[1], [0], [0], [1], [0, 0, 1, 1], [], []>} : vector<160x128xbf16>, vector<128x256xbf16>, vector<160x256xf32> -> vector<160x256xf32>
    %77 = arith.addf %72, %76 : vector<160x256xf32>
    %78 = vector.extract_strided_slice %77 {offsets = [0, 0], sizes = [160, 128], strides = [1, 1]} : vector<160x256xf32> to vector<160x128xf32>
    %79 = math.tanh %78 : vector<160x128xf32>
    %80 = vector.extract_strided_slice %77 {offsets = [0, 128], sizes = [160, 128], strides = [1, 1]} : vector<160x256xf32> to vector<160x128xf32>
    %81 = arith.negf %80 : vector<160x128xf32>
    %82 = math.exp %81 : vector<160x128xf32>
    %cst_62 = arith.constant 1.000000e+00 : f32
    %83 = vector.broadcast %cst_62 : f32 to vector<160x128xf32>
    %84 = arith.addf %83, %82 : vector<160x128xf32>
    %85 = arith.divf %83, %84 : vector<160x128xf32>
    %86 = arith.mulf %79, %85 : vector<160x128xf32>
    %87 = arith.truncf %86 : vector<160x128xf32> to vector<160x128xbf16>
    %c1_63 = arith.constant 1 : index
    %c0_64 = arith.constant 0 : index
    %c0_65 = arith.constant 0 : index
    %88 = vector.load %arg8[%c1_63, %c0_64, %c0_65] : memref<4x128x256xbf16, #tpu.memory_space<vmem>>, vector<1x128x256xbf16>
    %89 = vector.shape_cast %88 : vector<1x128x256xbf16> to vector<128x256xbf16>
    %cst_66 = arith.constant dense<0.000000e+00> : vector<160x256xf32>
    %90 = tpu.matmul %87, %89, %cst_66 {dimension_numbers = #tpu.dot_dimension_numbers<[1], [0], [0], [1], [0, 0, 1, 1], [], []>} : vector<160x128xbf16>, vector<128x256xbf16>, vector<160x256xf32> -> vector<160x256xf32>
    %c1_67 = arith.constant 1 : index
    %c0_68 = arith.constant 0 : index
    %c0_69 = arith.constant 0 : index
    %91 = vector.load %arg9[%c1_67, %c0_68, %c0_69] : memref<4x1x256xf32, #tpu.memory_space<vmem>>, vector<1x1x256xf32>
    %92 = vector.shape_cast %91 : vector<1x1x256xf32> to vector<1x256xf32>
    %93 = vector.broadcast %92 : vector<1x256xf32> to vector<160x256xf32>
    %94 = arith.addf %90, %93 : vector<160x256xf32>
    %95 = vector.extract_strided_slice %94 {offsets = [0, 0], sizes = [160, 128], strides = [1, 1]} : vector<160x256xf32> to vector<160x128xf32>
    %96 = arith.addf %55, %95 : vector<160x128xf32>
    %97 = vector.broadcast %1 : vector<160x1xf32> to vector<160x128xf32>
    %98 = arith.mulf %96, %97 : vector<160x128xf32>
    %99 = vector.extract_strided_slice %94 {offsets = [0, 128], sizes = [160, 128], strides = [1, 1]} : vector<160x256xf32> to vector<160x128xf32>
    %100 = arith.addf %57, %99 : vector<160x128xf32>
    %101 = arith.truncf %98 : vector<160x128xf32> to vector<160x128xbf16>
    %c8_70 = arith.constant 8 : index
    %c0_71 = arith.constant 0 : index
    %102 = vector.load %arg13[%c8_70, %c0_71] : memref<176x128xbf16, #tpu.memory_space<vmem>>, vector<160x128xbf16>
    tpu.vector_store %arg13[%c8_70, %c0_71], %101 {strides = array<i32>} : memref<176x128xbf16, #tpu.memory_space<vmem>>, vector<160x128xbf16>,
    %c0_72 = arith.constant 0 : index
    %c2_73 = arith.constant 2 : index
    %c0_74 = arith.constant 0 : index
    %c0_75 = arith.constant 0 : index
    %103 = vector.load %arg4[%c0_72, %c2_73, %c0_74, %c0_75] : memref<1x4x1x256xf32, #tpu.memory_space<vmem>>, vector<1x1x1x256xf32>
    %104 = vector.shape_cast %103 : vector<1x1x1x256xf32> to vector<1x256xf32>
    %c4_76 = arith.constant 4 : index
    %c0_77 = arith.constant 0 : index
    %105 = vector.load %arg13[%c4_76, %c0_77] : memref<176x128xbf16, #tpu.memory_space<vmem>>, vector<160x128xbf16>
    %c6_78 = arith.constant 6 : index
    %c0_79 = arith.constant 0 : index
    %c0_80 = arith.constant 0 : index
    %106 = vector.load %arg7[%c6_78, %c0_79, %c0_80] : memref<12x128x256xbf16, #tpu.memory_space<vmem>>, vector<1x128x256xbf16>
    %107 = vector.shape_cast %106 : vector<1x128x256xbf16> to vector<128x256xbf16>
    %cst_81 = arith.constant dense<0.000000e+00> : vector<160x256xf32>
    %108 = tpu.matmul %105, %107, %cst_81 {dimension_numbers = #tpu.dot_dimension_numbers<[1], [0], [0], [1], [0, 0, 1, 1], [], []>} : vector<160x128xbf16>, vector<128x256xbf16>, vector<160x256xf32> -> vector<160x256xf32>
    %109 = vector.broadcast %104 : vector<1x256xf32> to vector<160x256xf32>
    %110 = arith.addf %109, %108 : vector<160x256xf32>
    %c8_82 = arith.constant 8 : index
    %c0_83 = arith.constant 0 : index
    %111 = vector.load %arg13[%c8_82, %c0_83] : memref<176x128xbf16, #tpu.memory_space<vmem>>, vector<160x128xbf16>
    %c7_84 = arith.constant 7 : index
    %c0_85 = arith.constant 0 : index
    %c0_86 = arith.constant 0 : index
    %112 = vector.load %arg7[%c7_84, %c0_85, %c0_86] : memref<12x128x256xbf16, #tpu.memory_space<vmem>>, vector<1x128x256xbf16>
    %113 = vector.shape_cast %112 : vector<1x128x256xbf16> to vector<128x256xbf16>
    %cst_87 = arith.constant dense<0.000000e+00> : vector<160x256xf32>
    %114 = tpu.matmul %111, %113, %cst_87 {dimension_numbers = #tpu.dot_dimension_numbers<[1], [0], [0], [1], [0, 0, 1, 1], [], []>} : vector<160x128xbf16>, vector<128x256xbf16>, vector<160x256xf32> -> vector<160x256xf32>
    %115 = arith.addf %110, %114 : vector<160x256xf32>
    %c12 = arith.constant 12 : index
    %c0_88 = arith.constant 0 : index
    %116 = vector.load %arg13[%c12, %c0_88] : memref<176x128xbf16, #tpu.memory_space<vmem>>, vector<160x128xbf16>
    %c8_89 = arith.constant 8 : index
    %c0_90 = arith.constant 0 : index
    %c0_91 = arith.constant 0 : index
    %117 = vector.load %arg7[%c8_89, %c0_90, %c0_91] : memref<12x128x256xbf16, #tpu.memory_space<vmem>>, vector<1x128x256xbf16>
    %118 = vector.shape_cast %117 : vector<1x128x256xbf16> to vector<128x256xbf16>
    %cst_92 = arith.constant dense<0.000000e+00> : vector<160x256xf32>
    %119 = tpu.matmul %116, %118, %cst_92 {dimension_numbers = #tpu.dot_dimension_numbers<[1], [0], [0], [1], [0, 0, 1, 1], [], []>} : vector<160x128xbf16>, vector<128x256xbf16>, vector<160x256xf32> -> vector<160x256xf32>
    %120 = arith.addf %115, %119 : vector<160x256xf32>
    %121 = vector.extract_strided_slice %120 {offsets = [0, 0], sizes = [160, 128], strides = [1, 1]} : vector<160x256xf32> to vector<160x128xf32>
    %122 = math.tanh %121 : vector<160x128xf32>
    %123 = vector.extract_strided_slice %120 {offsets = [0, 128], sizes = [160, 128], strides = [1, 1]} : vector<160x256xf32> to vector<160x128xf32>
    %124 = arith.negf %123 : vector<160x128xf32>
    %125 = math.exp %124 : vector<160x128xf32>
    %cst_93 = arith.constant 1.000000e+00 : f32
    %126 = vector.broadcast %cst_93 : f32 to vector<160x128xf32>
    %127 = arith.addf %126, %125 : vector<160x128xf32>
    %128 = arith.divf %126, %127 : vector<160x128xf32>
    %129 = arith.mulf %122, %128 : vector<160x128xf32>
    %130 = arith.truncf %129 : vector<160x128xf32> to vector<160x128xbf16>
    %c2_94 = arith.constant 2 : index
    %c0_95 = arith.constant 0 : index
    %c0_96 = arith.constant 0 : index
    %131 = vector.load %arg8[%c2_94, %c0_95, %c0_96] : memref<4x128x256xbf16, #tpu.memory_space<vmem>>, vector<1x128x256xbf16>
    %132 = vector.shape_cast %131 : vector<1x128x256xbf16> to vector<128x256xbf16>
    %cst_97 = arith.constant dense<0.000000e+00> : vector<160x256xf32>
    %133 = tpu.matmul %130, %132, %cst_97 {dimension_numbers = #tpu.dot_dimension_numbers<[1], [0], [0], [1], [0, 0, 1, 1], [], []>} : vector<160x128xbf16>, vector<128x256xbf16>, vector<160x256xf32> -> vector<160x256xf32>
    %c2_98 = arith.constant 2 : index
    %c0_99 = arith.constant 0 : index
    %c0_100 = arith.constant 0 : index
    %134 = vector.load %arg9[%c2_98, %c0_99, %c0_100] : memref<4x1x256xf32, #tpu.memory_space<vmem>>, vector<1x1x256xf32>
    %135 = vector.shape_cast %134 : vector<1x1x256xf32> to vector<1x256xf32>
    %136 = vector.broadcast %135 : vector<1x256xf32> to vector<160x256xf32>
    %137 = arith.addf %133, %136 : vector<160x256xf32>
    %138 = vector.extract_strided_slice %137 {offsets = [0, 0], sizes = [160, 128], strides = [1, 1]} : vector<160x256xf32> to vector<160x128xf32>
    %139 = arith.addf %98, %138 : vector<160x128xf32>
    %140 = vector.broadcast %1 : vector<160x1xf32> to vector<160x128xf32>
    %141 = arith.mulf %139, %140 : vector<160x128xf32>
    %142 = vector.extract_strided_slice %137 {offsets = [0, 128], sizes = [160, 128], strides = [1, 1]} : vector<160x256xf32> to vector<160x128xf32>
    %143 = arith.addf %100, %142 : vector<160x128xf32>
    %144 = arith.truncf %141 : vector<160x128xf32> to vector<160x128xbf16>
    %c8_101 = arith.constant 8 : index
    %c0_102 = arith.constant 0 : index
    %145 = vector.load %arg13[%c8_101, %c0_102] : memref<176x128xbf16, #tpu.memory_space<vmem>>, vector<160x128xbf16>
    tpu.vector_store %arg13[%c8_101, %c0_102], %144 {strides = array<i32>} : memref<176x128xbf16, #tpu.memory_space<vmem>>, vector<160x128xbf16>,
    %c0_103 = arith.constant 0 : index
    %c3_104 = arith.constant 3 : index
    %c0_105 = arith.constant 0 : index
    %c0_106 = arith.constant 0 : index
    %146 = vector.load %arg4[%c0_103, %c3_104, %c0_105, %c0_106] : memref<1x4x1x256xf32, #tpu.memory_space<vmem>>, vector<1x1x1x256xf32>
    %147 = vector.shape_cast %146 : vector<1x1x1x256xf32> to vector<1x256xf32>
    %c0_107 = arith.constant 0 : index
    %c0_108 = arith.constant 0 : index
    %148 = vector.load %arg13[%c0_107, %c0_108] : memref<176x128xbf16, #tpu.memory_space<vmem>>, vector<160x128xbf16>
    %c9_109 = arith.constant 9 : index
    %c0_110 = arith.constant 0 : index
    %c0_111 = arith.constant 0 : index
    %149 = vector.load %arg7[%c9_109, %c0_110, %c0_111] : memref<12x128x256xbf16, #tpu.memory_space<vmem>>, vector<1x128x256xbf16>
    %150 = vector.shape_cast %149 : vector<1x128x256xbf16> to vector<128x256xbf16>
    %cst_112 = arith.constant dense<0.000000e+00> : vector<160x256xf32>
    %151 = tpu.matmul %148, %150, %cst_112 {dimension_numbers = #tpu.dot_dimension_numbers<[1], [0], [0], [1], [0, 0, 1, 1], [], []>} : vector<160x128xbf16>, vector<128x256xbf16>, vector<160x256xf32> -> vector<160x256xf32>
    %152 = vector.broadcast %147 : vector<1x256xf32> to vector<160x256xf32>
    %153 = arith.addf %152, %151 : vector<160x256xf32>
    %c8_113 = arith.constant 8 : index
    %c0_114 = arith.constant 0 : index
    %154 = vector.load %arg13[%c8_113, %c0_114] : memref<176x128xbf16, #tpu.memory_space<vmem>>, vector<160x128xbf16>
    %c10_115 = arith.constant 10 : index
    %c0_116 = arith.constant 0 : index
    %c0_117 = arith.constant 0 : index
    %155 = vector.load %arg7[%c10_115, %c0_116, %c0_117] : memref<12x128x256xbf16, #tpu.memory_space<vmem>>, vector<1x128x256xbf16>
    %156 = vector.shape_cast %155 : vector<1x128x256xbf16> to vector<128x256xbf16>
    %cst_118 = arith.constant dense<0.000000e+00> : vector<160x256xf32>
    %157 = tpu.matmul %154, %156, %cst_118 {dimension_numbers = #tpu.dot_dimension_numbers<[1], [0], [0], [1], [0, 0, 1, 1], [], []>} : vector<160x128xbf16>, vector<128x256xbf16>, vector<160x256xf32> -> vector<160x256xf32>
    %158 = arith.addf %153, %157 : vector<160x256xf32>
    %c16 = arith.constant 16 : index
    %c0_119 = arith.constant 0 : index
    %159 = vector.load %arg13[%c16, %c0_119] : memref<176x128xbf16, #tpu.memory_space<vmem>>, vector<160x128xbf16>
    %c11 = arith.constant 11 : index
    %c0_120 = arith.constant 0 : index
    %c0_121 = arith.constant 0 : index
    %160 = vector.load %arg7[%c11, %c0_120, %c0_121] : memref<12x128x256xbf16, #tpu.memory_space<vmem>>, vector<1x128x256xbf16>
    %161 = vector.shape_cast %160 : vector<1x128x256xbf16> to vector<128x256xbf16>
    %cst_122 = arith.constant dense<0.000000e+00> : vector<160x256xf32>
    %162 = tpu.matmul %159, %161, %cst_122 {dimension_numbers = #tpu.dot_dimension_numbers<[1], [0], [0], [1], [0, 0, 1, 1], [], []>} : vector<160x128xbf16>, vector<128x256xbf16>, vector<160x256xf32> -> vector<160x256xf32>
    %163 = arith.addf %158, %162 : vector<160x256xf32>
    %164 = vector.extract_strided_slice %163 {offsets = [0, 0], sizes = [160, 128], strides = [1, 1]} : vector<160x256xf32> to vector<160x128xf32>
    %165 = math.tanh %164 : vector<160x128xf32>
    %166 = vector.extract_strided_slice %163 {offsets = [0, 128], sizes = [160, 128], strides = [1, 1]} : vector<160x256xf32> to vector<160x128xf32>
    %167 = arith.negf %166 : vector<160x128xf32>
    %168 = math.exp %167 : vector<160x128xf32>
    %cst_123 = arith.constant 1.000000e+00 : f32
    %169 = vector.broadcast %cst_123 : f32 to vector<160x128xf32>
    %170 = arith.addf %169, %168 : vector<160x128xf32>
    %171 = arith.divf %169, %170 : vector<160x128xf32>
    %172 = arith.mulf %165, %171 : vector<160x128xf32>
    %173 = arith.truncf %172 : vector<160x128xf32> to vector<160x128xbf16>
    %c3_124 = arith.constant 3 : index
    %c0_125 = arith.constant 0 : index
    %c0_126 = arith.constant 0 : index
    %174 = vector.load %arg8[%c3_124, %c0_125, %c0_126] : memref<4x128x256xbf16, #tpu.memory_space<vmem>>, vector<1x128x256xbf16>
    %175 = vector.shape_cast %174 : vector<1x128x256xbf16> to vector<128x256xbf16>
    %cst_127 = arith.constant dense<0.000000e+00> : vector<160x256xf32>
    %176 = tpu.matmul %173, %175, %cst_127 {dimension_numbers = #tpu.dot_dimension_numbers<[1], [0], [0], [1], [0, 0, 1, 1], [], []>} : vector<160x128xbf16>, vector<128x256xbf16>, vector<160x256xf32> -> vector<160x256xf32>
    %c3_128 = arith.constant 3 : index
    %c0_129 = arith.constant 0 : index
    %c0_130 = arith.constant 0 : index
    %177 = vector.load %arg9[%c3_128, %c0_129, %c0_130] : memref<4x1x256xf32, #tpu.memory_space<vmem>>, vector<1x1x256xf32>
    %178 = vector.shape_cast %177 : vector<1x1x256xf32> to vector<1x256xf32>
    %179 = vector.broadcast %178 : vector<1x256xf32> to vector<160x256xf32>
    %180 = arith.addf %176, %179 : vector<160x256xf32>
    %181 = vector.extract_strided_slice %180 {offsets = [0, 128], sizes = [160, 128], strides = [1, 1]} : vector<160x256xf32> to vector<160x128xf32>
    %182 = arith.addf %143, %181 : vector<160x128xf32>
    %183 = vector.broadcast %1 : vector<160x1xf32> to vector<160x128xf32>
    %184 = arith.mulf %182, %183 : vector<160x128xf32>
    %185 = arith.truncf %184 : vector<160x128xf32> to vector<160x128xbf16>
    %c0_131 = arith.constant 0 : index
    %c0_132 = arith.constant 0 : index
    %186 = vector.load %arg10[%c0_131, %c0_132] : memref<128x128xbf16, #tpu.memory_space<vmem>>, vector<128x128xbf16>
    %cst_133 = arith.constant dense<0.000000e+00> : vector<160x128xf32>
    %187 = tpu.matmul %185, %186, %cst_133 {dimension_numbers = #tpu.dot_dimension_numbers<[1], [0], [0], [1], [0, 0, 1, 1], [], []>} : vector<160x128xbf16>, vector<128x128xbf16>, vector<160x128xf32> -> vector<160x128xf32>
    %c0_134 = arith.constant 0 : index
    %c0_135 = arith.constant 0 : index
    %188 = vector.load %arg11[%c0_134, %c0_135] : memref<1x128xf32, #tpu.memory_space<vmem>>, vector<1x128xf32>
    %189 = vector.broadcast %188 : vector<1x128xf32> to vector<160x128xf32>
    %190 = arith.addf %187, %189 : vector<160x128xf32>
    %191 = vector.broadcast %1 : vector<160x1xf32> to vector<160x128xf32>
    %192 = arith.mulf %190, %191 : vector<160x128xf32>
    %193 = vector.extract_strided_slice %192 {offsets = [16, 0], sizes = [128, 128], strides = [1, 1]} : vector<160x128xf32> to vector<128x128xf32>
    %c0_136 = arith.constant 0 : index
    %c0_137 = arith.constant 0 : index
    %c0_138 = arith.constant 0 : index
    %194 = vector.load %arg12[%c0_136, %c0_137, %c0_138] : memref<1x128x128xf32, #tpu.memory_space<vmem>>, vector<1x128x128xf32>
    %195 = vector.shape_cast %194 : vector<1x128x128xf32> to vector<128x128xf32>
    %196 = vector.shape_cast %193 : vector<128x128xf32> to vector<1x128x128xf32>
    tpu.vector_store %arg12[%c0_136, %c0_137, %c0_138], %196 {strides = array<i32>} : memref<1x128x128xf32, #tpu.memory_space<vmem>>, vector<1x128x128xf32>,
    return
  }
  func.func @transform_0(%arg0: i32, %arg1: i32) -> (i32, i32, i32, i32) {
    %c0_i32 = arith.constant 0 : i32
    %c0_i32_0 = arith.constant 0 : i32
    %c0_i32_1 = arith.constant 0 : i32
    return %arg0, %arg1, %c0_i32, %c0_i32_0 : i32, i32, i32, i32
  }
  func.func @transform_1(%arg0: i32, %arg1: i32) -> (i32, i32, i32, i32) {
    %c0_i32 = arith.constant 0 : i32
    %c0_i32_0 = arith.constant 0 : i32
    %c0_i32_1 = arith.constant 0 : i32
    return %arg0, %arg1, %c0_i32, %c0_i32_0 : i32, i32, i32, i32
  }
  func.func @transform_2(%arg0: i32, %arg1: i32) -> (i32, i32, i32, i32) {
    %c0_i32 = arith.constant 0 : i32
    %c0_i32_0 = arith.constant 0 : i32
    %c0_i32_1 = arith.constant 0 : i32
    %c0_i32_2 = arith.constant 0 : i32
    return %arg0, %c0_i32, %c0_i32_0, %c0_i32_1 : i32, i32, i32, i32
  }
  func.func @transform_3(%arg0: i32, %arg1: i32) -> (i32, i32) {
    %c0_i32 = arith.constant 0 : i32
    %c0_i32_0 = arith.constant 0 : i32
    %c0_i32_1 = arith.constant 0 : i32
    return %c0_i32, %c0_i32_0 : i32, i32
  }
  func.func @transform_4(%arg0: i32, %arg1: i32) -> (i32, i32) {
    %c0_i32 = arith.constant 0 : i32
    %c0_i32_0 = arith.constant 0 : i32
    %c0_i32_1 = arith.constant 0 : i32
    return %c0_i32, %c0_i32_0 : i32, i32
  }
  func.func @transform_5(%arg0: i32, %arg1: i32) -> (i32, i32, i32) {
    %c0_i32 = arith.constant 0 : i32
    %c0_i32_0 = arith.constant 0 : i32
    %c0_i32_1 = arith.constant 0 : i32
    %c0_i32_2 = arith.constant 0 : i32
    return %c0_i32, %c0_i32_0, %c0_i32_1 : i32, i32, i32
  }
  func.func @transform_6(%arg0: i32, %arg1: i32) -> (i32, i32, i32) {
    %c0_i32 = arith.constant 0 : i32
    %c0_i32_0 = arith.constant 0 : i32
    %c0_i32_1 = arith.constant 0 : i32
    %c0_i32_2 = arith.constant 0 : i32
    return %c0_i32, %c0_i32_0, %c0_i32_1 : i32, i32, i32
  }
  func.func @transform_7(%arg0: i32, %arg1: i32) -> (i32, i32, i32) {
    %c0_i32 = arith.constant 0 : i32
    %c0_i32_0 = arith.constant 0 : i32
    %c0_i32_1 = arith.constant 0 : i32
    %c0_i32_2 = arith.constant 0 : i32
    return %c0_i32, %c0_i32_0, %c0_i32_1 : i32, i32, i32
  }
  func.func @transform_8(%arg0: i32, %arg1: i32) -> (i32, i32) {
    %c0_i32 = arith.constant 0 : i32
    %c0_i32_0 = arith.constant 0 : i32
    %c0_i32_1 = arith.constant 0 : i32
    return %c0_i32, %c0_i32_0 : i32, i32
  }
  func.func @transform_9(%arg0: i32, %arg1: i32) -> (i32, i32) {
    %c0_i32 = arith.constant 0 : i32
    %c0_i32_0 = arith.constant 0 : i32
    %c0_i32_1 = arith.constant 0 : i32
    return %c0_i32, %c0_i32_0 : i32, i32
  }
  func.func @transform_10(%arg0: i32, %arg1: i32) -> (i32, i32, i32) {
    %c0_i32 = arith.constant 0 : i32
    %c0_i32_0 = arith.constant 0 : i32
    return %arg0, %arg1, %c0_i32 : i32, i32, i32
  }
}

</mosaic_0001>

<llo_original>
// kernel: _filter_encoder_jit.1
$region0: #{_filter_encoder_jit.1}
  #allocation0 [shape = 'u32[]', space=smem, size = 0x4, offset = 0x4, fixed_abs, tag = 'smem constant byte address 0x4 - core index']
  #allocation1 [shape = 'u32[144,128]{1,0:T(1,128)}', space=vmem, size = 0x12000, scoped, tag = 'internal scratch']
  #allocation2 [shape = 'bf16[176,128]{1,0:T(16,128)(2,1)}', space=vmem, size = 0xb000, scoped, tag = 'scratch operand']
  %s0 = inlined_call_operand.vmem [shape: bf16[2,2,160,192], index: 0, kind: input, shape index: {}]
  %s1 = inlined_call_operand.vmem [shape: f32[2,2,160,1], index: 1, kind: input, shape index: {}]
  %s2 = inlined_call_operand.vmem [shape: f32[2,4,1,256], index: 2, kind: input, shape index: {}]
  %s3 = inlined_call_operand.vmem [shape: bf16[192,128], index: 3, kind: input, shape index: {}]
  %s4 = inlined_call_operand.vmem [shape: f32[1,128], index: 4, kind: input, shape index: {}]
  %s5 = inlined_call_operand.vmem [shape: bf16[12,128,256], index: 5, kind: input, shape index: {}]
  %s6 = inlined_call_operand.vmem [shape: bf16[4,128,256], index: 6, kind: input, shape index: {}]
  %s7 = inlined_call_operand.vmem [shape: f32[4,1,256], index: 7, kind: input, shape index: {}]
  %s8 = inlined_call_operand.vmem [shape: bf16[128,128], index: 8, kind: input, shape index: {}]
  %s9 = inlined_call_operand.vmem [shape: f32[1,128], index: 9, kind: input, shape index: {}]
  %s10 = inlined_call_operand.vmem [shape: f32[2,256,128], index: 10, kind: output, shape index: {}]
  %s11 = sld [smem:[#allocation0]]
  $region73: #{_filter_encoder_jit.1} parent=0
    _
  %s13 = ssub.s32 1, %s11
  %s14 = scalar_select 0, %s13, %s11
  loop: start=0, step=1, limit=6
  $region2: #{_filter_encoder_jit.1} parent=0 // loop_pre_header
    _
  $region3: #{_filter_encoder_jit.1} parent=0 // loop_header
    %s16 = sphi 0, %s20
    %p17 = scmp.ge.s32.totalorder %s16, 6
    %s23 = sphi 0, %s35
    %s24 = sphi 0, %s31
    %s25 = sphi 0, %s23
    %s26 = sphi 0, %s24
    %s27 = sphi 0, %s25
    %s28 = sphi 0, %s26
    %s40 = sphi 0, %s42
    %s43 = sphi 0, %s40
    %s44 = sphi 0, %s43
    %s60 = sphi 0, %s44
    %s68 = sphi 0, %s70
    %s71 = sphi 0, %s68
    %s72 = sphi 0, %s71
    %s88 = sphi 0, %s72
    %s94 = sphi 0, %s96
    %s97 = sphi 0, %s94
    %s98 = sphi 0, %s97
    %s114 = sphi 0, %s98
    %s118 = sphi 0, %s118
    %s120 = sphi 0, %s118
    %s121 = sphi 0, %s120
    %s135 = sphi 0, %s121
    %s139 = sphi 0, %s139
    %s141 = sphi 0, %s139
    %s142 = sphi 0, %s141
    %s156 = sphi 0, %s142
    %s160 = sphi 0, %s160
    %s162 = sphi 0, %s160
    %s163 = sphi 0, %s162
    %s177 = sphi 0, %s163
    %s181 = sphi 0, %s181
    %s183 = sphi 0, %s181
    %s184 = sphi 0, %s183
    %s198 = sphi 0, %s184
    %s202 = sphi 0, %s202
    %s204 = sphi 0, %s202
    %s205 = sphi 0, %s204
    %s219 = sphi 0, %s205
    %s223 = sphi 0, %s223
    %s225 = sphi 0, %s223
    %s226 = sphi 0, %s225
    %s240 = sphi 0, %s226
    %s244 = sphi 0, %s244
    %s246 = sphi 0, %s244
    %s247 = sphi 0, %s246
    %s261 = sphi 0, %s247
    %s269 = sphi 0, %s271
    %s272 = sphi 0, %s269
    %s273 = sphi 0, %s272
    %s289 = sphi 0, %s273
  $region4: #{_filter_encoder_jit.1} parent=0 // loop_header_branch
    %19 = sbr.rel (%p17) target = $region8
  $region5: #{_filter_encoder_jit.1} parent=0 // loop_body
    %s21 = ssub.s32 %s16, 1
    %s22 = ssub.s32 %s16, 2
    %s29 = sadd.s32 1, %s24
    %p30 = scmp.ge.s32.totalorder %s29, 2
    %s31 = scalar_select %p30, 0, %s29
    %s32 = sadd.s32 1, %s23
    %s33 = scalar_select %p30, %s32, %s23
    %p34 = scmp.ge.s32.totalorder %s33, 2
    %s35 = scalar_select %p34, 0, %s33
    %s36 = ssub.s32 %s23, %s35
    %s37 = ssub.s32 %s24, %s31
    %s38 = sor.u32 %s36, %s37
    %p39 = scmp.eq.s32.totalorder %s38, 0
    %s41 = sadd.s32 %s40, 1
    %s42 = scalar_select %p39, %s40, %s41
    %p45 = pneg %p39
    %p46 = scmp.eq.s32.totalorder %s16, 3
    %p47 = por %p45, %p46
    %p48 = scmp.ne.s32.totalorder %s40, %s43
    %p49 = scmp.eq.s32.totalorder %s16, 0
    %p50 = por %p48, %p49
    %p51 = scmp.ne.s32.totalorder %s40, %s43
    %p52 = scmp.eq.s32.totalorder %s21, 3
    %p53 = por %p51, %p52
    %p54 = scmp.ne.s32.totalorder %s43, %s44
    %p55 = scmp.eq.s32.totalorder %s21, 0
    %p56 = por %p54, %p55
    %p57 = scmp.ne.s32.totalorder %s43, %s44
    %p58 = scmp.eq.s32.totalorder %s22, 3
    %p59 = por %p57, %p58
    %p61 = scmp.ne.s32.totalorder %s44, %s60
    %p62 = scmp.eq.s32.totalorder %s22, 0
    %p63 = por %p61, %p62
    %s64 = ssub.s32 %s23, %s35
    %s65 = ssub.s32 %s24, %s31
    %s66 = sor.u32 %s64, %s65
    %p67 = scmp.eq.s32.totalorder %s66, 0
    %s69 = sadd.s32 %s68, 1
    %s70 = scalar_select %p67, %s68, %s69
    %p73 = pneg %p67
    %p74 = scmp.eq.s32.totalorder %s16, 3
    %p75 = por %p73, %p74
    %p76 = scmp.ne.s32.totalorder %s68, %s71
    %p77 = scmp.eq.s32.totalorder %s16, 0
    %p78 = por %p76, %p77
    %p79 = scmp.ne.s32.totalorder %s68, %s71
    %p80 = scmp.eq.s32.totalorder %s21, 3
    %p81 = por %p79, %p80
    %p82 = scmp.ne.s32.totalorder %s71, %s72
    %p83 = scmp.eq.s32.totalorder %s21, 0
    %p84 = por %p82, %p83
    %p85 = scmp.ne.s32.totalorder %s71, %s72
    %p86 = scmp.eq.s32.totalorder %s22, 3
    %p87 = por %p85, %p86
    %p89 = scmp.ne.s32.totalorder %s72, %s88
    %p90 = scmp.eq.s32.totalorder %s22, 0
    %p91 = por %p89, %p90
    %s92 = ssub.s32 %s23, %s35
    %p93 = scmp.eq.s32.totalorder %s92, 0
    %s95 = sadd.s32 %s94, 1
    %s96 = scalar_select %p93, %s94, %s95
    %p99 = pneg %p93
    %p100 = scmp.eq.s32.totalorder %s16, 3
    %p101 = por %p99, %p100
    %p102 = scmp.ne.s32.totalorder %s94, %s97
    %p103 = scmp.eq.s32.totalorder %s16, 0
    %p104 = por %p102, %p103
    %p105 = scmp.ne.s32.totalorder %s94, %s97
    %p106 = scmp.eq.s32.totalorder %s21, 3
    %p107 = por %p105, %p106
    %p108 = scmp.ne.s32.totalorder %s97, %s98
    %p109 = scmp.eq.s32.totalorder %s21, 0
    %p110 = por %p108, %p109
    %p111 = scmp.ne.s32.totalorder %s97, %s98
    %p112 = scmp.eq.s32.totalorder %s22, 3
    %p113 = por %p111, %p112
    %p115 = scmp.ne.s32.totalorder %s98, %s114
    %p116 = scmp.eq.s32.totalorder %s22, 0
    %p117 = por %p115, %p116
    %s119 = sadd.s32 %s118, 1
    %p122 = scmp.eq.s32.totalorder %s16, 3
    %p123 = scmp.ne.s32.totalorder %s118, %s120
    %p124 = scmp.eq.s32.totalorder %s16, 0
    %p125 = por %p123, %p124
    %p126 = scmp.ne.s32.totalorder %s118, %s120
    %p127 = scmp.eq.s32.totalorder %s21, 3
    %p128 = por %p126, %p127
    %p129 = scmp.ne.s32.totalorder %s120, %s121
    %p130 = scmp.eq.s32.totalorder %s21, 0
    %p131 = por %p129, %p130
    %p132 = scmp.ne.s32.totalorder %s120, %s121
    %p133 = scmp.eq.s32.totalorder %s22, 3
    %p134 = por %p132, %p133
    %p136 = scmp.ne.s32.totalorder %s121, %s135
    %p137 = scmp.eq.s32.totalorder %s22, 0
    %p138 = por %p136, %p137
    %s140 = sadd.s32 %s139, 1
    %p143 = scmp.eq.s32.totalorder %s16, 3
    %p144 = scmp.ne.s32.totalorder %s139, %s141
    %p145 = scmp.eq.s32.totalorder %s16, 0
    %p146 = por %p144, %p145
    %p147 = scmp.ne.s32.totalorder %s139, %s141
    %p148 = scmp.eq.s32.totalorder %s21, 3
    %p149 = por %p147, %p148
    %p150 = scmp.ne.s32.totalorder %s141, %s142
    %p151 = scmp.eq.s32.totalorder %s21, 0
    %p152 = por %p150, %p151
    %p153 = scmp.ne.s32.totalorder %s141, %s142
    %p154 = scmp.eq.s32.totalorder %s22, 3
    %p155 = por %p153, %p154
    %p157 = scmp.ne.s32.totalorder %s142, %s156
    %p158 = scmp.eq.s32.totalorder %s22, 0
    %p159 = por %p157, %p158
    %s161 = sadd.s32 %s160, 1
    %p164 = scmp.eq.s32.totalorder %s16, 3
    %p165 = scmp.ne.s32.totalorder %s160, %s162
    %p166 = scmp.eq.s32.totalorder %s16, 0
    %p167 = por %p165, %p166
    %p168 = scmp.ne.s32.totalorder %s160, %s162
    %p169 = scmp.eq.s32.totalorder %s21, 3
    %p170 = por %p168, %p169
    %p171 = scmp.ne.s32.totalorder %s162, %s163
    %p172 = scmp.eq.s32.totalorder %s21, 0
    %p173 = por %p171, %p172
    %p174 = scmp.ne.s32.totalorder %s162, %s163
    %p175 = scmp.eq.s32.totalorder %s22, 3
    %p176 = por %p174, %p175
    %p178 = scmp.ne.s32.totalorder %s163, %s177
    %p179 = scmp.eq.s32.totalorder %s22, 0
    %p180 = por %p178, %p179
    %s182 = sadd.s32 %s181, 1
    %p185 = scmp.eq.s32.totalorder %s16, 3
    %p186 = scmp.ne.s32.totalorder %s181, %s183
    %p187 = scmp.eq.s32.totalorder %s16, 0
    %p188 = por %p186, %p187
    %p189 = scmp.ne.s32.totalorder %s181, %s183
    %p190 = scmp.eq.s32.totalorder %s21, 3
    %p191 = por %p189, %p190
    %p192 = scmp.ne.s32.totalorder %s183, %s184
    %p193 = scmp.eq.s32.totalorder %s21, 0
    %p194 = por %p192, %p193
    %p195 = scmp.ne.s32.totalorder %s183, %s184
    %p196 = scmp.eq.s32.totalorder %s22, 3
    %p197 = por %p195, %p196
    %p199 = scmp.ne.s32.totalorder %s184, %s198
    %p200 = scmp.eq.s32.totalorder %s22, 0
    %p201 = por %p199, %p200
    %s203 = sadd.s32 %s202, 1
    %p206 = scmp.eq.s32.totalorder %s16, 3
    %p207 = scmp.ne.s32.totalorder %s202, %s204
    %p208 = scmp.eq.s32.totalorder %s16, 0
    %p209 = por %p207, %p208
    %p210 = scmp.ne.s32.totalorder %s202, %s204
    %p211 = scmp.eq.s32.totalorder %s21, 3
    %p212 = por %p210, %p211
    %p213 = scmp.ne.s32.totalorder %s204, %s205
    %p214 = scmp.eq.s32.totalorder %s21, 0
    %p215 = por %p213, %p214
    %p216 = scmp.ne.s32.totalorder %s204, %s205
    %p217 = scmp.eq.s32.totalorder %s22, 3
    %p218 = por %p216, %p217
    %p220 = scmp.ne.s32.totalorder %s205, %s219
    %p221 = scmp.eq.s32.totalorder %s22, 0
    %p222 = por %p220, %p221
    %s224 = sadd.s32 %s223, 1
    %p227 = scmp.eq.s32.totalorder %s16, 3
    %p228 = scmp.ne.s32.totalorder %s223, %s225
    %p229 = scmp.eq.s32.totalorder %s16, 0
    %p230 = por %p228, %p229
    %p231 = scmp.ne.s32.totalorder %s223, %s225
    %p232 = scmp.eq.s32.totalorder %s21, 3
    %p233 = por %p231, %p232
    %p234 = scmp.ne.s32.totalorder %s225, %s226
    %p235 = scmp.eq.s32.totalorder %s21, 0
    %p236 = por %p234, %p235
    %p237 = scmp.ne.s32.totalorder %s225, %s226
    %p238 = scmp.eq.s32.totalorder %s22, 3
    %p239 = por %p237, %p238
    %p241 = scmp.ne.s32.totalorder %s226, %s240
    %p242 = scmp.eq.s32.totalorder %s22, 0
    %p243 = por %p241, %p242
    %s245 = sadd.s32 %s244, 1
    %p248 = scmp.eq.s32.totalorder %s16, 3
    %p249 = scmp.ne.s32.totalorder %s244, %s246
    %p250 = scmp.eq.s32.totalorder %s16, 0
    %p251 = por %p249, %p250
    %p252 = scmp.ne.s32.totalorder %s244, %s246
    %p253 = scmp.eq.s32.totalorder %s21, 3
    %p254 = por %p252, %p253
    %p255 = scmp.ne.s32.totalorder %s246, %s247
    %p256 = scmp.eq.s32.totalorder %s21, 0
    %p257 = por %p255, %p256
    %p258 = scmp.ne.s32.totalorder %s246, %s247
    %p259 = scmp.eq.s32.totalorder %s22, 3
    %p260 = por %p258, %p259
    %p262 = scmp.ne.s32.totalorder %s247, %s261
    %p263 = scmp.eq.s32.totalorder %s22, 0
    %p264 = por %p262, %p263
    %s265 = ssub.s32 %s23, %s35
    %s266 = ssub.s32 %s24, %s31
    %s267 = sor.u32 %s265, %s266
    %p268 = scmp.eq.s32.totalorder %s267, 0
    %s270 = sadd.s32 %s269, 1
    %s271 = scalar_select %p268, %s269, %s270
    %p274 = pneg %p268
    %p275 = scmp.eq.s32.totalorder %s16, 3
    %p276 = por %p274, %p275
    %p277 = scmp.ne.s32.totalorder %s269, %s272
    %p278 = scmp.eq.s32.totalorder %s16, 0
    %p279 = por %p277, %p278
    %p280 = scmp.ne.s32.totalorder %s269, %s272
    %p281 = scmp.eq.s32.totalorder %s21, 3
    %p282 = por %p280, %p281
    %p283 = scmp.ne.s32.totalorder %s272, %s273
    %p284 = scmp.eq.s32.totalorder %s21, 0
    %p285 = por %p283, %p284
    %p286 = scmp.ne.s32.totalorder %s272, %s273
    %p287 = scmp.eq.s32.totalorder %s22, 3
    %p288 = por %p286, %p287
    %p290 = scmp.ne.s32.totalorder %s273, %s289
    %p291 = scmp.eq.s32.totalorder %s22, 0
    %p292 = por %p290, %p291
    %p293 = scmp.le.s32.totalorder 1, %s16
    %p294 = scmp.lt.s32.totalorder %s16, 5
    %p295 = pnand %p293, %p294
    %p296 = pneg %p295
    // Predicated region
    $region9: #{_filter_encoder_jit.1} parent=5 // pred_check
      _
    $region10: #{_filter_encoder_jit.1} parent=5 // pred_check_branch
      %298 = sbr.rel (%p295) target = $region12
    $region11: #{_filter_encoder_jit.1} parent=5 // pred_region
      %s299 = ssub.s32 %s16, 1
      // Predicated region
      $region13: #{_filter_encoder_jit.1} parent=11 // pred_check
        %p300 = pneg %p131
      $region14: #{_filter_encoder_jit.1} parent=11 // pred_check_branch
        %302 = sbr.rel (%p300) target = $region16
      $region15: #{_filter_encoder_jit.1} parent=11 // pred_region
        _
      $region16: #{_filter_encoder_jit.1} parent=11 // pred_fallthru
        _
      // Predicated region
      $region17: #{_filter_encoder_jit.1} parent=11 // pred_check
        %p303 = pneg %p152
      $region18: #{_filter_encoder_jit.1} parent=11 // pred_check_branch
        %305 = sbr.rel (%p303) target = $region20
      $region19: #{_filter_encoder_jit.1} parent=11 // pred_region
        _
      $region20: #{_filter_encoder_jit.1} parent=11 // pred_fallthru
        _
      // Predicated region
      $region21: #{_filter_encoder_jit.1} parent=11 // pred_check
        %p306 = pneg %p173
      $region22: #{_filter_encoder_jit.1} parent=11 // pred_check_branch
        %308 = sbr.rel (%p306) target = $region24
      $region23: #{_filter_encoder_jit.1} parent=11 // pred_region
        _
      $region24: #{_filter_encoder_jit.1} parent=11 // pred_fallthru
        _
      // Predicated region
      $region25: #{_filter_encoder_jit.1} parent=11 // pred_check
        %p309 = pneg %p194
      $region26: #{_filter_encoder_jit.1} parent=11 // pred_check_branch
        %311 = sbr.rel (%p309) target = $region28
      $region27: #{_filter_encoder_jit.1} parent=11 // pred_region
        _
      $region28: #{_filter_encoder_jit.1} parent=11 // pred_fallthru
        _
      // Predicated region
      $region29: #{_filter_encoder_jit.1} parent=11 // pred_check
        %p312 = pneg %p215
      $region30: #{_filter_encoder_jit.1} parent=11 // pred_check_branch
        %314 = sbr.rel (%p312) target = $region32
      $region31: #{_filter_encoder_jit.1} parent=11 // pred_region
        _
      $region32: #{_filter_encoder_jit.1} parent=11 // pred_fallthru
        _
      // Predicated region
      $region33: #{_filter_encoder_jit.1} parent=11 // pred_check
        %p315 = pneg %p236
      $region34: #{_filter_encoder_jit.1} parent=11 // pred_check_branch
        %317 = sbr.rel (%p315) target = $region36
      $region35: #{_filter_encoder_jit.1} parent=11 // pred_region
        _
      $region36: #{_filter_encoder_jit.1} parent=11 // pred_fallthru
        _
      // Predicated region
      $region37: #{_filter_encoder_jit.1} parent=11 // pred_check
        %p318 = pneg %p257
      $region38: #{_filter_encoder_jit.1} parent=11 // pred_check_branch
        %320 = sbr.rel (%p318) target = $region40
      $region39: #{_filter_encoder_jit.1} parent=11 // pred_region
        _
      $region40: #{_filter_encoder_jit.1} parent=11 // pred_fallthru
        _
    $region12: #{_filter_encoder_jit.1} parent=5 // pred_fallthru
      _
    %p321 = scmp.lt.s32.totalorder %s16, 4
    // Predicated region
    $region41: #{_filter_encoder_jit.1} parent=5 // pred_check
      %p322 = pneg %p321
    $region42: #{_filter_encoder_jit.1} parent=5 // pred_check_branch
      %324 = sbr.rel (%p322) target = $region44
    $region43: #{_filter_encoder_jit.1} parent=5 // pred_region
      // Predicated region
      $region45: #{_filter_encoder_jit.1} parent=43 // pred_check
        %p325 = pneg %p50
      $region46: #{_filter_encoder_jit.1} parent=43 // pred_check_branch
        %327 = sbr.rel (%p325) target = $region48
      $region47: #{_filter_encoder_jit.1} parent=43 // pred_region
        %p328 = scmp.lt.s32.totalorder %s23, 1
        %s329 = scalar_select %p328, %s23, 1
        %p330 = scmp.lt.s32.totalorder %s24, 1
        %s331 = scalar_select %p330, %s24, 1
        %s332 = smul.addr %s331, 40
        %s333 = smul.addr %s329, 80
        %s334 = sadd.s32 %s332, %s333
        %s335 = smul.addr %s334, 4
        %s336 = scalar_lea.vmem %s0, %s335
      $region48: #{_filter_encoder_jit.1} parent=43 // pred_fallthru
        _
      // Predicated region
      $region49: #{_filter_encoder_jit.1} parent=43 // pred_check
        %p337 = pneg %p78
      $region50: #{_filter_encoder_jit.1} parent=43 // pred_check_branch
        %339 = sbr.rel (%p337) target = $region52
      $region51: #{_filter_encoder_jit.1} parent=43 // pred_region
        %p340 = scmp.lt.s32.totalorder %s23, 1
        %s341 = scalar_select %p340, %s23, 1
        %p342 = scmp.lt.s32.totalorder %s24, 1
        %s343 = scalar_select %p342, %s24, 1
        %s344 = smul.addr %s343, 20
        %s345 = smul.addr %s341, 40
        %s346 = sadd.s32 %s344, %s345
        %s347 = smul.addr %s346, 8
        %s348 = scalar_lea.vmem %s1, %s347
      $region52: #{_filter_encoder_jit.1} parent=43 // pred_fallthru
        _
      // Predicated region
      $region53: #{_filter_encoder_jit.1} parent=43 // pred_check
        %p349 = pneg %p104
      $region54: #{_filter_encoder_jit.1} parent=43 // pred_check_branch
        %351 = sbr.rel (%p349) target = $region56
      $region55: #{_filter_encoder_jit.1} parent=43 // pred_region
        %p352 = scmp.lt.s32.totalorder %s23, 1
        %s353 = scalar_select %p352, %s23, 1
        %s354 = smul.addr %s353, 8
        %s355 = scalar_lea.vmem %s2, %s354
      $region56: #{_filter_encoder_jit.1} parent=43 // pred_fallthru
        _
    $region44: #{_filter_encoder_jit.1} parent=5 // pred_fallthru
      _
    %p356 = scmp.le.s32.totalorder 1, %s16
    %p357 = scmp.lt.s32.totalorder %s16, 5
    %p358 = pnand %p356, %p357
    %p359 = pneg %p358
    // Predicated region
    $region57: #{_filter_encoder_jit.1} parent=5 // pred_check
      _
    $region58: #{_filter_encoder_jit.1} parent=5 // pred_check_branch
      %361 = sbr.rel (%p358) target = $region60
    $region59: #{_filter_encoder_jit.1} parent=5 // pred_region
      %s362 = ssub.s32 %s16, 1
      %p363 = scmp.lt.s32.totalorder %s25, 1
      %s364 = scalar_select %p363, %s25, 1
      %p365 = scmp.lt.s32.totalorder %s26, 1
      %s366 = scalar_select %p365, %s26, 1
      %s367 = smul.addr %s366, 40
      %s368 = smul.addr %s364, 80
      %s369 = sadd.s32 %s367, %s368
      %s370 = smul.addr %s369, 4
      %s371 = scalar_lea.vmem %s0, %s370
      %p372 = pneg %p56
      %p373 = pneg %p53
      %p374 = scmp.lt.s32.totalorder %s25, 1
      %s375 = scalar_select %p374, %s25, 1
      %p376 = scmp.lt.s32.totalorder %s26, 1
      %s377 = scalar_select %p376, %s26, 1
      %s378 = smul.addr %s377, 20
      %s379 = smul.addr %s375, 40
      %s380 = sadd.s32 %s378, %s379
      %s381 = smul.addr %s380, 8
      %s382 = scalar_lea.vmem %s1, %s381
      %p383 = pneg %p84
      %p384 = pneg %p81
      %p385 = scmp.lt.s32.totalorder %s25, 1
      %s386 = scalar_select %p385, %s25, 1
      %s387 = smul.addr %s386, 8
      %s388 = scalar_lea.vmem %s2, %s387
      %p389 = pneg %p110
      %p390 = pneg %p107
      %p391 = pneg %p131
      %p392 = pneg %p128
      %p393 = pneg %p152
      %p394 = pneg %p149
      %p395 = pneg %p173
      %p396 = pneg %p170
      %p397 = pneg %p194
      %p398 = pneg %p191
      %p399 = pneg %p215
      %p400 = pneg %p212
      %p401 = pneg %p236
      %p402 = pneg %p233
      %p403 = pneg %p257
      %p404 = pneg %p254
      %p405 = pneg %p285
      %p406 = pneg %p282
      %s407 = smul.u32 16, %s26
      %p408 = scmp.lt.s32.totalorder %s25, 1
      %s409 = scalar_select %p408, %s25, 1
      %p410 = scmp.lt.s32.totalorder %s407, 31
      %s411 = scalar_select %p410, %s407, 31
      %s412 = smul.addr %s409, 32
      %s413 = sadd.s32 %s411, %s412
      %s414 = smul.addr %s413, 8
      %s415 = scalar_lea.vmem %s10, %s414
      %p416 = scmp.lt.s32.totalorder %s25, 1
      %s417 = scalar_select %p416, %s25, 1
      %p418 = scmp.lt.s32.totalorder %s26, 1
      %s419 = scalar_select %p418, %s26, 1
      %s420 = smul.addr %s419, 40
      %s421 = smul.addr %s417, 80
      %s422 = sadd.s32 %s420, %s421
      %s423 = smul.addr %s422, 4
      %s424 = scalar_lea.vmem %s0, %s423
      %p425 = scmp.lt.s32.totalorder %s25, 1
      %s426 = scalar_select %p425, %s25, 1
      %p427 = scmp.lt.s32.totalorder %s26, 1
      %s428 = scalar_select %p427, %s26, 1
      %s429 = smul.addr %s428, 20
      %s430 = smul.addr %s426, 40
      %s431 = sadd.s32 %s429, %s430
      %s432 = smul.addr %s431, 8
      %s433 = scalar_lea.vmem %s1, %s432
      %p434 = scmp.lt.s32.totalorder %s25, 1
      %s435 = scalar_select %p434, %s25, 1
      %s436 = smul.addr %s435, 8
      %s437 = scalar_lea.vmem %s2, %s436
      %s438 = smul.u32 16, %s26
      %p439 = scmp.lt.s32.totalorder %s25, 1
      %s440 = scalar_select %p439, %s25, 1
      %p441 = scmp.lt.s32.totalorder %s438, 31
      %s442 = scalar_select %p441, %s438, 31
      %s443 = smul.addr %s440, 32
      %s444 = sadd.s32 %s442, %s443
      %s445 = smul.addr %s444, 8
      %s446 = scalar_lea.vmem %s10, %s445
      %s447 = smul.u32 16, %s26
      %v449 = vld [vmem:[%s433] sm:$0xff]
      %v450 = vld [vmem:[%s433 + $0x8] sm:$0xff]
      %v451 = vld [vmem:[%s433 + $0x10] sm:$0xff]
      %v452 = vld [vmem:[%s433 + $0x18] sm:$0xff]
      %v453 = vld [vmem:[%s433 + $0x20] sm:$0xff]
      %v454 = vld [vmem:[%s433 + $0x28] sm:$0xff]
      %v455 = vld [vmem:[%s433 + $0x30] sm:$0xff]
      %v456 = vld [vmem:[%s433 + $0x38] sm:$0xff]
      %v457 = vld [vmem:[%s433 + $0x40] sm:$0xff]
      %v458 = vld [vmem:[%s433 + $0x48] sm:$0xff]
      %v459 = vld [vmem:[%s433 + $0x50] sm:$0xff]
      %v460 = vld [vmem:[%s433 + $0x58] sm:$0xff]
      %v461 = vld [vmem:[%s433 + $0x60] sm:$0xff]
      %v462 = vld [vmem:[%s433 + $0x68] sm:$0xff]
      %v463 = vld [vmem:[%s433 + $0x70] sm:$0xff]
      %v464 = vld [vmem:[%s433 + $0x78] sm:$0xff]
      %v465 = vld [vmem:[%s433 + $0x80] sm:$0xff]
      %v466 = vld [vmem:[%s433 + $0x88] sm:$0xff]
      %v467 = vld [vmem:[%s433 + $0x90] sm:$0xff]
      %v468 = vld [vmem:[%s433 + $0x98] sm:$0xff]
      %469 = vst [vmem:[#allocation2] sm:$0xf] 0
      %470 = vst [vmem:[#allocation2 + $0x50] sm:$0xf0] 0
      %v471 = vld [vmem:[%s424] sm:$0xff]
      %v472 = vld [vmem:[%s424 + $0x8] sm:$0xff]
      %v473 = vld [vmem:[%s424 + $0x10] sm:$0xff]
      %v474 = vld [vmem:[%s424 + $0x18] sm:$0xff]
      %v475 = vld [vmem:[%s424 + $0x20] sm:$0xff]
      %v476 = vld [vmem:[%s424 + $0x28] sm:$0xff]
      %v477 = vld [vmem:[%s424 + $0x30] sm:$0xff]
      %v478 = vld [vmem:[%s424 + $0x38] sm:$0xff]
      %v479 = vld [vmem:[%s424 + $0x40] sm:$0xff]
      %v480 = vld [vmem:[%s424 + $0x48] sm:$0xff]
      %v481 = vld [vmem:[%s424 + $0x50] sm:$0xff]
      %v482 = vld [vmem:[%s424 + $0x58] sm:$0xff]
      %v483 = vld [vmem:[%s424 + $0x60] sm:$0xff]
      %v484 = vld [vmem:[%s424 + $0x68] sm:$0xff]
      %v485 = vld [vmem:[%s424 + $0x70] sm:$0xff]
      %v486 = vld [vmem:[%s424 + $0x78] sm:$0xff]
      %v487 = vld [vmem:[%s424 + $0x80] sm:$0xff]
      %v488 = vld [vmem:[%s424 + $0x88] sm:$0xff]
      %v489 = vld [vmem:[%s424 + $0x90] sm:$0xff]
      %v490 = vld [vmem:[%s424 + $0x98] sm:$0xff]
      %v491 = vld [vmem:[%s3] sm:$0xf]
      %v492 = vld [vmem:[%s3 + $0x4] sm:$0xf]
      %v493 = vld [vmem:[%s3 + $0x8] sm:$0xf]
      %v494 = vld [vmem:[%s3 + $0xc] sm:$0xf]
      %v495 = vld [vmem:[%s3 + $0x10] sm:$0xf]
      %v496 = vld [vmem:[%s3 + $0x14] sm:$0xf]
      %v497 = vld [vmem:[%s3 + $0x18] sm:$0xf]
      %v498 = vld [vmem:[%s3 + $0x1c] sm:$0xf]
      %v499 = vld [vmem:[%s3 + $0x20] sm:$0xf]
      %v500 = vld [vmem:[%s3 + $0x24] sm:$0xf]
      %v501 = vld [vmem:[%s3 + $0x28] sm:$0xf]
      %v502 = vld [vmem:[%s3 + $0x2c] sm:$0xf]
      %v503 = vld [vmem:[%s3 + $0x30] sm:$0xf]
      %v504 = vld [vmem:[%s3 + $0x34] sm:$0xf]
      %v505 = vld [vmem:[%s3 + $0x38] sm:$0xf]
      %v506 = vld [vmem:[%s3 + $0x3c] sm:$0xf]
      %v507 = vld [vmem:[%s3 + $0x40] sm:$0xf]
      %v508 = vld [vmem:[%s3 + $0x44] sm:$0xf]
      %v509 = vld [vmem:[%s3 + $0x48] sm:$0xf]
      %v510 = vld [vmem:[%s3 + $0x4c] sm:$0xf]
      %v511 = vld [vmem:[%s3 + $0x50] sm:$0xf]
      %v512 = vld [vmem:[%s3 + $0x54] sm:$0xf]
      %v513 = vld [vmem:[%s3 + $0x58] sm:$0xf]
      %v514 = vld [vmem:[%s3 + $0x5c] sm:$0xf]
      %v515 = vld [vmem:[%s4] sm:$0x1]
      %v517 = vlaneseq
      %v518 = vshrl.u32 %v517, 7
      %v519 = vsub.s32 0, %v518
      %v520 = vrot.slane %v515, %v519
      %v542 = vunpack.c.l.b16 %v471
      %v543 = vunpack.c.h.b16 %v471
      %v544 = vunpack.c.l.b16 %v472
      %v545 = vunpack.c.h.b16 %v472
      %v546 = vunpack.c.l.b16 %v473
      %v547 = vunpack.c.h.b16 %v473
      %v548 = vunpack.c.l.b16 %v474
      %v549 = vunpack.c.h.b16 %v474
      %v550 = vunpack.c.l.b16 %v475
      %v551 = vunpack.c.h.b16 %v475
      %v552 = vunpack.c.l.b16 %v476
      %v553 = vunpack.c.h.b16 %v476
      %v554 = vunpack.c.l.b16 %v477
      %v555 = vunpack.c.h.b16 %v477
      %v556 = vunpack.c.l.b16 %v478
      %v557 = vunpack.c.h.b16 %v478
      %v558 = vunpack.c.l.b16 %v479
      %v559 = vunpack.c.h.b16 %v479
      %v560 = vunpack.c.l.b16 %v480
      %v561 = vunpack.c.h.b16 %v480
      %v562 = vunpack.c.l.b16 %v481
      %v563 = vunpack.c.h.b16 %v481
      %v564 = vunpack.c.l.b16 %v482
      %v565 = vunpack.c.h.b16 %v482
      %v566 = vunpack.c.l.b16 %v483
      %v567 = vunpack.c.h.b16 %v483
      %v568 = vunpack.c.l.b16 %v484
      %v569 = vunpack.c.h.b16 %v484
      %v570 = vunpack.c.l.b16 %v485
      %v571 = vunpack.c.h.b16 %v485
      %v572 = vunpack.c.l.b16 %v486
      %v573 = vunpack.c.h.b16 %v486
      %v574 = vunpack.c.l.b16 %v487
      %v575 = vunpack.c.h.b16 %v487
      %v576 = vunpack.c.l.b16 %v488
      %v577 = vunpack.c.h.b16 %v488
      %v578 = vunpack.c.l.b16 %v489
      %v579 = vunpack.c.h.b16 %v489
      %v580 = vunpack.c.l.b16 %v490
      %v581 = vunpack.c.h.b16 %v490
      %v582 = vpack.c.b16 %v544, %v542
      %v583 = vpack.c.b16 %v545, %v543
      %v584 = vpack.c.b16 %v548, %v546
      %v585 = vpack.c.b16 %v549, %v547
      %v586 = vpack.c.b16 %v552, %v550
      %v587 = vpack.c.b16 %v553, %v551
      %v588 = vpack.c.b16 %v556, %v554
      %v589 = vpack.c.b16 %v557, %v555
      %v590 = vpack.c.b16 %v560, %v558
      %v591 = vpack.c.b16 %v561, %v559
      %v592 = vpack.c.b16 %v564, %v562
      %v593 = vpack.c.b16 %v565, %v563
      %v594 = vpack.c.b16 %v568, %v566
      %v595 = vpack.c.b16 %v569, %v567
      %v596 = vpack.c.b16 %v572, %v570
      %v597 = vpack.c.b16 %v573, %v571
      %v598 = vpack.c.b16 %v576, %v574
      %v599 = vpack.c.b16 %v577, %v575
      %v600 = vpack.c.b16 %v580, %v578
      %v601 = vpack.c.b16 %v581, %v579
      %v636 = vunpack.c.l.b16 %v491
      %v637 = vunpack.c.l.b16 %v492
      %v638 = vunpack.c.l.b16 %v493
      %v639 = vunpack.c.l.b16 %v494
      %v640 = vunpack.c.l.b16 %v495
      %v641 = vunpack.c.l.b16 %v496
      %v642 = vunpack.c.l.b16 %v497
      %v643 = vunpack.c.l.b16 %v498
      %v644 = vunpack.c.l.b16 %v499
      %v645 = vunpack.c.l.b16 %v500
      %v646 = vunpack.c.l.b16 %v501
      %v647 = vunpack.c.l.b16 %v502
      %v648 = vunpack.c.l.b16 %v503
      %v649 = vunpack.c.l.b16 %v504
      %v650 = vunpack.c.l.b16 %v505
      %v651 = vunpack.c.l.b16 %v506
      %v652 = vunpack.c.l.b16 %v507
      %v653 = vunpack.c.l.b16 %v508
      %v654 = vunpack.c.l.b16 %v509
      %v655 = vunpack.c.l.b16 %v510
      %v656 = vunpack.c.l.b16 %v511
      %v657 = vunpack.c.l.b16 %v512
      %v658 = vunpack.c.l.b16 %v513
      %v659 = vunpack.c.l.b16 %v514
      %v660 = vpack.c.b16 %v637, %v636
      %v661 = vpack.c.b16 %v639, %v638
      %v662 = vpack.c.b16 %v641, %v640
      %v663 = vpack.c.b16 %v643, %v642
      %v664 = vpack.c.b16 %v645, %v644
      %v665 = vpack.c.b16 %v647, %v646
      %v666 = vpack.c.b16 %v649, %v648
      %v667 = vpack.c.b16 %v651, %v650
      %v668 = vpack.c.b16 %v653, %v652
      %v669 = vpack.c.b16 %v655, %v654
      %v670 = vpack.c.b16 %v657, %v656
      %v671 = vpack.c.b16 %v659, %v658
      %vm684 = vcmask 523264
      %v686 = vsel %vm684, %v583, 0
      %v689 = vsel %vm684, %v585, 0
      %v692 = vsel %vm684, %v587, 0
      %v695 = vsel %vm684, %v589, 0
      %v698 = vsel %vm684, %v591, 0
      %v701 = vsel %vm684, %v593, 0
      %v704 = vsel %vm684, %v595, 0
      %v707 = vsel %vm684, %v597, 0
      %v710 = vsel %vm684, %v599, 0
      %v713 = vsel %vm684, %v601, 0
      %715 = vmatprep.subr.bf16.mxu0 0
      %716 = vmatpush1.bf16.msra.mxu0 %v660
      %717 = vmatprep.subr.bf16.mxu0 0
      %718 = vmatpush1.bf16.msra.mxu0 %v661
      %719 = vmatprep.subr.bf16.mxu0 0
      %720 = vmatpush1.bf16.msra.mxu0 %v662
      %721 = vmatprep.subr.bf16.mxu0 0
      %722 = vmatpush1.bf16.msra.mxu0 %v663
      %723 = vmatprep.subr.bf16.mxu0 0
      %724 = vmatpush1.bf16.msra.mxu0 %v664
      %725 = vmatprep.subr.bf16.mxu0 0
      %726 = vmatpush1.bf16.msra.mxu0 %v665
      %727 = vmatprep.subr.bf16.mxu0 0
      %728 = vmatpush1.bf16.msra.mxu0 %v666
      %729 = vmatprep.subr.bf16.mxu0 0
      %730 = vmatpush1.bf16.msra.mxu0 %v667
      %731 = vmatprep.subr.bf16.mxu0 0
      %732 = vmatpush1.bf16.msra.mxu0 %v668
      %733 = vmatprep.subr.bf16.mxu0 0
      %734 = vmatpush1.bf16.msra.mxu0 %v669
      %735 = vmatprep.subr.bf16.mxu0 0
      %736 = vmatpush1.bf16.msra.mxu0 %v670
      %737 = vmatprep.subr.bf16.mxu0 0
      %738 = vmatpush1.bf16.msra.mxu0 %v671
      %739 = vmatprep.subr.bf16.mxu0 0
      %740 = vmatpush1.bf16.msra.mxu0 0
      %741 = vmatprep.subr.bf16.mxu0 0
      %742 = vmatpush1.bf16.msra.mxu0 0
      %743 = vmatprep.subr.bf16.mxu0 0
      %744 = vmatpush1.bf16.msra.mxu0 0
      %745 = vmatprep.subr.bf16.mxu0 0
      %746 = vmatpush1.bf16.msra.mxu0 0
      %747 = vmatprep.mubr.bf16.mxu0 %v686
      %748 = vmatmul.mubr.bf16.gmra.mrb[0].mxu0 %v582
      %v749 = vpop.f32.mrb[0].mxu0
      %v750 = vadd.f32 %v520, %v749
      %v751 = vpop.f32.mrb[0].mxu0
      %v752 = vpop.f32.mrb[0].mxu0
      %v753 = vadd.f32 %v520, %v752
      %v754 = vpop.f32.mrb[0].mxu0
      %755 = vmatprep.mubr.bf16.mxu0 %v689
      %756 = vmatmul.mubr.bf16.gmra.mrb[0].mxu0 %v584
      %v757 = vpop.f32.mrb[0].mxu0
      %v758 = vadd.f32 %v520, %v757
      %v759 = vpop.f32.mrb[0].mxu0
      %v760 = vpop.f32.mrb[0].mxu0
      %v761 = vadd.f32 %v520, %v760
      %v762 = vpop.f32.mrb[0].mxu0
      %763 = vmatprep.mubr.bf16.mxu0 %v692
      %764 = vmatmul.mubr.bf16.gmra.mrb[0].mxu0 %v586
      %v765 = vpop.f32.mrb[0].mxu0
      %v766 = vadd.f32 %v520, %v765
      %v767 = vpop.f32.mrb[0].mxu0
      %v768 = vpop.f32.mrb[0].mxu0
      %v769 = vadd.f32 %v520, %v768
      %v770 = vpop.f32.mrb[0].mxu0
      %771 = vmatprep.mubr.bf16.mxu0 %v695
      %772 = vmatmul.mubr.bf16.gmra.mrb[0].mxu0 %v588
      %v773 = vpop.f32.mrb[0].mxu0
      %v774 = vadd.f32 %v520, %v773
      %v775 = vpop.f32.mrb[0].mxu0
      %v776 = vpop.f32.mrb[0].mxu0
      %v777 = vadd.f32 %v520, %v776
      %v778 = vpop.f32.mrb[0].mxu0
      %779 = vmatprep.mubr.bf16.mxu0 %v698
      %780 = vmatmul.mubr.bf16.gmra.mrb[0].mxu0 %v590
      %v781 = vpop.f32.mrb[0].mxu0
      %v782 = vadd.f32 %v520, %v781
      %v783 = vpop.f32.mrb[0].mxu0
      %v784 = vpop.f32.mrb[0].mxu0
      %v785 = vadd.f32 %v520, %v784
      %v786 = vpop.f32.mrb[0].mxu0
      %787 = vmatprep.mubr.bf16.mxu0 %v701
      %788 = vmatmul.mubr.bf16.gmra.mrb[0].mxu0 %v592
      %v789 = vpop.f32.mrb[0].mxu0
      %v790 = vadd.f32 %v520, %v789
      %v791 = vpop.f32.mrb[0].mxu0
      %v792 = vpop.f32.mrb[0].mxu0
      %v793 = vadd.f32 %v520, %v792
      %v794 = vpop.f32.mrb[0].mxu0
      %795 = vmatprep.mubr.bf16.mxu0 %v704
      %796 = vmatmul.mubr.bf16.gmra.mrb[0].mxu0 %v594
      %v797 = vpop.f32.mrb[0].mxu0
      %v798 = vadd.f32 %v520, %v797
      %v799 = vpop.f32.mrb[0].mxu0
      %v800 = vpop.f32.mrb[0].mxu0
      %v801 = vadd.f32 %v520, %v800
      %v802 = vpop.f32.mrb[0].mxu0
      %803 = vmatprep.mubr.bf16.mxu0 %v707
      %804 = vmatmul.mubr.bf16.gmra.mrb[0].mxu0 %v596
      %v805 = vpop.f32.mrb[0].mxu0
      %v806 = vadd.f32 %v520, %v805
      %v807 = vpop.f32.mrb[0].mxu0
      %v808 = vpop.f32.mrb[0].mxu0
      %v809 = vadd.f32 %v520, %v808
      %v810 = vpop.f32.mrb[0].mxu0
      %811 = vmatprep.mubr.bf16.mxu0 %v710
      %812 = vmatmul.mubr.bf16.gmra.mrb[0].mxu0 %v598
      %v813 = vpop.f32.mrb[0].mxu0
      %v814 = vadd.f32 %v520, %v813
      %v815 = vpop.f32.mrb[0].mxu0
      %v816 = vpop.f32.mrb[0].mxu0
      %v817 = vadd.f32 %v520, %v816
      %v818 = vpop.f32.mrb[0].mxu0
      %819 = vmatprep.mubr.bf16.mxu0 %v713
      %820 = vmatmul.mubr.bf16.gmra.mrb[0].mxu0 %v600
      %v821 = vpop.f32.mrb[0].mxu0
      %v822 = vadd.f32 %v520, %v821
      %v823 = vpop.f32.mrb[0].mxu0
      %v824 = vpop.f32.mrb[0].mxu0
      %v825 = vadd.f32 %v520, %v824
      %v826 = vpop.f32.mrb[0].mxu0
      %827 = vdwg.mxu0
      %829 = vset.pattern.permute.xlu0 0
      %830 = vperm.xlu0 %829, %v449
      %v831 = vpop.permute.xlu0 %830
      %834 = vset.pattern.permute.xlu0 0
      %835 = vperm.xlu0 %834, %v450
      %v836 = vpop.permute.xlu0 %835
      %839 = vset.pattern.permute.xlu0 0
      %840 = vperm.xlu0 %839, %v451
      %v841 = vpop.permute.xlu0 %840
      %844 = vset.pattern.permute.xlu0 0
      %845 = vperm.xlu0 %844, %v452
      %v846 = vpop.permute.xlu0 %845
      %849 = vset.pattern.permute.xlu0 0
      %850 = vperm.xlu0 %849, %v453
      %v851 = vpop.permute.xlu0 %850
      %854 = vset.pattern.permute.xlu0 0
      %855 = vperm.xlu0 %854, %v454
      %v856 = vpop.permute.xlu0 %855
      %859 = vset.pattern.permute.xlu0 0
      %860 = vperm.xlu0 %859, %v455
      %v861 = vpop.permute.xlu0 %860
      %864 = vset.pattern.permute.xlu0 0
      %865 = vperm.xlu0 %864, %v456
      %v866 = vpop.permute.xlu0 %865
      %869 = vset.pattern.permute.xlu0 0
      %870 = vperm.xlu0 %869, %v457
      %v871 = vpop.permute.xlu0 %870
      %874 = vset.pattern.permute.xlu0 0
      %875 = vperm.xlu0 %874, %v458
      %v876 = vpop.permute.xlu0 %875
      %879 = vset.pattern.permute.xlu0 0
      %880 = vperm.xlu0 %879, %v459
      %v881 = vpop.permute.xlu0 %880
      %884 = vset.pattern.permute.xlu0 0
      %885 = vperm.xlu0 %884, %v460
      %v886 = vpop.permute.xlu0 %885
      %889 = vset.pattern.permute.xlu0 0
      %890 = vperm.xlu0 %889, %v461
      %v891 = vpop.permute.xlu0 %890
      %894 = vset.pattern.permute.xlu0 0
      %895 = vperm.xlu0 %894, %v462
      %v896 = vpop.permute.xlu0 %895
      %899 = vset.pattern.permute.xlu0 0
      %900 = vperm.xlu0 %899, %v463
      %v901 = vpop.permute.xlu0 %900
      %904 = vset.pattern.permute.xlu0 0
      %905 = vperm.xlu0 %904, %v464
      %v906 = vpop.permute.xlu0 %905
      %909 = vset.pattern.permute.xlu0 0
      %910 = vperm.xlu0 %909, %v465
      %v911 = vpop.permute.xlu0 %910
      %914 = vset.pattern.permute.xlu0 0
      %915 = vperm.xlu0 %914, %v466
      %v916 = vpop.permute.xlu0 %915
      %919 = vset.pattern.permute.xlu0 0
      %920 = vperm.xlu0 %919, %v467
      %v921 = vpop.permute.xlu0 %920
      %924 = vset.pattern.permute.xlu0 0
      %925 = vperm.xlu0 %924, %v468
      %v926 = vpop.permute.xlu0 %925
      %v928 = vmul.f32 %v750, %v831
      %v929 = vmul.f32 %v753, %v836
      %v930 = vmul.f32 %v758, %v841
      %v931 = vmul.f32 %v761, %v846
      %v932 = vmul.f32 %v766, %v851
      %v933 = vmul.f32 %v769, %v856
      %v934 = vmul.f32 %v774, %v861
      %v935 = vmul.f32 %v777, %v866
      %v936 = vmul.f32 %v782, %v871
      %v937 = vmul.f32 %v785, %v876
      %v938 = vmul.f32 %v790, %v881
      %v939 = vmul.f32 %v793, %v886
      %v940 = vmul.f32 %v798, %v891
      %v941 = vmul.f32 %v801, %v896
      %v942 = vmul.f32 %v806, %v901
      %v943 = vmul.f32 %v809, %v906
      %v944 = vmul.f32 %v814, %v911
      %v945 = vmul.f32 %v817, %v916
      %v946 = vmul.f32 %v822, %v921
      %v947 = vmul.f32 %v825, %v926
      %v948 = vpack.c.bf16 %v929, %v928
      %v949 = vpack.c.bf16 %v931, %v930
      %v950 = vpack.c.bf16 %v933, %v932
      %v951 = vpack.c.bf16 %v935, %v934
      %v952 = vpack.c.bf16 %v937, %v936
      %v953 = vpack.c.bf16 %v939, %v938
      %v954 = vpack.c.bf16 %v941, %v940
      %v955 = vpack.c.bf16 %v943, %v942
      %v956 = vpack.c.bf16 %v945, %v944
      %v957 = vpack.c.bf16 %v947, %v946
      %vm968 = vcmask 1043456
      %v969 = vrot.slane %v948, 4
      %v970 = vrot.slane %v949, 4
      %v971 = vsel %vm968, %v969, %v970
      %v972 = vrot.slane %v950, 4
      %v973 = vsel %vm968, %v970, %v972
      %v974 = vrot.slane %v951, 4
      %v975 = vsel %vm968, %v972, %v974
      %v976 = vrot.slane %v952, 4
      %v977 = vsel %vm968, %v974, %v976
      %v978 = vrot.slane %v953, 4
      %v979 = vsel %vm968, %v976, %v978
      %v980 = vrot.slane %v954, 4
      %v981 = vsel %vm968, %v978, %v980
      %v982 = vrot.slane %v955, 4
      %v983 = vsel %vm968, %v980, %v982
      %v984 = vrot.slane %v956, 4
      %v985 = vsel %vm968, %v982, %v984
      %v986 = vrot.slane %v957, 4
      %v987 = vsel %vm968, %v984, %v986
      %999 = vst [vmem:[#allocation2] sm:$0xf0] %v969
      %1000 = vst [vmem:[#allocation2 + $0x8] sm:$0xff] %v971
      %1001 = vst [vmem:[#allocation2 + $0x10] sm:$0xff] %v973
      %1002 = vst [vmem:[#allocation2 + $0x18] sm:$0xff] %v975
      %1003 = vst [vmem:[#allocation2 + $0x20] sm:$0xff] %v977
      %1004 = vst [vmem:[#allocation2 + $0x28] sm:$0xff] %v979
      %1005 = vst [vmem:[#allocation2 + $0x30] sm:$0xff] %v981
      %1006 = vst [vmem:[#allocation2 + $0x38] sm:$0xff] %v983
      %1007 = vst [vmem:[#allocation2 + $0x40] sm:$0xff] %v985
      %1008 = vst [vmem:[#allocation2 + $0x48] sm:$0xff] %v987
      %1009 = vst [vmem:[#allocation2 + $0x50] sm:$0xf] %v986
      %v1010 = vld [vmem:[%s437] sm:$0x3]
      %v1011 = vld [vmem:[#allocation2] sm:$0xf8]
      %v1012 = vld [vmem:[#allocation2 + $0x8] sm:$0xff]
      %v1013 = vld [vmem:[#allocation2 + $0x10] sm:$0xff]
      %v1014 = vld [vmem:[#allocation2 + $0x18] sm:$0xff]
      %v1015 = vld [vmem:[#allocation2 + $0x20] sm:$0xff]
      %v1016 = vld [vmem:[#allocation2 + $0x28] sm:$0xff]
      %v1017 = vld [vmem:[#allocation2 + $0x30] sm:$0xff]
      %v1018 = vld [vmem:[#allocation2 + $0x38] sm:$0xff]
      %v1019 = vld [vmem:[#allocation2 + $0x40] sm:$0xff]
      %v1020 = vld [vmem:[#allocation2 + $0x48] sm:$0xff]
      %v1021 = vld [vmem:[#allocation2 + $0x50] sm:$0xf]
      %v1022 = vld [vmem:[%s5] sm:$0xff]
      %v1023 = vld [vmem:[%s5 + $0x8] sm:$0xff]
      %v1024 = vld [vmem:[%s5 + $0x10] sm:$0xff]
      %v1025 = vld [vmem:[%s5 + $0x18] sm:$0xff]
      %v1026 = vld [vmem:[%s5 + $0x20] sm:$0xff]
      %v1027 = vld [vmem:[%s5 + $0x28] sm:$0xff]
      %v1028 = vld [vmem:[%s5 + $0x30] sm:$0xff]
      %v1029 = vld [vmem:[%s5 + $0x38] sm:$0xff]
      %v1030 = vld [vmem:[%s5 + $0x40] sm:$0xff]
      %v1031 = vld [vmem:[%s5 + $0x48] sm:$0xff]
      %v1032 = vld [vmem:[%s5 + $0x50] sm:$0xff]
      %v1033 = vld [vmem:[%s5 + $0x58] sm:$0xff]
      %v1034 = vld [vmem:[%s5 + $0x60] sm:$0xff]
      %v1035 = vld [vmem:[%s5 + $0x68] sm:$0xff]
      %v1036 = vld [vmem:[%s5 + $0x70] sm:$0xff]
      %v1037 = vld [vmem:[%s5 + $0x78] sm:$0xff]
      %vm1038 = vsmask.f32 4352
      %v1040 = vshrl.u32 %v1011, 16
      %v1042 = vrot.slane %v1040, 3
      %v1043 = vshll.u32 %v1011, 16
      %v1045 = vrot.slane %v1043, 4
      %v1046 = vor.u32 %v1042, %v1045
      %v1048 = vshrl.u32 %v1012, 16
      %v1050 = vrot.slane %v1048, 3
      %v1051 = vshll.u32 %v1012, 16
      %v1053 = vrot.slane %v1051, 4
      %v1054 = vor.u32 %v1050, %v1053
      %v1055 = vsel %vm1038, %v1046, %v1054
      %v1057 = vshrl.u32 %v1013, 16
      %v1059 = vrot.slane %v1057, 3
      %v1060 = vshll.u32 %v1013, 16
      %v1062 = vrot.slane %v1060, 4
      %v1063 = vor.u32 %v1059, %v1062
      %v1064 = vsel %vm1038, %v1054, %v1063
      %v1066 = vshrl.u32 %v1014, 16
      %v1068 = vrot.slane %v1066, 3
      %v1069 = vshll.u32 %v1014, 16
      %v1071 = vrot.slane %v1069, 4
      %v1072 = vor.u32 %v1068, %v1071
      %v1073 = vsel %vm1038, %v1063, %v1072
      %v1075 = vshrl.u32 %v1015, 16
      %v1077 = vrot.slane %v1075, 3
      %v1078 = vshll.u32 %v1015, 16
      %v1080 = vrot.slane %v1078, 4
      %v1081 = vor.u32 %v1077, %v1080
      %v1082 = vsel %vm1038, %v1072, %v1081
      %v1084 = vshrl.u32 %v1016, 16
      %v1086 = vrot.slane %v1084, 3
      %v1087 = vshll.u32 %v1016, 16
      %v1089 = vrot.slane %v1087, 4
      %v1090 = vor.u32 %v1086, %v1089
      %v1091 = vsel %vm1038, %v1081, %v1090
      %v1093 = vshrl.u32 %v1017, 16
      %v1095 = vrot.slane %v1093, 3
      %v1096 = vshll.u32 %v1017, 16
      %v1098 = vrot.slane %v1096, 4
      %v1099 = vor.u32 %v1095, %v1098
      %v1100 = vsel %vm1038, %v1090, %v1099
      %v1102 = vshrl.u32 %v1018, 16
      %v1104 = vrot.slane %v1102, 3
      %v1105 = vshll.u32 %v1018, 16
      %v1107 = vrot.slane %v1105, 4
      %v1108 = vor.u32 %v1104, %v1107
      %v1109 = vsel %vm1038, %v1099, %v1108
      %v1111 = vshrl.u32 %v1019, 16
      %v1113 = vrot.slane %v1111, 3
      %v1114 = vshll.u32 %v1019, 16
      %v1116 = vrot.slane %v1114, 4
      %v1117 = vor.u32 %v1113, %v1116
      %v1118 = vsel %vm1038, %v1108, %v1117
      %v1120 = vshrl.u32 %v1020, 16
      %v1122 = vrot.slane %v1120, 3
      %v1123 = vshll.u32 %v1020, 16
      %v1125 = vrot.slane %v1123, 4
      %v1126 = vor.u32 %v1122, %v1125
      %v1127 = vsel %vm1038, %v1117, %v1126
      %v1129 = vshrl.u32 %v1021, 16
      %v1131 = vrot.slane %v1129, 3
      %v1132 = vshll.u32 %v1021, 16
      %v1134 = vrot.slane %v1132, 4
      %v1135 = vor.u32 %v1131, %v1134
      %v1136 = vsel %vm1038, %v1126, %v1135
      %v1163 = vunpack.c.l.b16 %v1022
      %v1164 = vunpack.c.h.b16 %v1022
      %v1165 = vunpack.c.l.b16 %v1023
      %v1166 = vunpack.c.h.b16 %v1023
      %v1167 = vunpack.c.l.b16 %v1024
      %v1168 = vunpack.c.h.b16 %v1024
      %v1169 = vunpack.c.l.b16 %v1025
      %v1170 = vunpack.c.h.b16 %v1025
      %v1171 = vunpack.c.l.b16 %v1026
      %v1172 = vunpack.c.h.b16 %v1026
      %v1173 = vunpack.c.l.b16 %v1027
      %v1174 = vunpack.c.h.b16 %v1027
      %v1175 = vunpack.c.l.b16 %v1028
      %v1176 = vunpack.c.h.b16 %v1028
      %v1177 = vunpack.c.l.b16 %v1029
      %v1178 = vunpack.c.h.b16 %v1029
      %v1179 = vunpack.c.l.b16 %v1030
      %v1180 = vunpack.c.h.b16 %v1030
      %v1181 = vunpack.c.l.b16 %v1031
      %v1182 = vunpack.c.h.b16 %v1031
      %v1183 = vunpack.c.l.b16 %v1032
      %v1184 = vunpack.c.h.b16 %v1032
      %v1185 = vunpack.c.l.b16 %v1033
      %v1186 = vunpack.c.h.b16 %v1033
      %v1187 = vunpack.c.l.b16 %v1034
      %v1188 = vunpack.c.h.b16 %v1034
      %v1189 = vunpack.c.l.b16 %v1035
      %v1190 = vunpack.c.h.b16 %v1035
      %v1191 = vunpack.c.l.b16 %v1036
      %v1192 = vunpack.c.h.b16 %v1036
      %v1193 = vunpack.c.l.b16 %v1037
      %v1194 = vunpack.c.h.b16 %v1037
      %v1195 = vpack.c.b16 %v1165, %v1163
      %v1196 = vpack.c.b16 %v1166, %v1164
      %v1197 = vpack.c.b16 %v1169, %v1167
      %v1198 = vpack.c.b16 %v1170, %v1168
      %v1199 = vpack.c.b16 %v1173, %v1171
      %v1200 = vpack.c.b16 %v1174, %v1172
      %v1201 = vpack.c.b16 %v1177, %v1175
      %v1202 = vpack.c.b16 %v1178, %v1176
      %v1203 = vpack.c.b16 %v1181, %v1179
      %v1204 = vpack.c.b16 %v1182, %v1180
      %v1205 = vpack.c.b16 %v1185, %v1183
      %v1206 = vpack.c.b16 %v1186, %v1184
      %v1207 = vpack.c.b16 %v1189, %v1187
      %v1208 = vpack.c.b16 %v1190, %v1188
      %v1209 = vpack.c.b16 %v1193, %v1191
      %v1210 = vpack.c.b16 %v1194, %v1192
      %1227 = vmatprep.subr.bf16.mxu0 %v1196
      %1228 = vmatpush1.bf16.msra.mxu0 %v1195
      %1229 = vmatprep.subr.bf16.mxu0 %v1198
      %1230 = vmatpush1.bf16.msra.mxu0 %v1197
      %1231 = vmatprep.subr.bf16.mxu0 %v1200
      %1232 = vmatpush1.bf16.msra.mxu0 %v1199
      %1233 = vmatprep.subr.bf16.mxu0 %v1202
      %1234 = vmatpush1.bf16.msra.mxu0 %v1201
      %1235 = vmatprep.subr.bf16.mxu0 %v1204
      %1236 = vmatpush1.bf16.msra.mxu0 %v1203
      %1237 = vmatprep.subr.bf16.mxu0 %v1206
      %1238 = vmatpush1.bf16.msra.mxu0 %v1205
      %1239 = vmatprep.subr.bf16.mxu0 %v1208
      %1240 = vmatpush1.bf16.msra.mxu0 %v1207
      %1241 = vmatprep.subr.bf16.mxu0 %v1210
      %1242 = vmatpush1.bf16.msra.mxu0 %v1209
      %1243 = vmatprep.subr.bf16.mxu0 0
      %1244 = vmatpush1.bf16.msra.mxu0 0
      %1245 = vmatprep.subr.bf16.mxu0 0
      %1246 = vmatpush1.bf16.msra.mxu0 0
      %1247 = vmatprep.subr.bf16.mxu0 0
      %1248 = vmatpush1.bf16.msra.mxu0 0
      %1249 = vmatprep.subr.bf16.mxu0 0
      %1250 = vmatpush1.bf16.msra.mxu0 0
      %1251 = vmatprep.subr.bf16.mxu0 0
      %1252 = vmatpush1.bf16.msra.mxu0 0
      %1253 = vmatprep.subr.bf16.mxu0 0
      %1254 = vmatpush1.bf16.msra.mxu0 0
      %1255 = vmatprep.subr.bf16.mxu0 0
      %1256 = vmatpush1.bf16.msra.mxu0 0
      %1257 = vmatprep.subr.bf16.mxu0 0
      %1258 = vmatpush1.bf16.msra.mxu0 0
      %1259 = vmatprep.mubr.bf16.mxu0 0
      %1260 = vmatmul.mubr.bf16.gmra.mrb[0].mxu0 %v1055
      %v1261 = vpop.f32.mrb[0].mxu0
      %v1262 = vadd.f32 0.0, %v1261
      %v1263 = vpop.f32.mrb[0].mxu0
      %v1264 = vadd.f32 0.0, %v1263
      %v1265 = vpop.f32.mrb[0].mxu0
      %v1266 = vadd.f32 0.0, %v1265
      %v1267 = vpop.f32.mrb[0].mxu0
      %v1268 = vadd.f32 0.0, %v1267
      %1269 = vmatprep.mubr.bf16.mxu0 0
      %1270 = vmatmul.mubr.bf16.gmra.mrb[0].mxu0 %v1064
      %v1271 = vpop.f32.mrb[0].mxu0
      %v1272 = vadd.f32 0.0, %v1271
      %v1273 = vpop.f32.mrb[0].mxu0
      %v1274 = vadd.f32 0.0, %v1273
      %v1275 = vpop.f32.mrb[0].mxu0
      %v1276 = vadd.f32 0.0, %v1275
      %v1277 = vpop.f32.mrb[0].mxu0
      %v1278 = vadd.f32 0.0, %v1277
      %1279 = vmatprep.mubr.bf16.mxu0 0
      %1280 = vmatmul.mubr.bf16.gmra.mrb[0].mxu0 %v1073
      %v1281 = vpop.f32.mrb[0].mxu0
      %v1282 = vadd.f32 0.0, %v1281
      %v1283 = vpop.f32.mrb[0].mxu0
      %v1284 = vadd.f32 0.0, %v1283
      %v1285 = vpop.f32.mrb[0].mxu0
      %v1286 = vadd.f32 0.0, %v1285
      %v1287 = vpop.f32.mrb[0].mxu0
      %v1288 = vadd.f32 0.0, %v1287
      %1289 = vmatprep.mubr.bf16.mxu0 0
      %1290 = vmatmul.mubr.bf16.gmra.mrb[0].mxu0 %v1082
      %v1291 = vpop.f32.mrb[0].mxu0
      %v1292 = vadd.f32 0.0, %v1291
      %v1293 = vpop.f32.mrb[0].mxu0
      %v1294 = vadd.f32 0.0, %v1293
      %v1295 = vpop.f32.mrb[0].mxu0
      %v1296 = vadd.f32 0.0, %v1295
      %v1297 = vpop.f32.mrb[0].mxu0
      %v1298 = vadd.f32 0.0, %v1297
      %1299 = vmatprep.mubr.bf16.mxu0 0
      %1300 = vmatmul.mubr.bf16.gmra.mrb[0].mxu0 %v1091
      %v1301 = vpop.f32.mrb[0].mxu0
      %v1302 = vadd.f32 0.0, %v1301
      %v1303 = vpop.f32.mrb[0].mxu0
      %v1304 = vadd.f32 0.0, %v1303
      %v1305 = vpop.f32.mrb[0].mxu0
      %v1306 = vadd.f32 0.0, %v1305
      %v1307 = vpop.f32.mrb[0].mxu0
      %v1308 = vadd.f32 0.0, %v1307
      %1309 = vmatprep.mubr.bf16.mxu0 0
      %1310 = vmatmul.mubr.bf16.gmra.mrb[0].mxu0 %v1100
      %v1311 = vpop.f32.mrb[0].mxu0
      %v1312 = vadd.f32 0.0, %v1311
      %v1313 = vpop.f32.mrb[0].mxu0
      %v1314 = vadd.f32 0.0, %v1313
      %v1315 = vpop.f32.mrb[0].mxu0
      %v1316 = vadd.f32 0.0, %v1315
      %v1317 = vpop.f32.mrb[0].mxu0
      %v1318 = vadd.f32 0.0, %v1317
      %1319 = vmatprep.mubr.bf16.mxu0 0
      %1320 = vmatmul.mubr.bf16.gmra.mrb[0].mxu0 %v1109
      %v1321 = vpop.f32.mrb[0].mxu0
      %v1322 = vadd.f32 0.0, %v1321
      %v1323 = vpop.f32.mrb[0].mxu0
      %v1324 = vadd.f32 0.0, %v1323
      %v1325 = vpop.f32.mrb[0].mxu0
      %v1326 = vadd.f32 0.0, %v1325
      %v1327 = vpop.f32.mrb[0].mxu0
      %v1328 = vadd.f32 0.0, %v1327
      %1329 = vmatprep.mubr.bf16.mxu0 0
      %1330 = vmatmul.mubr.bf16.gmra.mrb[0].mxu0 %v1118
      %v1331 = vpop.f32.mrb[0].mxu0
      %v1332 = vadd.f32 0.0, %v1331
      %v1333 = vpop.f32.mrb[0].mxu0
      %v1334 = vadd.f32 0.0, %v1333
      %v1335 = vpop.f32.mrb[0].mxu0
      %v1336 = vadd.f32 0.0, %v1335
      %v1337 = vpop.f32.mrb[0].mxu0
      %v1338 = vadd.f32 0.0, %v1337
      %1339 = vmatprep.mubr.bf16.mxu0 0
      %1340 = vmatmul.mubr.bf16.gmra.mrb[0].mxu0 %v1127
      %v1341 = vpop.f32.mrb[0].mxu0
      %v1342 = vadd.f32 0.0, %v1341
      %v1343 = vpop.f32.mrb[0].mxu0
      %v1344 = vadd.f32 0.0, %v1343
      %v1345 = vpop.f32.mrb[0].mxu0
      %v1346 = vadd.f32 0.0, %v1345
      %v1347 = vpop.f32.mrb[0].mxu0
      %v1348 = vadd.f32 0.0, %v1347
      %1349 = vmatprep.mubr.bf16.mxu0 0
      %1350 = vmatmul.mubr.bf16.gmra.mrb[0].mxu0 %v1136
      %v1351 = vpop.f32.mrb[0].mxu0
      %v1352 = vadd.f32 0.0, %v1351
      %v1353 = vpop.f32.mrb[0].mxu0
      %v1354 = vadd.f32 0.0, %v1353
      %v1355 = vpop.f32.mrb[0].mxu0
      %v1356 = vadd.f32 0.0, %v1355
      %v1357 = vpop.f32.mrb[0].mxu0
      %v1358 = vadd.f32 0.0, %v1357
      %1359 = vdwg.mxu0
      %v1361 = vlaneseq
      %v1362 = vshrl.u32 %v1361, 7
      %v1363 = vsub.s32 0, %v1362
      %v1364 = vrot.slane %v1010, %v1363
      %v1365 = vlaneseq
      %v1366 = vshrl.u32 %v1365, 7
      %v1367 = vsub.s32 1, %v1366
      %v1368 = vrot.slane %v1010, %v1367
      %v1371 = vadd.f32 %v1364, %v1262
      %v1372 = vadd.f32 %v1368, %v1264
      %v1373 = vadd.f32 %v1364, %v1266
      %v1374 = vadd.f32 %v1368, %v1268
      %v1375 = vadd.f32 %v1364, %v1272
      %v1376 = vadd.f32 %v1368, %v1274
      %v1377 = vadd.f32 %v1364, %v1276
      %v1378 = vadd.f32 %v1368, %v1278
      %v1379 = vadd.f32 %v1364, %v1282
      %v1380 = vadd.f32 %v1368, %v1284
      %v1381 = vadd.f32 %v1364, %v1286
      %v1382 = vadd.f32 %v1368, %v1288
      %v1383 = vadd.f32 %v1364, %v1292
      %v1384 = vadd.f32 %v1368, %v1294
      %v1385 = vadd.f32 %v1364, %v1296
      %v1386 = vadd.f32 %v1368, %v1298
      %v1387 = vadd.f32 %v1364, %v1302
      %v1388 = vadd.f32 %v1368, %v1304
      %v1389 = vadd.f32 %v1364, %v1306
      %v1390 = vadd.f32 %v1368, %v1308
      %v1391 = vadd.f32 %v1364, %v1312
      %v1392 = vadd.f32 %v1368, %v1314
      %v1393 = vadd.f32 %v1364, %v1316
      %v1394 = vadd.f32 %v1368, %v1318
      %v1395 = vadd.f32 %v1364, %v1322
      %v1396 = vadd.f32 %v1368, %v1324
      %v1397 = vadd.f32 %v1364, %v1326
      %v1398 = vadd.f32 %v1368, %v1328
      %v1399 = vadd.f32 %v1364, %v1332
      %v1400 = vadd.f32 %v1368, %v1334
      %v1401 = vadd.f32 %v1364, %v1336
      %v1402 = vadd.f32 %v1368, %v1338
      %v1403 = vadd.f32 %v1364, %v1342
      %v1404 = vadd.f32 %v1368, %v1344
      %v1405 = vadd.f32 %v1364, %v1346
      %v1406 = vadd.f32 %v1368, %v1348
      %v1407 = vadd.f32 %v1364, %v1352
      %v1408 = vadd.f32 %v1368, %v1354
      %v1409 = vadd.f32 %v1364, %v1356
      %v1410 = vadd.f32 %v1368, %v1358
      %v1411 = vld [vmem:[#allocation2] sm:$0xf0]
      %s1412 = scalar_lea.vmem %s5, 128
      %v1413 = vld [vmem:[%s1412] sm:$0xff]
      %v1414 = vld [vmem:[%s1412 + $0x8] sm:$0xff]
      %v1415 = vld [vmem:[%s1412 + $0x10] sm:$0xff]
      %v1416 = vld [vmem:[%s1412 + $0x18] sm:$0xff]
      %v1417 = vld [vmem:[%s1412 + $0x20] sm:$0xff]
      %v1418 = vld [vmem:[%s1412 + $0x28] sm:$0xff]
      %v1419 = vld [vmem:[%s1412 + $0x30] sm:$0xff]
      %v1420 = vld [vmem:[%s1412 + $0x38] sm:$0xff]
      %v1421 = vld [vmem:[%s1412 + $0x40] sm:$0xff]
      %v1422 = vld [vmem:[%s1412 + $0x48] sm:$0xff]
      %v1423 = vld [vmem:[%s1412 + $0x50] sm:$0xff]
      %v1424 = vld [vmem:[%s1412 + $0x58] sm:$0xff]
      %v1425 = vld [vmem:[%s1412 + $0x60] sm:$0xff]
      %v1426 = vld [vmem:[%s1412 + $0x68] sm:$0xff]
      %v1427 = vld [vmem:[%s1412 + $0x70] sm:$0xff]
      %v1428 = vld [vmem:[%s1412 + $0x78] sm:$0xff]
      %v1440 = vrot.slane %v1411, 4
      %v1441 = vrot.slane %v1012, 4
      %v1442 = vsel %vm968, %v1440, %v1441
      %v1443 = vrot.slane %v1013, 4
      %v1444 = vsel %vm968, %v1441, %v1443
      %v1445 = vrot.slane %v1014, 4
      %v1446 = vsel %vm968, %v1443, %v1445
      %v1447 = vrot.slane %v1015, 4
      %v1448 = vsel %vm968, %v1445, %v1447
      %v1449 = vrot.slane %v1016, 4
      %v1450 = vsel %vm968, %v1447, %v1449
      %v1451 = vrot.slane %v1017, 4
      %v1452 = vsel %vm968, %v1449, %v1451
      %v1453 = vrot.slane %v1018, 4
      %v1454 = vsel %vm968, %v1451, %v1453
      %v1455 = vrot.slane %v1019, 4
      %v1456 = vsel %vm968, %v1453, %v1455
      %v1457 = vrot.slane %v1020, 4
      %v1458 = vsel %vm968, %v1455, %v1457
      %v1459 = vrot.slane %v1021, 4
      %v1460 = vsel %vm968, %v1457, %v1459
      %v1487 = vunpack.c.l.b16 %v1413
      %v1488 = vunpack.c.h.b16 %v1413
      %v1489 = vunpack.c.l.b16 %v1414
      %v1490 = vunpack.c.h.b16 %v1414
      %v1491 = vunpack.c.l.b16 %v1415
      %v1492 = vunpack.c.h.b16 %v1415
      %v1493 = vunpack.c.l.b16 %v1416
      %v1494 = vunpack.c.h.b16 %v1416
      %v1495 = vunpack.c.l.b16 %v1417
      %v1496 = vunpack.c.h.b16 %v1417
      %v1497 = vunpack.c.l.b16 %v1418
      %v1498 = vunpack.c.h.b16 %v1418
      %v1499 = vunpack.c.l.b16 %v1419
      %v1500 = vunpack.c.h.b16 %v1419
      %v1501 = vunpack.c.l.b16 %v1420
      %v1502 = vunpack.c.h.b16 %v1420
      %v1503 = vunpack.c.l.b16 %v1421
      %v1504 = vunpack.c.h.b16 %v1421
      %v1505 = vunpack.c.l.b16 %v1422
      %v1506 = vunpack.c.h.b16 %v1422
      %v1507 = vunpack.c.l.b16 %v1423
      %v1508 = vunpack.c.h.b16 %v1423
      %v1509 = vunpack.c.l.b16 %v1424
      %v1510 = vunpack.c.h.b16 %v1424
      %v1511 = vunpack.c.l.b16 %v1425
      %v1512 = vunpack.c.h.b16 %v1425
      %v1513 = vunpack.c.l.b16 %v1426
      %v1514 = vunpack.c.h.b16 %v1426
      %v1515 = vunpack.c.l.b16 %v1427
      %v1516 = vunpack.c.h.b16 %v1427
      %v1517 = vunpack.c.l.b16 %v1428
      %v1518 = vunpack.c.h.b16 %v1428
      %v1519 = vpack.c.b16 %v1489, %v1487
      %v1520 = vpack.c.b16 %v1490, %v1488
      %v1521 = vpack.c.b16 %v1493, %v1491
      %v1522 = vpack.c.b16 %v1494, %v1492
      %v1523 = vpack.c.b16 %v1497, %v1495
      %v1524 = vpack.c.b16 %v1498, %v1496
      %v1525 = vpack.c.b16 %v1501, %v1499
      %v1526 = vpack.c.b16 %v1502, %v1500
      %v1527 = vpack.c.b16 %v1505, %v1503
      %v1528 = vpack.c.b16 %v1506, %v1504
      %v1529 = vpack.c.b16 %v1509, %v1507
      %v1530 = vpack.c.b16 %v1510, %v1508
      %v1531 = vpack.c.b16 %v1513, %v1511
      %v1532 = vpack.c.b16 %v1514, %v1512
      %v1533 = vpack.c.b16 %v1517, %v1515
      %v1534 = vpack.c.b16 %v1518, %v1516
      %1551 = vmatprep.subr.bf16.mxu0 %v1520
      %1552 = vmatpush1.bf16.msra.mxu0 %v1519
      %1553 = vmatprep.subr.bf16.mxu0 %v1522
      %1554 = vmatpush1.bf16.msra.mxu0 %v1521
      %1555 = vmatprep.subr.bf16.mxu0 %v1524
      %1556 = vmatpush1.bf16.msra.mxu0 %v1523
      %1557 = vmatprep.subr.bf16.mxu0 %v1526
      %1558 = vmatpush1.bf16.msra.mxu0 %v1525
      %1559 = vmatprep.subr.bf16.mxu0 %v1528
      %1560 = vmatpush1.bf16.msra.mxu0 %v1527
      %1561 = vmatprep.subr.bf16.mxu0 %v1530
      %1562 = vmatpush1.bf16.msra.mxu0 %v1529
      %1563 = vmatprep.subr.bf16.mxu0 %v1532
      %1564 = vmatpush1.bf16.msra.mxu0 %v1531
      %1565 = vmatprep.subr.bf16.mxu0 %v1534
      %1566 = vmatpush1.bf16.msra.mxu0 %v1533
      %1567 = vmatprep.subr.bf16.mxu0 0
      %1568 = vmatpush1.bf16.msra.mxu0 0
      %1569 = vmatprep.subr.bf16.mxu0 0
      %1570 = vmatpush1.bf16.msra.mxu0 0
      %1571 = vmatprep.subr.bf16.mxu0 0
      %1572 = vmatpush1.bf16.msra.mxu0 0
      %1573 = vmatprep.subr.bf16.mxu0 0
      %1574 = vmatpush1.bf16.msra.mxu0 0
      %1575 = vmatprep.subr.bf16.mxu0 0
      %1576 = vmatpush1.bf16.msra.mxu0 0
      %1577 = vmatprep.subr.bf16.mxu0 0
      %1578 = vmatpush1.bf16.msra.mxu0 0
      %1579 = vmatprep.subr.bf16.mxu0 0
      %1580 = vmatpush1.bf16.msra.mxu0 0
      %1581 = vmatprep.subr.bf16.mxu0 0
      %1582 = vmatpush1.bf16.msra.mxu0 0
      %1583 = vmatprep.mubr.bf16.mxu0 0
      %1584 = vmatmul.mubr.bf16.gmra.mrb[0].mxu0 %v1442
      %v1585 = vpop.f32.mrb[0].mxu0
      %v1586 = vadd.f32 0.0, %v1585
      %v1587 = vpop.f32.mrb[0].mxu0
      %v1588 = vadd.f32 0.0, %v1587
      %v1589 = vpop.f32.mrb[0].mxu0
      %v1590 = vadd.f32 0.0, %v1589
      %v1591 = vpop.f32.mrb[0].mxu0
      %v1592 = vadd.f32 0.0, %v1591
      %1593 = vmatprep.mubr.bf16.mxu0 0
      %1594 = vmatmul.mubr.bf16.gmra.mrb[0].mxu0 %v1444
      %v1595 = vpop.f32.mrb[0].mxu0
      %v1596 = vadd.f32 0.0, %v1595
      %v1597 = vpop.f32.mrb[0].mxu0
      %v1598 = vadd.f32 0.0, %v1597
      %v1599 = vpop.f32.mrb[0].mxu0
      %v1600 = vadd.f32 0.0, %v1599
      %v1601 = vpop.f32.mrb[0].mxu0
      %v1602 = vadd.f32 0.0, %v1601
      %1603 = vmatprep.mubr.bf16.mxu0 0
      %1604 = vmatmul.mubr.bf16.gmra.mrb[0].mxu0 %v1446
      %v1605 = vpop.f32.mrb[0].mxu0
      %v1606 = vadd.f32 0.0, %v1605
      %v1607 = vpop.f32.mrb[0].mxu0
      %v1608 = vadd.f32 0.0, %v1607
      %v1609 = vpop.f32.mrb[0].mxu0
      %v1610 = vadd.f32 0.0, %v1609
      %v1611 = vpop.f32.mrb[0].mxu0
      %v1612 = vadd.f32 0.0, %v1611
      %1613 = vmatprep.mubr.bf16.mxu0 0
      %1614 = vmatmul.mubr.bf16.gmra.mrb[0].mxu0 %v1448
      %v1615 = vpop.f32.mrb[0].mxu0
      %v1616 = vadd.f32 0.0, %v1615
      %v1617 = vpop.f32.mrb[0].mxu0
      %v1618 = vadd.f32 0.0, %v1617
      %v1619 = vpop.f32.mrb[0].mxu0
      %v1620 = vadd.f32 0.0, %v1619
      %v1621 = vpop.f32.mrb[0].mxu0
      %v1622 = vadd.f32 0.0, %v1621
      %1623 = vmatprep.mubr.bf16.mxu0 0
      %1624 = vmatmul.mubr.bf16.gmra.mrb[0].mxu0 %v1450
      %v1625 = vpop.f32.mrb[0].mxu0
      %v1626 = vadd.f32 0.0, %v1625
      %v1627 = vpop.f32.mrb[0].mxu0
      %v1628 = vadd.f32 0.0, %v1627
      %v1629 = vpop.f32.mrb[0].mxu0
      %v1630 = vadd.f32 0.0, %v1629
      %v1631 = vpop.f32.mrb[0].mxu0
      %v1632 = vadd.f32 0.0, %v1631
      %1633 = vmatprep.mubr.bf16.mxu0 0
      %1634 = vmatmul.mubr.bf16.gmra.mrb[0].mxu0 %v1452
      %v1635 = vpop.f32.mrb[0].mxu0
      %v1636 = vadd.f32 0.0, %v1635
      %v1637 = vpop.f32.mrb[0].mxu0
      %v1638 = vadd.f32 0.0, %v1637
      %v1639 = vpop.f32.mrb[0].mxu0
      %v1640 = vadd.f32 0.0, %v1639
      %v1641 = vpop.f32.mrb[0].mxu0
      %v1642 = vadd.f32 0.0, %v1641
      %1643 = vmatprep.mubr.bf16.mxu0 0
      %1644 = vmatmul.mubr.bf16.gmra.mrb[0].mxu0 %v1454
      %v1645 = vpop.f32.mrb[0].mxu0
      %v1646 = vadd.f32 0.0, %v1645
      %v1647 = vpop.f32.mrb[0].mxu0
      %v1648 = vadd.f32 0.0, %v1647
      %v1649 = vpop.f32.mrb[0].mxu0
      %v1650 = vadd.f32 0.0, %v1649
      %v1651 = vpop.f32.mrb[0].mxu0
      %v1652 = vadd.f32 0.0, %v1651
      %1653 = vmatprep.mubr.bf16.mxu0 0
      %1654 = vmatmul.mubr.bf16.gmra.mrb[0].mxu0 %v1456
      %v1655 = vpop.f32.mrb[0].mxu0
      %v1656 = vadd.f32 0.0, %v1655
      %v1657 = vpop.f32.mrb[0].mxu0
      %v1658 = vadd.f32 0.0, %v1657
      %v1659 = vpop.f32.mrb[0].mxu0
      %v1660 = vadd.f32 0.0, %v1659
      %v1661 = vpop.f32.mrb[0].mxu0
      %v1662 = vadd.f32 0.0, %v1661
      %1663 = vmatprep.mubr.bf16.mxu0 0
      %1664 = vmatmul.mubr.bf16.gmra.mrb[0].mxu0 %v1458
      %v1665 = vpop.f32.mrb[0].mxu0
      %v1666 = vadd.f32 0.0, %v1665
      %v1667 = vpop.f32.mrb[0].mxu0
      %v1668 = vadd.f32 0.0, %v1667
      %v1669 = vpop.f32.mrb[0].mxu0
      %v1670 = vadd.f32 0.0, %v1669
      %v1671 = vpop.f32.mrb[0].mxu0
      %v1672 = vadd.f32 0.0, %v1671
      %1673 = vmatprep.mubr.bf16.mxu0 0
      %1674 = vmatmul.mubr.bf16.gmra.mrb[0].mxu0 %v1460
      %v1675 = vpop.f32.mrb[0].mxu0
      %v1676 = vadd.f32 0.0, %v1675
      %v1677 = vpop.f32.mrb[0].mxu0
      %v1678 = vadd.f32 0.0, %v1677
      %v1679 = vpop.f32.mrb[0].mxu0
      %v1680 = vadd.f32 0.0, %v1679
      %v1681 = vpop.f32.mrb[0].mxu0
      %v1682 = vadd.f32 0.0, %v1681
      %1683 = vdwg.mxu0
      %v1684 = vadd.f32 %v1371, %v1586
      %v1685 = vadd.f32 %v1372, %v1588
      %v1686 = vadd.f32 %v1373, %v1590
      %v1687 = vadd.f32 %v1374, %v1592
      %v1688 = vadd.f32 %v1375, %v1596
      %v1689 = vadd.f32 %v1376, %v1598
      %v1690 = vadd.f32 %v1377, %v1600
      %v1691 = vadd.f32 %v1378, %v1602
      %v1692 = vadd.f32 %v1379, %v1606
      %v1693 = vadd.f32 %v1380, %v1608
      %v1694 = vadd.f32 %v1381, %v1610
      %v1695 = vadd.f32 %v1382, %v1612
      %v1696 = vadd.f32 %v1383, %v1616
      %v1697 = vadd.f32 %v1384, %v1618
      %v1698 = vadd.f32 %v1385, %v1620
      %v1699 = vadd.f32 %v1386, %v1622
      %v1700 = vadd.f32 %v1387, %v1626
      %v1701 = vadd.f32 %v1388, %v1628
      %v1702 = vadd.f32 %v1389, %v1630
      %v1703 = vadd.f32 %v1390, %v1632
      %v1704 = vadd.f32 %v1391, %v1636
      %v1705 = vadd.f32 %v1392, %v1638
      %v1706 = vadd.f32 %v1393, %v1640
      %v1707 = vadd.f32 %v1394, %v1642
      %v1708 = vadd.f32 %v1395, %v1646
      %v1709 = vadd.f32 %v1396, %v1648
      %v1710 = vadd.f32 %v1397, %v1650
      %v1711 = vadd.f32 %v1398, %v1652
      %v1712 = vadd.f32 %v1399, %v1656
      %v1713 = vadd.f32 %v1400, %v1658
      %v1714 = vadd.f32 %v1401, %v1660
      %v1715 = vadd.f32 %v1402, %v1662
      %v1716 = vadd.f32 %v1403, %v1666
      %v1717 = vadd.f32 %v1404, %v1668
      %v1718 = vadd.f32 %v1405, %v1670
      %v1719 = vadd.f32 %v1406, %v1672
      %v1720 = vadd.f32 %v1407, %v1676
      %v1721 = vadd.f32 %v1408, %v1678
      %v1722 = vadd.f32 %v1409, %v1680
      %v1723 = vadd.f32 %v1410, %v1682
      %v1724 = vld [vmem:[#allocation2 + $0x50] sm:$0x1f]
      %s1725 = scalar_lea.vmem %s5, 256
      %v1726 = vld [vmem:[%s1725] sm:$0xff]
      %v1727 = vld [vmem:[%s1725 + $0x8] sm:$0xff]
      %v1728 = vld [vmem:[%s1725 + $0x10] sm:$0xff]
      %v1729 = vld [vmem:[%s1725 + $0x18] sm:$0xff]
      %v1730 = vld [vmem:[%s1725 + $0x20] sm:$0xff]
      %v1731 = vld [vmem:[%s1725 + $0x28] sm:$0xff]
      %v1732 = vld [vmem:[%s1725 + $0x30] sm:$0xff]
      %v1733 = vld [vmem:[%s1725 + $0x38] sm:$0xff]
      %v1734 = vld [vmem:[%s1725 + $0x40] sm:$0xff]
      %v1735 = vld [vmem:[%s1725 + $0x48] sm:$0xff]
      %v1736 = vld [vmem:[%s1725 + $0x50] sm:$0xff]
      %v1737 = vld [vmem:[%s1725 + $0x58] sm:$0xff]
      %v1738 = vld [vmem:[%s1725 + $0x60] sm:$0xff]
      %v1739 = vld [vmem:[%s1725 + $0x68] sm:$0xff]
      %v1740 = vld [vmem:[%s1725 + $0x70] sm:$0xff]
      %v1741 = vld [vmem:[%s1725 + $0x78] sm:$0xff]
      %vm1742 = vsmask.f32 3328
      %v1744 = vshrl.u32 %v1411, 16
      %v1746 = vrot.slane %v1744, 4
      %v1747 = vshll.u32 %v1411, 16
      %v1749 = vrot.slane %v1747, 5
      %v1750 = vor.u32 %v1746, %v1749
      %v1751 = vrot.slane %v1048, 4
      %v1752 = vrot.slane %v1051, 5
      %v1753 = vor.u32 %v1751, %v1752
      %v1754 = vsel %vm1742, %v1750, %v1753
      %v1755 = vrot.slane %v1057, 4
      %v1756 = vrot.slane %v1060, 5
      %v1757 = vor.u32 %v1755, %v1756
      %v1758 = vsel %vm1742, %v1753, %v1757
      %v1759 = vrot.slane %v1066, 4
      %v1760 = vrot.slane %v1069, 5
      %v1761 = vor.u32 %v1759, %v1760
      %v1762 = vsel %vm1742, %v1757, %v1761
      %v1763 = vrot.slane %v1075, 4
      %v1764 = vrot.slane %v1078, 5
      %v1765 = vor.u32 %v1763, %v1764
      %v1766 = vsel %vm1742, %v1761, %v1765
      %v1767 = vrot.slane %v1084, 4
      %v1768 = vrot.slane %v1087, 5
      %v1769 = vor.u32 %v1767, %v1768
      %v1770 = vsel %vm1742, %v1765, %v1769
      %v1771 = vrot.slane %v1093, 4
      %v1772 = vrot.slane %v1096, 5
      %v1773 = vor.u32 %v1771, %v1772
      %v1774 = vsel %vm1742, %v1769, %v1773
      %v1775 = vrot.slane %v1102, 4
      %v1776 = vrot.slane %v1105, 5
      %v1777 = vor.u32 %v1775, %v1776
      %v1778 = vsel %vm1742, %v1773, %v1777
      %v1779 = vrot.slane %v1111, 4
      %v1780 = vrot.slane %v1114, 5
      %v1781 = vor.u32 %v1779, %v1780
      %v1782 = vsel %vm1742, %v1777, %v1781
      %v1783 = vrot.slane %v1120, 4
      %v1784 = vrot.slane %v1123, 5
      %v1785 = vor.u32 %v1783, %v1784
      %v1786 = vsel %vm1742, %v1781, %v1785
      %v1788 = vshrl.u32 %v1724, 16
      %v1790 = vrot.slane %v1788, 4
      %v1791 = vshll.u32 %v1724, 16
      %v1793 = vrot.slane %v1791, 5
      %v1794 = vor.u32 %v1790, %v1793
      %v1795 = vsel %vm1742, %v1785, %v1794
      %v1822 = vunpack.c.l.b16 %v1726
      %v1823 = vunpack.c.h.b16 %v1726
      %v1824 = vunpack.c.l.b16 %v1727
      %v1825 = vunpack.c.h.b16 %v1727
      %v1826 = vunpack.c.l.b16 %v1728
      %v1827 = vunpack.c.h.b16 %v1728
      %v1828 = vunpack.c.l.b16 %v1729
      %v1829 = vunpack.c.h.b16 %v1729
      %v1830 = vunpack.c.l.b16 %v1730
      %v1831 = vunpack.c.h.b16 %v1730
      %v1832 = vunpack.c.l.b16 %v1731
      %v1833 = vunpack.c.h.b16 %v1731
      %v1834 = vunpack.c.l.b16 %v1732
      %v1835 = vunpack.c.h.b16 %v1732
      %v1836 = vunpack.c.l.b16 %v1733
      %v1837 = vunpack.c.h.b16 %v1733
      %v1838 = vunpack.c.l.b16 %v1734
      %v1839 = vunpack.c.h.b16 %v1734
      %v1840 = vunpack.c.l.b16 %v1735
      %v1841 = vunpack.c.h.b16 %v1735
      %v1842 = vunpack.c.l.b16 %v1736
      %v1843 = vunpack.c.h.b16 %v1736
      %v1844 = vunpack.c.l.b16 %v1737
      %v1845 = vunpack.c.h.b16 %v1737
      %v1846 = vunpack.c.l.b16 %v1738
      %v1847 = vunpack.c.h.b16 %v1738
      %v1848 = vunpack.c.l.b16 %v1739
      %v1849 = vunpack.c.h.b16 %v1739
      %v1850 = vunpack.c.l.b16 %v1740
      %v1851 = vunpack.c.h.b16 %v1740
      %v1852 = vunpack.c.l.b16 %v1741
      %v1853 = vunpack.c.h.b16 %v1741
      %v1854 = vpack.c.b16 %v1824, %v1822
      %v1855 = vpack.c.b16 %v1825, %v1823
      %v1856 = vpack.c.b16 %v1828, %v1826
      %v1857 = vpack.c.b16 %v1829, %v1827
      %v1858 = vpack.c.b16 %v1832, %v1830
      %v1859 = vpack.c.b16 %v1833, %v1831
      %v1860 = vpack.c.b16 %v1836, %v1834
      %v1861 = vpack.c.b16 %v1837, %v1835
      %v1862 = vpack.c.b16 %v1840, %v1838
      %v1863 = vpack.c.b16 %v1841, %v1839
      %v1864 = vpack.c.b16 %v1844, %v1842
      %v1865 = vpack.c.b16 %v1845, %v1843
      %v1866 = vpack.c.b16 %v1848, %v1846
      %v1867 = vpack.c.b16 %v1849, %v1847
      %v1868 = vpack.c.b16 %v1852, %v1850
      %v1869 = vpack.c.b16 %v1853, %v1851
      %1886 = vmatprep.subr.bf16.mxu0 %v1855
      %1887 = vmatpush1.bf16.msra.mxu0 %v1854
      %1888 = vmatprep.subr.bf16.mxu0 %v1857
      %1889 = vmatpush1.bf16.msra.mxu0 %v1856
      %1890 = vmatprep.subr.bf16.mxu0 %v1859
      %1891 = vmatpush1.bf16.msra.mxu0 %v1858
      %1892 = vmatprep.subr.bf16.mxu0 %v1861
      %1893 = vmatpush1.bf16.msra.mxu0 %v1860
      %1894 = vmatprep.subr.bf16.mxu0 %v1863
      %1895 = vmatpush1.bf16.msra.mxu0 %v1862
      %1896 = vmatprep.subr.bf16.mxu0 %v1865
      %1897 = vmatpush1.bf16.msra.mxu0 %v1864
      %1898 = vmatprep.subr.bf16.mxu0 %v1867
      %1899 = vmatpush1.bf16.msra.mxu0 %v1866
      %1900 = vmatprep.subr.bf16.mxu0 %v1869
      %1901 = vmatpush1.bf16.msra.mxu0 %v1868
      %1902 = vmatprep.subr.bf16.mxu0 0
      %1903 = vmatpush1.bf16.msra.mxu0 0
      %1904 = vmatprep.subr.bf16.mxu0 0
      %1905 = vmatpush1.bf16.msra.mxu0 0
      %1906 = vmatprep.subr.bf16.mxu0 0
      %1907 = vmatpush1.bf16.msra.mxu0 0
      %1908 = vmatprep.subr.bf16.mxu0 0
      %1909 = vmatpush1.bf16.msra.mxu0 0
      %1910 = vmatprep.subr.bf16.mxu0 0
      %1911 = vmatpush1.bf16.msra.mxu0 0
      %1912 = vmatprep.subr.bf16.mxu0 0
      %1913 = vmatpush1.bf16.msra.mxu0 0
      %1914 = vmatprep.subr.bf16.mxu0 0
      %1915 = vmatpush1.bf16.msra.mxu0 0
      %1916 = vmatprep.subr.bf16.mxu0 0
      %1917 = vmatpush1.bf16.msra.mxu0 0
      %1918 = vmatprep.mubr.bf16.mxu0 0
      %1919 = vmatmul.mubr.bf16.gmra.mrb[0].mxu0 %v1754
      %v1920 = vpop.f32.mrb[0].mxu0
      %v1921 = vadd.f32 0.0, %v1920
      %v1922 = vpop.f32.mrb[0].mxu0
      %v1923 = vadd.f32 0.0, %v1922
      %v1924 = vpop.f32.mrb[0].mxu0
      %v1925 = vadd.f32 0.0, %v1924
      %v1926 = vpop.f32.mrb[0].mxu0
      %v1927 = vadd.f32 0.0, %v1926
      %1928 = vmatprep.mubr.bf16.mxu0 0
      %1929 = vmatmul.mubr.bf16.gmra.mrb[0].mxu0 %v1758
      %v1930 = vpop.f32.mrb[0].mxu0
      %v1931 = vadd.f32 0.0, %v1930
      %v1932 = vpop.f32.mrb[0].mxu0
      %v1933 = vadd.f32 0.0, %v1932
      %v1934 = vpop.f32.mrb[0].mxu0
      %v1935 = vadd.f32 0.0, %v1934
      %v1936 = vpop.f32.mrb[0].mxu0
      %v1937 = vadd.f32 0.0, %v1936
      %1938 = vmatprep.mubr.bf16.mxu0 0
      %1939 = vmatmul.mubr.bf16.gmra.mrb[0].mxu0 %v1762
      %v1940 = vpop.f32.mrb[0].mxu0
      %v1941 = vadd.f32 0.0, %v1940
      %v1942 = vpop.f32.mrb[0].mxu0
      %v1943 = vadd.f32 0.0, %v1942
      %v1944 = vpop.f32.mrb[0].mxu0
      %v1945 = vadd.f32 0.0, %v1944
      %v1946 = vpop.f32.mrb[0].mxu0
      %v1947 = vadd.f32 0.0, %v1946
      %1948 = vmatprep.mubr.bf16.mxu0 0
      %1949 = vmatmul.mubr.bf16.gmra.mrb[0].mxu0 %v1766
      %v1950 = vpop.f32.mrb[0].mxu0
      %v1951 = vadd.f32 0.0, %v1950
      %v1952 = vpop.f32.mrb[0].mxu0
      %v1953 = vadd.f32 0.0, %v1952
      %v1954 = vpop.f32.mrb[0].mxu0
      %v1955 = vadd.f32 0.0, %v1954
      %v1956 = vpop.f32.mrb[0].mxu0
      %v1957 = vadd.f32 0.0, %v1956
      %1958 = vmatprep.mubr.bf16.mxu0 0
      %1959 = vmatmul.mubr.bf16.gmra.mrb[0].mxu0 %v1770
      %v1960 = vpop.f32.mrb[0].mxu0
      %v1961 = vadd.f32 0.0, %v1960
      %v1962 = vpop.f32.mrb[0].mxu0
      %v1963 = vadd.f32 0.0, %v1962
      %v1964 = vpop.f32.mrb[0].mxu0
      %v1965 = vadd.f32 0.0, %v1964
      %v1966 = vpop.f32.mrb[0].mxu0
      %v1967 = vadd.f32 0.0, %v1966
      %1968 = vmatprep.mubr.bf16.mxu0 0
      %1969 = vmatmul.mubr.bf16.gmra.mrb[0].mxu0 %v1774
      %v1970 = vpop.f32.mrb[0].mxu0
      %v1971 = vadd.f32 0.0, %v1970
      %v1972 = vpop.f32.mrb[0].mxu0
      %v1973 = vadd.f32 0.0, %v1972
      %v1974 = vpop.f32.mrb[0].mxu0
      %v1975 = vadd.f32 0.0, %v1974
      %v1976 = vpop.f32.mrb[0].mxu0
      %v1977 = vadd.f32 0.0, %v1976
      %1978 = vmatprep.mubr.bf16.mxu0 0
      %1979 = vmatmul.mubr.bf16.gmra.mrb[0].mxu0 %v1778
      %v1980 = vpop.f32.mrb[0].mxu0
      %v1981 = vadd.f32 0.0, %v1980
      %v1982 = vpop.f32.mrb[0].mxu0
      %v1983 = vadd.f32 0.0, %v1982
      %v1984 = vpop.f32.mrb[0].mxu0
      %v1985 = vadd.f32 0.0, %v1984
      %v1986 = vpop.f32.mrb[0].mxu0
      %v1987 = vadd.f32 0.0, %v1986
      %1988 = vmatprep.mubr.bf16.mxu0 0
      %1989 = vmatmul.mubr.bf16.gmra.mrb[0].mxu0 %v1782
      %v1990 = vpop.f32.mrb[0].mxu0
      %v1991 = vadd.f32 0.0, %v1990
      %v1992 = vpop.f32.mrb[0].mxu0
      %v1993 = vadd.f32 0.0, %v1992
      %v1994 = vpop.f32.mrb[0].mxu0
      %v1995 = vadd.f32 0.0, %v1994
      %v1996 = vpop.f32.mrb[0].mxu0
      %v1997 = vadd.f32 0.0, %v1996
      %1998 = vmatprep.mubr.bf16.mxu0 0
      %1999 = vmatmul.mubr.bf16.gmra.mrb[0].mxu0 %v1786
      %v2000 = vpop.f32.mrb[0].mxu0
      %v2001 = vadd.f32 0.0, %v2000
      %v2002 = vpop.f32.mrb[0].mxu0
      %v2003 = vadd.f32 0.0, %v2002
      %v2004 = vpop.f32.mrb[0].mxu0
      %v2005 = vadd.f32 0.0, %v2004
      %v2006 = vpop.f32.mrb[0].mxu0
      %v2007 = vadd.f32 0.0, %v2006
      %2008 = vmatprep.mubr.bf16.mxu0 0
      %2009 = vmatmul.mubr.bf16.gmra.mrb[0].mxu0 %v1795
      %v2010 = vpop.f32.mrb[0].mxu0
      %v2011 = vadd.f32 0.0, %v2010
      %v2012 = vpop.f32.mrb[0].mxu0
      %v2013 = vadd.f32 0.0, %v2012
      %v2014 = vpop.f32.mrb[0].mxu0
      %v2015 = vadd.f32 0.0, %v2014
      %v2016 = vpop.f32.mrb[0].mxu0
      %v2017 = vadd.f32 0.0, %v2016
      %2018 = vdwg.mxu0
      %v2019 = vadd.f32 %v1684, %v1921
      %v2020 = vadd.f32 %v1685, %v1923
      %v2021 = vadd.f32 %v1686, %v1925
      %v2022 = vadd.f32 %v1687, %v1927
      %v2023 = vadd.f32 %v1688, %v1931
      %v2024 = vadd.f32 %v1689, %v1933
      %v2025 = vadd.f32 %v1690, %v1935
      %v2026 = vadd.f32 %v1691, %v1937
      %v2027 = vadd.f32 %v1692, %v1941
      %v2028 = vadd.f32 %v1693, %v1943
      %v2029 = vadd.f32 %v1694, %v1945
      %v2030 = vadd.f32 %v1695, %v1947
      %v2031 = vadd.f32 %v1696, %v1951
      %v2032 = vadd.f32 %v1697, %v1953
      %v2033 = vadd.f32 %v1698, %v1955
      %v2034 = vadd.f32 %v1699, %v1957
      %v2035 = vadd.f32 %v1700, %v1961
      %v2036 = vadd.f32 %v1701, %v1963
      %v2037 = vadd.f32 %v1702, %v1965
      %v2038 = vadd.f32 %v1703, %v1967
      %v2039 = vadd.f32 %v1704, %v1971
      %v2040 = vadd.f32 %v1705, %v1973
      %v2041 = vadd.f32 %v1706, %v1975
      %v2042 = vadd.f32 %v1707, %v1977
      %v2043 = vadd.f32 %v1708, %v1981
      %v2044 = vadd.f32 %v1709, %v1983
      %v2045 = vadd.f32 %v1710, %v1985
      %v2046 = vadd.f32 %v1711, %v1987
      %v2047 = vadd.f32 %v1712, %v1991
      %v2048 = vadd.f32 %v1713, %v1993
      %v2049 = vadd.f32 %v1714, %v1995
      %v2050 = vadd.f32 %v1715, %v1997
      %v2051 = vadd.f32 %v1716, %v2001
      %v2052 = vadd.f32 %v1717, %v2003
      %v2053 = vadd.f32 %v1718, %v2005
      %v2054 = vadd.f32 %v1719, %v2007
      %v2055 = vadd.f32 %v1720, %v2011
      %v2056 = vadd.f32 %v1721, %v2013
      %v2057 = vadd.f32 %v1722, %v2015
      %v2058 = vadd.f32 %v1723, %v2017
      %v2059 = vtanh.pop %v2019
      %v2060 = vtanh.pop %v2021
      %v2061 = vtanh.pop %v2023
      %v2062 = vtanh.pop %v2025
      %v2063 = vtanh.pop %v2027
      %v2064 = vtanh.pop %v2029
      %v2065 = vtanh.pop %v2031
      %v2066 = vtanh.pop %v2033
      %v2067 = vtanh.pop %v2035
      %v2068 = vtanh.pop %v2037
      %v2069 = vtanh.pop %v2039
      %v2070 = vtanh.pop %v2041
      %v2071 = vtanh.pop %v2043
      %v2072 = vtanh.pop %v2045
      %v2073 = vtanh.pop %v2047
      %v2074 = vtanh.pop %v2049
      %v2075 = vtanh.pop %v2051
      %v2076 = vtanh.pop %v2053
      %v2077 = vtanh.pop %v2055
      %v2078 = vtanh.pop %v2057
      %v2079 = vxor.u32 %v2020, 2147483648
      %v2080 = vxor.u32 %v2022, 2147483648
      %v2081 = vxor.u32 %v2024, 2147483648
      %v2082 = vxor.u32 %v2026, 2147483648
      %v2083 = vxor.u32 %v2028, 2147483648
      %v2084 = vxor.u32 %v2030, 2147483648
      %v2085 = vxor.u32 %v2032, 2147483648
      %v2086 = vxor.u32 %v2034, 2147483648
      %v2087 = vxor.u32 %v2036, 2147483648
      %v2088 = vxor.u32 %v2038, 2147483648
      %v2089 = vxor.u32 %v2040, 2147483648
      %v2090 = vxor.u32 %v2042, 2147483648
      %v2091 = vxor.u32 %v2044, 2147483648
      %v2092 = vxor.u32 %v2046, 2147483648
      %v2093 = vxor.u32 %v2048, 2147483648
      %v2094 = vxor.u32 %v2050, 2147483648
      %v2095 = vxor.u32 %v2052, 2147483648
      %v2096 = vxor.u32 %v2054, 2147483648
      %v2097 = vxor.u32 %v2056, 2147483648
      %v2098 = vxor.u32 %v2058, 2147483648
      %v2099 = vmul.f32 %v2079, 1.442695
      %v2100 = vpow.pop %v2099
      %v2101 = vmul.f32 %v2080, 1.442695
      %v2102 = vpow.pop %v2101
      %v2103 = vmul.f32 %v2081, 1.442695
      %v2104 = vpow.pop %v2103
      %v2105 = vmul.f32 %v2082, 1.442695
      %v2106 = vpow.pop %v2105
      %v2107 = vmul.f32 %v2083, 1.442695
      %v2108 = vpow.pop %v2107
      %v2109 = vmul.f32 %v2084, 1.442695
      %v2110 = vpow.pop %v2109
      %v2111 = vmul.f32 %v2085, 1.442695
      %v2112 = vpow.pop %v2111
      %v2113 = vmul.f32 %v2086, 1.442695
      %v2114 = vpow.pop %v2113
      %v2115 = vmul.f32 %v2087, 1.442695
      %v2116 = vpow.pop %v2115
      %v2117 = vmul.f32 %v2088, 1.442695
      %v2118 = vpow.pop %v2117
      %v2119 = vmul.f32 %v2089, 1.442695
      %v2120 = vpow.pop %v2119
      %v2121 = vmul.f32 %v2090, 1.442695
      %v2122 = vpow.pop %v2121
      %v2123 = vmul.f32 %v2091, 1.442695
      %v2124 = vpow.pop %v2123
      %v2125 = vmul.f32 %v2092, 1.442695
      %v2126 = vpow.pop %v2125
      %v2127 = vmul.f32 %v2093, 1.442695
      %v2128 = vpow.pop %v2127
      %v2129 = vmul.f32 %v2094, 1.442695
      %v2130 = vpow.pop %v2129
      %v2131 = vmul.f32 %v2095, 1.442695
      %v2132 = vpow.pop %v2131
      %v2133 = vmul.f32 %v2096, 1.442695
      %v2134 = vpow.pop %v2133
      %v2135 = vmul.f32 %v2097, 1.442695
      %v2136 = vpow.pop %v2135
      %v2137 = vmul.f32 %v2098, 1.442695
      %v2138 = vpow.pop %v2137
      %v2139 = vadd.f32 %v2100, 1.0
      %v2140 = vadd.f32 %v2102, 1.0
      %v2141 = vadd.f32 %v2104, 1.0
      %v2142 = vadd.f32 %v2106, 1.0
      %v2143 = vadd.f32 %v2108, 1.0
      %v2144 = vadd.f32 %v2110, 1.0
      %v2145 = vadd.f32 %v2112, 1.0
      %v2146 = vadd.f32 %v2114, 1.0
      %v2147 = vadd.f32 %v2116, 1.0
      %v2148 = vadd.f32 %v2118, 1.0
      %v2149 = vadd.f32 %v2120, 1.0
      %v2150 = vadd.f32 %v2122, 1.0
      %v2151 = vadd.f32 %v2124, 1.0
      %v2152 = vadd.f32 %v2126, 1.0
      %v2153 = vadd.f32 %v2128, 1.0
      %v2154 = vadd.f32 %v2130, 1.0
      %v2155 = vadd.f32 %v2132, 1.0
      %v2156 = vadd.f32 %v2134, 1.0
      %v2157 = vadd.f32 %v2136, 1.0
      %v2158 = vadd.f32 %v2138, 1.0
      %v2159 = vrcp.pop %v2139
      %v2160 = vmul.f32 1.0, %v2159
      %v2161 = vrcp.pop %v2140
      %v2162 = vmul.f32 1.0, %v2161
      %v2163 = vrcp.pop %v2141
      %v2164 = vmul.f32 1.0, %v2163
      %v2165 = vrcp.pop %v2142
      %v2166 = vmul.f32 1.0, %v2165
      %v2167 = vrcp.pop %v2143
      %v2168 = vmul.f32 1.0, %v2167
      %v2169 = vrcp.pop %v2144
      %v2170 = vmul.f32 1.0, %v2169
      %v2171 = vrcp.pop %v2145
      %v2172 = vmul.f32 1.0, %v2171
      %v2173 = vrcp.pop %v2146
      %v2174 = vmul.f32 1.0, %v2173
      %v2175 = vrcp.pop %v2147
      %v2176 = vmul.f32 1.0, %v2175
      %v2177 = vrcp.pop %v2148
      %v2178 = vmul.f32 1.0, %v2177
      %v2179 = vrcp.pop %v2149
      %v2180 = vmul.f32 1.0, %v2179
      %v2181 = vrcp.pop %v2150
      %v2182 = vmul.f32 1.0, %v2181
      %v2183 = vrcp.pop %v2151
      %v2184 = vmul.f32 1.0, %v2183
      %v2185 = vrcp.pop %v2152
      %v2186 = vmul.f32 1.0, %v2185
      %v2187 = vrcp.pop %v2153
      %v2188 = vmul.f32 1.0, %v2187
      %v2189 = vrcp.pop %v2154
      %v2190 = vmul.f32 1.0, %v2189
      %v2191 = vrcp.pop %v2155
      %v2192 = vmul.f32 1.0, %v2191
      %v2193 = vrcp.pop %v2156
      %v2194 = vmul.f32 1.0, %v2193
      %v2195 = vrcp.pop %v2157
      %v2196 = vmul.f32 1.0, %v2195
      %v2197 = vrcp.pop %v2158
      %v2198 = vmul.f32 1.0, %v2197
      %v2199 = vmul.f32 %v2059, %v2160
      %v2200 = vmul.f32 %v2060, %v2162
      %v2201 = vmul.f32 %v2061, %v2164
      %v2202 = vmul.f32 %v2062, %v2166
      %v2203 = vmul.f32 %v2063, %v2168
      %v2204 = vmul.f32 %v2064, %v2170
      %v2205 = vmul.f32 %v2065, %v2172
      %v2206 = vmul.f32 %v2066, %v2174
      %v2207 = vmul.f32 %v2067, %v2176
      %v2208 = vmul.f32 %v2068, %v2178
      %v2209 = vmul.f32 %v2069, %v2180
      %v2210 = vmul.f32 %v2070, %v2182
      %v2211 = vmul.f32 %v2071, %v2184
      %v2212 = vmul.f32 %v2072, %v2186
      %v2213 = vmul.f32 %v2073, %v2188
      %v2214 = vmul.f32 %v2074, %v2190
      %v2215 = vmul.f32 %v2075, %v2192
      %v2216 = vmul.f32 %v2076, %v2194
      %v2217 = vmul.f32 %v2077, %v2196
      %v2218 = vmul.f32 %v2078, %v2198
      %v2219 = vpack.c.bf16 %v2200, %v2199
      %v2220 = vpack.c.bf16 %v2202, %v2201
      %v2221 = vpack.c.bf16 %v2204, %v2203
      %v2222 = vpack.c.bf16 %v2206, %v2205
      %v2223 = vpack.c.bf16 %v2208, %v2207
      %v2224 = vpack.c.bf16 %v2210, %v2209
      %v2225 = vpack.c.bf16 %v2212, %v2211
      %v2226 = vpack.c.bf16 %v2214, %v2213
      %v2227 = vpack.c.bf16 %v2216, %v2215
      %v2228 = vpack.c.bf16 %v2218, %v2217
      %v2229 = vld [vmem:[%s6] sm:$0xff]
      %v2230 = vld [vmem:[%s6 + $0x8] sm:$0xff]
      %v2231 = vld [vmem:[%s6 + $0x10] sm:$0xff]
      %v2232 = vld [vmem:[%s6 + $0x18] sm:$0xff]
      %v2233 = vld [vmem:[%s6 + $0x20] sm:$0xff]
      %v2234 = vld [vmem:[%s6 + $0x28] sm:$0xff]
      %v2235 = vld [vmem:[%s6 + $0x30] sm:$0xff]
      %v2236 = vld [vmem:[%s6 + $0x38] sm:$0xff]
      %v2237 = vld [vmem:[%s6 + $0x40] sm:$0xff]
      %v2238 = vld [vmem:[%s6 + $0x48] sm:$0xff]
      %v2239 = vld [vmem:[%s6 + $0x50] sm:$0xff]
      %v2240 = vld [vmem:[%s6 + $0x58] sm:$0xff]
      %v2241 = vld [vmem:[%s6 + $0x60] sm:$0xff]
      %v2242 = vld [vmem:[%s6 + $0x68] sm:$0xff]
      %v2243 = vld [vmem:[%s6 + $0x70] sm:$0xff]
      %v2244 = vld [vmem:[%s6 + $0x78] sm:$0xff]
      %v2245 = vld [vmem:[%s7] sm:$0x3]
      %v2247 = vlaneseq
      %v2248 = vshrl.u32 %v2247, 7
      %v2249 = vsub.s32 0, %v2248
      %v2250 = vrot.slane %v2245, %v2249
      %v2251 = vlaneseq
      %v2252 = vshrl.u32 %v2251, 7
      %v2253 = vsub.s32 1, %v2252
      %v2254 = vrot.slane %v2245, %v2253
      %v2273 = vunpack.c.l.b16 %v2229
      %v2274 = vunpack.c.h.b16 %v2229
      %v2275 = vunpack.c.l.b16 %v2230
      %v2276 = vunpack.c.h.b16 %v2230
      %v2277 = vunpack.c.l.b16 %v2231
      %v2278 = vunpack.c.h.b16 %v2231
      %v2279 = vunpack.c.l.b16 %v2232
      %v2280 = vunpack.c.h.b16 %v2232
      %v2281 = vunpack.c.l.b16 %v2233
      %v2282 = vunpack.c.h.b16 %v2233
      %v2283 = vunpack.c.l.b16 %v2234
      %v2284 = vunpack.c.h.b16 %v2234
      %v2285 = vunpack.c.l.b16 %v2235
      %v2286 = vunpack.c.h.b16 %v2235
      %v2287 = vunpack.c.l.b16 %v2236
      %v2288 = vunpack.c.h.b16 %v2236
      %v2289 = vunpack.c.l.b16 %v2237
      %v2290 = vunpack.c.h.b16 %v2237
      %v2291 = vunpack.c.l.b16 %v2238
      %v2292 = vunpack.c.h.b16 %v2238
      %v2293 = vunpack.c.l.b16 %v2239
      %v2294 = vunpack.c.h.b16 %v2239
      %v2295 = vunpack.c.l.b16 %v2240
      %v2296 = vunpack.c.h.b16 %v2240
      %v2297 = vunpack.c.l.b16 %v2241
      %v2298 = vunpack.c.h.b16 %v2241
      %v2299 = vunpack.c.l.b16 %v2242
      %v2300 = vunpack.c.h.b16 %v2242
      %v2301 = vunpack.c.l.b16 %v2243
      %v2302 = vunpack.c.h.b16 %v2243
      %v2303 = vunpack.c.l.b16 %v2244
      %v2304 = vunpack.c.h.b16 %v2244
      %v2305 = vpack.c.b16 %v2275, %v2273
      %v2306 = vpack.c.b16 %v2276, %v2274
      %v2307 = vpack.c.b16 %v2279, %v2277
      %v2308 = vpack.c.b16 %v2280, %v2278
      %v2309 = vpack.c.b16 %v2283, %v2281
      %v2310 = vpack.c.b16 %v2284, %v2282
      %v2311 = vpack.c.b16 %v2287, %v2285
      %v2312 = vpack.c.b16 %v2288, %v2286
      %v2313 = vpack.c.b16 %v2291, %v2289
      %v2314 = vpack.c.b16 %v2292, %v2290
      %v2315 = vpack.c.b16 %v2295, %v2293
      %v2316 = vpack.c.b16 %v2296, %v2294
      %v2317 = vpack.c.b16 %v2299, %v2297
      %v2318 = vpack.c.b16 %v2300, %v2298
      %v2319 = vpack.c.b16 %v2303, %v2301
      %v2320 = vpack.c.b16 %v2304, %v2302
      %2337 = vmatprep.subr.bf16.mxu0 %v2306
      %2338 = vmatpush1.bf16.msra.mxu0 %v2305
      %2339 = vmatprep.subr.bf16.mxu0 %v2308
      %2340 = vmatpush1.bf16.msra.mxu0 %v2307
      %2341 = vmatprep.subr.bf16.mxu0 %v2310
      %2342 = vmatpush1.bf16.msra.mxu0 %v2309
      %2343 = vmatprep.subr.bf16.mxu0 %v2312
      %2344 = vmatpush1.bf16.msra.mxu0 %v2311
      %2345 = vmatprep.subr.bf16.mxu0 %v2314
      %2346 = vmatpush1.bf16.msra.mxu0 %v2313
      %2347 = vmatprep.subr.bf16.mxu0 %v2316
      %2348 = vmatpush1.bf16.msra.mxu0 %v2315
      %2349 = vmatprep.subr.bf16.mxu0 %v2318
      %2350 = vmatpush1.bf16.msra.mxu0 %v2317
      %2351 = vmatprep.subr.bf16.mxu0 %v2320
      %2352 = vmatpush1.bf16.msra.mxu0 %v2319
      %2353 = vmatprep.subr.bf16.mxu0 0
      %2354 = vmatpush1.bf16.msra.mxu0 0
      %2355 = vmatprep.subr.bf16.mxu0 0
      %2356 = vmatpush1.bf16.msra.mxu0 0
      %2357 = vmatprep.subr.bf16.mxu0 0
      %2358 = vmatpush1.bf16.msra.mxu0 0
      %2359 = vmatprep.subr.bf16.mxu0 0
      %2360 = vmatpush1.bf16.msra.mxu0 0
      %2361 = vmatprep.subr.bf16.mxu0 0
      %2362 = vmatpush1.bf16.msra.mxu0 0
      %2363 = vmatprep.subr.bf16.mxu0 0
      %2364 = vmatpush1.bf16.msra.mxu0 0
      %2365 = vmatprep.subr.bf16.mxu0 0
      %2366 = vmatpush1.bf16.msra.mxu0 0
      %2367 = vmatprep.subr.bf16.mxu0 0
      %2368 = vmatpush1.bf16.msra.mxu0 0
      %2369 = vmatprep.mubr.bf16.mxu0 0
      %2370 = vmatmul.mubr.bf16.gmra.mrb[0].mxu0 %v2219
      %v2371 = vpop.f32.mrb[0].mxu0
      %v2372 = vadd.f32 %v2250, %v2371
      %v2373 = vpop.f32.mrb[0].mxu0
      %v2374 = vadd.f32 %v2254, %v2373
      %v2375 = vpop.f32.mrb[0].mxu0
      %v2376 = vadd.f32 %v2250, %v2375
      %v2377 = vpop.f32.mrb[0].mxu0
      %v2378 = vadd.f32 %v2254, %v2377
      %2379 = vmatprep.mubr.bf16.mxu0 0
      %2380 = vmatmul.mubr.bf16.gmra.mrb[0].mxu0 %v2220
      %v2381 = vpop.f32.mrb[0].mxu0
      %v2382 = vadd.f32 %v2250, %v2381
      %v2383 = vpop.f32.mrb[0].mxu0
      %v2384 = vadd.f32 %v2254, %v2383
      %v2385 = vpop.f32.mrb[0].mxu0
      %v2386 = vadd.f32 %v2250, %v2385
      %v2387 = vpop.f32.mrb[0].mxu0
      %v2388 = vadd.f32 %v2254, %v2387
      %2389 = vmatprep.mubr.bf16.mxu0 0
      %2390 = vmatmul.mubr.bf16.gmra.mrb[0].mxu0 %v2221
      %v2391 = vpop.f32.mrb[0].mxu0
      %v2392 = vadd.f32 %v2250, %v2391
      %v2393 = vpop.f32.mrb[0].mxu0
      %v2394 = vadd.f32 %v2254, %v2393
      %v2395 = vpop.f32.mrb[0].mxu0
      %v2396 = vadd.f32 %v2250, %v2395
      %v2397 = vpop.f32.mrb[0].mxu0
      %v2398 = vadd.f32 %v2254, %v2397
      %2399 = vmatprep.mubr.bf16.mxu0 0
      %2400 = vmatmul.mubr.bf16.gmra.mrb[0].mxu0 %v2222
      %v2401 = vpop.f32.mrb[0].mxu0
      %v2402 = vadd.f32 %v2250, %v2401
      %v2403 = vpop.f32.mrb[0].mxu0
      %v2404 = vadd.f32 %v2254, %v2403
      %v2405 = vpop.f32.mrb[0].mxu0
      %v2406 = vadd.f32 %v2250, %v2405
      %v2407 = vpop.f32.mrb[0].mxu0
      %v2408 = vadd.f32 %v2254, %v2407
      %2409 = vmatprep.mubr.bf16.mxu0 0
      %2410 = vmatmul.mubr.bf16.gmra.mrb[0].mxu0 %v2223
      %v2411 = vpop.f32.mrb[0].mxu0
      %v2412 = vadd.f32 %v2250, %v2411
      %v2413 = vpop.f32.mrb[0].mxu0
      %v2414 = vadd.f32 %v2254, %v2413
      %v2415 = vpop.f32.mrb[0].mxu0
      %v2416 = vadd.f32 %v2250, %v2415
      %v2417 = vpop.f32.mrb[0].mxu0
      %v2418 = vadd.f32 %v2254, %v2417
      %2419 = vmatprep.mubr.bf16.mxu0 0
      %2420 = vmatmul.mubr.bf16.gmra.mrb[0].mxu0 %v2224
      %v2421 = vpop.f32.mrb[0].mxu0
      %v2422 = vadd.f32 %v2250, %v2421
      %v2423 = vpop.f32.mrb[0].mxu0
      %v2424 = vadd.f32 %v2254, %v2423
      %v2425 = vpop.f32.mrb[0].mxu0
      %v2426 = vadd.f32 %v2250, %v2425
      %v2427 = vpop.f32.mrb[0].mxu0
      %v2428 = vadd.f32 %v2254, %v2427
      %2429 = vmatprep.mubr.bf16.mxu0 0
      %2430 = vmatmul.mubr.bf16.gmra.mrb[0].mxu0 %v2225
      %v2431 = vpop.f32.mrb[0].mxu0
      %v2432 = vadd.f32 %v2250, %v2431
      %v2433 = vpop.f32.mrb[0].mxu0
      %v2434 = vadd.f32 %v2254, %v2433
      %v2435 = vpop.f32.mrb[0].mxu0
      %v2436 = vadd.f32 %v2250, %v2435
      %v2437 = vpop.f32.mrb[0].mxu0
      %v2438 = vadd.f32 %v2254, %v2437
      %2439 = vmatprep.mubr.bf16.mxu0 0
      %2440 = vmatmul.mubr.bf16.gmra.mrb[0].mxu0 %v2226
      %v2441 = vpop.f32.mrb[0].mxu0
      %v2442 = vadd.f32 %v2250, %v2441
      %v2443 = vpop.f32.mrb[0].mxu0
      %v2444 = vadd.f32 %v2254, %v2443
      %v2445 = vpop.f32.mrb[0].mxu0
      %v2446 = vadd.f32 %v2250, %v2445
      %v2447 = vpop.f32.mrb[0].mxu0
      %v2448 = vadd.f32 %v2254, %v2447
      %2449 = vmatprep.mubr.bf16.mxu0 0
      %2450 = vmatmul.mubr.bf16.gmra.mrb[0].mxu0 %v2227
      %v2451 = vpop.f32.mrb[0].mxu0
      %v2452 = vadd.f32 %v2250, %v2451
      %v2453 = vpop.f32.mrb[0].mxu0
      %v2454 = vadd.f32 %v2254, %v2453
      %v2455 = vpop.f32.mrb[0].mxu0
      %v2456 = vadd.f32 %v2250, %v2455
      %v2457 = vpop.f32.mrb[0].mxu0
      %v2458 = vadd.f32 %v2254, %v2457
      %2459 = vmatprep.mubr.bf16.mxu0 0
      %2460 = vmatmul.mubr.bf16.gmra.mrb[0].mxu0 %v2228
      %v2461 = vpop.f32.mrb[0].mxu0
      %v2462 = vadd.f32 %v2250, %v2461
      %v2463 = vpop.f32.mrb[0].mxu0
      %v2464 = vadd.f32 %v2254, %v2463
      %v2465 = vpop.f32.mrb[0].mxu0
      %v2466 = vadd.f32 %v2250, %v2465
      %v2467 = vpop.f32.mrb[0].mxu0
      %v2468 = vadd.f32 %v2254, %v2467
      %2469 = vdwg.mxu0
      %v2470 = vadd.f32 %v928, %v2372
      %v2471 = vadd.f32 %v929, %v2376
      %v2472 = vadd.f32 %v930, %v2382
      %v2473 = vadd.f32 %v931, %v2386
      %v2474 = vadd.f32 %v932, %v2392
      %v2475 = vadd.f32 %v933, %v2396
      %v2476 = vadd.f32 %v934, %v2402
      %v2477 = vadd.f32 %v935, %v2406
      %v2478 = vadd.f32 %v936, %v2412
      %v2479 = vadd.f32 %v937, %v2416
      %v2480 = vadd.f32 %v938, %v2422
      %v2481 = vadd.f32 %v939, %v2426
      %v2482 = vadd.f32 %v940, %v2432
      %v2483 = vadd.f32 %v941, %v2436
      %v2484 = vadd.f32 %v942, %v2442
      %v2485 = vadd.f32 %v943, %v2446
      %v2486 = vadd.f32 %v944, %v2452
      %v2487 = vadd.f32 %v945, %v2456
      %v2488 = vadd.f32 %v946, %v2462
      %v2489 = vadd.f32 %v947, %v2466
      %v2490 = vmul.f32 %v2470, %v831
      %v2491 = vmul.f32 %v2471, %v836
      %v2492 = vmul.f32 %v2472, %v841
      %v2493 = vmul.f32 %v2473, %v846
      %v2494 = vmul.f32 %v2474, %v851
      %v2495 = vmul.f32 %v2475, %v856
      %v2496 = vmul.f32 %v2476, %v861
      %v2497 = vmul.f32 %v2477, %v866
      %v2498 = vmul.f32 %v2478, %v871
      %v2499 = vmul.f32 %v2479, %v876
      %v2500 = vmul.f32 %v2480, %v881
      %v2501 = vmul.f32 %v2481, %v886
      %v2502 = vmul.f32 %v2482, %v891
      %v2503 = vmul.f32 %v2483, %v896
      %v2504 = vmul.f32 %v2484, %v901
      %v2505 = vmul.f32 %v2485, %v906
      %v2506 = vmul.f32 %v2486, %v911
      %v2507 = vmul.f32 %v2487, %v916
      %v2508 = vmul.f32 %v2488, %v921
      %v2509 = vmul.f32 %v2489, %v926
      %v2510 = vadd.f32 %v2374, 0.0
      %v2511 = vadd.f32 %v2378, 0.0
      %v2512 = vadd.f32 %v2384, 0.0
      %v2513 = vadd.f32 %v2388, 0.0
      %v2514 = vadd.f32 %v2394, 0.0
      %v2515 = vadd.f32 %v2398, 0.0
      %v2516 = vadd.f32 %v2404, 0.0
      %v2517 = vadd.f32 %v2408, 0.0
      %v2518 = vadd.f32 %v2414, 0.0
      %v2519 = vadd.f32 %v2418, 0.0
      %v2520 = vadd.f32 %v2424, 0.0
      %v2521 = vadd.f32 %v2428, 0.0
      %v2522 = vadd.f32 %v2434, 0.0
      %v2523 = vadd.f32 %v2438, 0.0
      %v2524 = vadd.f32 %v2444, 0.0
      %v2525 = vadd.f32 %v2448, 0.0
      %v2526 = vadd.f32 %v2454, 0.0
      %v2527 = vadd.f32 %v2458, 0.0
      %v2528 = vadd.f32 %v2464, 0.0
      %v2529 = vadd.f32 %v2468, 0.0
      %v2530 = vpack.c.bf16 %v2491, %v2490
      %v2531 = vpack.c.bf16 %v2493, %v2492
      %v2532 = vpack.c.bf16 %v2495, %v2494
      %v2533 = vpack.c.bf16 %v2497, %v2496
      %v2534 = vpack.c.bf16 %v2499, %v2498
      %v2535 = vpack.c.bf16 %v2501, %v2500
      %v2536 = vpack.c.bf16 %v2503, %v2502
      %v2537 = vpack.c.bf16 %v2505, %v2504
      %v2538 = vpack.c.bf16 %v2507, %v2506
      %v2539 = vpack.c.bf16 %v2509, %v2508
      %v2550 = vrot.slane %v2530, 4
      %v2551 = vrot.slane %v2531, 4
      %v2552 = vsel %vm968, %v2550, %v2551
      %v2553 = vrot.slane %v2532, 4
      %v2554 = vsel %vm968, %v2551, %v2553
      %v2555 = vrot.slane %v2533, 4
      %v2556 = vsel %vm968, %v2553, %v2555
      %v2557 = vrot.slane %v2534, 4
      %v2558 = vsel %vm968, %v2555, %v2557
      %v2559 = vrot.slane %v2535, 4
      %v2560 = vsel %vm968, %v2557, %v2559
      %v2561 = vrot.slane %v2536, 4
      %v2562 = vsel %vm968, %v2559, %v2561
      %v2563 = vrot.slane %v2537, 4
      %v2564 = vsel %vm968, %v2561, %v2563
      %v2565 = vrot.slane %v2538, 4
      %v2566 = vsel %vm968, %v2563, %v2565
      %v2567 = vrot.slane %v2539, 4
      %v2568 = vsel %vm968, %v2565, %v2567
      %2580 = vst [vmem:[#allocation2] sm:$0xf0] %v2550
      %2581 = vst [vmem:[#allocation2 + $0x8] sm:$0xff] %v2552
      %2582 = vst [vmem:[#allocation2 + $0x10] sm:$0xff] %v2554
      %2583 = vst [vmem:[#allocation2 + $0x18] sm:$0xff] %v2556
      %2584 = vst [vmem:[#allocation2 + $0x20] sm:$0xff] %v2558
      %2585 = vst [vmem:[#allocation2 + $0x28] sm:$0xff] %v2560
      %2586 = vst [vmem:[#allocation2 + $0x30] sm:$0xff] %v2562
      %2587 = vst [vmem:[#allocation2 + $0x38] sm:$0xff] %v2564
      %2588 = vst [vmem:[#allocation2 + $0x40] sm:$0xff] %v2566
      %2589 = vst [vmem:[#allocation2 + $0x48] sm:$0xff] %v2568
      %2590 = vst [vmem:[#allocation2 + $0x50] sm:$0xf] %v2567
      %s2591 = scalar_lea.vmem %s437, 2
      %v2592 = vld [vmem:[%s2591] sm:$0x3]
      %v2593 = vld [vmem:[#allocation2] sm:$0xf8]
      %v2594 = vld [vmem:[#allocation2 + $0x8] sm:$0xff]
      %v2595 = vld [vmem:[#allocation2 + $0x10] sm:$0xff]
      %v2596 = vld [vmem:[#allocation2 + $0x18] sm:$0xff]
      %v2597 = vld [vmem:[#allocation2 + $0x20] sm:$0xff]
      %v2598 = vld [vmem:[#allocation2 + $0x28] sm:$0xff]
      %v2599 = vld [vmem:[#allocation2 + $0x30] sm:$0xff]
      %v2600 = vld [vmem:[#allocation2 + $0x38] sm:$0xff]
      %v2601 = vld [vmem:[#allocation2 + $0x40] sm:$0xff]
      %v2602 = vld [vmem:[#allocation2 + $0x48] sm:$0xff]
      %v2603 = vld [vmem:[#allocation2 + $0x50] sm:$0x7]
      %s2604 = scalar_lea.vmem %s5, 384
      %v2605 = vld [vmem:[%s2604] sm:$0xff]
      %v2606 = vld [vmem:[%s2604 + $0x8] sm:$0xff]
      %v2607 = vld [vmem:[%s2604 + $0x10] sm:$0xff]
      %v2608 = vld [vmem:[%s2604 + $0x18] sm:$0xff]
      %v2609 = vld [vmem:[%s2604 + $0x20] sm:$0xff]
      %v2610 = vld [vmem:[%s2604 + $0x28] sm:$0xff]
      %v2611 = vld [vmem:[%s2604 + $0x30] sm:$0xff]
      %v2612 = vld [vmem:[%s2604 + $0x38] sm:$0xff]
      %v2613 = vld [vmem:[%s2604 + $0x40] sm:$0xff]
      %v2614 = vld [vmem:[%s2604 + $0x48] sm:$0xff]
      %v2615 = vld [vmem:[%s2604 + $0x50] sm:$0xff]
      %v2616 = vld [vmem:[%s2604 + $0x58] sm:$0xff]
      %v2617 = vld [vmem:[%s2604 + $0x60] sm:$0xff]
      %v2618 = vld [vmem:[%s2604 + $0x68] sm:$0xff]
      %v2619 = vld [vmem:[%s2604 + $0x70] sm:$0xff]
      %v2620 = vld [vmem:[%s2604 + $0x78] sm:$0xff]
      %vm2632 = vcmask 1044480
      %v2633 = vrot.slane %v2593, 3
      %v2634 = vrot.slane %v2594, 3
      %v2635 = vsel %vm2632, %v2633, %v2634
      %v2636 = vrot.slane %v2595, 3
      %v2637 = vsel %vm2632, %v2634, %v2636
      %v2638 = vrot.slane %v2596, 3
      %v2639 = vsel %vm2632, %v2636, %v2638
      %v2640 = vrot.slane %v2597, 3
      %v2641 = vsel %vm2632, %v2638, %v2640
      %v2642 = vrot.slane %v2598, 3
      %v2643 = vsel %vm2632, %v2640, %v2642
      %v2644 = vrot.slane %v2599, 3
      %v2645 = vsel %vm2632, %v2642, %v2644
      %v2646 = vrot.slane %v2600, 3
      %v2647 = vsel %vm2632, %v2644, %v2646
      %v2648 = vrot.slane %v2601, 3
      %v2649 = vsel %vm2632, %v2646, %v2648
      %v2650 = vrot.slane %v2602, 3
      %v2651 = vsel %vm2632, %v2648, %v2650
      %v2652 = vrot.slane %v2603, 3
      %v2653 = vsel %vm2632, %v2650, %v2652
      %v2680 = vunpack.c.l.b16 %v2605
      %v2681 = vunpack.c.h.b16 %v2605
      %v2682 = vunpack.c.l.b16 %v2606
      %v2683 = vunpack.c.h.b16 %v2606
      %v2684 = vunpack.c.l.b16 %v2607
      %v2685 = vunpack.c.h.b16 %v2607
      %v2686 = vunpack.c.l.b16 %v2608
      %v2687 = vunpack.c.h.b16 %v2608
      %v2688 = vunpack.c.l.b16 %v2609
      %v2689 = vunpack.c.h.b16 %v2609
      %v2690 = vunpack.c.l.b16 %v2610
      %v2691 = vunpack.c.h.b16 %v2610
      %v2692 = vunpack.c.l.b16 %v2611
      %v2693 = vunpack.c.h.b16 %v2611
      %v2694 = vunpack.c.l.b16 %v2612
      %v2695 = vunpack.c.h.b16 %v2612
      %v2696 = vunpack.c.l.b16 %v2613
      %v2697 = vunpack.c.h.b16 %v2613
      %v2698 = vunpack.c.l.b16 %v2614
      %v2699 = vunpack.c.h.b16 %v2614
      %v2700 = vunpack.c.l.b16 %v2615
      %v2701 = vunpack.c.h.b16 %v2615
      %v2702 = vunpack.c.l.b16 %v2616
      %v2703 = vunpack.c.h.b16 %v2616
      %v2704 = vunpack.c.l.b16 %v2617
      %v2705 = vunpack.c.h.b16 %v2617
      %v2706 = vunpack.c.l.b16 %v2618
      %v2707 = vunpack.c.h.b16 %v2618
      %v2708 = vunpack.c.l.b16 %v2619
      %v2709 = vunpack.c.h.b16 %v2619
      %v2710 = vunpack.c.l.b16 %v2620
      %v2711 = vunpack.c.h.b16 %v2620
      %v2712 = vpack.c.b16 %v2682, %v2680
      %v2713 = vpack.c.b16 %v2683, %v2681
      %v2714 = vpack.c.b16 %v2686, %v2684
      %v2715 = vpack.c.b16 %v2687, %v2685
      %v2716 = vpack.c.b16 %v2690, %v2688
      %v2717 = vpack.c.b16 %v2691, %v2689
      %v2718 = vpack.c.b16 %v2694, %v2692
      %v2719 = vpack.c.b16 %v2695, %v2693
      %v2720 = vpack.c.b16 %v2698, %v2696
      %v2721 = vpack.c.b16 %v2699, %v2697
      %v2722 = vpack.c.b16 %v2702, %v2700
      %v2723 = vpack.c.b16 %v2703, %v2701
      %v2724 = vpack.c.b16 %v2706, %v2704
      %v2725 = vpack.c.b16 %v2707, %v2705
      %v2726 = vpack.c.b16 %v2710, %v2708
      %v2727 = vpack.c.b16 %v2711, %v2709
      %2744 = vmatprep.subr.bf16.mxu0 %v2713
      %2745 = vmatpush1.bf16.msra.mxu0 %v2712
      %2746 = vmatprep.subr.bf16.mxu0 %v2715
      %2747 = vmatpush1.bf16.msra.mxu0 %v2714
      %2748 = vmatprep.subr.bf16.mxu0 %v2717
      %2749 = vmatpush1.bf16.msra.mxu0 %v2716
      %2750 = vmatprep.subr.bf16.mxu0 %v2719
      %2751 = vmatpush1.bf16.msra.mxu0 %v2718
      %2752 = vmatprep.subr.bf16.mxu0 %v2721
      %2753 = vmatpush1.bf16.msra.mxu0 %v2720
      %2754 = vmatprep.subr.bf16.mxu0 %v2723
      %2755 = vmatpush1.bf16.msra.mxu0 %v2722
      %2756 = vmatprep.subr.bf16.mxu0 %v2725
      %2757 = vmatpush1.bf16.msra.mxu0 %v2724
      %2758 = vmatprep.subr.bf16.mxu0 %v2727
      %2759 = vmatpush1.bf16.msra.mxu0 %v2726
      %2760 = vmatprep.subr.bf16.mxu0 0
      %2761 = vmatpush1.bf16.msra.mxu0 0
      %2762 = vmatprep.subr.bf16.mxu0 0
      %2763 = vmatpush1.bf16.msra.mxu0 0
      %2764 = vmatprep.subr.bf16.mxu0 0
      %2765 = vmatpush1.bf16.msra.mxu0 0
      %2766 = vmatprep.subr.bf16.mxu0 0
      %2767 = vmatpush1.bf16.msra.mxu0 0
      %2768 = vmatprep.subr.bf16.mxu0 0
      %2769 = vmatpush1.bf16.msra.mxu0 0
      %2770 = vmatprep.subr.bf16.mxu0 0
      %2771 = vmatpush1.bf16.msra.mxu0 0
      %2772 = vmatprep.subr.bf16.mxu0 0
      %2773 = vmatpush1.bf16.msra.mxu0 0
      %2774 = vmatprep.subr.bf16.mxu0 0
      %2775 = vmatpush1.bf16.msra.mxu0 0
      %2776 = vmatprep.mubr.bf16.mxu0 0
      %2777 = vmatmul.mubr.bf16.gmra.mrb[0].mxu0 %v2635
      %v2778 = vpop.f32.mrb[0].mxu0
      %v2779 = vadd.f32 0.0, %v2778
      %v2780 = vpop.f32.mrb[0].mxu0
      %v2781 = vadd.f32 0.0, %v2780
      %v2782 = vpop.f32.mrb[0].mxu0
      %v2783 = vadd.f32 0.0, %v2782
      %v2784 = vpop.f32.mrb[0].mxu0
      %v2785 = vadd.f32 0.0, %v2784
      %2786 = vmatprep.mubr.bf16.mxu0 0
      %2787 = vmatmul.mubr.bf16.gmra.mrb[0].mxu0 %v2637
      %v2788 = vpop.f32.mrb[0].mxu0
      %v2789 = vadd.f32 0.0, %v2788
      %v2790 = vpop.f32.mrb[0].mxu0
      %v2791 = vadd.f32 0.0, %v2790
      %v2792 = vpop.f32.mrb[0].mxu0
      %v2793 = vadd.f32 0.0, %v2792
      %v2794 = vpop.f32.mrb[0].mxu0
      %v2795 = vadd.f32 0.0, %v2794
      %2796 = vmatprep.mubr.bf16.mxu0 0
      %2797 = vmatmul.mubr.bf16.gmra.mrb[0].mxu0 %v2639
      %v2798 = vpop.f32.mrb[0].mxu0
      %v2799 = vadd.f32 0.0, %v2798
      %v2800 = vpop.f32.mrb[0].mxu0
      %v2801 = vadd.f32 0.0, %v2800
      %v2802 = vpop.f32.mrb[0].mxu0
      %v2803 = vadd.f32 0.0, %v2802
      %v2804 = vpop.f32.mrb[0].mxu0
      %v2805 = vadd.f32 0.0, %v2804
      %2806 = vmatprep.mubr.bf16.mxu0 0
      %2807 = vmatmul.mubr.bf16.gmra.mrb[0].mxu0 %v2641
      %v2808 = vpop.f32.mrb[0].mxu0
      %v2809 = vadd.f32 0.0, %v2808
      %v2810 = vpop.f32.mrb[0].mxu0
      %v2811 = vadd.f32 0.0, %v2810
      %v2812 = vpop.f32.mrb[0].mxu0
      %v2813 = vadd.f32 0.0, %v2812
      %v2814 = vpop.f32.mrb[0].mxu0
      %v2815 = vadd.f32 0.0, %v2814
      %2816 = vmatprep.mubr.bf16.mxu0 0
      %2817 = vmatmul.mubr.bf16.gmra.mrb[0].mxu0 %v2643
      %v2818 = vpop.f32.mrb[0].mxu0
      %v2819 = vadd.f32 0.0, %v2818
      %v2820 = vpop.f32.mrb[0].mxu0
      %v2821 = vadd.f32 0.0, %v2820
      %v2822 = vpop.f32.mrb[0].mxu0
      %v2823 = vadd.f32 0.0, %v2822
      %v2824 = vpop.f32.mrb[0].mxu0
      %v2825 = vadd.f32 0.0, %v2824
      %2826 = vmatprep.mubr.bf16.mxu0 0
      %2827 = vmatmul.mubr.bf16.gmra.mrb[0].mxu0 %v2645
      %v2828 = vpop.f32.mrb[0].mxu0
      %v2829 = vadd.f32 0.0, %v2828
      %v2830 = vpop.f32.mrb[0].mxu0
      %v2831 = vadd.f32 0.0, %v2830
      %v2832 = vpop.f32.mrb[0].mxu0
      %v2833 = vadd.f32 0.0, %v2832
      %v2834 = vpop.f32.mrb[0].mxu0
      %v2835 = vadd.f32 0.0, %v2834
      %2836 = vmatprep.mubr.bf16.mxu0 0
      %2837 = vmatmul.mubr.bf16.gmra.mrb[0].mxu0 %v2647
      %v2838 = vpop.f32.mrb[0].mxu0
      %v2839 = vadd.f32 0.0, %v2838
      %v2840 = vpop.f32.mrb[0].mxu0
      %v2841 = vadd.f32 0.0, %v2840
      %v2842 = vpop.f32.mrb[0].mxu0
      %v2843 = vadd.f32 0.0, %v2842
      %v2844 = vpop.f32.mrb[0].mxu0
      %v2845 = vadd.f32 0.0, %v2844
      %2846 = vmatprep.mubr.bf16.mxu0 0
      %2847 = vmatmul.mubr.bf16.gmra.mrb[0].mxu0 %v2649
      %v2848 = vpop.f32.mrb[0].mxu0
      %v2849 = vadd.f32 0.0, %v2848
      %v2850 = vpop.f32.mrb[0].mxu0
      %v2851 = vadd.f32 0.0, %v2850
      %v2852 = vpop.f32.mrb[0].mxu0
      %v2853 = vadd.f32 0.0, %v2852
      %v2854 = vpop.f32.mrb[0].mxu0
      %v2855 = vadd.f32 0.0, %v2854
      %2856 = vmatprep.mubr.bf16.mxu0 0
      %2857 = vmatmul.mubr.bf16.gmra.mrb[0].mxu0 %v2651
      %v2858 = vpop.f32.mrb[0].mxu0
      %v2859 = vadd.f32 0.0, %v2858
      %v2860 = vpop.f32.mrb[0].mxu0
      %v2861 = vadd.f32 0.0, %v2860
      %v2862 = vpop.f32.mrb[0].mxu0
      %v2863 = vadd.f32 0.0, %v2862
      %v2864 = vpop.f32.mrb[0].mxu0
      %v2865 = vadd.f32 0.0, %v2864
      %2866 = vmatprep.mubr.bf16.mxu0 0
      %2867 = vmatmul.mubr.bf16.gmra.mrb[0].mxu0 %v2653
      %v2868 = vpop.f32.mrb[0].mxu0
      %v2869 = vadd.f32 0.0, %v2868
      %v2870 = vpop.f32.mrb[0].mxu0
      %v2871 = vadd.f32 0.0, %v2870
      %v2872 = vpop.f32.mrb[0].mxu0
      %v2873 = vadd.f32 0.0, %v2872
      %v2874 = vpop.f32.mrb[0].mxu0
      %v2875 = vadd.f32 0.0, %v2874
      %2876 = vdwg.mxu0
      %v2878 = vlaneseq
      %v2879 = vshrl.u32 %v2878, 7
      %v2880 = vsub.s32 0, %v2879
      %v2881 = vrot.slane %v2592, %v2880
      %v2882 = vlaneseq
      %v2883 = vshrl.u32 %v2882, 7
      %v2884 = vsub.s32 1, %v2883
      %v2885 = vrot.slane %v2592, %v2884
      %v2888 = vadd.f32 %v2881, %v2779
      %v2889 = vadd.f32 %v2885, %v2781
      %v2890 = vadd.f32 %v2881, %v2783
      %v2891 = vadd.f32 %v2885, %v2785
      %v2892 = vadd.f32 %v2881, %v2789
      %v2893 = vadd.f32 %v2885, %v2791
      %v2894 = vadd.f32 %v2881, %v2793
      %v2895 = vadd.f32 %v2885, %v2795
      %v2896 = vadd.f32 %v2881, %v2799
      %v2897 = vadd.f32 %v2885, %v2801
      %v2898 = vadd.f32 %v2881, %v2803
      %v2899 = vadd.f32 %v2885, %v2805
      %v2900 = vadd.f32 %v2881, %v2809
      %v2901 = vadd.f32 %v2885, %v2811
      %v2902 = vadd.f32 %v2881, %v2813
      %v2903 = vadd.f32 %v2885, %v2815
      %v2904 = vadd.f32 %v2881, %v2819
      %v2905 = vadd.f32 %v2885, %v2821
      %v2906 = vadd.f32 %v2881, %v2823
      %v2907 = vadd.f32 %v2885, %v2825
      %v2908 = vadd.f32 %v2881, %v2829
      %v2909 = vadd.f32 %v2885, %v2831
      %v2910 = vadd.f32 %v2881, %v2833
      %v2911 = vadd.f32 %v2885, %v2835
      %v2912 = vadd.f32 %v2881, %v2839
      %v2913 = vadd.f32 %v2885, %v2841
      %v2914 = vadd.f32 %v2881, %v2843
      %v2915 = vadd.f32 %v2885, %v2845
      %v2916 = vadd.f32 %v2881, %v2849
      %v2917 = vadd.f32 %v2885, %v2851
      %v2918 = vadd.f32 %v2881, %v2853
      %v2919 = vadd.f32 %v2885, %v2855
      %v2920 = vadd.f32 %v2881, %v2859
      %v2921 = vadd.f32 %v2885, %v2861
      %v2922 = vadd.f32 %v2881, %v2863
      %v2923 = vadd.f32 %v2885, %v2865
      %v2924 = vadd.f32 %v2881, %v2869
      %v2925 = vadd.f32 %v2885, %v2871
      %v2926 = vadd.f32 %v2881, %v2873
      %v2927 = vadd.f32 %v2885, %v2875
      %v2928 = vld [vmem:[#allocation2] sm:$0xf0]
      %v2929 = vld [vmem:[#allocation2 + $0x50] sm:$0xf]
      %s2930 = scalar_lea.vmem %s5, 512
      %v2931 = vld [vmem:[%s2930] sm:$0xff]
      %v2932 = vld [vmem:[%s2930 + $0x8] sm:$0xff]
      %v2933 = vld [vmem:[%s2930 + $0x10] sm:$0xff]
      %v2934 = vld [vmem:[%s2930 + $0x18] sm:$0xff]
      %v2935 = vld [vmem:[%s2930 + $0x20] sm:$0xff]
      %v2936 = vld [vmem:[%s2930 + $0x28] sm:$0xff]
      %v2937 = vld [vmem:[%s2930 + $0x30] sm:$0xff]
      %v2938 = vld [vmem:[%s2930 + $0x38] sm:$0xff]
      %v2939 = vld [vmem:[%s2930 + $0x40] sm:$0xff]
      %v2940 = vld [vmem:[%s2930 + $0x48] sm:$0xff]
      %v2941 = vld [vmem:[%s2930 + $0x50] sm:$0xff]
      %v2942 = vld [vmem:[%s2930 + $0x58] sm:$0xff]
      %v2943 = vld [vmem:[%s2930 + $0x60] sm:$0xff]
      %v2944 = vld [vmem:[%s2930 + $0x68] sm:$0xff]
      %v2945 = vld [vmem:[%s2930 + $0x70] sm:$0xff]
      %v2946 = vld [vmem:[%s2930 + $0x78] sm:$0xff]
      %v2949 = vrot.slane %v2928, 4
      %v2950 = vrot.slane %v2594, 4
      %v2951 = vsel %vm968, %v2949, %v2950
      %v2952 = vrot.slane %v2595, 4
      %v2953 = vsel %vm968, %v2950, %v2952
      %v2954 = vrot.slane %v2596, 4
      %v2955 = vsel %vm968, %v2952, %v2954
      %v2956 = vrot.slane %v2597, 4
      %v2957 = vsel %vm968, %v2954, %v2956
      %v2958 = vrot.slane %v2598, 4
      %v2959 = vsel %vm968, %v2956, %v2958
      %v2960 = vrot.slane %v2599, 4
      %v2961 = vsel %vm968, %v2958, %v2960
      %v2962 = vrot.slane %v2600, 4
      %v2963 = vsel %vm968, %v2960, %v2962
      %v2964 = vrot.slane %v2601, 4
      %v2965 = vsel %vm968, %v2962, %v2964
      %v2966 = vrot.slane %v2602, 4
      %v2967 = vsel %vm968, %v2964, %v2966
      %v2968 = vrot.slane %v2929, 4
      %v2969 = vsel %vm968, %v2966, %v2968
      %v2996 = vunpack.c.l.b16 %v2931
      %v2997 = vunpack.c.h.b16 %v2931
      %v2998 = vunpack.c.l.b16 %v2932
      %v2999 = vunpack.c.h.b16 %v2932
      %v3000 = vunpack.c.l.b16 %v2933
      %v3001 = vunpack.c.h.b16 %v2933
      %v3002 = vunpack.c.l.b16 %v2934
      %v3003 = vunpack.c.h.b16 %v2934
      %v3004 = vunpack.c.l.b16 %v2935
      %v3005 = vunpack.c.h.b16 %v2935
      %v3006 = vunpack.c.l.b16 %v2936
      %v3007 = vunpack.c.h.b16 %v2936
      %v3008 = vunpack.c.l.b16 %v2937
      %v3009 = vunpack.c.h.b16 %v2937
      %v3010 = vunpack.c.l.b16 %v2938
      %v3011 = vunpack.c.h.b16 %v2938
      %v3012 = vunpack.c.l.b16 %v2939
      %v3013 = vunpack.c.h.b16 %v2939
      %v3014 = vunpack.c.l.b16 %v2940
      %v3015 = vunpack.c.h.b16 %v2940
      %v3016 = vunpack.c.l.b16 %v2941
      %v3017 = vunpack.c.h.b16 %v2941
      %v3018 = vunpack.c.l.b16 %v2942
      %v3019 = vunpack.c.h.b16 %v2942
      %v3020 = vunpack.c.l.b16 %v2943
      %v3021 = vunpack.c.h.b16 %v2943
      %v3022 = vunpack.c.l.b16 %v2944
      %v3023 = vunpack.c.h.b16 %v2944
      %v3024 = vunpack.c.l.b16 %v2945
      %v3025 = vunpack.c.h.b16 %v2945
      %v3026 = vunpack.c.l.b16 %v2946
      %v3027 = vunpack.c.h.b16 %v2946
      %v3028 = vpack.c.b16 %v2998, %v2996
      %v3029 = vpack.c.b16 %v2999, %v2997
      %v3030 = vpack.c.b16 %v3002, %v3000
      %v3031 = vpack.c.b16 %v3003, %v3001
      %v3032 = vpack.c.b16 %v3006, %v3004
      %v3033 = vpack.c.b16 %v3007, %v3005
      %v3034 = vpack.c.b16 %v3010, %v3008
      %v3035 = vpack.c.b16 %v3011, %v3009
      %v3036 = vpack.c.b16 %v3014, %v3012
      %v3037 = vpack.c.b16 %v3015, %v3013
      %v3038 = vpack.c.b16 %v3018, %v3016
      %v3039 = vpack.c.b16 %v3019, %v3017
      %v3040 = vpack.c.b16 %v3022, %v3020
      %v3041 = vpack.c.b16 %v3023, %v3021
      %v3042 = vpack.c.b16 %v3026, %v3024
      %v3043 = vpack.c.b16 %v3027, %v3025
      %3060 = vmatprep.subr.bf16.mxu0 %v3029
      %3061 = vmatpush1.bf16.msra.mxu0 %v3028
      %3062 = vmatprep.subr.bf16.mxu0 %v3031
      %3063 = vmatpush1.bf16.msra.mxu0 %v3030
      %3064 = vmatprep.subr.bf16.mxu0 %v3033
      %3065 = vmatpush1.bf16.msra.mxu0 %v3032
      %3066 = vmatprep.subr.bf16.mxu0 %v3035
      %3067 = vmatpush1.bf16.msra.mxu0 %v3034
      %3068 = vmatprep.subr.bf16.mxu0 %v3037
      %3069 = vmatpush1.bf16.msra.mxu0 %v3036
      %3070 = vmatprep.subr.bf16.mxu0 %v3039
      %3071 = vmatpush1.bf16.msra.mxu0 %v3038
      %3072 = vmatprep.subr.bf16.mxu0 %v3041
      %3073 = vmatpush1.bf16.msra.mxu0 %v3040
      %3074 = vmatprep.subr.bf16.mxu0 %v3043
      %3075 = vmatpush1.bf16.msra.mxu0 %v3042
      %3076 = vmatprep.subr.bf16.mxu0 0
      %3077 = vmatpush1.bf16.msra.mxu0 0
      %3078 = vmatprep.subr.bf16.mxu0 0
      %3079 = vmatpush1.bf16.msra.mxu0 0
      %3080 = vmatprep.subr.bf16.mxu0 0
      %3081 = vmatpush1.bf16.msra.mxu0 0
      %3082 = vmatprep.subr.bf16.mxu0 0
      %3083 = vmatpush1.bf16.msra.mxu0 0
      %3084 = vmatprep.subr.bf16.mxu0 0
      %3085 = vmatpush1.bf16.msra.mxu0 0
      %3086 = vmatprep.subr.bf16.mxu0 0
      %3087 = vmatpush1.bf16.msra.mxu0 0
      %3088 = vmatprep.subr.bf16.mxu0 0
      %3089 = vmatpush1.bf16.msra.mxu0 0
      %3090 = vmatprep.subr.bf16.mxu0 0
      %3091 = vmatpush1.bf16.msra.mxu0 0
      %3092 = vmatprep.mubr.bf16.mxu0 0
      %3093 = vmatmul.mubr.bf16.gmra.mrb[0].mxu0 %v2951
      %v3094 = vpop.f32.mrb[0].mxu0
      %v3095 = vadd.f32 0.0, %v3094
      %v3096 = vpop.f32.mrb[0].mxu0
      %v3097 = vadd.f32 0.0, %v3096
      %v3098 = vpop.f32.mrb[0].mxu0
      %v3099 = vadd.f32 0.0, %v3098
      %v3100 = vpop.f32.mrb[0].mxu0
      %v3101 = vadd.f32 0.0, %v3100
      %3102 = vmatprep.mubr.bf16.mxu0 0
      %3103 = vmatmul.mubr.bf16.gmra.mrb[0].mxu0 %v2953
      %v3104 = vpop.f32.mrb[0].mxu0
      %v3105 = vadd.f32 0.0, %v3104
      %v3106 = vpop.f32.mrb[0].mxu0
      %v3107 = vadd.f32 0.0, %v3106
      %v3108 = vpop.f32.mrb[0].mxu0
      %v3109 = vadd.f32 0.0, %v3108
      %v3110 = vpop.f32.mrb[0].mxu0
      %v3111 = vadd.f32 0.0, %v3110
      %3112 = vmatprep.mubr.bf16.mxu0 0
      %3113 = vmatmul.mubr.bf16.gmra.mrb[0].mxu0 %v2955
      %v3114 = vpop.f32.mrb[0].mxu0
      %v3115 = vadd.f32 0.0, %v3114
      %v3116 = vpop.f32.mrb[0].mxu0
      %v3117 = vadd.f32 0.0, %v3116
      %v3118 = vpop.f32.mrb[0].mxu0
      %v3119 = vadd.f32 0.0, %v3118
      %v3120 = vpop.f32.mrb[0].mxu0
      %v3121 = vadd.f32 0.0, %v3120
      %3122 = vmatprep.mubr.bf16.mxu0 0
      %3123 = vmatmul.mubr.bf16.gmra.mrb[0].mxu0 %v2957
      %v3124 = vpop.f32.mrb[0].mxu0
      %v3125 = vadd.f32 0.0, %v3124
      %v3126 = vpop.f32.mrb[0].mxu0
      %v3127 = vadd.f32 0.0, %v3126
      %v3128 = vpop.f32.mrb[0].mxu0
      %v3129 = vadd.f32 0.0, %v3128
      %v3130 = vpop.f32.mrb[0].mxu0
      %v3131 = vadd.f32 0.0, %v3130
      %3132 = vmatprep.mubr.bf16.mxu0 0
      %3133 = vmatmul.mubr.bf16.gmra.mrb[0].mxu0 %v2959
      %v3134 = vpop.f32.mrb[0].mxu0
      %v3135 = vadd.f32 0.0, %v3134
      %v3136 = vpop.f32.mrb[0].mxu0
      %v3137 = vadd.f32 0.0, %v3136
      %v3138 = vpop.f32.mrb[0].mxu0
      %v3139 = vadd.f32 0.0, %v3138
      %v3140 = vpop.f32.mrb[0].mxu0
      %v3141 = vadd.f32 0.0, %v3140
      %3142 = vmatprep.mubr.bf16.mxu0 0
      %3143 = vmatmul.mubr.bf16.gmra.mrb[0].mxu0 %v2961
      %v3144 = vpop.f32.mrb[0].mxu0
      %v3145 = vadd.f32 0.0, %v3144
      %v3146 = vpop.f32.mrb[0].mxu0
      %v3147 = vadd.f32 0.0, %v3146
      %v3148 = vpop.f32.mrb[0].mxu0
      %v3149 = vadd.f32 0.0, %v3148
      %v3150 = vpop.f32.mrb[0].mxu0
      %v3151 = vadd.f32 0.0, %v3150
      %3152 = vmatprep.mubr.bf16.mxu0 0
      %3153 = vmatmul.mubr.bf16.gmra.mrb[0].mxu0 %v2963
      %v3154 = vpop.f32.mrb[0].mxu0
      %v3155 = vadd.f32 0.0, %v3154
      %v3156 = vpop.f32.mrb[0].mxu0
      %v3157 = vadd.f32 0.0, %v3156
      %v3158 = vpop.f32.mrb[0].mxu0
      %v3159 = vadd.f32 0.0, %v3158
      %v3160 = vpop.f32.mrb[0].mxu0
      %v3161 = vadd.f32 0.0, %v3160
      %3162 = vmatprep.mubr.bf16.mxu0 0
      %3163 = vmatmul.mubr.bf16.gmra.mrb[0].mxu0 %v2965
      %v3164 = vpop.f32.mrb[0].mxu0
      %v3165 = vadd.f32 0.0, %v3164
      %v3166 = vpop.f32.mrb[0].mxu0
      %v3167 = vadd.f32 0.0, %v3166
      %v3168 = vpop.f32.mrb[0].mxu0
      %v3169 = vadd.f32 0.0, %v3168
      %v3170 = vpop.f32.mrb[0].mxu0
      %v3171 = vadd.f32 0.0, %v3170
      %3172 = vmatprep.mubr.bf16.mxu0 0
      %3173 = vmatmul.mubr.bf16.gmra.mrb[0].mxu0 %v2967
      %v3174 = vpop.f32.mrb[0].mxu0
      %v3175 = vadd.f32 0.0, %v3174
      %v3176 = vpop.f32.mrb[0].mxu0
      %v3177 = vadd.f32 0.0, %v3176
      %v3178 = vpop.f32.mrb[0].mxu0
      %v3179 = vadd.f32 0.0, %v3178
      %v3180 = vpop.f32.mrb[0].mxu0
      %v3181 = vadd.f32 0.0, %v3180
      %3182 = vmatprep.mubr.bf16.mxu0 0
      %3183 = vmatmul.mubr.bf16.gmra.mrb[0].mxu0 %v2969
      %v3184 = vpop.f32.mrb[0].mxu0
      %v3185 = vadd.f32 0.0, %v3184
      %v3186 = vpop.f32.mrb[0].mxu0
      %v3187 = vadd.f32 0.0, %v3186
      %v3188 = vpop.f32.mrb[0].mxu0
      %v3189 = vadd.f32 0.0, %v3188
      %v3190 = vpop.f32.mrb[0].mxu0
      %v3191 = vadd.f32 0.0, %v3190
      %3192 = vdwg.mxu0
      %v3193 = vadd.f32 %v2888, %v3095
      %v3194 = vadd.f32 %v2889, %v3097
      %v3195 = vadd.f32 %v2890, %v3099
      %v3196 = vadd.f32 %v2891, %v3101
      %v3197 = vadd.f32 %v2892, %v3105
      %v3198 = vadd.f32 %v2893, %v3107
      %v3199 = vadd.f32 %v2894, %v3109
      %v3200 = vadd.f32 %v2895, %v3111
      %v3201 = vadd.f32 %v2896, %v3115
      %v3202 = vadd.f32 %v2897, %v3117
      %v3203 = vadd.f32 %v2898, %v3119
      %v3204 = vadd.f32 %v2899, %v3121
      %v3205 = vadd.f32 %v2900, %v3125
      %v3206 = vadd.f32 %v2901, %v3127
      %v3207 = vadd.f32 %v2902, %v3129
      %v3208 = vadd.f32 %v2903, %v3131
      %v3209 = vadd.f32 %v2904, %v3135
      %v3210 = vadd.f32 %v2905, %v3137
      %v3211 = vadd.f32 %v2906, %v3139
      %v3212 = vadd.f32 %v2907, %v3141
      %v3213 = vadd.f32 %v2908, %v3145
      %v3214 = vadd.f32 %v2909, %v3147
      %v3215 = vadd.f32 %v2910, %v3149
      %v3216 = vadd.f32 %v2911, %v3151
      %v3217 = vadd.f32 %v2912, %v3155
      %v3218 = vadd.f32 %v2913, %v3157
      %v3219 = vadd.f32 %v2914, %v3159
      %v3220 = vadd.f32 %v2915, %v3161
      %v3221 = vadd.f32 %v2916, %v3165
      %v3222 = vadd.f32 %v2917, %v3167
      %v3223 = vadd.f32 %v2918, %v3169
      %v3224 = vadd.f32 %v2919, %v3171
      %v3225 = vadd.f32 %v2920, %v3175
      %v3226 = vadd.f32 %v2921, %v3177
      %v3227 = vadd.f32 %v2922, %v3179
      %v3228 = vadd.f32 %v2923, %v3181
      %v3229 = vadd.f32 %v2924, %v3185
      %v3230 = vadd.f32 %v2925, %v3187
      %v3231 = vadd.f32 %v2926, %v3189
      %v3232 = vadd.f32 %v2927, %v3191
      %v3233 = vld [vmem:[#allocation2] sm:$0xe0]
      %v3234 = vld [vmem:[#allocation2 + $0x50] sm:$0x1f]
      %s3235 = scalar_lea.vmem %s5, 640
      %v3236 = vld [vmem:[%s3235] sm:$0xff]
      %v3237 = vld [vmem:[%s3235 + $0x8] sm:$0xff]
      %v3238 = vld [vmem:[%s3235 + $0x10] sm:$0xff]
      %v3239 = vld [vmem:[%s3235 + $0x18] sm:$0xff]
      %v3240 = vld [vmem:[%s3235 + $0x20] sm:$0xff]
      %v3241 = vld [vmem:[%s3235 + $0x28] sm:$0xff]
      %v3242 = vld [vmem:[%s3235 + $0x30] sm:$0xff]
      %v3243 = vld [vmem:[%s3235 + $0x38] sm:$0xff]
      %v3244 = vld [vmem:[%s3235 + $0x40] sm:$0xff]
      %v3245 = vld [vmem:[%s3235 + $0x48] sm:$0xff]
      %v3246 = vld [vmem:[%s3235 + $0x50] sm:$0xff]
      %v3247 = vld [vmem:[%s3235 + $0x58] sm:$0xff]
      %v3248 = vld [vmem:[%s3235 + $0x60] sm:$0xff]
      %v3249 = vld [vmem:[%s3235 + $0x68] sm:$0xff]
      %v3250 = vld [vmem:[%s3235 + $0x70] sm:$0xff]
      %v3251 = vld [vmem:[%s3235 + $0x78] sm:$0xff]
      %vm3254 = vcmask 1042432
      %v3255 = vrot.slane %v3233, 5
      %v3256 = vrot.slane %v2594, 5
      %v3257 = vsel %vm3254, %v3255, %v3256
      %v3258 = vrot.slane %v2595, 5
      %v3259 = vsel %vm3254, %v3256, %v3258
      %v3260 = vrot.slane %v2596, 5
      %v3261 = vsel %vm3254, %v3258, %v3260
      %v3262 = vrot.slane %v2597, 5
      %v3263 = vsel %vm3254, %v3260, %v3262
      %v3264 = vrot.slane %v2598, 5
      %v3265 = vsel %vm3254, %v3262, %v3264
      %v3266 = vrot.slane %v2599, 5
      %v3267 = vsel %vm3254, %v3264, %v3266
      %v3268 = vrot.slane %v2600, 5
      %v3269 = vsel %vm3254, %v3266, %v3268
      %v3270 = vrot.slane %v2601, 5
      %v3271 = vsel %vm3254, %v3268, %v3270
      %v3272 = vrot.slane %v2602, 5
      %v3273 = vsel %vm3254, %v3270, %v3272
      %v3274 = vrot.slane %v3234, 5
      %v3275 = vsel %vm3254, %v3272, %v3274
      %v3302 = vunpack.c.l.b16 %v3236
      %v3303 = vunpack.c.h.b16 %v3236
      %v3304 = vunpack.c.l.b16 %v3237
      %v3305 = vunpack.c.h.b16 %v3237
      %v3306 = vunpack.c.l.b16 %v3238
      %v3307 = vunpack.c.h.b16 %v3238
      %v3308 = vunpack.c.l.b16 %v3239
      %v3309 = vunpack.c.h.b16 %v3239
      %v3310 = vunpack.c.l.b16 %v3240
      %v3311 = vunpack.c.h.b16 %v3240
      %v3312 = vunpack.c.l.b16 %v3241
      %v3313 = vunpack.c.h.b16 %v3241
      %v3314 = vunpack.c.l.b16 %v3242
      %v3315 = vunpack.c.h.b16 %v3242
      %v3316 = vunpack.c.l.b16 %v3243
      %v3317 = vunpack.c.h.b16 %v3243
      %v3318 = vunpack.c.l.b16 %v3244
      %v3319 = vunpack.c.h.b16 %v3244
      %v3320 = vunpack.c.l.b16 %v3245
      %v3321 = vunpack.c.h.b16 %v3245
      %v3322 = vunpack.c.l.b16 %v3246
      %v3323 = vunpack.c.h.b16 %v3246
      %v3324 = vunpack.c.l.b16 %v3247
      %v3325 = vunpack.c.h.b16 %v3247
      %v3326 = vunpack.c.l.b16 %v3248
      %v3327 = vunpack.c.h.b16 %v3248
      %v3328 = vunpack.c.l.b16 %v3249
      %v3329 = vunpack.c.h.b16 %v3249
      %v3330 = vunpack.c.l.b16 %v3250
      %v3331 = vunpack.c.h.b16 %v3250
      %v3332 = vunpack.c.l.b16 %v3251
      %v3333 = vunpack.c.h.b16 %v3251
      %v3334 = vpack.c.b16 %v3304, %v3302
      %v3335 = vpack.c.b16 %v3305, %v3303
      %v3336 = vpack.c.b16 %v3308, %v3306
      %v3337 = vpack.c.b16 %v3309, %v3307
      %v3338 = vpack.c.b16 %v3312, %v3310
      %v3339 = vpack.c.b16 %v3313, %v3311
      %v3340 = vpack.c.b16 %v3316, %v3314
      %v3341 = vpack.c.b16 %v3317, %v3315
      %v3342 = vpack.c.b16 %v3320, %v3318
      %v3343 = vpack.c.b16 %v3321, %v3319
      %v3344 = vpack.c.b16 %v3324, %v3322
      %v3345 = vpack.c.b16 %v3325, %v3323
      %v3346 = vpack.c.b16 %v3328, %v3326
      %v3347 = vpack.c.b16 %v3329, %v3327
      %v3348 = vpack.c.b16 %v3332, %v3330
      %v3349 = vpack.c.b16 %v3333, %v3331
      %3366 = vmatprep.subr.bf16.mxu0 %v3335
      %3367 = vmatpush1.bf16.msra.mxu0 %v3334
      %3368 = vmatprep.subr.bf16.mxu0 %v3337
      %3369 = vmatpush1.bf16.msra.mxu0 %v3336
      %3370 = vmatprep.subr.bf16.mxu0 %v3339
      %3371 = vmatpush1.bf16.msra.mxu0 %v3338
      %3372 = vmatprep.subr.bf16.mxu0 %v3341
      %3373 = vmatpush1.bf16.msra.mxu0 %v3340
      %3374 = vmatprep.subr.bf16.mxu0 %v3343
      %3375 = vmatpush1.bf16.msra.mxu0 %v3342
      %3376 = vmatprep.subr.bf16.mxu0 %v3345
      %3377 = vmatpush1.bf16.msra.mxu0 %v3344
      %3378 = vmatprep.subr.bf16.mxu0 %v3347
      %3379 = vmatpush1.bf16.msra.mxu0 %v3346
      %3380 = vmatprep.subr.bf16.mxu0 %v3349
      %3381 = vmatpush1.bf16.msra.mxu0 %v3348
      %3382 = vmatprep.subr.bf16.mxu0 0
      %3383 = vmatpush1.bf16.msra.mxu0 0
      %3384 = vmatprep.subr.bf16.mxu0 0
      %3385 = vmatpush1.bf16.msra.mxu0 0
      %3386 = vmatprep.subr.bf16.mxu0 0
      %3387 = vmatpush1.bf16.msra.mxu0 0
      %3388 = vmatprep.subr.bf16.mxu0 0
      %3389 = vmatpush1.bf16.msra.mxu0 0
      %3390 = vmatprep.subr.bf16.mxu0 0
      %3391 = vmatpush1.bf16.msra.mxu0 0
      %3392 = vmatprep.subr.bf16.mxu0 0
      %3393 = vmatpush1.bf16.msra.mxu0 0
      %3394 = vmatprep.subr.bf16.mxu0 0
      %3395 = vmatpush1.bf16.msra.mxu0 0
      %3396 = vmatprep.subr.bf16.mxu0 0
      %3397 = vmatpush1.bf16.msra.mxu0 0
      %3398 = vmatprep.mubr.bf16.mxu0 0
      %3399 = vmatmul.mubr.bf16.gmra.mrb[0].mxu0 %v3257
      %v3400 = vpop.f32.mrb[0].mxu0
      %v3401 = vadd.f32 0.0, %v3400
      %v3402 = vpop.f32.mrb[0].mxu0
      %v3403 = vadd.f32 0.0, %v3402
      %v3404 = vpop.f32.mrb[0].mxu0
      %v3405 = vadd.f32 0.0, %v3404
      %v3406 = vpop.f32.mrb[0].mxu0
      %v3407 = vadd.f32 0.0, %v3406
      %3408 = vmatprep.mubr.bf16.mxu0 0
      %3409 = vmatmul.mubr.bf16.gmra.mrb[0].mxu0 %v3259
      %v3410 = vpop.f32.mrb[0].mxu0
      %v3411 = vadd.f32 0.0, %v3410
      %v3412 = vpop.f32.mrb[0].mxu0
      %v3413 = vadd.f32 0.0, %v3412
      %v3414 = vpop.f32.mrb[0].mxu0
      %v3415 = vadd.f32 0.0, %v3414
      %v3416 = vpop.f32.mrb[0].mxu0
      %v3417 = vadd.f32 0.0, %v3416
      %3418 = vmatprep.mubr.bf16.mxu0 0
      %3419 = vmatmul.mubr.bf16.gmra.mrb[0].mxu0 %v3261
      %v3420 = vpop.f32.mrb[0].mxu0
      %v3421 = vadd.f32 0.0, %v3420
      %v3422 = vpop.f32.mrb[0].mxu0
      %v3423 = vadd.f32 0.0, %v3422
      %v3424 = vpop.f32.mrb[0].mxu0
      %v3425 = vadd.f32 0.0, %v3424
      %v3426 = vpop.f32.mrb[0].mxu0
      %v3427 = vadd.f32 0.0, %v3426
      %3428 = vmatprep.mubr.bf16.mxu0 0
      %3429 = vmatmul.mubr.bf16.gmra.mrb[0].mxu0 %v3263
      %v3430 = vpop.f32.mrb[0].mxu0
      %v3431 = vadd.f32 0.0, %v3430
      %v3432 = vpop.f32.mrb[0].mxu0
      %v3433 = vadd.f32 0.0, %v3432
      %v3434 = vpop.f32.mrb[0].mxu0
      %v3435 = vadd.f32 0.0, %v3434
      %v3436 = vpop.f32.mrb[0].mxu0
      %v3437 = vadd.f32 0.0, %v3436
      %3438 = vmatprep.mubr.bf16.mxu0 0
      %3439 = vmatmul.mubr.bf16.gmra.mrb[0].mxu0 %v3265
      %v3440 = vpop.f32.mrb[0].mxu0
      %v3441 = vadd.f32 0.0, %v3440
      %v3442 = vpop.f32.mrb[0].mxu0
      %v3443 = vadd.f32 0.0, %v3442
      %v3444 = vpop.f32.mrb[0].mxu0
      %v3445 = vadd.f32 0.0, %v3444
      %v3446 = vpop.f32.mrb[0].mxu0
      %v3447 = vadd.f32 0.0, %v3446
      %3448 = vmatprep.mubr.bf16.mxu0 0
      %3449 = vmatmul.mubr.bf16.gmra.mrb[0].mxu0 %v3267
      %v3450 = vpop.f32.mrb[0].mxu0
      %v3451 = vadd.f32 0.0, %v3450
      %v3452 = vpop.f32.mrb[0].mxu0
      %v3453 = vadd.f32 0.0, %v3452
      %v3454 = vpop.f32.mrb[0].mxu0
      %v3455 = vadd.f32 0.0, %v3454
      %v3456 = vpop.f32.mrb[0].mxu0
      %v3457 = vadd.f32 0.0, %v3456
      %3458 = vmatprep.mubr.bf16.mxu0 0
      %3459 = vmatmul.mubr.bf16.gmra.mrb[0].mxu0 %v3269
      %v3460 = vpop.f32.mrb[0].mxu0
      %v3461 = vadd.f32 0.0, %v3460
      %v3462 = vpop.f32.mrb[0].mxu0
      %v3463 = vadd.f32 0.0, %v3462
      %v3464 = vpop.f32.mrb[0].mxu0
      %v3465 = vadd.f32 0.0, %v3464
      %v3466 = vpop.f32.mrb[0].mxu0
      %v3467 = vadd.f32 0.0, %v3466
      %3468 = vmatprep.mubr.bf16.mxu0 0
      %3469 = vmatmul.mubr.bf16.gmra.mrb[0].mxu0 %v3271
      %v3470 = vpop.f32.mrb[0].mxu0
      %v3471 = vadd.f32 0.0, %v3470
      %v3472 = vpop.f32.mrb[0].mxu0
      %v3473 = vadd.f32 0.0, %v3472
      %v3474 = vpop.f32.mrb[0].mxu0
      %v3475 = vadd.f32 0.0, %v3474
      %v3476 = vpop.f32.mrb[0].mxu0
      %v3477 = vadd.f32 0.0, %v3476
      %3478 = vmatprep.mubr.bf16.mxu0 0
      %3479 = vmatmul.mubr.bf16.gmra.mrb[0].mxu0 %v3273
      %v3480 = vpop.f32.mrb[0].mxu0
      %v3481 = vadd.f32 0.0, %v3480
      %v3482 = vpop.f32.mrb[0].mxu0
      %v3483 = vadd.f32 0.0, %v3482
      %v3484 = vpop.f32.mrb[0].mxu0
      %v3485 = vadd.f32 0.0, %v3484
      %v3486 = vpop.f32.mrb[0].mxu0
      %v3487 = vadd.f32 0.0, %v3486
      %3488 = vmatprep.mubr.bf16.mxu0 0
      %3489 = vmatmul.mubr.bf16.gmra.mrb[0].mxu0 %v3275
      %v3490 = vpop.f32.mrb[0].mxu0
      %v3491 = vadd.f32 0.0, %v3490
      %v3492 = vpop.f32.mrb[0].mxu0
      %v3493 = vadd.f32 0.0, %v3492
      %v3494 = vpop.f32.mrb[0].mxu0
      %v3495 = vadd.f32 0.0, %v3494
      %v3496 = vpop.f32.mrb[0].mxu0
      %v3497 = vadd.f32 0.0, %v3496
      %3498 = vdwg.mxu0
      %v3499 = vadd.f32 %v3193, %v3401
      %v3500 = vadd.f32 %v3194, %v3403
      %v3501 = vadd.f32 %v3195, %v3405
      %v3502 = vadd.f32 %v3196, %v3407
      %v3503 = vadd.f32 %v3197, %v3411
      %v3504 = vadd.f32 %v3198, %v3413
      %v3505 = vadd.f32 %v3199, %v3415
      %v3506 = vadd.f32 %v3200, %v3417
      %v3507 = vadd.f32 %v3201, %v3421
      %v3508 = vadd.f32 %v3202, %v3423
      %v3509 = vadd.f32 %v3203, %v3425
      %v3510 = vadd.f32 %v3204, %v3427
      %v3511 = vadd.f32 %v3205, %v3431
      %v3512 = vadd.f32 %v3206, %v3433
      %v3513 = vadd.f32 %v3207, %v3435
      %v3514 = vadd.f32 %v3208, %v3437
      %v3515 = vadd.f32 %v3209, %v3441
      %v3516 = vadd.f32 %v3210, %v3443
      %v3517 = vadd.f32 %v3211, %v3445
      %v3518 = vadd.f32 %v3212, %v3447
      %v3519 = vadd.f32 %v3213, %v3451
      %v3520 = vadd.f32 %v3214, %v3453
      %v3521 = vadd.f32 %v3215, %v3455
      %v3522 = vadd.f32 %v3216, %v3457
      %v3523 = vadd.f32 %v3217, %v3461
      %v3524 = vadd.f32 %v3218, %v3463
      %v3525 = vadd.f32 %v3219, %v3465
      %v3526 = vadd.f32 %v3220, %v3467
      %v3527 = vadd.f32 %v3221, %v3471
      %v3528 = vadd.f32 %v3222, %v3473
      %v3529 = vadd.f32 %v3223, %v3475
      %v3530 = vadd.f32 %v3224, %v3477
      %v3531 = vadd.f32 %v3225, %v3481
      %v3532 = vadd.f32 %v3226, %v3483
      %v3533 = vadd.f32 %v3227, %v3485
      %v3534 = vadd.f32 %v3228, %v3487
      %v3535 = vadd.f32 %v3229, %v3491
      %v3536 = vadd.f32 %v3230, %v3493
      %v3537 = vadd.f32 %v3231, %v3495
      %v3538 = vadd.f32 %v3232, %v3497
      %v3539 = vtanh.pop %v3499
      %v3540 = vtanh.pop %v3501
      %v3541 = vtanh.pop %v3503
      %v3542 = vtanh.pop %v3505
      %v3543 = vtanh.pop %v3507
      %v3544 = vtanh.pop %v3509
      %v3545 = vtanh.pop %v3511
      %v3546 = vtanh.pop %v3513
      %v3547 = vtanh.pop %v3515
      %v3548 = vtanh.pop %v3517
      %v3549 = vtanh.pop %v3519
      %v3550 = vtanh.pop %v3521
      %v3551 = vtanh.pop %v3523
      %v3552 = vtanh.pop %v3525
      %v3553 = vtanh.pop %v3527
      %v3554 = vtanh.pop %v3529
      %v3555 = vtanh.pop %v3531
      %v3556 = vtanh.pop %v3533
      %v3557 = vtanh.pop %v3535
      %v3558 = vtanh.pop %v3537
      %v3559 = vxor.u32 %v3500, 2147483648
      %v3560 = vxor.u32 %v3502, 2147483648
      %v3561 = vxor.u32 %v3504, 2147483648
      %v3562 = vxor.u32 %v3506, 2147483648
      %v3563 = vxor.u32 %v3508, 2147483648
      %v3564 = vxor.u32 %v3510, 2147483648
      %v3565 = vxor.u32 %v3512, 2147483648
      %v3566 = vxor.u32 %v3514, 2147483648
      %v3567 = vxor.u32 %v3516, 2147483648
      %v3568 = vxor.u32 %v3518, 2147483648
      %v3569 = vxor.u32 %v3520, 2147483648
      %v3570 = vxor.u32 %v3522, 2147483648
      %v3571 = vxor.u32 %v3524, 2147483648
      %v3572 = vxor.u32 %v3526, 2147483648
      %v3573 = vxor.u32 %v3528, 2147483648
      %v3574 = vxor.u32 %v3530, 2147483648
      %v3575 = vxor.u32 %v3532, 2147483648
      %v3576 = vxor.u32 %v3534, 2147483648
      %v3577 = vxor.u32 %v3536, 2147483648
      %v3578 = vxor.u32 %v3538, 2147483648
      %v3579 = vmul.f32 %v3559, 1.442695
      %v3580 = vpow.pop %v3579
      %v3581 = vmul.f32 %v3560, 1.442695
      %v3582 = vpow.pop %v3581
      %v3583 = vmul.f32 %v3561, 1.442695
      %v3584 = vpow.pop %v3583
      %v3585 = vmul.f32 %v3562, 1.442695
      %v3586 = vpow.pop %v3585
      %v3587 = vmul.f32 %v3563, 1.442695
      %v3588 = vpow.pop %v3587
      %v3589 = vmul.f32 %v3564, 1.442695
      %v3590 = vpow.pop %v3589
      %v3591 = vmul.f32 %v3565, 1.442695
      %v3592 = vpow.pop %v3591
      %v3593 = vmul.f32 %v3566, 1.442695
      %v3594 = vpow.pop %v3593
      %v3595 = vmul.f32 %v3567, 1.442695
      %v3596 = vpow.pop %v3595
      %v3597 = vmul.f32 %v3568, 1.442695
      %v3598 = vpow.pop %v3597
      %v3599 = vmul.f32 %v3569, 1.442695
      %v3600 = vpow.pop %v3599
      %v3601 = vmul.f32 %v3570, 1.442695
      %v3602 = vpow.pop %v3601
      %v3603 = vmul.f32 %v3571, 1.442695
      %v3604 = vpow.pop %v3603
      %v3605 = vmul.f32 %v3572, 1.442695
      %v3606 = vpow.pop %v3605
      %v3607 = vmul.f32 %v3573, 1.442695
      %v3608 = vpow.pop %v3607
      %v3609 = vmul.f32 %v3574, 1.442695
      %v3610 = vpow.pop %v3609
      %v3611 = vmul.f32 %v3575, 1.442695
      %v3612 = vpow.pop %v3611
      %v3613 = vmul.f32 %v3576, 1.442695
      %v3614 = vpow.pop %v3613
      %v3615 = vmul.f32 %v3577, 1.442695
      %v3616 = vpow.pop %v3615
      %v3617 = vmul.f32 %v3578, 1.442695
      %v3618 = vpow.pop %v3617
      %v3619 = vadd.f32 %v3580, 1.0
      %v3620 = vadd.f32 %v3582, 1.0
      %v3621 = vadd.f32 %v3584, 1.0
      %v3622 = vadd.f32 %v3586, 1.0
      %v3623 = vadd.f32 %v3588, 1.0
      %v3624 = vadd.f32 %v3590, 1.0
      %v3625 = vadd.f32 %v3592, 1.0
      %v3626 = vadd.f32 %v3594, 1.0
      %v3627 = vadd.f32 %v3596, 1.0
      %v3628 = vadd.f32 %v3598, 1.0
      %v3629 = vadd.f32 %v3600, 1.0
      %v3630 = vadd.f32 %v3602, 1.0
      %v3631 = vadd.f32 %v3604, 1.0
      %v3632 = vadd.f32 %v3606, 1.0
      %v3633 = vadd.f32 %v3608, 1.0
      %v3634 = vadd.f32 %v3610, 1.0
      %v3635 = vadd.f32 %v3612, 1.0
      %v3636 = vadd.f32 %v3614, 1.0
      %v3637 = vadd.f32 %v3616, 1.0
      %v3638 = vadd.f32 %v3618, 1.0
      %v3639 = vrcp.pop %v3619
      %v3640 = vmul.f32 1.0, %v3639
      %v3641 = vrcp.pop %v3620
      %v3642 = vmul.f32 1.0, %v3641
      %v3643 = vrcp.pop %v3621
      %v3644 = vmul.f32 1.0, %v3643
      %v3645 = vrcp.pop %v3622
      %v3646 = vmul.f32 1.0, %v3645
      %v3647 = vrcp.pop %v3623
      %v3648 = vmul.f32 1.0, %v3647
      %v3649 = vrcp.pop %v3624
      %v3650 = vmul.f32 1.0, %v3649
      %v3651 = vrcp.pop %v3625
      %v3652 = vmul.f32 1.0, %v3651
      %v3653 = vrcp.pop %v3626
      %v3654 = vmul.f32 1.0, %v3653
      %v3655 = vrcp.pop %v3627
      %v3656 = vmul.f32 1.0, %v3655
      %v3657 = vrcp.pop %v3628
      %v3658 = vmul.f32 1.0, %v3657
      %v3659 = vrcp.pop %v3629
      %v3660 = vmul.f32 1.0, %v3659
      %v3661 = vrcp.pop %v3630
      %v3662 = vmul.f32 1.0, %v3661
      %v3663 = vrcp.pop %v3631
      %v3664 = vmul.f32 1.0, %v3663
      %v3665 = vrcp.pop %v3632
      %v3666 = vmul.f32 1.0, %v3665
      %v3667 = vrcp.pop %v3633
      %v3668 = vmul.f32 1.0, %v3667
      %v3669 = vrcp.pop %v3634
      %v3670 = vmul.f32 1.0, %v3669
      %v3671 = vrcp.pop %v3635
      %v3672 = vmul.f32 1.0, %v3671
      %v3673 = vrcp.pop %v3636
      %v3674 = vmul.f32 1.0, %v3673
      %v3675 = vrcp.pop %v3637
      %v3676 = vmul.f32 1.0, %v3675
      %v3677 = vrcp.pop %v3638
      %v3678 = vmul.f32 1.0, %v3677
      %v3679 = vmul.f32 %v3539, %v3640
      %v3680 = vmul.f32 %v3540, %v3642
      %v3681 = vmul.f32 %v3541, %v3644
      %v3682 = vmul.f32 %v3542, %v3646
      %v3683 = vmul.f32 %v3543, %v3648
      %v3684 = vmul.f32 %v3544, %v3650
      %v3685 = vmul.f32 %v3545, %v3652
      %v3686 = vmul.f32 %v3546, %v3654
      %v3687 = vmul.f32 %v3547, %v3656
      %v3688 = vmul.f32 %v3548, %v3658
      %v3689 = vmul.f32 %v3549, %v3660
      %v3690 = vmul.f32 %v3550, %v3662
      %v3691 = vmul.f32 %v3551, %v3664
      %v3692 = vmul.f32 %v3552, %v3666
      %v3693 = vmul.f32 %v3553, %v3668
      %v3694 = vmul.f32 %v3554, %v3670
      %v3695 = vmul.f32 %v3555, %v3672
      %v3696 = vmul.f32 %v3556, %v3674
      %v3697 = vmul.f32 %v3557, %v3676
      %v3698 = vmul.f32 %v3558, %v3678
      %v3699 = vpack.c.bf16 %v3680, %v3679
      %v3700 = vpack.c.bf16 %v3682, %v3681
      %v3701 = vpack.c.bf16 %v3684, %v3683
      %v3702 = vpack.c.bf16 %v3686, %v3685
      %v3703 = vpack.c.bf16 %v3688, %v3687
      %v3704 = vpack.c.bf16 %v3690, %v3689
      %v3705 = vpack.c.bf16 %v3692, %v3691
      %v3706 = vpack.c.bf16 %v3694, %v3693
      %v3707 = vpack.c.bf16 %v3696, %v3695
      %v3708 = vpack.c.bf16 %v3698, %v3697
      %s3709 = scalar_lea.vmem %s6, 128
      %v3710 = vld [vmem:[%s3709] sm:$0xff]
      %v3711 = vld [vmem:[%s3709 + $0x8] sm:$0xff]
      %v3712 = vld [vmem:[%s3709 + $0x10] sm:$0xff]
      %v3713 = vld [vmem:[%s3709 + $0x18] sm:$0xff]
      %v3714 = vld [vmem:[%s3709 + $0x20] sm:$0xff]
      %v3715 = vld [vmem:[%s3709 + $0x28] sm:$0xff]
      %v3716 = vld [vmem:[%s3709 + $0x30] sm:$0xff]
      %v3717 = vld [vmem:[%s3709 + $0x38] sm:$0xff]
      %v3718 = vld [vmem:[%s3709 + $0x40] sm:$0xff]
      %v3719 = vld [vmem:[%s3709 + $0x48] sm:$0xff]
      %v3720 = vld [vmem:[%s3709 + $0x50] sm:$0xff]
      %v3721 = vld [vmem:[%s3709 + $0x58] sm:$0xff]
      %v3722 = vld [vmem:[%s3709 + $0x60] sm:$0xff]
      %v3723 = vld [vmem:[%s3709 + $0x68] sm:$0xff]
      %v3724 = vld [vmem:[%s3709 + $0x70] sm:$0xff]
      %v3725 = vld [vmem:[%s3709 + $0x78] sm:$0xff]
      %s3726 = scalar_lea.vmem %s7, 2
      %v3727 = vld [vmem:[%s3726] sm:$0x3]
      %v3729 = vlaneseq
      %v3730 = vshrl.u32 %v3729, 7
      %v3731 = vsub.s32 0, %v3730
      %v3732 = vrot.slane %v3727, %v3731
      %v3733 = vlaneseq
      %v3734 = vshrl.u32 %v3733, 7
      %v3735 = vsub.s32 1, %v3734
      %v3736 = vrot.slane %v3727, %v3735
      %v3755 = vunpack.c.l.b16 %v3710
      %v3756 = vunpack.c.h.b16 %v3710
      %v3757 = vunpack.c.l.b16 %v3711
      %v3758 = vunpack.c.h.b16 %v3711
      %v3759 = vunpack.c.l.b16 %v3712
      %v3760 = vunpack.c.h.b16 %v3712
      %v3761 = vunpack.c.l.b16 %v3713
      %v3762 = vunpack.c.h.b16 %v3713
      %v3763 = vunpack.c.l.b16 %v3714
      %v3764 = vunpack.c.h.b16 %v3714
      %v3765 = vunpack.c.l.b16 %v3715
      %v3766 = vunpack.c.h.b16 %v3715
      %v3767 = vunpack.c.l.b16 %v3716
      %v3768 = vunpack.c.h.b16 %v3716
      %v3769 = vunpack.c.l.b16 %v3717
      %v3770 = vunpack.c.h.b16 %v3717
      %v3771 = vunpack.c.l.b16 %v3718
      %v3772 = vunpack.c.h.b16 %v3718
      %v3773 = vunpack.c.l.b16 %v3719
      %v3774 = vunpack.c.h.b16 %v3719
      %v3775 = vunpack.c.l.b16 %v3720
      %v3776 = vunpack.c.h.b16 %v3720
      %v3777 = vunpack.c.l.b16 %v3721
      %v3778 = vunpack.c.h.b16 %v3721
      %v3779 = vunpack.c.l.b16 %v3722
      %v3780 = vunpack.c.h.b16 %v3722
      %v3781 = vunpack.c.l.b16 %v3723
      %v3782 = vunpack.c.h.b16 %v3723
      %v3783 = vunpack.c.l.b16 %v3724
      %v3784 = vunpack.c.h.b16 %v3724
      %v3785 = vunpack.c.l.b16 %v3725
      %v3786 = vunpack.c.h.b16 %v3725
      %v3787 = vpack.c.b16 %v3757, %v3755
      %v3788 = vpack.c.b16 %v3758, %v3756
      %v3789 = vpack.c.b16 %v3761, %v3759
      %v3790 = vpack.c.b16 %v3762, %v3760
      %v3791 = vpack.c.b16 %v3765, %v3763
      %v3792 = vpack.c.b16 %v3766, %v3764
      %v3793 = vpack.c.b16 %v3769, %v3767
      %v3794 = vpack.c.b16 %v3770, %v3768
      %v3795 = vpack.c.b16 %v3773, %v3771
      %v3796 = vpack.c.b16 %v3774, %v3772
      %v3797 = vpack.c.b16 %v3777, %v3775
      %v3798 = vpack.c.b16 %v3778, %v3776
      %v3799 = vpack.c.b16 %v3781, %v3779
      %v3800 = vpack.c.b16 %v3782, %v3780
      %v3801 = vpack.c.b16 %v3785, %v3783
      %v3802 = vpack.c.b16 %v3786, %v3784
      %3819 = vmatprep.subr.bf16.mxu0 %v3788
      %3820 = vmatpush1.bf16.msra.mxu0 %v3787
      %3821 = vmatprep.subr.bf16.mxu0 %v3790
      %3822 = vmatpush1.bf16.msra.mxu0 %v3789
      %3823 = vmatprep.subr.bf16.mxu0 %v3792
      %3824 = vmatpush1.bf16.msra.mxu0 %v3791
      %3825 = vmatprep.subr.bf16.mxu0 %v3794
      %3826 = vmatpush1.bf16.msra.mxu0 %v3793
      %3827 = vmatprep.subr.bf16.mxu0 %v3796
      %3828 = vmatpush1.bf16.msra.mxu0 %v3795
      %3829 = vmatprep.subr.bf16.mxu0 %v3798
      %3830 = vmatpush1.bf16.msra.mxu0 %v3797
      %3831 = vmatprep.subr.bf16.mxu0 %v3800
      %3832 = vmatpush1.bf16.msra.mxu0 %v3799
      %3833 = vmatprep.subr.bf16.mxu0 %v3802
      %3834 = vmatpush1.bf16.msra.mxu0 %v3801
      %3835 = vmatprep.subr.bf16.mxu0 0
      %3836 = vmatpush1.bf16.msra.mxu0 0
      %3837 = vmatprep.subr.bf16.mxu0 0
      %3838 = vmatpush1.bf16.msra.mxu0 0
      %3839 = vmatprep.subr.bf16.mxu0 0
      %3840 = vmatpush1.bf16.msra.mxu0 0
      %3841 = vmatprep.subr.bf16.mxu0 0
      %3842 = vmatpush1.bf16.msra.mxu0 0
      %3843 = vmatprep.subr.bf16.mxu0 0
      %3844 = vmatpush1.bf16.msra.mxu0 0
      %3845 = vmatprep.subr.bf16.mxu0 0
      %3846 = vmatpush1.bf16.msra.mxu0 0
      %3847 = vmatprep.subr.bf16.mxu0 0
      %3848 = vmatpush1.bf16.msra.mxu0 0
      %3849 = vmatprep.subr.bf16.mxu0 0
      %3850 = vmatpush1.bf16.msra.mxu0 0
      %3851 = vmatprep.mubr.bf16.mxu0 0
      %3852 = vmatmul.mubr.bf16.gmra.mrb[0].mxu0 %v3699
      %v3853 = vpop.f32.mrb[0].mxu0
      %v3854 = vadd.f32 %v3732, %v3853
      %v3855 = vpop.f32.mrb[0].mxu0
      %v3856 = vadd.f32 %v3736, %v3855
      %v3857 = vpop.f32.mrb[0].mxu0
      %v3858 = vadd.f32 %v3732, %v3857
      %v3859 = vpop.f32.mrb[0].mxu0
      %v3860 = vadd.f32 %v3736, %v3859
      %3861 = vmatprep.mubr.bf16.mxu0 0
      %3862 = vmatmul.mubr.bf16.gmra.mrb[0].mxu0 %v3700
      %v3863 = vpop.f32.mrb[0].mxu0
      %v3864 = vadd.f32 %v3732, %v3863
      %v3865 = vpop.f32.mrb[0].mxu0
      %v3866 = vadd.f32 %v3736, %v3865
      %v3867 = vpop.f32.mrb[0].mxu0
      %v3868 = vadd.f32 %v3732, %v3867
      %v3869 = vpop.f32.mrb[0].mxu0
      %v3870 = vadd.f32 %v3736, %v3869
      %3871 = vmatprep.mubr.bf16.mxu0 0
      %3872 = vmatmul.mubr.bf16.gmra.mrb[0].mxu0 %v3701
      %v3873 = vpop.f32.mrb[0].mxu0
      %v3874 = vadd.f32 %v3732, %v3873
      %v3875 = vpop.f32.mrb[0].mxu0
      %v3876 = vadd.f32 %v3736, %v3875
      %v3877 = vpop.f32.mrb[0].mxu0
      %v3878 = vadd.f32 %v3732, %v3877
      %v3879 = vpop.f32.mrb[0].mxu0
      %v3880 = vadd.f32 %v3736, %v3879
      %3881 = vmatprep.mubr.bf16.mxu0 0
      %3882 = vmatmul.mubr.bf16.gmra.mrb[0].mxu0 %v3702
      %v3883 = vpop.f32.mrb[0].mxu0
      %v3884 = vadd.f32 %v3732, %v3883
      %v3885 = vpop.f32.mrb[0].mxu0
      %v3886 = vadd.f32 %v3736, %v3885
      %v3887 = vpop.f32.mrb[0].mxu0
      %v3888 = vadd.f32 %v3732, %v3887
      %v3889 = vpop.f32.mrb[0].mxu0
      %v3890 = vadd.f32 %v3736, %v3889
      %3891 = vmatprep.mubr.bf16.mxu0 0
      %3892 = vmatmul.mubr.bf16.gmra.mrb[0].mxu0 %v3703
      %v3893 = vpop.f32.mrb[0].mxu0
      %v3894 = vadd.f32 %v3732, %v3893
      %v3895 = vpop.f32.mrb[0].mxu0
      %v3896 = vadd.f32 %v3736, %v3895
      %v3897 = vpop.f32.mrb[0].mxu0
      %v3898 = vadd.f32 %v3732, %v3897
      %v3899 = vpop.f32.mrb[0].mxu0
      %v3900 = vadd.f32 %v3736, %v3899
      %3901 = vmatprep.mubr.bf16.mxu0 0
      %3902 = vmatmul.mubr.bf16.gmra.mrb[0].mxu0 %v3704
      %v3903 = vpop.f32.mrb[0].mxu0
      %v3904 = vadd.f32 %v3732, %v3903
      %v3905 = vpop.f32.mrb[0].mxu0
      %v3906 = vadd.f32 %v3736, %v3905
      %v3907 = vpop.f32.mrb[0].mxu0
      %v3908 = vadd.f32 %v3732, %v3907
      %v3909 = vpop.f32.mrb[0].mxu0
      %v3910 = vadd.f32 %v3736, %v3909
      %3911 = vmatprep.mubr.bf16.mxu0 0
      %3912 = vmatmul.mubr.bf16.gmra.mrb[0].mxu0 %v3705
      %v3913 = vpop.f32.mrb[0].mxu0
      %v3914 = vadd.f32 %v3732, %v3913
      %v3915 = vpop.f32.mrb[0].mxu0
      %v3916 = vadd.f32 %v3736, %v3915
      %v3917 = vpop.f32.mrb[0].mxu0
      %v3918 = vadd.f32 %v3732, %v3917
      %v3919 = vpop.f32.mrb[0].mxu0
      %v3920 = vadd.f32 %v3736, %v3919
      %3921 = vmatprep.mubr.bf16.mxu0 0
      %3922 = vmatmul.mubr.bf16.gmra.mrb[0].mxu0 %v3706
      %v3923 = vpop.f32.mrb[0].mxu0
      %v3924 = vadd.f32 %v3732, %v3923
      %v3925 = vpop.f32.mrb[0].mxu0
      %v3926 = vadd.f32 %v3736, %v3925
      %v3927 = vpop.f32.mrb[0].mxu0
      %v3928 = vadd.f32 %v3732, %v3927
      %v3929 = vpop.f32.mrb[0].mxu0
      %v3930 = vadd.f32 %v3736, %v3929
      %3931 = vmatprep.mubr.bf16.mxu0 0
      %3932 = vmatmul.mubr.bf16.gmra.mrb[0].mxu0 %v3707
      %v3933 = vpop.f32.mrb[0].mxu0
      %v3934 = vadd.f32 %v3732, %v3933
      %v3935 = vpop.f32.mrb[0].mxu0
      %v3936 = vadd.f32 %v3736, %v3935
      %v3937 = vpop.f32.mrb[0].mxu0
      %v3938 = vadd.f32 %v3732, %v3937
      %v3939 = vpop.f32.mrb[0].mxu0
      %v3940 = vadd.f32 %v3736, %v3939
      %3941 = vmatprep.mubr.bf16.mxu0 0
      %3942 = vmatmul.mubr.bf16.gmra.mrb[0].mxu0 %v3708
      %v3943 = vpop.f32.mrb[0].mxu0
      %v3944 = vadd.f32 %v3732, %v3943
      %v3945 = vpop.f32.mrb[0].mxu0
      %v3946 = vadd.f32 %v3736, %v3945
      %v3947 = vpop.f32.mrb[0].mxu0
      %v3948 = vadd.f32 %v3732, %v3947
      %v3949 = vpop.f32.mrb[0].mxu0
      %v3950 = vadd.f32 %v3736, %v3949
      %3951 = vdwg.mxu0
      %v3952 = vadd.f32 %v2490, %v3854
      %v3953 = vadd.f32 %v2491, %v3858
      %v3954 = vadd.f32 %v2492, %v3864
      %v3955 = vadd.f32 %v2493, %v3868
      %v3956 = vadd.f32 %v2494, %v3874
      %v3957 = vadd.f32 %v2495, %v3878
      %v3958 = vadd.f32 %v2496, %v3884
      %v3959 = vadd.f32 %v2497, %v3888
      %v3960 = vadd.f32 %v2498, %v3894
      %v3961 = vadd.f32 %v2499, %v3898
      %v3962 = vadd.f32 %v2500, %v3904
      %v3963 = vadd.f32 %v2501, %v3908
      %v3964 = vadd.f32 %v2502, %v3914
      %v3965 = vadd.f32 %v2503, %v3918
      %v3966 = vadd.f32 %v2504, %v3924
      %v3967 = vadd.f32 %v2505, %v3928
      %v3968 = vadd.f32 %v2506, %v3934
      %v3969 = vadd.f32 %v2507, %v3938
      %v3970 = vadd.f32 %v2508, %v3944
      %v3971 = vadd.f32 %v2509, %v3948
      %v3972 = vmul.f32 %v3952, %v831
      %v3973 = vmul.f32 %v3953, %v836
      %v3974 = vmul.f32 %v3954, %v841
      %v3975 = vmul.f32 %v3955, %v846
      %v3976 = vmul.f32 %v3956, %v851
      %v3977 = vmul.f32 %v3957, %v856
      %v3978 = vmul.f32 %v3958, %v861
      %v3979 = vmul.f32 %v3959, %v866
      %v3980 = vmul.f32 %v3960, %v871
      %v3981 = vmul.f32 %v3961, %v876
      %v3982 = vmul.f32 %v3962, %v881
      %v3983 = vmul.f32 %v3963, %v886
      %v3984 = vmul.f32 %v3964, %v891
      %v3985 = vmul.f32 %v3965, %v896
      %v3986 = vmul.f32 %v3966, %v901
      %v3987 = vmul.f32 %v3967, %v906
      %v3988 = vmul.f32 %v3968, %v911
      %v3989 = vmul.f32 %v3969, %v916
      %v3990 = vmul.f32 %v3970, %v921
      %v3991 = vmul.f32 %v3971, %v926
      %v3992 = vadd.f32 %v2510, %v3856
      %v3993 = vadd.f32 %v2511, %v3860
      %v3994 = vadd.f32 %v2512, %v3866
      %v3995 = vadd.f32 %v2513, %v3870
      %v3996 = vadd.f32 %v2514, %v3876
      %v3997 = vadd.f32 %v2515, %v3880
      %v3998 = vadd.f32 %v2516, %v3886
      %v3999 = vadd.f32 %v2517, %v3890
      %v4000 = vadd.f32 %v2518, %v3896
      %v4001 = vadd.f32 %v2519, %v3900
      %v4002 = vadd.f32 %v2520, %v3906
      %v4003 = vadd.f32 %v2521, %v3910
      %v4004 = vadd.f32 %v2522, %v3916
      %v4005 = vadd.f32 %v2523, %v3920
      %v4006 = vadd.f32 %v2524, %v3926
      %v4007 = vadd.f32 %v2525, %v3930
      %v4008 = vadd.f32 %v2526, %v3936
      %v4009 = vadd.f32 %v2527, %v3940
      %v4010 = vadd.f32 %v2528, %v3946
      %v4011 = vadd.f32 %v2529, %v3950
      %v4012 = vpack.c.bf16 %v3973, %v3972
      %v4013 = vpack.c.bf16 %v3975, %v3974
      %v4014 = vpack.c.bf16 %v3977, %v3976
      %v4015 = vpack.c.bf16 %v3979, %v3978
      %v4016 = vpack.c.bf16 %v3981, %v3980
      %v4017 = vpack.c.bf16 %v3983, %v3982
      %v4018 = vpack.c.bf16 %v3985, %v3984
      %v4019 = vpack.c.bf16 %v3987, %v3986
      %v4020 = vpack.c.bf16 %v3989, %v3988
      %v4021 = vpack.c.bf16 %v3991, %v3990
      %v4032 = vrot.slane %v4012, 4
      %v4033 = vrot.slane %v4013, 4
      %v4034 = vsel %vm968, %v4032, %v4033
      %v4035 = vrot.slane %v4014, 4
      %v4036 = vsel %vm968, %v4033, %v4035
      %v4037 = vrot.slane %v4015, 4
      %v4038 = vsel %vm968, %v4035, %v4037
      %v4039 = vrot.slane %v4016, 4
      %v4040 = vsel %vm968, %v4037, %v4039
      %v4041 = vrot.slane %v4017, 4
      %v4042 = vsel %vm968, %v4039, %v4041
      %v4043 = vrot.slane %v4018, 4
      %v4044 = vsel %vm968, %v4041, %v4043
      %v4045 = vrot.slane %v4019, 4
      %v4046 = vsel %vm968, %v4043, %v4045
      %v4047 = vrot.slane %v4020, 4
      %v4048 = vsel %vm968, %v4045, %v4047
      %v4049 = vrot.slane %v4021, 4
      %v4050 = vsel %vm968, %v4047, %v4049
      %4062 = vst [vmem:[#allocation2] sm:$0xf0] %v4032
      %4063 = vst [vmem:[#allocation2 + $0x8] sm:$0xff] %v4034
      %4064 = vst [vmem:[#allocation2 + $0x10] sm:$0xff] %v4036
      %4065 = vst [vmem:[#allocation2 + $0x18] sm:$0xff] %v4038
      %4066 = vst [vmem:[#allocation2 + $0x20] sm:$0xff] %v4040
      %4067 = vst [vmem:[#allocation2 + $0x28] sm:$0xff] %v4042
      %4068 = vst [vmem:[#allocation2 + $0x30] sm:$0xff] %v4044
      %4069 = vst [vmem:[#allocation2 + $0x38] sm:$0xff] %v4046
      %4070 = vst [vmem:[#allocation2 + $0x40] sm:$0xff] %v4048
      %4071 = vst [vmem:[#allocation2 + $0x48] sm:$0xff] %v4050
      %4072 = vst [vmem:[#allocation2 + $0x50] sm:$0xf] %v4049
      %s4073 = scalar_lea.vmem %s437, 4
      %v4074 = vld [vmem:[%s4073] sm:$0x3]
      %v4075 = vld [vmem:[#allocation2] sm:$0xfc]
      %v4076 = vld [vmem:[#allocation2 + $0x8] sm:$0xff]
      %v4077 = vld [vmem:[#allocation2 + $0x10] sm:$0xff]
      %v4078 = vld [vmem:[#allocation2 + $0x18] sm:$0xff]
      %v4079 = vld [vmem:[#allocation2 + $0x20] sm:$0xff]
      %v4080 = vld [vmem:[#allocation2 + $0x28] sm:$0xff]
      %v4081 = vld [vmem:[#allocation2 + $0x30] sm:$0xff]
      %v4082 = vld [vmem:[#allocation2 + $0x38] sm:$0xff]
      %v4083 = vld [vmem:[#allocation2 + $0x40] sm:$0xff]
      %v4084 = vld [vmem:[#allocation2 + $0x48] sm:$0xff]
      %v4085 = vld [vmem:[#allocation2 + $0x50] sm:$0x3]
      %s4086 = scalar_lea.vmem %s5, 768
      %v4087 = vld [vmem:[%s4086] sm:$0xff]
      %v4088 = vld [vmem:[%s4086 + $0x8] sm:$0xff]
      %v4089 = vld [vmem:[%s4086 + $0x10] sm:$0xff]
      %v4090 = vld [vmem:[%s4086 + $0x18] sm:$0xff]
      %v4091 = vld [vmem:[%s4086 + $0x20] sm:$0xff]
      %v4092 = vld [vmem:[%s4086 + $0x28] sm:$0xff]
      %v4093 = vld [vmem:[%s4086 + $0x30] sm:$0xff]
      %v4094 = vld [vmem:[%s4086 + $0x38] sm:$0xff]
      %v4095 = vld [vmem:[%s4086 + $0x40] sm:$0xff]
      %v4096 = vld [vmem:[%s4086 + $0x48] sm:$0xff]
      %v4097 = vld [vmem:[%s4086 + $0x50] sm:$0xff]
      %v4098 = vld [vmem:[%s4086 + $0x58] sm:$0xff]
      %v4099 = vld [vmem:[%s4086 + $0x60] sm:$0xff]
      %v4100 = vld [vmem:[%s4086 + $0x68] sm:$0xff]
      %v4101 = vld [vmem:[%s4086 + $0x70] sm:$0xff]
      %v4102 = vld [vmem:[%s4086 + $0x78] sm:$0xff]
      %vm4114 = vcmask 1045504
      %v4115 = vrot.slane %v4075, 2
      %v4116 = vrot.slane %v4076, 2
      %v4117 = vsel %vm4114, %v4115, %v4116
      %v4118 = vrot.slane %v4077, 2
      %v4119 = vsel %vm4114, %v4116, %v4118
      %v4120 = vrot.slane %v4078, 2
      %v4121 = vsel %vm4114, %v4118, %v4120
      %v4122 = vrot.slane %v4079, 2
      %v4123 = vsel %vm4114, %v4120, %v4122
      %v4124 = vrot.slane %v4080, 2
      %v4125 = vsel %vm4114, %v4122, %v4124
      %v4126 = vrot.slane %v4081, 2
      %v4127 = vsel %vm4114, %v4124, %v4126
      %v4128 = vrot.slane %v4082, 2
      %v4129 = vsel %vm4114, %v4126, %v4128
      %v4130 = vrot.slane %v4083, 2
      %v4131 = vsel %vm4114, %v4128, %v4130
      %v4132 = vrot.slane %v4084, 2
      %v4133 = vsel %vm4114, %v4130, %v4132
      %v4134 = vrot.slane %v4085, 2
      %v4135 = vsel %vm4114, %v4132, %v4134
      %v4162 = vunpack.c.l.b16 %v4087
      %v4163 = vunpack.c.h.b16 %v4087
      %v4164 = vunpack.c.l.b16 %v4088
      %v4165 = vunpack.c.h.b16 %v4088
      %v4166 = vunpack.c.l.b16 %v4089
      %v4167 = vunpack.c.h.b16 %v4089
      %v4168 = vunpack.c.l.b16 %v4090
      %v4169 = vunpack.c.h.b16 %v4090
      %v4170 = vunpack.c.l.b16 %v4091
      %v4171 = vunpack.c.h.b16 %v4091
      %v4172 = vunpack.c.l.b16 %v4092
      %v4173 = vunpack.c.h.b16 %v4092
      %v4174 = vunpack.c.l.b16 %v4093
      %v4175 = vunpack.c.h.b16 %v4093
      %v4176 = vunpack.c.l.b16 %v4094
      %v4177 = vunpack.c.h.b16 %v4094
      %v4178 = vunpack.c.l.b16 %v4095
      %v4179 = vunpack.c.h.b16 %v4095
      %v4180 = vunpack.c.l.b16 %v4096
      %v4181 = vunpack.c.h.b16 %v4096
      %v4182 = vunpack.c.l.b16 %v4097
      %v4183 = vunpack.c.h.b16 %v4097
      %v4184 = vunpack.c.l.b16 %v4098
      %v4185 = vunpack.c.h.b16 %v4098
      %v4186 = vunpack.c.l.b16 %v4099
      %v4187 = vunpack.c.h.b16 %v4099
      %v4188 = vunpack.c.l.b16 %v4100
      %v4189 = vunpack.c.h.b16 %v4100
      %v4190 = vunpack.c.l.b16 %v4101
      %v4191 = vunpack.c.h.b16 %v4101
      %v4192 = vunpack.c.l.b16 %v4102
      %v4193 = vunpack.c.h.b16 %v4102
      %v4194 = vpack.c.b16 %v4164, %v4162
      %v4195 = vpack.c.b16 %v4165, %v4163
      %v4196 = vpack.c.b16 %v4168, %v4166
      %v4197 = vpack.c.b16 %v4169, %v4167
      %v4198 = vpack.c.b16 %v4172, %v4170
      %v4199 = vpack.c.b16 %v4173, %v4171
      %v4200 = vpack.c.b16 %v4176, %v4174
      %v4201 = vpack.c.b16 %v4177, %v4175
      %v4202 = vpack.c.b16 %v4180, %v4178
      %v4203 = vpack.c.b16 %v4181, %v4179
      %v4204 = vpack.c.b16 %v4184, %v4182
      %v4205 = vpack.c.b16 %v4185, %v4183
      %v4206 = vpack.c.b16 %v4188, %v4186
      %v4207 = vpack.c.b16 %v4189, %v4187
      %v4208 = vpack.c.b16 %v4192, %v4190
      %v4209 = vpack.c.b16 %v4193, %v4191
      %4226 = vmatprep.subr.bf16.mxu0 %v4195
      %4227 = vmatpush1.bf16.msra.mxu0 %v4194
      %4228 = vmatprep.subr.bf16.mxu0 %v4197
      %4229 = vmatpush1.bf16.msra.mxu0 %v4196
      %4230 = vmatprep.subr.bf16.mxu0 %v4199
      %4231 = vmatpush1.bf16.msra.mxu0 %v4198
      %4232 = vmatprep.subr.bf16.mxu0 %v4201
      %4233 = vmatpush1.bf16.msra.mxu0 %v4200
      %4234 = vmatprep.subr.bf16.mxu0 %v4203
      %4235 = vmatpush1.bf16.msra.mxu0 %v4202
      %4236 = vmatprep.subr.bf16.mxu0 %v4205
      %4237 = vmatpush1.bf16.msra.mxu0 %v4204
      %4238 = vmatprep.subr.bf16.mxu0 %v4207
      %4239 = vmatpush1.bf16.msra.mxu0 %v4206
      %4240 = vmatprep.subr.bf16.mxu0 %v4209
      %4241 = vmatpush1.bf16.msra.mxu0 %v4208
      %4242 = vmatprep.subr.bf16.mxu0 0
      %4243 = vmatpush1.bf16.msra.mxu0 0
      %4244 = vmatprep.subr.bf16.mxu0 0
      %4245 = vmatpush1.bf16.msra.mxu0 0
      %4246 = vmatprep.subr.bf16.mxu0 0
      %4247 = vmatpush1.bf16.msra.mxu0 0
      %4248 = vmatprep.subr.bf16.mxu0 0
      %4249 = vmatpush1.bf16.msra.mxu0 0
      %4250 = vmatprep.subr.bf16.mxu0 0
      %4251 = vmatpush1.bf16.msra.mxu0 0
      %4252 = vmatprep.subr.bf16.mxu0 0
      %4253 = vmatpush1.bf16.msra.mxu0 0
      %4254 = vmatprep.subr.bf16.mxu0 0
      %4255 = vmatpush1.bf16.msra.mxu0 0
      %4256 = vmatprep.subr.bf16.mxu0 0
      %4257 = vmatpush1.bf16.msra.mxu0 0
      %4258 = vmatprep.mubr.bf16.mxu0 0
      %4259 = vmatmul.mubr.bf16.gmra.mrb[0].mxu0 %v4117
      %v4260 = vpop.f32.mrb[0].mxu0
      %v4261 = vadd.f32 0.0, %v4260
      %v4262 = vpop.f32.mrb[0].mxu0
      %v4263 = vadd.f32 0.0, %v4262
      %v4264 = vpop.f32.mrb[0].mxu0
      %v4265 = vadd.f32 0.0, %v4264
      %v4266 = vpop.f32.mrb[0].mxu0
      %v4267 = vadd.f32 0.0, %v4266
      %4268 = vmatprep.mubr.bf16.mxu0 0
      %4269 = vmatmul.mubr.bf16.gmra.mrb[0].mxu0 %v4119
      %v4270 = vpop.f32.mrb[0].mxu0
      %v4271 = vadd.f32 0.0, %v4270
      %v4272 = vpop.f32.mrb[0].mxu0
      %v4273 = vadd.f32 0.0, %v4272
      %v4274 = vpop.f32.mrb[0].mxu0
      %v4275 = vadd.f32 0.0, %v4274
      %v4276 = vpop.f32.mrb[0].mxu0
      %v4277 = vadd.f32 0.0, %v4276
      %4278 = vmatprep.mubr.bf16.mxu0 0
      %4279 = vmatmul.mubr.bf16.gmra.mrb[0].mxu0 %v4121
      %v4280 = vpop.f32.mrb[0].mxu0
      %v4281 = vadd.f32 0.0, %v4280
      %v4282 = vpop.f32.mrb[0].mxu0
      %v4283 = vadd.f32 0.0, %v4282
      %v4284 = vpop.f32.mrb[0].mxu0
      %v4285 = vadd.f32 0.0, %v4284
      %v4286 = vpop.f32.mrb[0].mxu0
      %v4287 = vadd.f32 0.0, %v4286
      %4288 = vmatprep.mubr.bf16.mxu0 0
      %4289 = vmatmul.mubr.bf16.gmra.mrb[0].mxu0 %v4123
      %v4290 = vpop.f32.mrb[0].mxu0
      %v4291 = vadd.f32 0.0, %v4290
      %v4292 = vpop.f32.mrb[0].mxu0
      %v4293 = vadd.f32 0.0, %v4292
      %v4294 = vpop.f32.mrb[0].mxu0
      %v4295 = vadd.f32 0.0, %v4294
      %v4296 = vpop.f32.mrb[0].mxu0
      %v4297 = vadd.f32 0.0, %v4296
      %4298 = vmatprep.mubr.bf16.mxu0 0
      %4299 = vmatmul.mubr.bf16.gmra.mrb[0].mxu0 %v4125
      %v4300 = vpop.f32.mrb[0].mxu0
      %v4301 = vadd.f32 0.0, %v4300
      %v4302 = vpop.f32.mrb[0].mxu0
      %v4303 = vadd.f32 0.0, %v4302
      %v4304 = vpop.f32.mrb[0].mxu0
      %v4305 = vadd.f32 0.0, %v4304
      %v4306 = vpop.f32.mrb[0].mxu0
      %v4307 = vadd.f32 0.0, %v4306
      %4308 = vmatprep.mubr.bf16.mxu0 0
      %4309 = vmatmul.mubr.bf16.gmra.mrb[0].mxu0 %v4127
      %v4310 = vpop.f32.mrb[0].mxu0
      %v4311 = vadd.f32 0.0, %v4310
      %v4312 = vpop.f32.mrb[0].mxu0
      %v4313 = vadd.f32 0.0, %v4312
      %v4314 = vpop.f32.mrb[0].mxu0
      %v4315 = vadd.f32 0.0, %v4314
      %v4316 = vpop.f32.mrb[0].mxu0
      %v4317 = vadd.f32 0.0, %v4316
      %4318 = vmatprep.mubr.bf16.mxu0 0
      %4319 = vmatmul.mubr.bf16.gmra.mrb[0].mxu0 %v4129
      %v4320 = vpop.f32.mrb[0].mxu0
      %v4321 = vadd.f32 0.0, %v4320
      %v4322 = vpop.f32.mrb[0].mxu0
      %v4323 = vadd.f32 0.0, %v4322
      %v4324 = vpop.f32.mrb[0].mxu0
      %v4325 = vadd.f32 0.0, %v4324
      %v4326 = vpop.f32.mrb[0].mxu0
      %v4327 = vadd.f32 0.0, %v4326
      %4328 = vmatprep.mubr.bf16.mxu0 0
      %4329 = vmatmul.mubr.bf16.gmra.mrb[0].mxu0 %v4131
      %v4330 = vpop.f32.mrb[0].mxu0
      %v4331 = vadd.f32 0.0, %v4330
      %v4332 = vpop.f32.mrb[0].mxu0
      %v4333 = vadd.f32 0.0, %v4332
      %v4334 = vpop.f32.mrb[0].mxu0
      %v4335 = vadd.f32 0.0, %v4334
      %v4336 = vpop.f32.mrb[0].mxu0
      %v4337 = vadd.f32 0.0, %v4336
      %4338 = vmatprep.mubr.bf16.mxu0 0
      %4339 = vmatmul.mubr.bf16.gmra.mrb[0].mxu0 %v4133
      %v4340 = vpop.f32.mrb[0].mxu0
      %v4341 = vadd.f32 0.0, %v4340
      %v4342 = vpop.f32.mrb[0].mxu0
      %v4343 = vadd.f32 0.0, %v4342
      %v4344 = vpop.f32.mrb[0].mxu0
      %v4345 = vadd.f32 0.0, %v4344
      %v4346 = vpop.f32.mrb[0].mxu0
      %v4347 = vadd.f32 0.0, %v4346
      %4348 = vmatprep.mubr.bf16.mxu0 0
      %4349 = vmatmul.mubr.bf16.gmra.mrb[0].mxu0 %v4135
      %v4350 = vpop.f32.mrb[0].mxu0
      %v4351 = vadd.f32 0.0, %v4350
      %v4352 = vpop.f32.mrb[0].mxu0
      %v4353 = vadd.f32 0.0, %v4352
      %v4354 = vpop.f32.mrb[0].mxu0
      %v4355 = vadd.f32 0.0, %v4354
      %v4356 = vpop.f32.mrb[0].mxu0
      %v4357 = vadd.f32 0.0, %v4356
      %4358 = vdwg.mxu0
      %v4360 = vlaneseq
      %v4361 = vshrl.u32 %v4360, 7
      %v4362 = vsub.s32 0, %v4361
      %v4363 = vrot.slane %v4074, %v4362
      %v4364 = vlaneseq
      %v4365 = vshrl.u32 %v4364, 7
      %v4366 = vsub.s32 1, %v4365
      %v4367 = vrot.slane %v4074, %v4366
      %v4370 = vadd.f32 %v4363, %v4261
      %v4371 = vadd.f32 %v4367, %v4263
      %v4372 = vadd.f32 %v4363, %v4265
      %v4373 = vadd.f32 %v4367, %v4267
      %v4374 = vadd.f32 %v4363, %v4271
      %v4375 = vadd.f32 %v4367, %v4273
      %v4376 = vadd.f32 %v4363, %v4275
      %v4377 = vadd.f32 %v4367, %v4277
      %v4378 = vadd.f32 %v4363, %v4281
      %v4379 = vadd.f32 %v4367, %v4283
      %v4380 = vadd.f32 %v4363, %v4285
      %v4381 = vadd.f32 %v4367, %v4287
      %v4382 = vadd.f32 %v4363, %v4291
      %v4383 = vadd.f32 %v4367, %v4293
      %v4384 = vadd.f32 %v4363, %v4295
      %v4385 = vadd.f32 %v4367, %v4297
      %v4386 = vadd.f32 %v4363, %v4301
      %v4387 = vadd.f32 %v4367, %v4303
      %v4388 = vadd.f32 %v4363, %v4305
      %v4389 = vadd.f32 %v4367, %v4307
      %v4390 = vadd.f32 %v4363, %v4311
      %v4391 = vadd.f32 %v4367, %v4313
      %v4392 = vadd.f32 %v4363, %v4315
      %v4393 = vadd.f32 %v4367, %v4317
      %v4394 = vadd.f32 %v4363, %v4321
      %v4395 = vadd.f32 %v4367, %v4323
      %v4396 = vadd.f32 %v4363, %v4325
      %v4397 = vadd.f32 %v4367, %v4327
      %v4398 = vadd.f32 %v4363, %v4331
      %v4399 = vadd.f32 %v4367, %v4333
      %v4400 = vadd.f32 %v4363, %v4335
      %v4401 = vadd.f32 %v4367, %v4337
      %v4402 = vadd.f32 %v4363, %v4341
      %v4403 = vadd.f32 %v4367, %v4343
      %v4404 = vadd.f32 %v4363, %v4345
      %v4405 = vadd.f32 %v4367, %v4347
      %v4406 = vadd.f32 %v4363, %v4351
      %v4407 = vadd.f32 %v4367, %v4353
      %v4408 = vadd.f32 %v4363, %v4355
      %v4409 = vadd.f32 %v4367, %v4357
      %v4410 = vld [vmem:[#allocation2] sm:$0xf0]
      %v4411 = vld [vmem:[#allocation2 + $0x50] sm:$0xf]
      %s4412 = scalar_lea.vmem %s5, 896
      %v4413 = vld [vmem:[%s4412] sm:$0xff]
      %v4414 = vld [vmem:[%s4412 + $0x8] sm:$0xff]
      %v4415 = vld [vmem:[%s4412 + $0x10] sm:$0xff]
      %v4416 = vld [vmem:[%s4412 + $0x18] sm:$0xff]
      %v4417 = vld [vmem:[%s4412 + $0x20] sm:$0xff]
      %v4418 = vld [vmem:[%s4412 + $0x28] sm:$0xff]
      %v4419 = vld [vmem:[%s4412 + $0x30] sm:$0xff]
      %v4420 = vld [vmem:[%s4412 + $0x38] sm:$0xff]
      %v4421 = vld [vmem:[%s4412 + $0x40] sm:$0xff]
      %v4422 = vld [vmem:[%s4412 + $0x48] sm:$0xff]
      %v4423 = vld [vmem:[%s4412 + $0x50] sm:$0xff]
      %v4424 = vld [vmem:[%s4412 + $0x58] sm:$0xff]
      %v4425 = vld [vmem:[%s4412 + $0x60] sm:$0xff]
      %v4426 = vld [vmem:[%s4412 + $0x68] sm:$0xff]
      %v4427 = vld [vmem:[%s4412 + $0x70] sm:$0xff]
      %v4428 = vld [vmem:[%s4412 + $0x78] sm:$0xff]
      %v4431 = vrot.slane %v4410, 4
      %v4432 = vrot.slane %v4076, 4
      %v4433 = vsel %vm968, %v4431, %v4432
      %v4434 = vrot.slane %v4077, 4
      %v4435 = vsel %vm968, %v4432, %v4434
      %v4436 = vrot.slane %v4078, 4
      %v4437 = vsel %vm968, %v4434, %v4436
      %v4438 = vrot.slane %v4079, 4
      %v4439 = vsel %vm968, %v4436, %v4438
      %v4440 = vrot.slane %v4080, 4
      %v4441 = vsel %vm968, %v4438, %v4440
      %v4442 = vrot.slane %v4081, 4
      %v4443 = vsel %vm968, %v4440, %v4442
      %v4444 = vrot.slane %v4082, 4
      %v4445 = vsel %vm968, %v4442, %v4444
      %v4446 = vrot.slane %v4083, 4
      %v4447 = vsel %vm968, %v4444, %v4446
      %v4448 = vrot.slane %v4084, 4
      %v4449 = vsel %vm968, %v4446, %v4448
      %v4450 = vrot.slane %v4411, 4
      %v4451 = vsel %vm968, %v4448, %v4450
      %v4478 = vunpack.c.l.b16 %v4413
      %v4479 = vunpack.c.h.b16 %v4413
      %v4480 = vunpack.c.l.b16 %v4414
      %v4481 = vunpack.c.h.b16 %v4414
      %v4482 = vunpack.c.l.b16 %v4415
      %v4483 = vunpack.c.h.b16 %v4415
      %v4484 = vunpack.c.l.b16 %v4416
      %v4485 = vunpack.c.h.b16 %v4416
      %v4486 = vunpack.c.l.b16 %v4417
      %v4487 = vunpack.c.h.b16 %v4417
      %v4488 = vunpack.c.l.b16 %v4418
      %v4489 = vunpack.c.h.b16 %v4418
      %v4490 = vunpack.c.l.b16 %v4419
      %v4491 = vunpack.c.h.b16 %v4419
      %v4492 = vunpack.c.l.b16 %v4420
      %v4493 = vunpack.c.h.b16 %v4420
      %v4494 = vunpack.c.l.b16 %v4421
      %v4495 = vunpack.c.h.b16 %v4421
      %v4496 = vunpack.c.l.b16 %v4422
      %v4497 = vunpack.c.h.b16 %v4422
      %v4498 = vunpack.c.l.b16 %v4423
      %v4499 = vunpack.c.h.b16 %v4423
      %v4500 = vunpack.c.l.b16 %v4424
      %v4501 = vunpack.c.h.b16 %v4424
      %v4502 = vunpack.c.l.b16 %v4425
      %v4503 = vunpack.c.h.b16 %v4425
      %v4504 = vunpack.c.l.b16 %v4426
      %v4505 = vunpack.c.h.b16 %v4426
      %v4506 = vunpack.c.l.b16 %v4427
      %v4507 = vunpack.c.h.b16 %v4427
      %v4508 = vunpack.c.l.b16 %v4428
      %v4509 = vunpack.c.h.b16 %v4428
      %v4510 = vpack.c.b16 %v4480, %v4478
      %v4511 = vpack.c.b16 %v4481, %v4479
      %v4512 = vpack.c.b16 %v4484, %v4482
      %v4513 = vpack.c.b16 %v4485, %v4483
      %v4514 = vpack.c.b16 %v4488, %v4486
      %v4515 = vpack.c.b16 %v4489, %v4487
      %v4516 = vpack.c.b16 %v4492, %v4490
      %v4517 = vpack.c.b16 %v4493, %v4491
      %v4518 = vpack.c.b16 %v4496, %v4494
      %v4519 = vpack.c.b16 %v4497, %v4495
      %v4520 = vpack.c.b16 %v4500, %v4498
      %v4521 = vpack.c.b16 %v4501, %v4499
      %v4522 = vpack.c.b16 %v4504, %v4502
      %v4523 = vpack.c.b16 %v4505, %v4503
      %v4524 = vpack.c.b16 %v4508, %v4506
      %v4525 = vpack.c.b16 %v4509, %v4507
      %4542 = vmatprep.subr.bf16.mxu0 %v4511
      %4543 = vmatpush1.bf16.msra.mxu0 %v4510
      %4544 = vmatprep.subr.bf16.mxu0 %v4513
      %4545 = vmatpush1.bf16.msra.mxu0 %v4512
      %4546 = vmatprep.subr.bf16.mxu0 %v4515
      %4547 = vmatpush1.bf16.msra.mxu0 %v4514
      %4548 = vmatprep.subr.bf16.mxu0 %v4517
      %4549 = vmatpush1.bf16.msra.mxu0 %v4516
      %4550 = vmatprep.subr.bf16.mxu0 %v4519
      %4551 = vmatpush1.bf16.msra.mxu0 %v4518
      %4552 = vmatprep.subr.bf16.mxu0 %v4521
      %4553 = vmatpush1.bf16.msra.mxu0 %v4520
      %4554 = vmatprep.subr.bf16.mxu0 %v4523
      %4555 = vmatpush1.bf16.msra.mxu0 %v4522
      %4556 = vmatprep.subr.bf16.mxu0 %v4525
      %4557 = vmatpush1.bf16.msra.mxu0 %v4524
      %4558 = vmatprep.subr.bf16.mxu0 0
      %4559 = vmatpush1.bf16.msra.mxu0 0
      %4560 = vmatprep.subr.bf16.mxu0 0
      %4561 = vmatpush1.bf16.msra.mxu0 0
      %4562 = vmatprep.subr.bf16.mxu0 0
      %4563 = vmatpush1.bf16.msra.mxu0 0
      %4564 = vmatprep.subr.bf16.mxu0 0
      %4565 = vmatpush1.bf16.msra.mxu0 0
      %4566 = vmatprep.subr.bf16.mxu0 0
      %4567 = vmatpush1.bf16.msra.mxu0 0
      %4568 = vmatprep.subr.bf16.mxu0 0
      %4569 = vmatpush1.bf16.msra.mxu0 0
      %4570 = vmatprep.subr.bf16.mxu0 0
      %4571 = vmatpush1.bf16.msra.mxu0 0
      %4572 = vmatprep.subr.bf16.mxu0 0
      %4573 = vmatpush1.bf16.msra.mxu0 0
      %4574 = vmatprep.mubr.bf16.mxu0 0
      %4575 = vmatmul.mubr.bf16.gmra.mrb[0].mxu0 %v4433
      %v4576 = vpop.f32.mrb[0].mxu0
      %v4577 = vadd.f32 0.0, %v4576
      %v4578 = vpop.f32.mrb[0].mxu0
      %v4579 = vadd.f32 0.0, %v4578
      %v4580 = vpop.f32.mrb[0].mxu0
      %v4581 = vadd.f32 0.0, %v4580
      %v4582 = vpop.f32.mrb[0].mxu0
      %v4583 = vadd.f32 0.0, %v4582
      %4584 = vmatprep.mubr.bf16.mxu0 0
      %4585 = vmatmul.mubr.bf16.gmra.mrb[0].mxu0 %v4435
      %v4586 = vpop.f32.mrb[0].mxu0
      %v4587 = vadd.f32 0.0, %v4586
      %v4588 = vpop.f32.mrb[0].mxu0
      %v4589 = vadd.f32 0.0, %v4588
      %v4590 = vpop.f32.mrb[0].mxu0
      %v4591 = vadd.f32 0.0, %v4590
      %v4592 = vpop.f32.mrb[0].mxu0
      %v4593 = vadd.f32 0.0, %v4592
      %4594 = vmatprep.mubr.bf16.mxu0 0
      %4595 = vmatmul.mubr.bf16.gmra.mrb[0].mxu0 %v4437
      %v4596 = vpop.f32.mrb[0].mxu0
      %v4597 = vadd.f32 0.0, %v4596
      %v4598 = vpop.f32.mrb[0].mxu0
      %v4599 = vadd.f32 0.0, %v4598
      %v4600 = vpop.f32.mrb[0].mxu0
      %v4601 = vadd.f32 0.0, %v4600
      %v4602 = vpop.f32.mrb[0].mxu0
      %v4603 = vadd.f32 0.0, %v4602
      %4604 = vmatprep.mubr.bf16.mxu0 0
      %4605 = vmatmul.mubr.bf16.gmra.mrb[0].mxu0 %v4439
      %v4606 = vpop.f32.mrb[0].mxu0
      %v4607 = vadd.f32 0.0, %v4606
      %v4608 = vpop.f32.mrb[0].mxu0
      %v4609 = vadd.f32 0.0, %v4608
      %v4610 = vpop.f32.mrb[0].mxu0
      %v4611 = vadd.f32 0.0, %v4610
      %v4612 = vpop.f32.mrb[0].mxu0
      %v4613 = vadd.f32 0.0, %v4612
      %4614 = vmatprep.mubr.bf16.mxu0 0
      %4615 = vmatmul.mubr.bf16.gmra.mrb[0].mxu0 %v4441
      %v4616 = vpop.f32.mrb[0].mxu0
      %v4617 = vadd.f32 0.0, %v4616
      %v4618 = vpop.f32.mrb[0].mxu0
      %v4619 = vadd.f32 0.0, %v4618
      %v4620 = vpop.f32.mrb[0].mxu0
      %v4621 = vadd.f32 0.0, %v4620
      %v4622 = vpop.f32.mrb[0].mxu0
      %v4623 = vadd.f32 0.0, %v4622
      %4624 = vmatprep.mubr.bf16.mxu0 0
      %4625 = vmatmul.mubr.bf16.gmra.mrb[0].mxu0 %v4443
      %v4626 = vpop.f32.mrb[0].mxu0
      %v4627 = vadd.f32 0.0, %v4626
      %v4628 = vpop.f32.mrb[0].mxu0
      %v4629 = vadd.f32 0.0, %v4628
      %v4630 = vpop.f32.mrb[0].mxu0
      %v4631 = vadd.f32 0.0, %v4630
      %v4632 = vpop.f32.mrb[0].mxu0
      %v4633 = vadd.f32 0.0, %v4632
      %4634 = vmatprep.mubr.bf16.mxu0 0
      %4635 = vmatmul.mubr.bf16.gmra.mrb[0].mxu0 %v4445
      %v4636 = vpop.f32.mrb[0].mxu0
      %v4637 = vadd.f32 0.0, %v4636
      %v4638 = vpop.f32.mrb[0].mxu0
      %v4639 = vadd.f32 0.0, %v4638
      %v4640 = vpop.f32.mrb[0].mxu0
      %v4641 = vadd.f32 0.0, %v4640
      %v4642 = vpop.f32.mrb[0].mxu0
      %v4643 = vadd.f32 0.0, %v4642
      %4644 = vmatprep.mubr.bf16.mxu0 0
      %4645 = vmatmul.mubr.bf16.gmra.mrb[0].mxu0 %v4447
      %v4646 = vpop.f32.mrb[0].mxu0
      %v4647 = vadd.f32 0.0, %v4646
      %v4648 = vpop.f32.mrb[0].mxu0
      %v4649 = vadd.f32 0.0, %v4648
      %v4650 = vpop.f32.mrb[0].mxu0
      %v4651 = vadd.f32 0.0, %v4650
      %v4652 = vpop.f32.mrb[0].mxu0
      %v4653 = vadd.f32 0.0, %v4652
      %4654 = vmatprep.mubr.bf16.mxu0 0
      %4655 = vmatmul.mubr.bf16.gmra.mrb[0].mxu0 %v4449
      %v4656 = vpop.f32.mrb[0].mxu0
      %v4657 = vadd.f32 0.0, %v4656
      %v4658 = vpop.f32.mrb[0].mxu0
      %v4659 = vadd.f32 0.0, %v4658
      %v4660 = vpop.f32.mrb[0].mxu0
      %v4661 = vadd.f32 0.0, %v4660
      %v4662 = vpop.f32.mrb[0].mxu0
      %v4663 = vadd.f32 0.0, %v4662
      %4664 = vmatprep.mubr.bf16.mxu0 0
      %4665 = vmatmul.mubr.bf16.gmra.mrb[0].mxu0 %v4451
      %v4666 = vpop.f32.mrb[0].mxu0
      %v4667 = vadd.f32 0.0, %v4666
      %v4668 = vpop.f32.mrb[0].mxu0
      %v4669 = vadd.f32 0.0, %v4668
      %v4670 = vpop.f32.mrb[0].mxu0
      %v4671 = vadd.f32 0.0, %v4670
      %v4672 = vpop.f32.mrb[0].mxu0
      %v4673 = vadd.f32 0.0, %v4672
      %4674 = vdwg.mxu0
      %v4675 = vadd.f32 %v4370, %v4577
      %v4676 = vadd.f32 %v4371, %v4579
      %v4677 = vadd.f32 %v4372, %v4581
      %v4678 = vadd.f32 %v4373, %v4583
      %v4679 = vadd.f32 %v4374, %v4587
      %v4680 = vadd.f32 %v4375, %v4589
      %v4681 = vadd.f32 %v4376, %v4591
      %v4682 = vadd.f32 %v4377, %v4593
      %v4683 = vadd.f32 %v4378, %v4597
      %v4684 = vadd.f32 %v4379, %v4599
      %v4685 = vadd.f32 %v4380, %v4601
      %v4686 = vadd.f32 %v4381, %v4603
      %v4687 = vadd.f32 %v4382, %v4607
      %v4688 = vadd.f32 %v4383, %v4609
      %v4689 = vadd.f32 %v4384, %v4611
      %v4690 = vadd.f32 %v4385, %v4613
      %v4691 = vadd.f32 %v4386, %v4617
      %v4692 = vadd.f32 %v4387, %v4619
      %v4693 = vadd.f32 %v4388, %v4621
      %v4694 = vadd.f32 %v4389, %v4623
      %v4695 = vadd.f32 %v4390, %v4627
      %v4696 = vadd.f32 %v4391, %v4629
      %v4697 = vadd.f32 %v4392, %v4631
      %v4698 = vadd.f32 %v4393, %v4633
      %v4699 = vadd.f32 %v4394, %v4637
      %v4700 = vadd.f32 %v4395, %v4639
      %v4701 = vadd.f32 %v4396, %v4641
      %v4702 = vadd.f32 %v4397, %v4643
      %v4703 = vadd.f32 %v4398, %v4647
      %v4704 = vadd.f32 %v4399, %v4649
      %v4705 = vadd.f32 %v4400, %v4651
      %v4706 = vadd.f32 %v4401, %v4653
      %v4707 = vadd.f32 %v4402, %v4657
      %v4708 = vadd.f32 %v4403, %v4659
      %v4709 = vadd.f32 %v4404, %v4661
      %v4710 = vadd.f32 %v4405, %v4663
      %v4711 = vadd.f32 %v4406, %v4667
      %v4712 = vadd.f32 %v4407, %v4669
      %v4713 = vadd.f32 %v4408, %v4671
      %v4714 = vadd.f32 %v4409, %v4673
      %v4715 = vld [vmem:[#allocation2] sm:$0xc0]
      %v4716 = vld [vmem:[#allocation2 + $0x50] sm:$0x3f]
      %s4717 = scalar_lea.vmem %s5, 1024
      %v4718 = vld [vmem:[%s4717] sm:$0xff]
      %v4719 = vld [vmem:[%s4717 + $0x8] sm:$0xff]
      %v4720 = vld [vmem:[%s4717 + $0x10] sm:$0xff]
      %v4721 = vld [vmem:[%s4717 + $0x18] sm:$0xff]
      %v4722 = vld [vmem:[%s4717 + $0x20] sm:$0xff]
      %v4723 = vld [vmem:[%s4717 + $0x28] sm:$0xff]
      %v4724 = vld [vmem:[%s4717 + $0x30] sm:$0xff]
      %v4725 = vld [vmem:[%s4717 + $0x38] sm:$0xff]
      %v4726 = vld [vmem:[%s4717 + $0x40] sm:$0xff]
      %v4727 = vld [vmem:[%s4717 + $0x48] sm:$0xff]
      %v4728 = vld [vmem:[%s4717 + $0x50] sm:$0xff]
      %v4729 = vld [vmem:[%s4717 + $0x58] sm:$0xff]
      %v4730 = vld [vmem:[%s4717 + $0x60] sm:$0xff]
      %v4731 = vld [vmem:[%s4717 + $0x68] sm:$0xff]
      %v4732 = vld [vmem:[%s4717 + $0x70] sm:$0xff]
      %v4733 = vld [vmem:[%s4717 + $0x78] sm:$0xff]
      %vm4736 = vcmask 1041408
      %v4737 = vrot.slane %v4715, 6
      %v4738 = vrot.slane %v4076, 6
      %v4739 = vsel %vm4736, %v4737, %v4738
      %v4740 = vrot.slane %v4077, 6
      %v4741 = vsel %vm4736, %v4738, %v4740
      %v4742 = vrot.slane %v4078, 6
      %v4743 = vsel %vm4736, %v4740, %v4742
      %v4744 = vrot.slane %v4079, 6
      %v4745 = vsel %vm4736, %v4742, %v4744
      %v4746 = vrot.slane %v4080, 6
      %v4747 = vsel %vm4736, %v4744, %v4746
      %v4748 = vrot.slane %v4081, 6
      %v4749 = vsel %vm4736, %v4746, %v4748
      %v4750 = vrot.slane %v4082, 6
      %v4751 = vsel %vm4736, %v4748, %v4750
      %v4752 = vrot.slane %v4083, 6
      %v4753 = vsel %vm4736, %v4750, %v4752
      %v4754 = vrot.slane %v4084, 6
      %v4755 = vsel %vm4736, %v4752, %v4754
      %v4756 = vrot.slane %v4716, 6
      %v4757 = vsel %vm4736, %v4754, %v4756
      %v4784 = vunpack.c.l.b16 %v4718
      %v4785 = vunpack.c.h.b16 %v4718
      %v4786 = vunpack.c.l.b16 %v4719
      %v4787 = vunpack.c.h.b16 %v4719
      %v4788 = vunpack.c.l.b16 %v4720
      %v4789 = vunpack.c.h.b16 %v4720
      %v4790 = vunpack.c.l.b16 %v4721
      %v4791 = vunpack.c.h.b16 %v4721
      %v4792 = vunpack.c.l.b16 %v4722
      %v4793 = vunpack.c.h.b16 %v4722
      %v4794 = vunpack.c.l.b16 %v4723
      %v4795 = vunpack.c.h.b16 %v4723
      %v4796 = vunpack.c.l.b16 %v4724
      %v4797 = vunpack.c.h.b16 %v4724
      %v4798 = vunpack.c.l.b16 %v4725
      %v4799 = vunpack.c.h.b16 %v4725
      %v4800 = vunpack.c.l.b16 %v4726
      %v4801 = vunpack.c.h.b16 %v4726
      %v4802 = vunpack.c.l.b16 %v4727
      %v4803 = vunpack.c.h.b16 %v4727
      %v4804 = vunpack.c.l.b16 %v4728
      %v4805 = vunpack.c.h.b16 %v4728
      %v4806 = vunpack.c.l.b16 %v4729
      %v4807 = vunpack.c.h.b16 %v4729
      %v4808 = vunpack.c.l.b16 %v4730
      %v4809 = vunpack.c.h.b16 %v4730
      %v4810 = vunpack.c.l.b16 %v4731
      %v4811 = vunpack.c.h.b16 %v4731
      %v4812 = vunpack.c.l.b16 %v4732
      %v4813 = vunpack.c.h.b16 %v4732
      %v4814 = vunpack.c.l.b16 %v4733
      %v4815 = vunpack.c.h.b16 %v4733
      %v4816 = vpack.c.b16 %v4786, %v4784
      %v4817 = vpack.c.b16 %v4787, %v4785
      %v4818 = vpack.c.b16 %v4790, %v4788
      %v4819 = vpack.c.b16 %v4791, %v4789
      %v4820 = vpack.c.b16 %v4794, %v4792
      %v4821 = vpack.c.b16 %v4795, %v4793
      %v4822 = vpack.c.b16 %v4798, %v4796
      %v4823 = vpack.c.b16 %v4799, %v4797
      %v4824 = vpack.c.b16 %v4802, %v4800
      %v4825 = vpack.c.b16 %v4803, %v4801
      %v4826 = vpack.c.b16 %v4806, %v4804
      %v4827 = vpack.c.b16 %v4807, %v4805
      %v4828 = vpack.c.b16 %v4810, %v4808
      %v4829 = vpack.c.b16 %v4811, %v4809
      %v4830 = vpack.c.b16 %v4814, %v4812
      %v4831 = vpack.c.b16 %v4815, %v4813
      %4848 = vmatprep.subr.bf16.mxu0 %v4817
      %4849 = vmatpush1.bf16.msra.mxu0 %v4816
      %4850 = vmatprep.subr.bf16.mxu0 %v4819
      %4851 = vmatpush1.bf16.msra.mxu0 %v4818
      %4852 = vmatprep.subr.bf16.mxu0 %v4821
      %4853 = vmatpush1.bf16.msra.mxu0 %v4820
      %4854 = vmatprep.subr.bf16.mxu0 %v4823
      %4855 = vmatpush1.bf16.msra.mxu0 %v4822
      %4856 = vmatprep.subr.bf16.mxu0 %v4825
      %4857 = vmatpush1.bf16.msra.mxu0 %v4824
      %4858 = vmatprep.subr.bf16.mxu0 %v4827
      %4859 = vmatpush1.bf16.msra.mxu0 %v4826
      %4860 = vmatprep.subr.bf16.mxu0 %v4829
      %4861 = vmatpush1.bf16.msra.mxu0 %v4828
      %4862 = vmatprep.subr.bf16.mxu0 %v4831
      %4863 = vmatpush1.bf16.msra.mxu0 %v4830
      %4864 = vmatprep.subr.bf16.mxu0 0
      %4865 = vmatpush1.bf16.msra.mxu0 0
      %4866 = vmatprep.subr.bf16.mxu0 0
      %4867 = vmatpush1.bf16.msra.mxu0 0
      %4868 = vmatprep.subr.bf16.mxu0 0
      %4869 = vmatpush1.bf16.msra.mxu0 0
      %4870 = vmatprep.subr.bf16.mxu0 0
      %4871 = vmatpush1.bf16.msra.mxu0 0
      %4872 = vmatprep.subr.bf16.mxu0 0
      %4873 = vmatpush1.bf16.msra.mxu0 0
      %4874 = vmatprep.subr.bf16.mxu0 0
      %4875 = vmatpush1.bf16.msra.mxu0 0
      %4876 = vmatprep.subr.bf16.mxu0 0
      %4877 = vmatpush1.bf16.msra.mxu0 0
      %4878 = vmatprep.subr.bf16.mxu0 0
      %4879 = vmatpush1.bf16.msra.mxu0 0
      %4880 = vmatprep.mubr.bf16.mxu0 0
      %4881 = vmatmul.mubr.bf16.gmra.mrb[0].mxu0 %v4739
      %v4882 = vpop.f32.mrb[0].mxu0
      %v4883 = vadd.f32 0.0, %v4882
      %v4884 = vpop.f32.mrb[0].mxu0
      %v4885 = vadd.f32 0.0, %v4884
      %v4886 = vpop.f32.mrb[0].mxu0
      %v4887 = vadd.f32 0.0, %v4886
      %v4888 = vpop.f32.mrb[0].mxu0
      %v4889 = vadd.f32 0.0, %v4888
      %4890 = vmatprep.mubr.bf16.mxu0 0
      %4891 = vmatmul.mubr.bf16.gmra.mrb[0].mxu0 %v4741
      %v4892 = vpop.f32.mrb[0].mxu0
      %v4893 = vadd.f32 0.0, %v4892
      %v4894 = vpop.f32.mrb[0].mxu0
      %v4895 = vadd.f32 0.0, %v4894
      %v4896 = vpop.f32.mrb[0].mxu0
      %v4897 = vadd.f32 0.0, %v4896
      %v4898 = vpop.f32.mrb[0].mxu0
      %v4899 = vadd.f32 0.0, %v4898
      %4900 = vmatprep.mubr.bf16.mxu0 0
      %4901 = vmatmul.mubr.bf16.gmra.mrb[0].mxu0 %v4743
      %v4902 = vpop.f32.mrb[0].mxu0
      %v4903 = vadd.f32 0.0, %v4902
      %v4904 = vpop.f32.mrb[0].mxu0
      %v4905 = vadd.f32 0.0, %v4904
      %v4906 = vpop.f32.mrb[0].mxu0
      %v4907 = vadd.f32 0.0, %v4906
      %v4908 = vpop.f32.mrb[0].mxu0
      %v4909 = vadd.f32 0.0, %v4908
      %4910 = vmatprep.mubr.bf16.mxu0 0
      %4911 = vmatmul.mubr.bf16.gmra.mrb[0].mxu0 %v4745
      %v4912 = vpop.f32.mrb[0].mxu0
      %v4913 = vadd.f32 0.0, %v4912
      %v4914 = vpop.f32.mrb[0].mxu0
      %v4915 = vadd.f32 0.0, %v4914
      %v4916 = vpop.f32.mrb[0].mxu0
      %v4917 = vadd.f32 0.0, %v4916
      %v4918 = vpop.f32.mrb[0].mxu0
      %v4919 = vadd.f32 0.0, %v4918
      %4920 = vmatprep.mubr.bf16.mxu0 0
      %4921 = vmatmul.mubr.bf16.gmra.mrb[0].mxu0 %v4747
      %v4922 = vpop.f32.mrb[0].mxu0
      %v4923 = vadd.f32 0.0, %v4922
      %v4924 = vpop.f32.mrb[0].mxu0
      %v4925 = vadd.f32 0.0, %v4924
      %v4926 = vpop.f32.mrb[0].mxu0
      %v4927 = vadd.f32 0.0, %v4926
      %v4928 = vpop.f32.mrb[0].mxu0
      %v4929 = vadd.f32 0.0, %v4928
      %4930 = vmatprep.mubr.bf16.mxu0 0
      %4931 = vmatmul.mubr.bf16.gmra.mrb[0].mxu0 %v4749
      %v4932 = vpop.f32.mrb[0].mxu0
      %v4933 = vadd.f32 0.0, %v4932
      %v4934 = vpop.f32.mrb[0].mxu0
      %v4935 = vadd.f32 0.0, %v4934
      %v4936 = vpop.f32.mrb[0].mxu0
      %v4937 = vadd.f32 0.0, %v4936
      %v4938 = vpop.f32.mrb[0].mxu0
      %v4939 = vadd.f32 0.0, %v4938
      %4940 = vmatprep.mubr.bf16.mxu0 0
      %4941 = vmatmul.mubr.bf16.gmra.mrb[0].mxu0 %v4751
      %v4942 = vpop.f32.mrb[0].mxu0
      %v4943 = vadd.f32 0.0, %v4942
      %v4944 = vpop.f32.mrb[0].mxu0
      %v4945 = vadd.f32 0.0, %v4944
      %v4946 = vpop.f32.mrb[0].mxu0
      %v4947 = vadd.f32 0.0, %v4946
      %v4948 = vpop.f32.mrb[0].mxu0
      %v4949 = vadd.f32 0.0, %v4948
      %4950 = vmatprep.mubr.bf16.mxu0 0
      %4951 = vmatmul.mubr.bf16.gmra.mrb[0].mxu0 %v4753
      %v4952 = vpop.f32.mrb[0].mxu0
      %v4953 = vadd.f32 0.0, %v4952
      %v4954 = vpop.f32.mrb[0].mxu0
      %v4955 = vadd.f32 0.0, %v4954
      %v4956 = vpop.f32.mrb[0].mxu0
      %v4957 = vadd.f32 0.0, %v4956
      %v4958 = vpop.f32.mrb[0].mxu0
      %v4959 = vadd.f32 0.0, %v4958
      %4960 = vmatprep.mubr.bf16.mxu0 0
      %4961 = vmatmul.mubr.bf16.gmra.mrb[0].mxu0 %v4755
      %v4962 = vpop.f32.mrb[0].mxu0
      %v4963 = vadd.f32 0.0, %v4962
      %v4964 = vpop.f32.mrb[0].mxu0
      %v4965 = vadd.f32 0.0, %v4964
      %v4966 = vpop.f32.mrb[0].mxu0
      %v4967 = vadd.f32 0.0, %v4966
      %v4968 = vpop.f32.mrb[0].mxu0
      %v4969 = vadd.f32 0.0, %v4968
      %4970 = vmatprep.mubr.bf16.mxu0 0
      %4971 = vmatmul.mubr.bf16.gmra.mrb[0].mxu0 %v4757
      %v4972 = vpop.f32.mrb[0].mxu0
      %v4973 = vadd.f32 0.0, %v4972
      %v4974 = vpop.f32.mrb[0].mxu0
      %v4975 = vadd.f32 0.0, %v4974
      %v4976 = vpop.f32.mrb[0].mxu0
      %v4977 = vadd.f32 0.0, %v4976
      %v4978 = vpop.f32.mrb[0].mxu0
      %v4979 = vadd.f32 0.0, %v4978
      %4980 = vdwg.mxu0
      %v4981 = vadd.f32 %v4675, %v4883
      %v4982 = vadd.f32 %v4676, %v4885
      %v4983 = vadd.f32 %v4677, %v4887
      %v4984 = vadd.f32 %v4678, %v4889
      %v4985 = vadd.f32 %v4679, %v4893
      %v4986 = vadd.f32 %v4680, %v4895
      %v4987 = vadd.f32 %v4681, %v4897
      %v4988 = vadd.f32 %v4682, %v4899
      %v4989 = vadd.f32 %v4683, %v4903
      %v4990 = vadd.f32 %v4684, %v4905
      %v4991 = vadd.f32 %v4685, %v4907
      %v4992 = vadd.f32 %v4686, %v4909
      %v4993 = vadd.f32 %v4687, %v4913
      %v4994 = vadd.f32 %v4688, %v4915
      %v4995 = vadd.f32 %v4689, %v4917
      %v4996 = vadd.f32 %v4690, %v4919
      %v4997 = vadd.f32 %v4691, %v4923
      %v4998 = vadd.f32 %v4692, %v4925
      %v4999 = vadd.f32 %v4693, %v4927
      %v5000 = vadd.f32 %v4694, %v4929
      %v5001 = vadd.f32 %v4695, %v4933
      %v5002 = vadd.f32 %v4696, %v4935
      %v5003 = vadd.f32 %v4697, %v4937
      %v5004 = vadd.f32 %v4698, %v4939
      %v5005 = vadd.f32 %v4699, %v4943
      %v5006 = vadd.f32 %v4700, %v4945
      %v5007 = vadd.f32 %v4701, %v4947
      %v5008 = vadd.f32 %v4702, %v4949
      %v5009 = vadd.f32 %v4703, %v4953
      %v5010 = vadd.f32 %v4704, %v4955
      %v5011 = vadd.f32 %v4705, %v4957
      %v5012 = vadd.f32 %v4706, %v4959
      %v5013 = vadd.f32 %v4707, %v4963
      %v5014 = vadd.f32 %v4708, %v4965
      %v5015 = vadd.f32 %v4709, %v4967
      %v5016 = vadd.f32 %v4710, %v4969
      %v5017 = vadd.f32 %v4711, %v4973
      %v5018 = vadd.f32 %v4712, %v4975
      %v5019 = vadd.f32 %v4713, %v4977
      %v5020 = vadd.f32 %v4714, %v4979
      %v5021 = vtanh.pop %v4981
      %v5022 = vtanh.pop %v4983
      %v5023 = vtanh.pop %v4985
      %v5024 = vtanh.pop %v4987
      %v5025 = vtanh.pop %v4989
      %v5026 = vtanh.pop %v4991
      %v5027 = vtanh.pop %v4993
      %v5028 = vtanh.pop %v4995
      %v5029 = vtanh.pop %v4997
      %v5030 = vtanh.pop %v4999
      %v5031 = vtanh.pop %v5001
      %v5032 = vtanh.pop %v5003
      %v5033 = vtanh.pop %v5005
      %v5034 = vtanh.pop %v5007
      %v5035 = vtanh.pop %v5009
      %v5036 = vtanh.pop %v5011
      %v5037 = vtanh.pop %v5013
      %v5038 = vtanh.pop %v5015
      %v5039 = vtanh.pop %v5017
      %v5040 = vtanh.pop %v5019
      %v5041 = vxor.u32 %v4982, 2147483648
      %v5042 = vxor.u32 %v4984, 2147483648
      %v5043 = vxor.u32 %v4986, 2147483648
      %v5044 = vxor.u32 %v4988, 2147483648
      %v5045 = vxor.u32 %v4990, 2147483648
      %v5046 = vxor.u32 %v4992, 2147483648
      %v5047 = vxor.u32 %v4994, 2147483648
      %v5048 = vxor.u32 %v4996, 2147483648
      %v5049 = vxor.u32 %v4998, 2147483648
      %v5050 = vxor.u32 %v5000, 2147483648
      %v5051 = vxor.u32 %v5002, 2147483648
      %v5052 = vxor.u32 %v5004, 2147483648
      %v5053 = vxor.u32 %v5006, 2147483648
      %v5054 = vxor.u32 %v5008, 2147483648
      %v5055 = vxor.u32 %v5010, 2147483648
      %v5056 = vxor.u32 %v5012, 2147483648
      %v5057 = vxor.u32 %v5014, 2147483648
      %v5058 = vxor.u32 %v5016, 2147483648
      %v5059 = vxor.u32 %v5018, 2147483648
      %v5060 = vxor.u32 %v5020, 2147483648
      %v5061 = vmul.f32 %v5041, 1.442695
      %v5062 = vpow.pop %v5061
      %v5063 = vmul.f32 %v5042, 1.442695
      %v5064 = vpow.pop %v5063
      %v5065 = vmul.f32 %v5043, 1.442695
      %v5066 = vpow.pop %v5065
      %v5067 = vmul.f32 %v5044, 1.442695
      %v5068 = vpow.pop %v5067
      %v5069 = vmul.f32 %v5045, 1.442695
      %v5070 = vpow.pop %v5069
      %v5071 = vmul.f32 %v5046, 1.442695
      %v5072 = vpow.pop %v5071
      %v5073 = vmul.f32 %v5047, 1.442695
      %v5074 = vpow.pop %v5073
      %v5075 = vmul.f32 %v5048, 1.442695
      %v5076 = vpow.pop %v5075
      %v5077 = vmul.f32 %v5049, 1.442695
      %v5078 = vpow.pop %v5077
      %v5079 = vmul.f32 %v5050, 1.442695
      %v5080 = vpow.pop %v5079
      %v5081 = vmul.f32 %v5051, 1.442695
      %v5082 = vpow.pop %v5081
      %v5083 = vmul.f32 %v5052, 1.442695
      %v5084 = vpow.pop %v5083
      %v5085 = vmul.f32 %v5053, 1.442695
      %v5086 = vpow.pop %v5085
      %v5087 = vmul.f32 %v5054, 1.442695
      %v5088 = vpow.pop %v5087
      %v5089 = vmul.f32 %v5055, 1.442695
      %v5090 = vpow.pop %v5089
      %v5091 = vmul.f32 %v5056, 1.442695
      %v5092 = vpow.pop %v5091
      %v5093 = vmul.f32 %v5057, 1.442695
      %v5094 = vpow.pop %v5093
      %v5095 = vmul.f32 %v5058, 1.442695
      %v5096 = vpow.pop %v5095
      %v5097 = vmul.f32 %v5059, 1.442695
      %v5098 = vpow.pop %v5097
      %v5099 = vmul.f32 %v5060, 1.442695
      %v5100 = vpow.pop %v5099
      %v5101 = vadd.f32 %v5062, 1.0
      %v5102 = vadd.f32 %v5064, 1.0
      %v5103 = vadd.f32 %v5066, 1.0
      %v5104 = vadd.f32 %v5068, 1.0
      %v5105 = vadd.f32 %v5070, 1.0
      %v5106 = vadd.f32 %v5072, 1.0
      %v5107 = vadd.f32 %v5074, 1.0
      %v5108 = vadd.f32 %v5076, 1.0
      %v5109 = vadd.f32 %v5078, 1.0
      %v5110 = vadd.f32 %v5080, 1.0
      %v5111 = vadd.f32 %v5082, 1.0
      %v5112 = vadd.f32 %v5084, 1.0
      %v5113 = vadd.f32 %v5086, 1.0
      %v5114 = vadd.f32 %v5088, 1.0
      %v5115 = vadd.f32 %v5090, 1.0
      %v5116 = vadd.f32 %v5092, 1.0
      %v5117 = vadd.f32 %v5094, 1.0
      %v5118 = vadd.f32 %v5096, 1.0
      %v5119 = vadd.f32 %v5098, 1.0
      %v5120 = vadd.f32 %v5100, 1.0
      %v5121 = vrcp.pop %v5101
      %v5122 = vmul.f32 1.0, %v5121
      %v5123 = vrcp.pop %v5102
      %v5124 = vmul.f32 1.0, %v5123
      %v5125 = vrcp.pop %v5103
      %v5126 = vmul.f32 1.0, %v5125
      %v5127 = vrcp.pop %v5104
      %v5128 = vmul.f32 1.0, %v5127
      %v5129 = vrcp.pop %v5105
      %v5130 = vmul.f32 1.0, %v5129
      %v5131 = vrcp.pop %v5106
      %v5132 = vmul.f32 1.0, %v5131
      %v5133 = vrcp.pop %v5107
      %v5134 = vmul.f32 1.0, %v5133
      %v5135 = vrcp.pop %v5108
      %v5136 = vmul.f32 1.0, %v5135
      %v5137 = vrcp.pop %v5109
      %v5138 = vmul.f32 1.0, %v5137
      %v5139 = vrcp.pop %v5110
      %v5140 = vmul.f32 1.0, %v5139
      %v5141 = vrcp.pop %v5111
      %v5142 = vmul.f32 1.0, %v5141
      %v5143 = vrcp.pop %v5112
      %v5144 = vmul.f32 1.0, %v5143
      %v5145 = vrcp.pop %v5113
      %v5146 = vmul.f32 1.0, %v5145
      %v5147 = vrcp.pop %v5114
      %v5148 = vmul.f32 1.0, %v5147
      %v5149 = vrcp.pop %v5115
      %v5150 = vmul.f32 1.0, %v5149
      %v5151 = vrcp.pop %v5116
      %v5152 = vmul.f32 1.0, %v5151
      %v5153 = vrcp.pop %v5117
      %v5154 = vmul.f32 1.0, %v5153
      %v5155 = vrcp.pop %v5118
      %v5156 = vmul.f32 1.0, %v5155
      %v5157 = vrcp.pop %v5119
      %v5158 = vmul.f32 1.0, %v5157
      %v5159 = vrcp.pop %v5120
      %v5160 = vmul.f32 1.0, %v5159
      %v5161 = vmul.f32 %v5021, %v5122
      %v5162 = vmul.f32 %v5022, %v5124
      %v5163 = vmul.f32 %v5023, %v5126
      %v5164 = vmul.f32 %v5024, %v5128
      %v5165 = vmul.f32 %v5025, %v5130
      %v5166 = vmul.f32 %v5026, %v5132
      %v5167 = vmul.f32 %v5027, %v5134
      %v5168 = vmul.f32 %v5028, %v5136
      %v5169 = vmul.f32 %v5029, %v5138
      %v5170 = vmul.f32 %v5030, %v5140
      %v5171 = vmul.f32 %v5031, %v5142
      %v5172 = vmul.f32 %v5032, %v5144
      %v5173 = vmul.f32 %v5033, %v5146
      %v5174 = vmul.f32 %v5034, %v5148
      %v5175 = vmul.f32 %v5035, %v5150
      %v5176 = vmul.f32 %v5036, %v5152
      %v5177 = vmul.f32 %v5037, %v5154
      %v5178 = vmul.f32 %v5038, %v5156
      %v5179 = vmul.f32 %v5039, %v5158
      %v5180 = vmul.f32 %v5040, %v5160
      %v5181 = vpack.c.bf16 %v5162, %v5161
      %v5182 = vpack.c.bf16 %v5164, %v5163
      %v5183 = vpack.c.bf16 %v5166, %v5165
      %v5184 = vpack.c.bf16 %v5168, %v5167
      %v5185 = vpack.c.bf16 %v5170, %v5169
      %v5186 = vpack.c.bf16 %v5172, %v5171
      %v5187 = vpack.c.bf16 %v5174, %v5173
      %v5188 = vpack.c.bf16 %v5176, %v5175
      %v5189 = vpack.c.bf16 %v5178, %v5177
      %v5190 = vpack.c.bf16 %v5180, %v5179
      %s5191 = scalar_lea.vmem %s6, 256
      %v5192 = vld [vmem:[%s5191] sm:$0xff]
      %v5193 = vld [vmem:[%s5191 + $0x8] sm:$0xff]
      %v5194 = vld [vmem:[%s5191 + $0x10] sm:$0xff]
      %v5195 = vld [vmem:[%s5191 + $0x18] sm:$0xff]
      %v5196 = vld [vmem:[%s5191 + $0x20] sm:$0xff]
      %v5197 = vld [vmem:[%s5191 + $0x28] sm:$0xff]
      %v5198 = vld [vmem:[%s5191 + $0x30] sm:$0xff]
      %v5199 = vld [vmem:[%s5191 + $0x38] sm:$0xff]
      %v5200 = vld [vmem:[%s5191 + $0x40] sm:$0xff]
      %v5201 = vld [vmem:[%s5191 + $0x48] sm:$0xff]
      %v5202 = vld [vmem:[%s5191 + $0x50] sm:$0xff]
      %v5203 = vld [vmem:[%s5191 + $0x58] sm:$0xff]
      %v5204 = vld [vmem:[%s5191 + $0x60] sm:$0xff]
      %v5205 = vld [vmem:[%s5191 + $0x68] sm:$0xff]
      %v5206 = vld [vmem:[%s5191 + $0x70] sm:$0xff]
      %v5207 = vld [vmem:[%s5191 + $0x78] sm:$0xff]
      %s5208 = scalar_lea.vmem %s7, 4
      %v5209 = vld [vmem:[%s5208] sm:$0x3]
      %v5211 = vlaneseq
      %v5212 = vshrl.u32 %v5211, 7
      %v5213 = vsub.s32 0, %v5212
      %v5214 = vrot.slane %v5209, %v5213
      %v5215 = vlaneseq
      %v5216 = vshrl.u32 %v5215, 7
      %v5217 = vsub.s32 1, %v5216
      %v5218 = vrot.slane %v5209, %v5217
      %v5237 = vunpack.c.l.b16 %v5192
      %v5238 = vunpack.c.h.b16 %v5192
      %v5239 = vunpack.c.l.b16 %v5193
      %v5240 = vunpack.c.h.b16 %v5193
      %v5241 = vunpack.c.l.b16 %v5194
      %v5242 = vunpack.c.h.b16 %v5194
      %v5243 = vunpack.c.l.b16 %v5195
      %v5244 = vunpack.c.h.b16 %v5195
      %v5245 = vunpack.c.l.b16 %v5196
      %v5246 = vunpack.c.h.b16 %v5196
      %v5247 = vunpack.c.l.b16 %v5197
      %v5248 = vunpack.c.h.b16 %v5197
      %v5249 = vunpack.c.l.b16 %v5198
      %v5250 = vunpack.c.h.b16 %v5198
      %v5251 = vunpack.c.l.b16 %v5199
      %v5252 = vunpack.c.h.b16 %v5199
      %v5253 = vunpack.c.l.b16 %v5200
      %v5254 = vunpack.c.h.b16 %v5200
      %v5255 = vunpack.c.l.b16 %v5201
      %v5256 = vunpack.c.h.b16 %v5201
      %v5257 = vunpack.c.l.b16 %v5202
      %v5258 = vunpack.c.h.b16 %v5202
      %v5259 = vunpack.c.l.b16 %v5203
      %v5260 = vunpack.c.h.b16 %v5203
      %v5261 = vunpack.c.l.b16 %v5204
      %v5262 = vunpack.c.h.b16 %v5204
      %v5263 = vunpack.c.l.b16 %v5205
      %v5264 = vunpack.c.h.b16 %v5205
      %v5265 = vunpack.c.l.b16 %v5206
      %v5266 = vunpack.c.h.b16 %v5206
      %v5267 = vunpack.c.l.b16 %v5207
      %v5268 = vunpack.c.h.b16 %v5207
      %v5269 = vpack.c.b16 %v5239, %v5237
      %v5270 = vpack.c.b16 %v5240, %v5238
      %v5271 = vpack.c.b16 %v5243, %v5241
      %v5272 = vpack.c.b16 %v5244, %v5242
      %v5273 = vpack.c.b16 %v5247, %v5245
      %v5274 = vpack.c.b16 %v5248, %v5246
      %v5275 = vpack.c.b16 %v5251, %v5249
      %v5276 = vpack.c.b16 %v5252, %v5250
      %v5277 = vpack.c.b16 %v5255, %v5253
      %v5278 = vpack.c.b16 %v5256, %v5254
      %v5279 = vpack.c.b16 %v5259, %v5257
      %v5280 = vpack.c.b16 %v5260, %v5258
      %v5281 = vpack.c.b16 %v5263, %v5261
      %v5282 = vpack.c.b16 %v5264, %v5262
      %v5283 = vpack.c.b16 %v5267, %v5265
      %v5284 = vpack.c.b16 %v5268, %v5266
      %5301 = vmatprep.subr.bf16.mxu0 %v5270
      %5302 = vmatpush1.bf16.msra.mxu0 %v5269
      %5303 = vmatprep.subr.bf16.mxu0 %v5272
      %5304 = vmatpush1.bf16.msra.mxu0 %v5271
      %5305 = vmatprep.subr.bf16.mxu0 %v5274
      %5306 = vmatpush1.bf16.msra.mxu0 %v5273
      %5307 = vmatprep.subr.bf16.mxu0 %v5276
      %5308 = vmatpush1.bf16.msra.mxu0 %v5275
      %5309 = vmatprep.subr.bf16.mxu0 %v5278
      %5310 = vmatpush1.bf16.msra.mxu0 %v5277
      %5311 = vmatprep.subr.bf16.mxu0 %v5280
      %5312 = vmatpush1.bf16.msra.mxu0 %v5279
      %5313 = vmatprep.subr.bf16.mxu0 %v5282
      %5314 = vmatpush1.bf16.msra.mxu0 %v5281
      %5315 = vmatprep.subr.bf16.mxu0 %v5284
      %5316 = vmatpush1.bf16.msra.mxu0 %v5283
      %5317 = vmatprep.subr.bf16.mxu0 0
      %5318 = vmatpush1.bf16.msra.mxu0 0
      %5319 = vmatprep.subr.bf16.mxu0 0
      %5320 = vmatpush1.bf16.msra.mxu0 0
      %5321 = vmatprep.subr.bf16.mxu0 0
      %5322 = vmatpush1.bf16.msra.mxu0 0
      %5323 = vmatprep.subr.bf16.mxu0 0
      %5324 = vmatpush1.bf16.msra.mxu0 0
      %5325 = vmatprep.subr.bf16.mxu0 0
      %5326 = vmatpush1.bf16.msra.mxu0 0
      %5327 = vmatprep.subr.bf16.mxu0 0
      %5328 = vmatpush1.bf16.msra.mxu0 0
      %5329 = vmatprep.subr.bf16.mxu0 0
      %5330 = vmatpush1.bf16.msra.mxu0 0
      %5331 = vmatprep.subr.bf16.mxu0 0
      %5332 = vmatpush1.bf16.msra.mxu0 0
      %5333 = vmatprep.mubr.bf16.mxu0 0
      %5334 = vmatmul.mubr.bf16.gmra.mrb[0].mxu0 %v5181
      %v5335 = vpop.f32.mrb[0].mxu0
      %v5336 = vadd.f32 %v5214, %v5335
      %v5337 = vpop.f32.mrb[0].mxu0
      %v5338 = vadd.f32 %v5218, %v5337
      %v5339 = vpop.f32.mrb[0].mxu0
      %v5340 = vadd.f32 %v5214, %v5339
      %v5341 = vpop.f32.mrb[0].mxu0
      %v5342 = vadd.f32 %v5218, %v5341
      %5343 = vmatprep.mubr.bf16.mxu0 0
      %5344 = vmatmul.mubr.bf16.gmra.mrb[0].mxu0 %v5182
      %v5345 = vpop.f32.mrb[0].mxu0
      %v5346 = vadd.f32 %v5214, %v5345
      %v5347 = vpop.f32.mrb[0].mxu0
      %v5348 = vadd.f32 %v5218, %v5347
      %v5349 = vpop.f32.mrb[0].mxu0
      %v5350 = vadd.f32 %v5214, %v5349
      %v5351 = vpop.f32.mrb[0].mxu0
      %v5352 = vadd.f32 %v5218, %v5351
      %5353 = vmatprep.mubr.bf16.mxu0 0
      %5354 = vmatmul.mubr.bf16.gmra.mrb[0].mxu0 %v5183
      %v5355 = vpop.f32.mrb[0].mxu0
      %v5356 = vadd.f32 %v5214, %v5355
      %v5357 = vpop.f32.mrb[0].mxu0
      %v5358 = vadd.f32 %v5218, %v5357
      %v5359 = vpop.f32.mrb[0].mxu0
      %v5360 = vadd.f32 %v5214, %v5359
      %v5361 = vpop.f32.mrb[0].mxu0
      %v5362 = vadd.f32 %v5218, %v5361
      %5363 = vmatprep.mubr.bf16.mxu0 0
      %5364 = vmatmul.mubr.bf16.gmra.mrb[0].mxu0 %v5184
      %v5365 = vpop.f32.mrb[0].mxu0
      %v5366 = vadd.f32 %v5214, %v5365
      %v5367 = vpop.f32.mrb[0].mxu0
      %v5368 = vadd.f32 %v5218, %v5367
      %v5369 = vpop.f32.mrb[0].mxu0
      %v5370 = vadd.f32 %v5214, %v5369
      %v5371 = vpop.f32.mrb[0].mxu0
      %v5372 = vadd.f32 %v5218, %v5371
      %5373 = vmatprep.mubr.bf16.mxu0 0
      %5374 = vmatmul.mubr.bf16.gmra.mrb[0].mxu0 %v5185
      %v5375 = vpop.f32.mrb[0].mxu0
      %v5376 = vadd.f32 %v5214, %v5375
      %v5377 = vpop.f32.mrb[0].mxu0
      %v5378 = vadd.f32 %v5218, %v5377
      %v5379 = vpop.f32.mrb[0].mxu0
      %v5380 = vadd.f32 %v5214, %v5379
      %v5381 = vpop.f32.mrb[0].mxu0
      %v5382 = vadd.f32 %v5218, %v5381
      %5383 = vmatprep.mubr.bf16.mxu0 0
      %5384 = vmatmul.mubr.bf16.gmra.mrb[0].mxu0 %v5186
      %v5385 = vpop.f32.mrb[0].mxu0
      %v5386 = vadd.f32 %v5214, %v5385
      %v5387 = vpop.f32.mrb[0].mxu0
      %v5388 = vadd.f32 %v5218, %v5387
      %v5389 = vpop.f32.mrb[0].mxu0
      %v5390 = vadd.f32 %v5214, %v5389
      %v5391 = vpop.f32.mrb[0].mxu0
      %v5392 = vadd.f32 %v5218, %v5391
      %5393 = vmatprep.mubr.bf16.mxu0 0
      %5394 = vmatmul.mubr.bf16.gmra.mrb[0].mxu0 %v5187
      %v5395 = vpop.f32.mrb[0].mxu0
      %v5396 = vadd.f32 %v5214, %v5395
      %v5397 = vpop.f32.mrb[0].mxu0
      %v5398 = vadd.f32 %v5218, %v5397
      %v5399 = vpop.f32.mrb[0].mxu0
      %v5400 = vadd.f32 %v5214, %v5399
      %v5401 = vpop.f32.mrb[0].mxu0
      %v5402 = vadd.f32 %v5218, %v5401
      %5403 = vmatprep.mubr.bf16.mxu0 0
      %5404 = vmatmul.mubr.bf16.gmra.mrb[0].mxu0 %v5188
      %v5405 = vpop.f32.mrb[0].mxu0
      %v5406 = vadd.f32 %v5214, %v5405
      %v5407 = vpop.f32.mrb[0].mxu0
      %v5408 = vadd.f32 %v5218, %v5407
      %v5409 = vpop.f32.mrb[0].mxu0
      %v5410 = vadd.f32 %v5214, %v5409
      %v5411 = vpop.f32.mrb[0].mxu0
      %v5412 = vadd.f32 %v5218, %v5411
      %5413 = vmatprep.mubr.bf16.mxu0 0
      %5414 = vmatmul.mubr.bf16.gmra.mrb[0].mxu0 %v5189
      %v5415 = vpop.f32.mrb[0].mxu0
      %v5416 = vadd.f32 %v5214, %v5415
      %v5417 = vpop.f32.mrb[0].mxu0
      %v5418 = vadd.f32 %v5218, %v5417
      %v5419 = vpop.f32.mrb[0].mxu0
      %v5420 = vadd.f32 %v5214, %v5419
      %v5421 = vpop.f32.mrb[0].mxu0
      %v5422 = vadd.f32 %v5218, %v5421
      %5423 = vmatprep.mubr.bf16.mxu0 0
      %5424 = vmatmul.mubr.bf16.gmra.mrb[0].mxu0 %v5190
      %v5425 = vpop.f32.mrb[0].mxu0
      %v5426 = vadd.f32 %v5214, %v5425
      %v5427 = vpop.f32.mrb[0].mxu0
      %v5428 = vadd.f32 %v5218, %v5427
      %v5429 = vpop.f32.mrb[0].mxu0
      %v5430 = vadd.f32 %v5214, %v5429
      %v5431 = vpop.f32.mrb[0].mxu0
      %v5432 = vadd.f32 %v5218, %v5431
      %5433 = vdwg.mxu0
      %v5434 = vadd.f32 %v3972, %v5336
      %v5435 = vadd.f32 %v3973, %v5340
      %v5436 = vadd.f32 %v3974, %v5346
      %v5437 = vadd.f32 %v3975, %v5350
      %v5438 = vadd.f32 %v3976, %v5356
      %v5439 = vadd.f32 %v3977, %v5360
      %v5440 = vadd.f32 %v3978, %v5366
      %v5441 = vadd.f32 %v3979, %v5370
      %v5442 = vadd.f32 %v3980, %v5376
      %v5443 = vadd.f32 %v3981, %v5380
      %v5444 = vadd.f32 %v3982, %v5386
      %v5445 = vadd.f32 %v3983, %v5390
      %v5446 = vadd.f32 %v3984, %v5396
      %v5447 = vadd.f32 %v3985, %v5400
      %v5448 = vadd.f32 %v3986, %v5406
      %v5449 = vadd.f32 %v3987, %v5410
      %v5450 = vadd.f32 %v3988, %v5416
      %v5451 = vadd.f32 %v3989, %v5420
      %v5452 = vadd.f32 %v3990, %v5426
      %v5453 = vadd.f32 %v3991, %v5430
      %v5454 = vmul.f32 %v5434, %v831
      %v5455 = vmul.f32 %v5435, %v836
      %v5456 = vmul.f32 %v5436, %v841
      %v5457 = vmul.f32 %v5437, %v846
      %v5458 = vmul.f32 %v5438, %v851
      %v5459 = vmul.f32 %v5439, %v856
      %v5460 = vmul.f32 %v5440, %v861
      %v5461 = vmul.f32 %v5441, %v866
      %v5462 = vmul.f32 %v5442, %v871
      %v5463 = vmul.f32 %v5443, %v876
      %v5464 = vmul.f32 %v5444, %v881
      %v5465 = vmul.f32 %v5445, %v886
      %v5466 = vmul.f32 %v5446, %v891
      %v5467 = vmul.f32 %v5447, %v896
      %v5468 = vmul.f32 %v5448, %v901
      %v5469 = vmul.f32 %v5449, %v906
      %v5470 = vmul.f32 %v5450, %v911
      %v5471 = vmul.f32 %v5451, %v916
      %v5472 = vmul.f32 %v5452, %v921
      %v5473 = vmul.f32 %v5453, %v926
      %v5474 = vadd.f32 %v3992, %v5338
      %v5475 = vadd.f32 %v3993, %v5342
      %v5476 = vadd.f32 %v3994, %v5348
      %v5477 = vadd.f32 %v3995, %v5352
      %v5478 = vadd.f32 %v3996, %v5358
      %v5479 = vadd.f32 %v3997, %v5362
      %v5480 = vadd.f32 %v3998, %v5368
      %v5481 = vadd.f32 %v3999, %v5372
      %v5482 = vadd.f32 %v4000, %v5378
      %v5483 = vadd.f32 %v4001, %v5382
      %v5484 = vadd.f32 %v4002, %v5388
      %v5485 = vadd.f32 %v4003, %v5392
      %v5486 = vadd.f32 %v4004, %v5398
      %v5487 = vadd.f32 %v4005, %v5402
      %v5488 = vadd.f32 %v4006, %v5408
      %v5489 = vadd.f32 %v4007, %v5412
      %v5490 = vadd.f32 %v4008, %v5418
      %v5491 = vadd.f32 %v4009, %v5422
      %v5492 = vadd.f32 %v4010, %v5428
      %v5493 = vadd.f32 %v4011, %v5432
      %v5494 = vpack.c.bf16 %v5455, %v5454
      %v5495 = vpack.c.bf16 %v5457, %v5456
      %v5496 = vpack.c.bf16 %v5459, %v5458
      %v5497 = vpack.c.bf16 %v5461, %v5460
      %v5498 = vpack.c.bf16 %v5463, %v5462
      %v5499 = vpack.c.bf16 %v5465, %v5464
      %v5500 = vpack.c.bf16 %v5467, %v5466
      %v5501 = vpack.c.bf16 %v5469, %v5468
      %v5502 = vpack.c.bf16 %v5471, %v5470
      %v5503 = vpack.c.bf16 %v5473, %v5472
      %v5514 = vrot.slane %v5494, 4
      %v5515 = vrot.slane %v5495, 4
      %v5516 = vsel %vm968, %v5514, %v5515
      %v5517 = vrot.slane %v5496, 4
      %v5518 = vsel %vm968, %v5515, %v5517
      %v5519 = vrot.slane %v5497, 4
      %v5520 = vsel %vm968, %v5517, %v5519
      %v5521 = vrot.slane %v5498, 4
      %v5522 = vsel %vm968, %v5519, %v5521
      %v5523 = vrot.slane %v5499, 4
      %v5524 = vsel %vm968, %v5521, %v5523
      %v5525 = vrot.slane %v5500, 4
      %v5526 = vsel %vm968, %v5523, %v5525
      %v5527 = vrot.slane %v5501, 4
      %v5528 = vsel %vm968, %v5525, %v5527
      %v5529 = vrot.slane %v5502, 4
      %v5530 = vsel %vm968, %v5527, %v5529
      %v5531 = vrot.slane %v5503, 4
      %v5532 = vsel %vm968, %v5529, %v5531
      %5544 = vst [vmem:[#allocation2] sm:$0xf0] %v5514
      %5545 = vst [vmem:[#allocation2 + $0x8] sm:$0xff] %v5516
      %5546 = vst [vmem:[#allocation2 + $0x10] sm:$0xff] %v5518
      %5547 = vst [vmem:[#allocation2 + $0x18] sm:$0xff] %v5520
      %5548 = vst [vmem:[#allocation2 + $0x20] sm:$0xff] %v5522
      %5549 = vst [vmem:[#allocation2 + $0x28] sm:$0xff] %v5524
      %5550 = vst [vmem:[#allocation2 + $0x30] sm:$0xff] %v5526
      %5551 = vst [vmem:[#allocation2 + $0x38] sm:$0xff] %v5528
      %5552 = vst [vmem:[#allocation2 + $0x40] sm:$0xff] %v5530
      %5553 = vst [vmem:[#allocation2 + $0x48] sm:$0xff] %v5532
      %5554 = vst [vmem:[#allocation2 + $0x50] sm:$0xf] %v5531
      %s5555 = scalar_lea.vmem %s437, 6
      %v5556 = vld [vmem:[%s5555] sm:$0x3]
      %v5557 = vld [vmem:[#allocation2] sm:$0xff]
      %v5558 = vld [vmem:[#allocation2 + $0x8] sm:$0xff]
      %v5559 = vld [vmem:[#allocation2 + $0x10] sm:$0xff]
      %v5560 = vld [vmem:[#allocation2 + $0x18] sm:$0xff]
      %v5561 = vld [vmem:[#allocation2 + $0x20] sm:$0xff]
      %v5562 = vld [vmem:[#allocation2 + $0x28] sm:$0xff]
      %v5563 = vld [vmem:[#allocation2 + $0x30] sm:$0xff]
      %v5564 = vld [vmem:[#allocation2 + $0x38] sm:$0xff]
      %v5565 = vld [vmem:[#allocation2 + $0x40] sm:$0xff]
      %v5566 = vld [vmem:[#allocation2 + $0x48] sm:$0xff]
      %s5567 = scalar_lea.vmem %s5, 1152
      %v5568 = vld [vmem:[%s5567] sm:$0xff]
      %v5569 = vld [vmem:[%s5567 + $0x8] sm:$0xff]
      %v5570 = vld [vmem:[%s5567 + $0x10] sm:$0xff]
      %v5571 = vld [vmem:[%s5567 + $0x18] sm:$0xff]
      %v5572 = vld [vmem:[%s5567 + $0x20] sm:$0xff]
      %v5573 = vld [vmem:[%s5567 + $0x28] sm:$0xff]
      %v5574 = vld [vmem:[%s5567 + $0x30] sm:$0xff]
      %v5575 = vld [vmem:[%s5567 + $0x38] sm:$0xff]
      %v5576 = vld [vmem:[%s5567 + $0x40] sm:$0xff]
      %v5577 = vld [vmem:[%s5567 + $0x48] sm:$0xff]
      %v5578 = vld [vmem:[%s5567 + $0x50] sm:$0xff]
      %v5579 = vld [vmem:[%s5567 + $0x58] sm:$0xff]
      %v5580 = vld [vmem:[%s5567 + $0x60] sm:$0xff]
      %v5581 = vld [vmem:[%s5567 + $0x68] sm:$0xff]
      %v5582 = vld [vmem:[%s5567 + $0x70] sm:$0xff]
      %v5583 = vld [vmem:[%s5567 + $0x78] sm:$0xff]
      %v5600 = vunpack.c.l.b16 %v5568
      %v5601 = vunpack.c.h.b16 %v5568
      %v5602 = vunpack.c.l.b16 %v5569
      %v5603 = vunpack.c.h.b16 %v5569
      %v5604 = vunpack.c.l.b16 %v5570
      %v5605 = vunpack.c.h.b16 %v5570
      %v5606 = vunpack.c.l.b16 %v5571
      %v5607 = vunpack.c.h.b16 %v5571
      %v5608 = vunpack.c.l.b16 %v5572
      %v5609 = vunpack.c.h.b16 %v5572
      %v5610 = vunpack.c.l.b16 %v5573
      %v5611 = vunpack.c.h.b16 %v5573
      %v5612 = vunpack.c.l.b16 %v5574
      %v5613 = vunpack.c.h.b16 %v5574
      %v5614 = vunpack.c.l.b16 %v5575
      %v5615 = vunpack.c.h.b16 %v5575
      %v5616 = vunpack.c.l.b16 %v5576
      %v5617 = vunpack.c.h.b16 %v5576
      %v5618 = vunpack.c.l.b16 %v5577
      %v5619 = vunpack.c.h.b16 %v5577
      %v5620 = vunpack.c.l.b16 %v5578
      %v5621 = vunpack.c.h.b16 %v5578
      %v5622 = vunpack.c.l.b16 %v5579
      %v5623 = vunpack.c.h.b16 %v5579
      %v5624 = vunpack.c.l.b16 %v5580
      %v5625 = vunpack.c.h.b16 %v5580
      %v5626 = vunpack.c.l.b16 %v5581
      %v5627 = vunpack.c.h.b16 %v5581
      %v5628 = vunpack.c.l.b16 %v5582
      %v5629 = vunpack.c.h.b16 %v5582
      %v5630 = vunpack.c.l.b16 %v5583
      %v5631 = vunpack.c.h.b16 %v5583
      %v5632 = vpack.c.b16 %v5602, %v5600
      %v5633 = vpack.c.b16 %v5603, %v5601
      %v5634 = vpack.c.b16 %v5606, %v5604
      %v5635 = vpack.c.b16 %v5607, %v5605
      %v5636 = vpack.c.b16 %v5610, %v5608
      %v5637 = vpack.c.b16 %v5611, %v5609
      %v5638 = vpack.c.b16 %v5614, %v5612
      %v5639 = vpack.c.b16 %v5615, %v5613
      %v5640 = vpack.c.b16 %v5618, %v5616
      %v5641 = vpack.c.b16 %v5619, %v5617
      %v5642 = vpack.c.b16 %v5622, %v5620
      %v5643 = vpack.c.b16 %v5623, %v5621
      %v5644 = vpack.c.b16 %v5626, %v5624
      %v5645 = vpack.c.b16 %v5627, %v5625
      %v5646 = vpack.c.b16 %v5630, %v5628
      %v5647 = vpack.c.b16 %v5631, %v5629
      %5664 = vmatprep.subr.bf16.mxu0 %v5633
      %5665 = vmatpush1.bf16.msra.mxu0 %v5632
      %5666 = vmatprep.subr.bf16.mxu0 %v5635
      %5667 = vmatpush1.bf16.msra.mxu0 %v5634
      %5668 = vmatprep.subr.bf16.mxu0 %v5637
      %5669 = vmatpush1.bf16.msra.mxu0 %v5636
      %5670 = vmatprep.subr.bf16.mxu0 %v5639
      %5671 = vmatpush1.bf16.msra.mxu0 %v5638
      %5672 = vmatprep.subr.bf16.mxu0 %v5641
      %5673 = vmatpush1.bf16.msra.mxu0 %v5640
      %5674 = vmatprep.subr.bf16.mxu0 %v5643
      %5675 = vmatpush1.bf16.msra.mxu0 %v5642
      %5676 = vmatprep.subr.bf16.mxu0 %v5645
      %5677 = vmatpush1.bf16.msra.mxu0 %v5644
      %5678 = vmatprep.subr.bf16.mxu0 %v5647
      %5679 = vmatpush1.bf16.msra.mxu0 %v5646
      %5680 = vmatprep.subr.bf16.mxu0 0
      %5681 = vmatpush1.bf16.msra.mxu0 0
      %5682 = vmatprep.subr.bf16.mxu0 0
      %5683 = vmatpush1.bf16.msra.mxu0 0
      %5684 = vmatprep.subr.bf16.mxu0 0
      %5685 = vmatpush1.bf16.msra.mxu0 0
      %5686 = vmatprep.subr.bf16.mxu0 0
      %5687 = vmatpush1.bf16.msra.mxu0 0
      %5688 = vmatprep.subr.bf16.mxu0 0
      %5689 = vmatpush1.bf16.msra.mxu0 0
      %5690 = vmatprep.subr.bf16.mxu0 0
      %5691 = vmatpush1.bf16.msra.mxu0 0
      %5692 = vmatprep.subr.bf16.mxu0 0
      %5693 = vmatpush1.bf16.msra.mxu0 0
      %5694 = vmatprep.subr.bf16.mxu0 0
      %5695 = vmatpush1.bf16.msra.mxu0 0
      %5696 = vmatprep.mubr.bf16.mxu0 0
      %5697 = vmatmul.mubr.bf16.gmra.mrb[0].mxu0 %v5557
      %v5698 = vpop.f32.mrb[0].mxu0
      %v5699 = vadd.f32 0.0, %v5698
      %v5700 = vpop.f32.mrb[0].mxu0
      %v5701 = vadd.f32 0.0, %v5700
      %v5702 = vpop.f32.mrb[0].mxu0
      %v5703 = vadd.f32 0.0, %v5702
      %v5704 = vpop.f32.mrb[0].mxu0
      %v5705 = vadd.f32 0.0, %v5704
      %5706 = vmatprep.mubr.bf16.mxu0 0
      %5707 = vmatmul.mubr.bf16.gmra.mrb[0].mxu0 %v5558
      %v5708 = vpop.f32.mrb[0].mxu0
      %v5709 = vadd.f32 0.0, %v5708
      %v5710 = vpop.f32.mrb[0].mxu0
      %v5711 = vadd.f32 0.0, %v5710
      %v5712 = vpop.f32.mrb[0].mxu0
      %v5713 = vadd.f32 0.0, %v5712
      %v5714 = vpop.f32.mrb[0].mxu0
      %v5715 = vadd.f32 0.0, %v5714
      %5716 = vmatprep.mubr.bf16.mxu0 0
      %5717 = vmatmul.mubr.bf16.gmra.mrb[0].mxu0 %v5559
      %v5718 = vpop.f32.mrb[0].mxu0
      %v5719 = vadd.f32 0.0, %v5718
      %v5720 = vpop.f32.mrb[0].mxu0
      %v5721 = vadd.f32 0.0, %v5720
      %v5722 = vpop.f32.mrb[0].mxu0
      %v5723 = vadd.f32 0.0, %v5722
      %v5724 = vpop.f32.mrb[0].mxu0
      %v5725 = vadd.f32 0.0, %v5724
      %5726 = vmatprep.mubr.bf16.mxu0 0
      %5727 = vmatmul.mubr.bf16.gmra.mrb[0].mxu0 %v5560
      %v5728 = vpop.f32.mrb[0].mxu0
      %v5729 = vadd.f32 0.0, %v5728
      %v5730 = vpop.f32.mrb[0].mxu0
      %v5731 = vadd.f32 0.0, %v5730
      %v5732 = vpop.f32.mrb[0].mxu0
      %v5733 = vadd.f32 0.0, %v5732
      %v5734 = vpop.f32.mrb[0].mxu0
      %v5735 = vadd.f32 0.0, %v5734
      %5736 = vmatprep.mubr.bf16.mxu0 0
      %5737 = vmatmul.mubr.bf16.gmra.mrb[0].mxu0 %v5561
      %v5738 = vpop.f32.mrb[0].mxu0
      %v5739 = vadd.f32 0.0, %v5738
      %v5740 = vpop.f32.mrb[0].mxu0
      %v5741 = vadd.f32 0.0, %v5740
      %v5742 = vpop.f32.mrb[0].mxu0
      %v5743 = vadd.f32 0.0, %v5742
      %v5744 = vpop.f32.mrb[0].mxu0
      %v5745 = vadd.f32 0.0, %v5744
      %5746 = vmatprep.mubr.bf16.mxu0 0
      %5747 = vmatmul.mubr.bf16.gmra.mrb[0].mxu0 %v5562
      %v5748 = vpop.f32.mrb[0].mxu0
      %v5749 = vadd.f32 0.0, %v5748
      %v5750 = vpop.f32.mrb[0].mxu0
      %v5751 = vadd.f32 0.0, %v5750
      %v5752 = vpop.f32.mrb[0].mxu0
      %v5753 = vadd.f32 0.0, %v5752
      %v5754 = vpop.f32.mrb[0].mxu0
      %v5755 = vadd.f32 0.0, %v5754
      %5756 = vmatprep.mubr.bf16.mxu0 0
      %5757 = vmatmul.mubr.bf16.gmra.mrb[0].mxu0 %v5563
      %v5758 = vpop.f32.mrb[0].mxu0
      %v5759 = vadd.f32 0.0, %v5758
      %v5760 = vpop.f32.mrb[0].mxu0
      %v5761 = vadd.f32 0.0, %v5760
      %v5762 = vpop.f32.mrb[0].mxu0
      %v5763 = vadd.f32 0.0, %v5762
      %v5764 = vpop.f32.mrb[0].mxu0
      %v5765 = vadd.f32 0.0, %v5764
      %5766 = vmatprep.mubr.bf16.mxu0 0
      %5767 = vmatmul.mubr.bf16.gmra.mrb[0].mxu0 %v5564
      %v5768 = vpop.f32.mrb[0].mxu0
      %v5769 = vadd.f32 0.0, %v5768
      %v5770 = vpop.f32.mrb[0].mxu0
      %v5771 = vadd.f32 0.0, %v5770
      %v5772 = vpop.f32.mrb[0].mxu0
      %v5773 = vadd.f32 0.0, %v5772
      %v5774 = vpop.f32.mrb[0].mxu0
      %v5775 = vadd.f32 0.0, %v5774
      %5776 = vmatprep.mubr.bf16.mxu0 0
      %5777 = vmatmul.mubr.bf16.gmra.mrb[0].mxu0 %v5565
      %v5778 = vpop.f32.mrb[0].mxu0
      %v5779 = vadd.f32 0.0, %v5778
      %v5780 = vpop.f32.mrb[0].mxu0
      %v5781 = vadd.f32 0.0, %v5780
      %v5782 = vpop.f32.mrb[0].mxu0
      %v5783 = vadd.f32 0.0, %v5782
      %v5784 = vpop.f32.mrb[0].mxu0
      %v5785 = vadd.f32 0.0, %v5784
      %5786 = vmatprep.mubr.bf16.mxu0 0
      %5787 = vmatmul.mubr.bf16.gmra.mrb[0].mxu0 %v5566
      %v5788 = vpop.f32.mrb[0].mxu0
      %v5789 = vadd.f32 0.0, %v5788
      %v5790 = vpop.f32.mrb[0].mxu0
      %v5791 = vadd.f32 0.0, %v5790
      %v5792 = vpop.f32.mrb[0].mxu0
      %v5793 = vadd.f32 0.0, %v5792
      %v5794 = vpop.f32.mrb[0].mxu0
      %v5795 = vadd.f32 0.0, %v5794
      %5796 = vdwg.mxu0
      %v5798 = vlaneseq
      %v5799 = vshrl.u32 %v5798, 7
      %v5800 = vsub.s32 0, %v5799
      %v5801 = vrot.slane %v5556, %v5800
      %v5802 = vlaneseq
      %v5803 = vshrl.u32 %v5802, 7
      %v5804 = vsub.s32 1, %v5803
      %v5805 = vrot.slane %v5556, %v5804
      %v5808 = vadd.f32 %v5801, %v5699
      %v5809 = vadd.f32 %v5805, %v5701
      %v5810 = vadd.f32 %v5801, %v5703
      %v5811 = vadd.f32 %v5805, %v5705
      %v5812 = vadd.f32 %v5801, %v5709
      %v5813 = vadd.f32 %v5805, %v5711
      %v5814 = vadd.f32 %v5801, %v5713
      %v5815 = vadd.f32 %v5805, %v5715
      %v5816 = vadd.f32 %v5801, %v5719
      %v5817 = vadd.f32 %v5805, %v5721
      %v5818 = vadd.f32 %v5801, %v5723
      %v5819 = vadd.f32 %v5805, %v5725
      %v5820 = vadd.f32 %v5801, %v5729
      %v5821 = vadd.f32 %v5805, %v5731
      %v5822 = vadd.f32 %v5801, %v5733
      %v5823 = vadd.f32 %v5805, %v5735
      %v5824 = vadd.f32 %v5801, %v5739
      %v5825 = vadd.f32 %v5805, %v5741
      %v5826 = vadd.f32 %v5801, %v5743
      %v5827 = vadd.f32 %v5805, %v5745
      %v5828 = vadd.f32 %v5801, %v5749
      %v5829 = vadd.f32 %v5805, %v5751
      %v5830 = vadd.f32 %v5801, %v5753
      %v5831 = vadd.f32 %v5805, %v5755
      %v5832 = vadd.f32 %v5801, %v5759
      %v5833 = vadd.f32 %v5805, %v5761
      %v5834 = vadd.f32 %v5801, %v5763
      %v5835 = vadd.f32 %v5805, %v5765
      %v5836 = vadd.f32 %v5801, %v5769
      %v5837 = vadd.f32 %v5805, %v5771
      %v5838 = vadd.f32 %v5801, %v5773
      %v5839 = vadd.f32 %v5805, %v5775
      %v5840 = vadd.f32 %v5801, %v5779
      %v5841 = vadd.f32 %v5805, %v5781
      %v5842 = vadd.f32 %v5801, %v5783
      %v5843 = vadd.f32 %v5805, %v5785
      %v5844 = vadd.f32 %v5801, %v5789
      %v5845 = vadd.f32 %v5805, %v5791
      %v5846 = vadd.f32 %v5801, %v5793
      %v5847 = vadd.f32 %v5805, %v5795
      %v5848 = vld [vmem:[#allocation2] sm:$0xf0]
      %v5849 = vld [vmem:[#allocation2 + $0x8] sm:$0xff]
      %v5850 = vld [vmem:[#allocation2 + $0x10] sm:$0xff]
      %v5851 = vld [vmem:[#allocation2 + $0x18] sm:$0xff]
      %v5852 = vld [vmem:[#allocation2 + $0x20] sm:$0xff]
      %v5853 = vld [vmem:[#allocation2 + $0x28] sm:$0xff]
      %v5854 = vld [vmem:[#allocation2 + $0x30] sm:$0xff]
      %v5855 = vld [vmem:[#allocation2 + $0x38] sm:$0xff]
      %v5856 = vld [vmem:[#allocation2 + $0x40] sm:$0xff]
      %v5857 = vld [vmem:[#allocation2 + $0x48] sm:$0xff]
      %v5858 = vld [vmem:[#allocation2 + $0x50] sm:$0xf]
      %s5859 = scalar_lea.vmem %s5, 1280
      %v5860 = vld [vmem:[%s5859] sm:$0xff]
      %v5861 = vld [vmem:[%s5859 + $0x8] sm:$0xff]
      %v5862 = vld [vmem:[%s5859 + $0x10] sm:$0xff]
      %v5863 = vld [vmem:[%s5859 + $0x18] sm:$0xff]
      %v5864 = vld [vmem:[%s5859 + $0x20] sm:$0xff]
      %v5865 = vld [vmem:[%s5859 + $0x28] sm:$0xff]
      %v5866 = vld [vmem:[%s5859 + $0x30] sm:$0xff]
      %v5867 = vld [vmem:[%s5859 + $0x38] sm:$0xff]
      %v5868 = vld [vmem:[%s5859 + $0x40] sm:$0xff]
      %v5869 = vld [vmem:[%s5859 + $0x48] sm:$0xff]
      %v5870 = vld [vmem:[%s5859 + $0x50] sm:$0xff]
      %v5871 = vld [vmem:[%s5859 + $0x58] sm:$0xff]
      %v5872 = vld [vmem:[%s5859 + $0x60] sm:$0xff]
      %v5873 = vld [vmem:[%s5859 + $0x68] sm:$0xff]
      %v5874 = vld [vmem:[%s5859 + $0x70] sm:$0xff]
      %v5875 = vld [vmem:[%s5859 + $0x78] sm:$0xff]
      %v5887 = vrot.slane %v5848, 4
      %v5888 = vrot.slane %v5849, 4
      %v5889 = vsel %vm968, %v5887, %v5888
      %v5890 = vrot.slane %v5850, 4
      %v5891 = vsel %vm968, %v5888, %v5890
      %v5892 = vrot.slane %v5851, 4
      %v5893 = vsel %vm968, %v5890, %v5892
      %v5894 = vrot.slane %v5852, 4
      %v5895 = vsel %vm968, %v5892, %v5894
      %v5896 = vrot.slane %v5853, 4
      %v5897 = vsel %vm968, %v5894, %v5896
      %v5898 = vrot.slane %v5854, 4
      %v5899 = vsel %vm968, %v5896, %v5898
      %v5900 = vrot.slane %v5855, 4
      %v5901 = vsel %vm968, %v5898, %v5900
      %v5902 = vrot.slane %v5856, 4
      %v5903 = vsel %vm968, %v5900, %v5902
      %v5904 = vrot.slane %v5857, 4
      %v5905 = vsel %vm968, %v5902, %v5904
      %v5906 = vrot.slane %v5858, 4
      %v5907 = vsel %vm968, %v5904, %v5906
      %v5934 = vunpack.c.l.b16 %v5860
      %v5935 = vunpack.c.h.b16 %v5860
      %v5936 = vunpack.c.l.b16 %v5861
      %v5937 = vunpack.c.h.b16 %v5861
      %v5938 = vunpack.c.l.b16 %v5862
      %v5939 = vunpack.c.h.b16 %v5862
      %v5940 = vunpack.c.l.b16 %v5863
      %v5941 = vunpack.c.h.b16 %v5863
      %v5942 = vunpack.c.l.b16 %v5864
      %v5943 = vunpack.c.h.b16 %v5864
      %v5944 = vunpack.c.l.b16 %v5865
      %v5945 = vunpack.c.h.b16 %v5865
      %v5946 = vunpack.c.l.b16 %v5866
      %v5947 = vunpack.c.h.b16 %v5866
      %v5948 = vunpack.c.l.b16 %v5867
      %v5949 = vunpack.c.h.b16 %v5867
      %v5950 = vunpack.c.l.b16 %v5868
      %v5951 = vunpack.c.h.b16 %v5868
      %v5952 = vunpack.c.l.b16 %v5869
      %v5953 = vunpack.c.h.b16 %v5869
      %v5954 = vunpack.c.l.b16 %v5870
      %v5955 = vunpack.c.h.b16 %v5870
      %v5956 = vunpack.c.l.b16 %v5871
      %v5957 = vunpack.c.h.b16 %v5871
      %v5958 = vunpack.c.l.b16 %v5872
      %v5959 = vunpack.c.h.b16 %v5872
      %v5960 = vunpack.c.l.b16 %v5873
      %v5961 = vunpack.c.h.b16 %v5873
      %v5962 = vunpack.c.l.b16 %v5874
      %v5963 = vunpack.c.h.b16 %v5874
      %v5964 = vunpack.c.l.b16 %v5875
      %v5965 = vunpack.c.h.b16 %v5875
      %v5966 = vpack.c.b16 %v5936, %v5934
      %v5967 = vpack.c.b16 %v5937, %v5935
      %v5968 = vpack.c.b16 %v5940, %v5938
      %v5969 = vpack.c.b16 %v5941, %v5939
      %v5970 = vpack.c.b16 %v5944, %v5942
      %v5971 = vpack.c.b16 %v5945, %v5943
      %v5972 = vpack.c.b16 %v5948, %v5946
      %v5973 = vpack.c.b16 %v5949, %v5947
      %v5974 = vpack.c.b16 %v5952, %v5950
      %v5975 = vpack.c.b16 %v5953, %v5951
      %v5976 = vpack.c.b16 %v5956, %v5954
      %v5977 = vpack.c.b16 %v5957, %v5955
      %v5978 = vpack.c.b16 %v5960, %v5958
      %v5979 = vpack.c.b16 %v5961, %v5959
      %v5980 = vpack.c.b16 %v5964, %v5962
      %v5981 = vpack.c.b16 %v5965, %v5963
      %5998 = vmatprep.subr.bf16.mxu0 %v5967
      %5999 = vmatpush1.bf16.msra.mxu0 %v5966
      %6000 = vmatprep.subr.bf16.mxu0 %v5969
      %6001 = vmatpush1.bf16.msra.mxu0 %v5968
      %6002 = vmatprep.subr.bf16.mxu0 %v5971
      %6003 = vmatpush1.bf16.msra.mxu0 %v5970
      %6004 = vmatprep.subr.bf16.mxu0 %v5973
      %6005 = vmatpush1.bf16.msra.mxu0 %v5972
      %6006 = vmatprep.subr.bf16.mxu0 %v5975
      %6007 = vmatpush1.bf16.msra.mxu0 %v5974
      %6008 = vmatprep.subr.bf16.mxu0 %v5977
      %6009 = vmatpush1.bf16.msra.mxu0 %v5976
      %6010 = vmatprep.subr.bf16.mxu0 %v5979
      %6011 = vmatpush1.bf16.msra.mxu0 %v5978
      %6012 = vmatprep.subr.bf16.mxu0 %v5981
      %6013 = vmatpush1.bf16.msra.mxu0 %v5980
      %6014 = vmatprep.subr.bf16.mxu0 0
      %6015 = vmatpush1.bf16.msra.mxu0 0
      %6016 = vmatprep.subr.bf16.mxu0 0
      %6017 = vmatpush1.bf16.msra.mxu0 0
      %6018 = vmatprep.subr.bf16.mxu0 0
      %6019 = vmatpush1.bf16.msra.mxu0 0
      %6020 = vmatprep.subr.bf16.mxu0 0
      %6021 = vmatpush1.bf16.msra.mxu0 0
      %6022 = vmatprep.subr.bf16.mxu0 0
      %6023 = vmatpush1.bf16.msra.mxu0 0
      %6024 = vmatprep.subr.bf16.mxu0 0
      %6025 = vmatpush1.bf16.msra.mxu0 0
      %6026 = vmatprep.subr.bf16.mxu0 0
      %6027 = vmatpush1.bf16.msra.mxu0 0
      %6028 = vmatprep.subr.bf16.mxu0 0
      %6029 = vmatpush1.bf16.msra.mxu0 0
      %6030 = vmatprep.mubr.bf16.mxu0 0
      %6031 = vmatmul.mubr.bf16.gmra.mrb[0].mxu0 %v5889
      %v6032 = vpop.f32.mrb[0].mxu0
      %v6033 = vadd.f32 0.0, %v6032
      %v6034 = vpop.f32.mrb[0].mxu0
      %v6035 = vadd.f32 0.0, %v6034
      %v6036 = vpop.f32.mrb[0].mxu0
      %v6037 = vadd.f32 0.0, %v6036
      %v6038 = vpop.f32.mrb[0].mxu0
      %v6039 = vadd.f32 0.0, %v6038
      %6040 = vmatprep.mubr.bf16.mxu0 0
      %6041 = vmatmul.mubr.bf16.gmra.mrb[0].mxu0 %v5891
      %v6042 = vpop.f32.mrb[0].mxu0
      %v6043 = vadd.f32 0.0, %v6042
      %v6044 = vpop.f32.mrb[0].mxu0
      %v6045 = vadd.f32 0.0, %v6044
      %v6046 = vpop.f32.mrb[0].mxu0
      %v6047 = vadd.f32 0.0, %v6046
      %v6048 = vpop.f32.mrb[0].mxu0
      %v6049 = vadd.f32 0.0, %v6048
      %6050 = vmatprep.mubr.bf16.mxu0 0
      %6051 = vmatmul.mubr.bf16.gmra.mrb[0].mxu0 %v5893
      %v6052 = vpop.f32.mrb[0].mxu0
      %v6053 = vadd.f32 0.0, %v6052
      %v6054 = vpop.f32.mrb[0].mxu0
      %v6055 = vadd.f32 0.0, %v6054
      %v6056 = vpop.f32.mrb[0].mxu0
      %v6057 = vadd.f32 0.0, %v6056
      %v6058 = vpop.f32.mrb[0].mxu0
      %v6059 = vadd.f32 0.0, %v6058
      %6060 = vmatprep.mubr.bf16.mxu0 0
      %6061 = vmatmul.mubr.bf16.gmra.mrb[0].mxu0 %v5895
      %v6062 = vpop.f32.mrb[0].mxu0
      %v6063 = vadd.f32 0.0, %v6062
      %v6064 = vpop.f32.mrb[0].mxu0
      %v6065 = vadd.f32 0.0, %v6064
      %v6066 = vpop.f32.mrb[0].mxu0
      %v6067 = vadd.f32 0.0, %v6066
      %v6068 = vpop.f32.mrb[0].mxu0
      %v6069 = vadd.f32 0.0, %v6068
      %6070 = vmatprep.mubr.bf16.mxu0 0
      %6071 = vmatmul.mubr.bf16.gmra.mrb[0].mxu0 %v5897
      %v6072 = vpop.f32.mrb[0].mxu0
      %v6073 = vadd.f32 0.0, %v6072
      %v6074 = vpop.f32.mrb[0].mxu0
      %v6075 = vadd.f32 0.0, %v6074
      %v6076 = vpop.f32.mrb[0].mxu0
      %v6077 = vadd.f32 0.0, %v6076
      %v6078 = vpop.f32.mrb[0].mxu0
      %v6079 = vadd.f32 0.0, %v6078
      %6080 = vmatprep.mubr.bf16.mxu0 0
      %6081 = vmatmul.mubr.bf16.gmra.mrb[0].mxu0 %v5899
      %v6082 = vpop.f32.mrb[0].mxu0
      %v6083 = vadd.f32 0.0, %v6082
      %v6084 = vpop.f32.mrb[0].mxu0
      %v6085 = vadd.f32 0.0, %v6084
      %v6086 = vpop.f32.mrb[0].mxu0
      %v6087 = vadd.f32 0.0, %v6086
      %v6088 = vpop.f32.mrb[0].mxu0
      %v6089 = vadd.f32 0.0, %v6088
      %6090 = vmatprep.mubr.bf16.mxu0 0
      %6091 = vmatmul.mubr.bf16.gmra.mrb[0].mxu0 %v5901
      %v6092 = vpop.f32.mrb[0].mxu0
      %v6093 = vadd.f32 0.0, %v6092
      %v6094 = vpop.f32.mrb[0].mxu0
      %v6095 = vadd.f32 0.0, %v6094
      %v6096 = vpop.f32.mrb[0].mxu0
      %v6097 = vadd.f32 0.0, %v6096
      %v6098 = vpop.f32.mrb[0].mxu0
      %v6099 = vadd.f32 0.0, %v6098
      %6100 = vmatprep.mubr.bf16.mxu0 0
      %6101 = vmatmul.mubr.bf16.gmra.mrb[0].mxu0 %v5903
      %v6102 = vpop.f32.mrb[0].mxu0
      %v6103 = vadd.f32 0.0, %v6102
      %v6104 = vpop.f32.mrb[0].mxu0
      %v6105 = vadd.f32 0.0, %v6104
      %v6106 = vpop.f32.mrb[0].mxu0
      %v6107 = vadd.f32 0.0, %v6106
      %v6108 = vpop.f32.mrb[0].mxu0
      %v6109 = vadd.f32 0.0, %v6108
      %6110 = vmatprep.mubr.bf16.mxu0 0
      %6111 = vmatmul.mubr.bf16.gmra.mrb[0].mxu0 %v5905
      %v6112 = vpop.f32.mrb[0].mxu0
      %v6113 = vadd.f32 0.0, %v6112
      %v6114 = vpop.f32.mrb[0].mxu0
      %v6115 = vadd.f32 0.0, %v6114
      %v6116 = vpop.f32.mrb[0].mxu0
      %v6117 = vadd.f32 0.0, %v6116
      %v6118 = vpop.f32.mrb[0].mxu0
      %v6119 = vadd.f32 0.0, %v6118
      %6120 = vmatprep.mubr.bf16.mxu0 0
      %6121 = vmatmul.mubr.bf16.gmra.mrb[0].mxu0 %v5907
      %v6122 = vpop.f32.mrb[0].mxu0
      %v6123 = vadd.f32 0.0, %v6122
      %v6124 = vpop.f32.mrb[0].mxu0
      %v6125 = vadd.f32 0.0, %v6124
      %v6126 = vpop.f32.mrb[0].mxu0
      %v6127 = vadd.f32 0.0, %v6126
      %v6128 = vpop.f32.mrb[0].mxu0
      %v6129 = vadd.f32 0.0, %v6128
      %6130 = vdwg.mxu0
      %v6131 = vadd.f32 %v5808, %v6033
      %v6132 = vadd.f32 %v5809, %v6035
      %v6133 = vadd.f32 %v5810, %v6037
      %v6134 = vadd.f32 %v5811, %v6039
      %v6135 = vadd.f32 %v5812, %v6043
      %v6136 = vadd.f32 %v5813, %v6045
      %v6137 = vadd.f32 %v5814, %v6047
      %v6138 = vadd.f32 %v5815, %v6049
      %v6139 = vadd.f32 %v5816, %v6053
      %v6140 = vadd.f32 %v5817, %v6055
      %v6141 = vadd.f32 %v5818, %v6057
      %v6142 = vadd.f32 %v5819, %v6059
      %v6143 = vadd.f32 %v5820, %v6063
      %v6144 = vadd.f32 %v5821, %v6065
      %v6145 = vadd.f32 %v5822, %v6067
      %v6146 = vadd.f32 %v5823, %v6069
      %v6147 = vadd.f32 %v5824, %v6073
      %v6148 = vadd.f32 %v5825, %v6075
      %v6149 = vadd.f32 %v5826, %v6077
      %v6150 = vadd.f32 %v5827, %v6079
      %v6151 = vadd.f32 %v5828, %v6083
      %v6152 = vadd.f32 %v5829, %v6085
      %v6153 = vadd.f32 %v5830, %v6087
      %v6154 = vadd.f32 %v5831, %v6089
      %v6155 = vadd.f32 %v5832, %v6093
      %v6156 = vadd.f32 %v5833, %v6095
      %v6157 = vadd.f32 %v5834, %v6097
      %v6158 = vadd.f32 %v5835, %v6099
      %v6159 = vadd.f32 %v5836, %v6103
      %v6160 = vadd.f32 %v5837, %v6105
      %v6161 = vadd.f32 %v5838, %v6107
      %v6162 = vadd.f32 %v5839, %v6109
      %v6163 = vadd.f32 %v5840, %v6113
      %v6164 = vadd.f32 %v5841, %v6115
      %v6165 = vadd.f32 %v5842, %v6117
      %v6166 = vadd.f32 %v5843, %v6119
      %v6167 = vadd.f32 %v5844, %v6123
      %v6168 = vadd.f32 %v5845, %v6125
      %v6169 = vadd.f32 %v5846, %v6127
      %v6170 = vadd.f32 %v5847, %v6129
      %v6171 = vld [vmem:[#allocation2 + $0x50] sm:$0xff]
      %s6172 = scalar_lea.vmem %s5, 1408
      %v6173 = vld [vmem:[%s6172] sm:$0xff]
      %v6174 = vld [vmem:[%s6172 + $0x8] sm:$0xff]
      %v6175 = vld [vmem:[%s6172 + $0x10] sm:$0xff]
      %v6176 = vld [vmem:[%s6172 + $0x18] sm:$0xff]
      %v6177 = vld [vmem:[%s6172 + $0x20] sm:$0xff]
      %v6178 = vld [vmem:[%s6172 + $0x28] sm:$0xff]
      %v6179 = vld [vmem:[%s6172 + $0x30] sm:$0xff]
      %v6180 = vld [vmem:[%s6172 + $0x38] sm:$0xff]
      %v6181 = vld [vmem:[%s6172 + $0x40] sm:$0xff]
      %v6182 = vld [vmem:[%s6172 + $0x48] sm:$0xff]
      %v6183 = vld [vmem:[%s6172 + $0x50] sm:$0xff]
      %v6184 = vld [vmem:[%s6172 + $0x58] sm:$0xff]
      %v6185 = vld [vmem:[%s6172 + $0x60] sm:$0xff]
      %v6186 = vld [vmem:[%s6172 + $0x68] sm:$0xff]
      %v6187 = vld [vmem:[%s6172 + $0x70] sm:$0xff]
      %v6188 = vld [vmem:[%s6172 + $0x78] sm:$0xff]
      %v6205 = vunpack.c.l.b16 %v6173
      %v6206 = vunpack.c.h.b16 %v6173
      %v6207 = vunpack.c.l.b16 %v6174
      %v6208 = vunpack.c.h.b16 %v6174
      %v6209 = vunpack.c.l.b16 %v6175
      %v6210 = vunpack.c.h.b16 %v6175
      %v6211 = vunpack.c.l.b16 %v6176
      %v6212 = vunpack.c.h.b16 %v6176
      %v6213 = vunpack.c.l.b16 %v6177
      %v6214 = vunpack.c.h.b16 %v6177
      %v6215 = vunpack.c.l.b16 %v6178
      %v6216 = vunpack.c.h.b16 %v6178
      %v6217 = vunpack.c.l.b16 %v6179
      %v6218 = vunpack.c.h.b16 %v6179
      %v6219 = vunpack.c.l.b16 %v6180
      %v6220 = vunpack.c.h.b16 %v6180
      %v6221 = vunpack.c.l.b16 %v6181
      %v6222 = vunpack.c.h.b16 %v6181
      %v6223 = vunpack.c.l.b16 %v6182
      %v6224 = vunpack.c.h.b16 %v6182
      %v6225 = vunpack.c.l.b16 %v6183
      %v6226 = vunpack.c.h.b16 %v6183
      %v6227 = vunpack.c.l.b16 %v6184
      %v6228 = vunpack.c.h.b16 %v6184
      %v6229 = vunpack.c.l.b16 %v6185
      %v6230 = vunpack.c.h.b16 %v6185
      %v6231 = vunpack.c.l.b16 %v6186
      %v6232 = vunpack.c.h.b16 %v6186
      %v6233 = vunpack.c.l.b16 %v6187
      %v6234 = vunpack.c.h.b16 %v6187
      %v6235 = vunpack.c.l.b16 %v6188
      %v6236 = vunpack.c.h.b16 %v6188
      %v6237 = vpack.c.b16 %v6207, %v6205
      %v6238 = vpack.c.b16 %v6208, %v6206
      %v6239 = vpack.c.b16 %v6211, %v6209
      %v6240 = vpack.c.b16 %v6212, %v6210
      %v6241 = vpack.c.b16 %v6215, %v6213
      %v6242 = vpack.c.b16 %v6216, %v6214
      %v6243 = vpack.c.b16 %v6219, %v6217
      %v6244 = vpack.c.b16 %v6220, %v6218
      %v6245 = vpack.c.b16 %v6223, %v6221
      %v6246 = vpack.c.b16 %v6224, %v6222
      %v6247 = vpack.c.b16 %v6227, %v6225
      %v6248 = vpack.c.b16 %v6228, %v6226
      %v6249 = vpack.c.b16 %v6231, %v6229
      %v6250 = vpack.c.b16 %v6232, %v6230
      %v6251 = vpack.c.b16 %v6235, %v6233
      %v6252 = vpack.c.b16 %v6236, %v6234
      %6269 = vmatprep.subr.bf16.mxu0 %v6238
      %6270 = vmatpush1.bf16.msra.mxu0 %v6237
      %6271 = vmatprep.subr.bf16.mxu0 %v6240
      %6272 = vmatpush1.bf16.msra.mxu0 %v6239
      %6273 = vmatprep.subr.bf16.mxu0 %v6242
      %6274 = vmatpush1.bf16.msra.mxu0 %v6241
      %6275 = vmatprep.subr.bf16.mxu0 %v6244
      %6276 = vmatpush1.bf16.msra.mxu0 %v6243
      %6277 = vmatprep.subr.bf16.mxu0 %v6246
      %6278 = vmatpush1.bf16.msra.mxu0 %v6245
      %6279 = vmatprep.subr.bf16.mxu0 %v6248
      %6280 = vmatpush1.bf16.msra.mxu0 %v6247
      %6281 = vmatprep.subr.bf16.mxu0 %v6250
      %6282 = vmatpush1.bf16.msra.mxu0 %v6249
      %6283 = vmatprep.subr.bf16.mxu0 %v6252
      %6284 = vmatpush1.bf16.msra.mxu0 %v6251
      %6285 = vmatprep.subr.bf16.mxu0 0
      %6286 = vmatpush1.bf16.msra.mxu0 0
      %6287 = vmatprep.subr.bf16.mxu0 0
      %6288 = vmatpush1.bf16.msra.mxu0 0
      %6289 = vmatprep.subr.bf16.mxu0 0
      %6290 = vmatpush1.bf16.msra.mxu0 0
      %6291 = vmatprep.subr.bf16.mxu0 0
      %6292 = vmatpush1.bf16.msra.mxu0 0
      %6293 = vmatprep.subr.bf16.mxu0 0
      %6294 = vmatpush1.bf16.msra.mxu0 0
      %6295 = vmatprep.subr.bf16.mxu0 0
      %6296 = vmatpush1.bf16.msra.mxu0 0
      %6297 = vmatprep.subr.bf16.mxu0 0
      %6298 = vmatpush1.bf16.msra.mxu0 0
      %6299 = vmatprep.subr.bf16.mxu0 0
      %6300 = vmatpush1.bf16.msra.mxu0 0
      %6301 = vmatprep.mubr.bf16.mxu0 0
      %6302 = vmatmul.mubr.bf16.gmra.mrb[0].mxu0 %v5849
      %v6303 = vpop.f32.mrb[0].mxu0
      %v6304 = vadd.f32 0.0, %v6303
      %v6305 = vpop.f32.mrb[0].mxu0
      %v6306 = vadd.f32 0.0, %v6305
      %v6307 = vpop.f32.mrb[0].mxu0
      %v6308 = vadd.f32 0.0, %v6307
      %v6309 = vpop.f32.mrb[0].mxu0
      %v6310 = vadd.f32 0.0, %v6309
      %6311 = vmatprep.mubr.bf16.mxu0 0
      %6312 = vmatmul.mubr.bf16.gmra.mrb[0].mxu0 %v5850
      %v6313 = vpop.f32.mrb[0].mxu0
      %v6314 = vadd.f32 0.0, %v6313
      %v6315 = vpop.f32.mrb[0].mxu0
      %v6316 = vadd.f32 0.0, %v6315
      %v6317 = vpop.f32.mrb[0].mxu0
      %v6318 = vadd.f32 0.0, %v6317
      %v6319 = vpop.f32.mrb[0].mxu0
      %v6320 = vadd.f32 0.0, %v6319
      %6321 = vmatprep.mubr.bf16.mxu0 0
      %6322 = vmatmul.mubr.bf16.gmra.mrb[0].mxu0 %v5851
      %v6323 = vpop.f32.mrb[0].mxu0
      %v6324 = vadd.f32 0.0, %v6323
      %v6325 = vpop.f32.mrb[0].mxu0
      %v6326 = vadd.f32 0.0, %v6325
      %v6327 = vpop.f32.mrb[0].mxu0
      %v6328 = vadd.f32 0.0, %v6327
      %v6329 = vpop.f32.mrb[0].mxu0
      %v6330 = vadd.f32 0.0, %v6329
      %6331 = vmatprep.mubr.bf16.mxu0 0
      %6332 = vmatmul.mubr.bf16.gmra.mrb[0].mxu0 %v5852
      %v6333 = vpop.f32.mrb[0].mxu0
      %v6334 = vadd.f32 0.0, %v6333
      %v6335 = vpop.f32.mrb[0].mxu0
      %v6336 = vadd.f32 0.0, %v6335
      %v6337 = vpop.f32.mrb[0].mxu0
      %v6338 = vadd.f32 0.0, %v6337
      %v6339 = vpop.f32.mrb[0].mxu0
      %v6340 = vadd.f32 0.0, %v6339
      %6341 = vmatprep.mubr.bf16.mxu0 0
      %6342 = vmatmul.mubr.bf16.gmra.mrb[0].mxu0 %v5853
      %v6343 = vpop.f32.mrb[0].mxu0
      %v6344 = vadd.f32 0.0, %v6343
      %v6345 = vpop.f32.mrb[0].mxu0
      %v6346 = vadd.f32 0.0, %v6345
      %v6347 = vpop.f32.mrb[0].mxu0
      %v6348 = vadd.f32 0.0, %v6347
      %v6349 = vpop.f32.mrb[0].mxu0
      %v6350 = vadd.f32 0.0, %v6349
      %6351 = vmatprep.mubr.bf16.mxu0 0
      %6352 = vmatmul.mubr.bf16.gmra.mrb[0].mxu0 %v5854
      %v6353 = vpop.f32.mrb[0].mxu0
      %v6354 = vadd.f32 0.0, %v6353
      %v6355 = vpop.f32.mrb[0].mxu0
      %v6356 = vadd.f32 0.0, %v6355
      %v6357 = vpop.f32.mrb[0].mxu0
      %v6358 = vadd.f32 0.0, %v6357
      %v6359 = vpop.f32.mrb[0].mxu0
      %v6360 = vadd.f32 0.0, %v6359
      %6361 = vmatprep.mubr.bf16.mxu0 0
      %6362 = vmatmul.mubr.bf16.gmra.mrb[0].mxu0 %v5855
      %v6363 = vpop.f32.mrb[0].mxu0
      %v6364 = vadd.f32 0.0, %v6363
      %v6365 = vpop.f32.mrb[0].mxu0
      %v6366 = vadd.f32 0.0, %v6365
      %v6367 = vpop.f32.mrb[0].mxu0
      %v6368 = vadd.f32 0.0, %v6367
      %v6369 = vpop.f32.mrb[0].mxu0
      %v6370 = vadd.f32 0.0, %v6369
      %6371 = vmatprep.mubr.bf16.mxu0 0
      %6372 = vmatmul.mubr.bf16.gmra.mrb[0].mxu0 %v5856
      %v6373 = vpop.f32.mrb[0].mxu0
      %v6374 = vadd.f32 0.0, %v6373
      %v6375 = vpop.f32.mrb[0].mxu0
      %v6376 = vadd.f32 0.0, %v6375
      %v6377 = vpop.f32.mrb[0].mxu0
      %v6378 = vadd.f32 0.0, %v6377
      %v6379 = vpop.f32.mrb[0].mxu0
      %v6380 = vadd.f32 0.0, %v6379
      %6381 = vmatprep.mubr.bf16.mxu0 0
      %6382 = vmatmul.mubr.bf16.gmra.mrb[0].mxu0 %v5857
      %v6383 = vpop.f32.mrb[0].mxu0
      %v6384 = vadd.f32 0.0, %v6383
      %v6385 = vpop.f32.mrb[0].mxu0
      %v6386 = vadd.f32 0.0, %v6385
      %v6387 = vpop.f32.mrb[0].mxu0
      %v6388 = vadd.f32 0.0, %v6387
      %v6389 = vpop.f32.mrb[0].mxu0
      %v6390 = vadd.f32 0.0, %v6389
      %6391 = vmatprep.mubr.bf16.mxu0 0
      %6392 = vmatmul.mubr.bf16.gmra.mrb[0].mxu0 %v6171
      %v6393 = vpop.f32.mrb[0].mxu0
      %v6394 = vadd.f32 0.0, %v6393
      %v6395 = vpop.f32.mrb[0].mxu0
      %v6396 = vadd.f32 0.0, %v6395
      %v6397 = vpop.f32.mrb[0].mxu0
      %v6398 = vadd.f32 0.0, %v6397
      %v6399 = vpop.f32.mrb[0].mxu0
      %v6400 = vadd.f32 0.0, %v6399
      %6401 = vdwg.mxu0
      %v6402 = vadd.f32 %v6131, %v6304
      %v6403 = vadd.f32 %v6132, %v6306
      %v6404 = vadd.f32 %v6133, %v6308
      %v6405 = vadd.f32 %v6134, %v6310
      %v6406 = vadd.f32 %v6135, %v6314
      %v6407 = vadd.f32 %v6136, %v6316
      %v6408 = vadd.f32 %v6137, %v6318
      %v6409 = vadd.f32 %v6138, %v6320
      %v6410 = vadd.f32 %v6139, %v6324
      %v6411 = vadd.f32 %v6140, %v6326
      %v6412 = vadd.f32 %v6141, %v6328
      %v6413 = vadd.f32 %v6142, %v6330
      %v6414 = vadd.f32 %v6143, %v6334
      %v6415 = vadd.f32 %v6144, %v6336
      %v6416 = vadd.f32 %v6145, %v6338
      %v6417 = vadd.f32 %v6146, %v6340
      %v6418 = vadd.f32 %v6147, %v6344
      %v6419 = vadd.f32 %v6148, %v6346
      %v6420 = vadd.f32 %v6149, %v6348
      %v6421 = vadd.f32 %v6150, %v6350
      %v6422 = vadd.f32 %v6151, %v6354
      %v6423 = vadd.f32 %v6152, %v6356
      %v6424 = vadd.f32 %v6153, %v6358
      %v6425 = vadd.f32 %v6154, %v6360
      %v6426 = vadd.f32 %v6155, %v6364
      %v6427 = vadd.f32 %v6156, %v6366
      %v6428 = vadd.f32 %v6157, %v6368
      %v6429 = vadd.f32 %v6158, %v6370
      %v6430 = vadd.f32 %v6159, %v6374
      %v6431 = vadd.f32 %v6160, %v6376
      %v6432 = vadd.f32 %v6161, %v6378
      %v6433 = vadd.f32 %v6162, %v6380
      %v6434 = vadd.f32 %v6163, %v6384
      %v6435 = vadd.f32 %v6164, %v6386
      %v6436 = vadd.f32 %v6165, %v6388
      %v6437 = vadd.f32 %v6166, %v6390
      %v6438 = vadd.f32 %v6167, %v6394
      %v6439 = vadd.f32 %v6168, %v6396
      %v6440 = vadd.f32 %v6169, %v6398
      %v6441 = vadd.f32 %v6170, %v6400
      %v6442 = vtanh.pop %v6402
      %v6443 = vtanh.pop %v6404
      %v6444 = vtanh.pop %v6406
      %v6445 = vtanh.pop %v6408
      %v6446 = vtanh.pop %v6410
      %v6447 = vtanh.pop %v6412
      %v6448 = vtanh.pop %v6414
      %v6449 = vtanh.pop %v6416
      %v6450 = vtanh.pop %v6418
      %v6451 = vtanh.pop %v6420
      %v6452 = vtanh.pop %v6422
      %v6453 = vtanh.pop %v6424
      %v6454 = vtanh.pop %v6426
      %v6455 = vtanh.pop %v6428
      %v6456 = vtanh.pop %v6430
      %v6457 = vtanh.pop %v6432
      %v6458 = vtanh.pop %v6434
      %v6459 = vtanh.pop %v6436
      %v6460 = vtanh.pop %v6438
      %v6461 = vtanh.pop %v6440
      %v6462 = vxor.u32 %v6403, 2147483648
      %v6463 = vxor.u32 %v6405, 2147483648
      %v6464 = vxor.u32 %v6407, 2147483648
      %v6465 = vxor.u32 %v6409, 2147483648
      %v6466 = vxor.u32 %v6411, 2147483648
      %v6467 = vxor.u32 %v6413, 2147483648
      %v6468 = vxor.u32 %v6415, 2147483648
      %v6469 = vxor.u32 %v6417, 2147483648
      %v6470 = vxor.u32 %v6419, 2147483648
      %v6471 = vxor.u32 %v6421, 2147483648
      %v6472 = vxor.u32 %v6423, 2147483648
      %v6473 = vxor.u32 %v6425, 2147483648
      %v6474 = vxor.u32 %v6427, 2147483648
      %v6475 = vxor.u32 %v6429, 2147483648
      %v6476 = vxor.u32 %v6431, 2147483648
      %v6477 = vxor.u32 %v6433, 2147483648
      %v6478 = vxor.u32 %v6435, 2147483648
      %v6479 = vxor.u32 %v6437, 2147483648
      %v6480 = vxor.u32 %v6439, 2147483648
      %v6481 = vxor.u32 %v6441, 2147483648
      %v6482 = vmul.f32 %v6462, 1.442695
      %v6483 = vpow.pop %v6482
      %v6484 = vmul.f32 %v6463, 1.442695
      %v6485 = vpow.pop %v6484
      %v6486 = vmul.f32 %v6464, 1.442695
      %v6487 = vpow.pop %v6486
      %v6488 = vmul.f32 %v6465, 1.442695
      %v6489 = vpow.pop %v6488
      %v6490 = vmul.f32 %v6466, 1.442695
      %v6491 = vpow.pop %v6490
      %v6492 = vmul.f32 %v6467, 1.442695
      %v6493 = vpow.pop %v6492
      %v6494 = vmul.f32 %v6468, 1.442695
      %v6495 = vpow.pop %v6494
      %v6496 = vmul.f32 %v6469, 1.442695
      %v6497 = vpow.pop %v6496
      %v6498 = vmul.f32 %v6470, 1.442695
      %v6499 = vpow.pop %v6498
      %v6500 = vmul.f32 %v6471, 1.442695
      %v6501 = vpow.pop %v6500
      %v6502 = vmul.f32 %v6472, 1.442695
      %v6503 = vpow.pop %v6502
      %v6504 = vmul.f32 %v6473, 1.442695
      %v6505 = vpow.pop %v6504
      %v6506 = vmul.f32 %v6474, 1.442695
      %v6507 = vpow.pop %v6506
      %v6508 = vmul.f32 %v6475, 1.442695
      %v6509 = vpow.pop %v6508
      %v6510 = vmul.f32 %v6476, 1.442695
      %v6511 = vpow.pop %v6510
      %v6512 = vmul.f32 %v6477, 1.442695
      %v6513 = vpow.pop %v6512
      %v6514 = vmul.f32 %v6478, 1.442695
      %v6515 = vpow.pop %v6514
      %v6516 = vmul.f32 %v6479, 1.442695
      %v6517 = vpow.pop %v6516
      %v6518 = vmul.f32 %v6480, 1.442695
      %v6519 = vpow.pop %v6518
      %v6520 = vmul.f32 %v6481, 1.442695
      %v6521 = vpow.pop %v6520
      %v6522 = vadd.f32 %v6483, 1.0
      %v6523 = vadd.f32 %v6485, 1.0
      %v6524 = vadd.f32 %v6487, 1.0
      %v6525 = vadd.f32 %v6489, 1.0
      %v6526 = vadd.f32 %v6491, 1.0
      %v6527 = vadd.f32 %v6493, 1.0
      %v6528 = vadd.f32 %v6495, 1.0
      %v6529 = vadd.f32 %v6497, 1.0
      %v6530 = vadd.f32 %v6499, 1.0
      %v6531 = vadd.f32 %v6501, 1.0
      %v6532 = vadd.f32 %v6503, 1.0
      %v6533 = vadd.f32 %v6505, 1.0
      %v6534 = vadd.f32 %v6507, 1.0
      %v6535 = vadd.f32 %v6509, 1.0
      %v6536 = vadd.f32 %v6511, 1.0
      %v6537 = vadd.f32 %v6513, 1.0
      %v6538 = vadd.f32 %v6515, 1.0
      %v6539 = vadd.f32 %v6517, 1.0
      %v6540 = vadd.f32 %v6519, 1.0
      %v6541 = vadd.f32 %v6521, 1.0
      %v6542 = vrcp.pop %v6522
      %v6543 = vmul.f32 1.0, %v6542
      %v6544 = vrcp.pop %v6523
      %v6545 = vmul.f32 1.0, %v6544
      %v6546 = vrcp.pop %v6524
      %v6547 = vmul.f32 1.0, %v6546
      %v6548 = vrcp.pop %v6525
      %v6549 = vmul.f32 1.0, %v6548
      %v6550 = vrcp.pop %v6526
      %v6551 = vmul.f32 1.0, %v6550
      %v6552 = vrcp.pop %v6527
      %v6553 = vmul.f32 1.0, %v6552
      %v6554 = vrcp.pop %v6528
      %v6555 = vmul.f32 1.0, %v6554
      %v6556 = vrcp.pop %v6529
      %v6557 = vmul.f32 1.0, %v6556
      %v6558 = vrcp.pop %v6530
      %v6559 = vmul.f32 1.0, %v6558
      %v6560 = vrcp.pop %v6531
      %v6561 = vmul.f32 1.0, %v6560
      %v6562 = vrcp.pop %v6532
      %v6563 = vmul.f32 1.0, %v6562
      %v6564 = vrcp.pop %v6533
      %v6565 = vmul.f32 1.0, %v6564
      %v6566 = vrcp.pop %v6534
      %v6567 = vmul.f32 1.0, %v6566
      %v6568 = vrcp.pop %v6535
      %v6569 = vmul.f32 1.0, %v6568
      %v6570 = vrcp.pop %v6536
      %v6571 = vmul.f32 1.0, %v6570
      %v6572 = vrcp.pop %v6537
      %v6573 = vmul.f32 1.0, %v6572
      %v6574 = vrcp.pop %v6538
      %v6575 = vmul.f32 1.0, %v6574
      %v6576 = vrcp.pop %v6539
      %v6577 = vmul.f32 1.0, %v6576
      %v6578 = vrcp.pop %v6540
      %v6579 = vmul.f32 1.0, %v6578
      %v6580 = vrcp.pop %v6541
      %v6581 = vmul.f32 1.0, %v6580
      %v6582 = vmul.f32 %v6442, %v6543
      %v6583 = vmul.f32 %v6443, %v6545
      %v6584 = vmul.f32 %v6444, %v6547
      %v6585 = vmul.f32 %v6445, %v6549
      %v6586 = vmul.f32 %v6446, %v6551
      %v6587 = vmul.f32 %v6447, %v6553
      %v6588 = vmul.f32 %v6448, %v6555
      %v6589 = vmul.f32 %v6449, %v6557
      %v6590 = vmul.f32 %v6450, %v6559
      %v6591 = vmul.f32 %v6451, %v6561
      %v6592 = vmul.f32 %v6452, %v6563
      %v6593 = vmul.f32 %v6453, %v6565
      %v6594 = vmul.f32 %v6454, %v6567
      %v6595 = vmul.f32 %v6455, %v6569
      %v6596 = vmul.f32 %v6456, %v6571
      %v6597 = vmul.f32 %v6457, %v6573
      %v6598 = vmul.f32 %v6458, %v6575
      %v6599 = vmul.f32 %v6459, %v6577
      %v6600 = vmul.f32 %v6460, %v6579
      %v6601 = vmul.f32 %v6461, %v6581
      %v6602 = vpack.c.bf16 %v6583, %v6582
      %v6603 = vpack.c.bf16 %v6585, %v6584
      %v6604 = vpack.c.bf16 %v6587, %v6586
      %v6605 = vpack.c.bf16 %v6589, %v6588
      %v6606 = vpack.c.bf16 %v6591, %v6590
      %v6607 = vpack.c.bf16 %v6593, %v6592
      %v6608 = vpack.c.bf16 %v6595, %v6594
      %v6609 = vpack.c.bf16 %v6597, %v6596
      %v6610 = vpack.c.bf16 %v6599, %v6598
      %v6611 = vpack.c.bf16 %v6601, %v6600
      %s6612 = scalar_lea.vmem %s6, 384
      %v6613 = vld [vmem:[%s6612] sm:$0xff]
      %v6614 = vld [vmem:[%s6612 + $0x8] sm:$0xff]
      %v6615 = vld [vmem:[%s6612 + $0x10] sm:$0xff]
      %v6616 = vld [vmem:[%s6612 + $0x18] sm:$0xff]
      %v6617 = vld [vmem:[%s6612 + $0x20] sm:$0xff]
      %v6618 = vld [vmem:[%s6612 + $0x28] sm:$0xff]
      %v6619 = vld [vmem:[%s6612 + $0x30] sm:$0xff]
      %v6620 = vld [vmem:[%s6612 + $0x38] sm:$0xff]
      %v6621 = vld [vmem:[%s6612 + $0x40] sm:$0xff]
      %v6622 = vld [vmem:[%s6612 + $0x48] sm:$0xff]
      %v6623 = vld [vmem:[%s6612 + $0x50] sm:$0xff]
      %v6624 = vld [vmem:[%s6612 + $0x58] sm:$0xff]
      %v6625 = vld [vmem:[%s6612 + $0x60] sm:$0xff]
      %v6626 = vld [vmem:[%s6612 + $0x68] sm:$0xff]
      %v6627 = vld [vmem:[%s6612 + $0x70] sm:$0xff]
      %v6628 = vld [vmem:[%s6612 + $0x78] sm:$0xff]
      %s6629 = scalar_lea.vmem %s7, 6
      %v6630 = vld [vmem:[%s6629] sm:$0x3]
      %v6632 = vlaneseq
      %v6633 = vshrl.u32 %v6632, 7
      %v6634 = vsub.s32 1, %v6633
      %v6635 = vrot.slane %v6630, %v6634
      %v6653 = vunpack.c.l.b16 %v6613
      %v6654 = vunpack.c.h.b16 %v6613
      %v6655 = vunpack.c.l.b16 %v6614
      %v6656 = vunpack.c.h.b16 %v6614
      %v6657 = vunpack.c.l.b16 %v6615
      %v6658 = vunpack.c.h.b16 %v6615
      %v6659 = vunpack.c.l.b16 %v6616
      %v6660 = vunpack.c.h.b16 %v6616
      %v6661 = vunpack.c.l.b16 %v6617
      %v6662 = vunpack.c.h.b16 %v6617
      %v6663 = vunpack.c.l.b16 %v6618
      %v6664 = vunpack.c.h.b16 %v6618
      %v6665 = vunpack.c.l.b16 %v6619
      %v6666 = vunpack.c.h.b16 %v6619
      %v6667 = vunpack.c.l.b16 %v6620
      %v6668 = vunpack.c.h.b16 %v6620
      %v6669 = vunpack.c.l.b16 %v6621
      %v6670 = vunpack.c.h.b16 %v6621
      %v6671 = vunpack.c.l.b16 %v6622
      %v6672 = vunpack.c.h.b16 %v6622
      %v6673 = vunpack.c.l.b16 %v6623
      %v6674 = vunpack.c.h.b16 %v6623
      %v6675 = vunpack.c.l.b16 %v6624
      %v6676 = vunpack.c.h.b16 %v6624
      %v6677 = vunpack.c.l.b16 %v6625
      %v6678 = vunpack.c.h.b16 %v6625
      %v6679 = vunpack.c.l.b16 %v6626
      %v6680 = vunpack.c.h.b16 %v6626
      %v6681 = vunpack.c.l.b16 %v6627
      %v6682 = vunpack.c.h.b16 %v6627
      %v6683 = vunpack.c.l.b16 %v6628
      %v6684 = vunpack.c.h.b16 %v6628
      %v6685 = vpack.c.b16 %v6655, %v6653
      %v6686 = vpack.c.b16 %v6656, %v6654
      %v6687 = vpack.c.b16 %v6659, %v6657
      %v6688 = vpack.c.b16 %v6660, %v6658
      %v6689 = vpack.c.b16 %v6663, %v6661
      %v6690 = vpack.c.b16 %v6664, %v6662
      %v6691 = vpack.c.b16 %v6667, %v6665
      %v6692 = vpack.c.b16 %v6668, %v6666
      %v6693 = vpack.c.b16 %v6671, %v6669
      %v6694 = vpack.c.b16 %v6672, %v6670
      %v6695 = vpack.c.b16 %v6675, %v6673
      %v6696 = vpack.c.b16 %v6676, %v6674
      %v6697 = vpack.c.b16 %v6679, %v6677
      %v6698 = vpack.c.b16 %v6680, %v6678
      %v6699 = vpack.c.b16 %v6683, %v6681
      %v6700 = vpack.c.b16 %v6684, %v6682
      %6717 = vmatprep.subr.bf16.mxu0 %v6686
      %6718 = vmatpush1.bf16.msra.mxu0 %v6685
      %6719 = vmatprep.subr.bf16.mxu0 %v6688
      %6720 = vmatpush1.bf16.msra.mxu0 %v6687
      %6721 = vmatprep.subr.bf16.mxu0 %v6690
      %6722 = vmatpush1.bf16.msra.mxu0 %v6689
      %6723 = vmatprep.subr.bf16.mxu0 %v6692
      %6724 = vmatpush1.bf16.msra.mxu0 %v6691
      %6725 = vmatprep.subr.bf16.mxu0 %v6694
      %6726 = vmatpush1.bf16.msra.mxu0 %v6693
      %6727 = vmatprep.subr.bf16.mxu0 %v6696
      %6728 = vmatpush1.bf16.msra.mxu0 %v6695
      %6729 = vmatprep.subr.bf16.mxu0 %v6698
      %6730 = vmatpush1.bf16.msra.mxu0 %v6697
      %6731 = vmatprep.subr.bf16.mxu0 %v6700
      %6732 = vmatpush1.bf16.msra.mxu0 %v6699
      %6733 = vmatprep.subr.bf16.mxu0 0
      %6734 = vmatpush1.bf16.msra.mxu0 0
      %6735 = vmatprep.subr.bf16.mxu0 0
      %6736 = vmatpush1.bf16.msra.mxu0 0
      %6737 = vmatprep.subr.bf16.mxu0 0
      %6738 = vmatpush1.bf16.msra.mxu0 0
      %6739 = vmatprep.subr.bf16.mxu0 0
      %6740 = vmatpush1.bf16.msra.mxu0 0
      %6741 = vmatprep.subr.bf16.mxu0 0
      %6742 = vmatpush1.bf16.msra.mxu0 0
      %6743 = vmatprep.subr.bf16.mxu0 0
      %6744 = vmatpush1.bf16.msra.mxu0 0
      %6745 = vmatprep.subr.bf16.mxu0 0
      %6746 = vmatpush1.bf16.msra.mxu0 0
      %6747 = vmatprep.subr.bf16.mxu0 0
      %6748 = vmatpush1.bf16.msra.mxu0 0
      %6749 = vmatprep.mubr.bf16.mxu0 0
      %6750 = vmatmul.mubr.bf16.gmra.mrb[0].mxu0 %v6602
      %v6751 = vpop.f32.mrb[0].mxu0
      %v6752 = vpop.f32.mrb[0].mxu0
      %v6753 = vadd.f32 %v6635, %v6752
      %v6754 = vpop.f32.mrb[0].mxu0
      %v6755 = vpop.f32.mrb[0].mxu0
      %v6756 = vadd.f32 %v6635, %v6755
      %6757 = vmatprep.mubr.bf16.mxu0 0
      %6758 = vmatmul.mubr.bf16.gmra.mrb[0].mxu0 %v6603
      %v6759 = vpop.f32.mrb[0].mxu0
      %v6760 = vpop.f32.mrb[0].mxu0
      %v6761 = vadd.f32 %v6635, %v6760
      %v6762 = vpop.f32.mrb[0].mxu0
      %v6763 = vpop.f32.mrb[0].mxu0
      %v6764 = vadd.f32 %v6635, %v6763
      %6765 = vmatprep.mubr.bf16.mxu0 0
      %6766 = vmatmul.mubr.bf16.gmra.mrb[0].mxu0 %v6604
      %v6767 = vpop.f32.mrb[0].mxu0
      %v6768 = vpop.f32.mrb[0].mxu0
      %v6769 = vadd.f32 %v6635, %v6768
      %v6770 = vpop.f32.mrb[0].mxu0
      %v6771 = vpop.f32.mrb[0].mxu0
      %v6772 = vadd.f32 %v6635, %v6771
      %6773 = vmatprep.mubr.bf16.mxu0 0
      %6774 = vmatmul.mubr.bf16.gmra.mrb[0].mxu0 %v6605
      %v6775 = vpop.f32.mrb[0].mxu0
      %v6776 = vpop.f32.mrb[0].mxu0
      %v6777 = vadd.f32 %v6635, %v6776
      %v6778 = vpop.f32.mrb[0].mxu0
      %v6779 = vpop.f32.mrb[0].mxu0
      %v6780 = vadd.f32 %v6635, %v6779
      %6781 = vmatprep.mubr.bf16.mxu0 0
      %6782 = vmatmul.mubr.bf16.gmra.mrb[0].mxu0 %v6606
      %v6783 = vpop.f32.mrb[0].mxu0
      %v6784 = vpop.f32.mrb[0].mxu0
      %v6785 = vadd.f32 %v6635, %v6784
      %v6786 = vpop.f32.mrb[0].mxu0
      %v6787 = vpop.f32.mrb[0].mxu0
      %v6788 = vadd.f32 %v6635, %v6787
      %6789 = vmatprep.mubr.bf16.mxu0 0
      %6790 = vmatmul.mubr.bf16.gmra.mrb[0].mxu0 %v6607
      %v6791 = vpop.f32.mrb[0].mxu0
      %v6792 = vpop.f32.mrb[0].mxu0
      %v6793 = vadd.f32 %v6635, %v6792
      %v6794 = vpop.f32.mrb[0].mxu0
      %v6795 = vpop.f32.mrb[0].mxu0
      %v6796 = vadd.f32 %v6635, %v6795
      %6797 = vmatprep.mubr.bf16.mxu0 0
      %6798 = vmatmul.mubr.bf16.gmra.mrb[0].mxu0 %v6608
      %v6799 = vpop.f32.mrb[0].mxu0
      %v6800 = vpop.f32.mrb[0].mxu0
      %v6801 = vadd.f32 %v6635, %v6800
      %v6802 = vpop.f32.mrb[0].mxu0
      %v6803 = vpop.f32.mrb[0].mxu0
      %v6804 = vadd.f32 %v6635, %v6803
      %6805 = vmatprep.mubr.bf16.mxu0 0
      %6806 = vmatmul.mubr.bf16.gmra.mrb[0].mxu0 %v6609
      %v6807 = vpop.f32.mrb[0].mxu0
      %v6808 = vpop.f32.mrb[0].mxu0
      %v6809 = vadd.f32 %v6635, %v6808
      %v6810 = vpop.f32.mrb[0].mxu0
      %v6811 = vpop.f32.mrb[0].mxu0
      %v6812 = vadd.f32 %v6635, %v6811
      %6813 = vmatprep.mubr.bf16.mxu0 0
      %6814 = vmatmul.mubr.bf16.gmra.mrb[0].mxu0 %v6610
      %v6815 = vpop.f32.mrb[0].mxu0
      %v6816 = vpop.f32.mrb[0].mxu0
      %v6817 = vadd.f32 %v6635, %v6816
      %v6818 = vpop.f32.mrb[0].mxu0
      %v6819 = vpop.f32.mrb[0].mxu0
      %v6820 = vadd.f32 %v6635, %v6819
      %6821 = vmatprep.mubr.bf16.mxu0 0
      %6822 = vmatmul.mubr.bf16.gmra.mrb[0].mxu0 %v6611
      %v6823 = vpop.f32.mrb[0].mxu0
      %v6824 = vpop.f32.mrb[0].mxu0
      %v6825 = vadd.f32 %v6635, %v6824
      %v6826 = vpop.f32.mrb[0].mxu0
      %v6827 = vpop.f32.mrb[0].mxu0
      %v6828 = vadd.f32 %v6635, %v6827
      %6829 = vdwg.mxu0
      %v6830 = vadd.f32 %v5474, %v6753
      %v6831 = vadd.f32 %v5475, %v6756
      %v6832 = vadd.f32 %v5476, %v6761
      %v6833 = vadd.f32 %v5477, %v6764
      %v6834 = vadd.f32 %v5478, %v6769
      %v6835 = vadd.f32 %v5479, %v6772
      %v6836 = vadd.f32 %v5480, %v6777
      %v6837 = vadd.f32 %v5481, %v6780
      %v6838 = vadd.f32 %v5482, %v6785
      %v6839 = vadd.f32 %v5483, %v6788
      %v6840 = vadd.f32 %v5484, %v6793
      %v6841 = vadd.f32 %v5485, %v6796
      %v6842 = vadd.f32 %v5486, %v6801
      %v6843 = vadd.f32 %v5487, %v6804
      %v6844 = vadd.f32 %v5488, %v6809
      %v6845 = vadd.f32 %v5489, %v6812
      %v6846 = vadd.f32 %v5490, %v6817
      %v6847 = vadd.f32 %v5491, %v6820
      %v6848 = vadd.f32 %v5492, %v6825
      %v6849 = vadd.f32 %v5493, %v6828
      %v6850 = vmul.f32 %v6830, %v831
      %v6851 = vmul.f32 %v6831, %v836
      %v6852 = vmul.f32 %v6832, %v841
      %v6853 = vmul.f32 %v6833, %v846
      %v6854 = vmul.f32 %v6834, %v851
      %v6855 = vmul.f32 %v6835, %v856
      %v6856 = vmul.f32 %v6836, %v861
      %v6857 = vmul.f32 %v6837, %v866
      %v6858 = vmul.f32 %v6838, %v871
      %v6859 = vmul.f32 %v6839, %v876
      %v6860 = vmul.f32 %v6840, %v881
      %v6861 = vmul.f32 %v6841, %v886
      %v6862 = vmul.f32 %v6842, %v891
      %v6863 = vmul.f32 %v6843, %v896
      %v6864 = vmul.f32 %v6844, %v901
      %v6865 = vmul.f32 %v6845, %v906
      %v6866 = vmul.f32 %v6846, %v911
      %v6867 = vmul.f32 %v6847, %v916
      %v6868 = vmul.f32 %v6848, %v921
      %v6869 = vmul.f32 %v6849, %v926
      %v6870 = vpack.c.bf16 %v6851, %v6850
      %v6871 = vpack.c.bf16 %v6853, %v6852
      %v6872 = vpack.c.bf16 %v6855, %v6854
      %v6873 = vpack.c.bf16 %v6857, %v6856
      %v6874 = vpack.c.bf16 %v6859, %v6858
      %v6875 = vpack.c.bf16 %v6861, %v6860
      %v6876 = vpack.c.bf16 %v6863, %v6862
      %v6877 = vpack.c.bf16 %v6865, %v6864
      %v6878 = vpack.c.bf16 %v6867, %v6866
      %v6879 = vpack.c.bf16 %v6869, %v6868
      %v6880 = vld [vmem:[%s8] sm:$0xf]
      %v6881 = vld [vmem:[%s8 + $0x4] sm:$0xf]
      %v6882 = vld [vmem:[%s8 + $0x8] sm:$0xf]
      %v6883 = vld [vmem:[%s8 + $0xc] sm:$0xf]
      %v6884 = vld [vmem:[%s8 + $0x10] sm:$0xf]
      %v6885 = vld [vmem:[%s8 + $0x14] sm:$0xf]
      %v6886 = vld [vmem:[%s8 + $0x18] sm:$0xf]
      %v6887 = vld [vmem:[%s8 + $0x1c] sm:$0xf]
      %v6888 = vld [vmem:[%s8 + $0x20] sm:$0xf]
      %v6889 = vld [vmem:[%s8 + $0x24] sm:$0xf]
      %v6890 = vld [vmem:[%s8 + $0x28] sm:$0xf]
      %v6891 = vld [vmem:[%s8 + $0x2c] sm:$0xf]
      %v6892 = vld [vmem:[%s8 + $0x30] sm:$0xf]
      %v6893 = vld [vmem:[%s8 + $0x34] sm:$0xf]
      %v6894 = vld [vmem:[%s8 + $0x38] sm:$0xf]
      %v6895 = vld [vmem:[%s8 + $0x3c] sm:$0xf]
      %v6896 = vld [vmem:[%s9] sm:$0x1]
      %v6898 = vlaneseq
      %v6899 = vshrl.u32 %v6898, 7
      %v6900 = vsub.s32 0, %v6899
      %v6901 = vrot.slane %v6896, %v6900
      %v6919 = vunpack.c.l.b16 %v6880
      %v6920 = vunpack.c.l.b16 %v6881
      %v6921 = vunpack.c.l.b16 %v6882
      %v6922 = vunpack.c.l.b16 %v6883
      %v6923 = vunpack.c.l.b16 %v6884
      %v6924 = vunpack.c.l.b16 %v6885
      %v6925 = vunpack.c.l.b16 %v6886
      %v6926 = vunpack.c.l.b16 %v6887
      %v6927 = vunpack.c.l.b16 %v6888
      %v6928 = vunpack.c.l.b16 %v6889
      %v6929 = vunpack.c.l.b16 %v6890
      %v6930 = vunpack.c.l.b16 %v6891
      %v6931 = vunpack.c.l.b16 %v6892
      %v6932 = vunpack.c.l.b16 %v6893
      %v6933 = vunpack.c.l.b16 %v6894
      %v6934 = vunpack.c.l.b16 %v6895
      %v6935 = vpack.c.b16 %v6920, %v6919
      %v6936 = vpack.c.b16 %v6922, %v6921
      %v6937 = vpack.c.b16 %v6924, %v6923
      %v6938 = vpack.c.b16 %v6926, %v6925
      %v6939 = vpack.c.b16 %v6928, %v6927
      %v6940 = vpack.c.b16 %v6930, %v6929
      %v6941 = vpack.c.b16 %v6932, %v6931
      %v6942 = vpack.c.b16 %v6934, %v6933
      %6951 = vmatprep.subr.bf16.mxu0 0
      %6952 = vmatpush1.bf16.msra.mxu0 %v6935
      %6953 = vmatprep.subr.bf16.mxu0 0
      %6954 = vmatpush1.bf16.msra.mxu0 %v6936
      %6955 = vmatprep.subr.bf16.mxu0 0
      %6956 = vmatpush1.bf16.msra.mxu0 %v6937
      %6957 = vmatprep.subr.bf16.mxu0 0
      %6958 = vmatpush1.bf16.msra.mxu0 %v6938
      %6959 = vmatprep.subr.bf16.mxu0 0
      %6960 = vmatpush1.bf16.msra.mxu0 %v6939
      %6961 = vmatprep.subr.bf16.mxu0 0
      %6962 = vmatpush1.bf16.msra.mxu0 %v6940
      %6963 = vmatprep.subr.bf16.mxu0 0
      %6964 = vmatpush1.bf16.msra.mxu0 %v6941
      %6965 = vmatprep.subr.bf16.mxu0 0
      %6966 = vmatpush1.bf16.msra.mxu0 %v6942
      %6967 = vmatprep.subr.bf16.mxu0 0
      %6968 = vmatpush1.bf16.msra.mxu0 0
      %6969 = vmatprep.subr.bf16.mxu0 0
      %6970 = vmatpush1.bf16.msra.mxu0 0
      %6971 = vmatprep.subr.bf16.mxu0 0
      %6972 = vmatpush1.bf16.msra.mxu0 0
      %6973 = vmatprep.subr.bf16.mxu0 0
      %6974 = vmatpush1.bf16.msra.mxu0 0
      %6975 = vmatprep.subr.bf16.mxu0 0
      %6976 = vmatpush1.bf16.msra.mxu0 0
      %6977 = vmatprep.subr.bf16.mxu0 0
      %6978 = vmatpush1.bf16.msra.mxu0 0
      %6979 = vmatprep.subr.bf16.mxu0 0
      %6980 = vmatpush1.bf16.msra.mxu0 0
      %6981 = vmatprep.subr.bf16.mxu0 0
      %6982 = vmatpush1.bf16.msra.mxu0 0
      %6983 = vmatprep.mubr.bf16.mxu0 0
      %6984 = vmatmul.mubr.bf16.gmra.mrb[0].mxu0 %v6870
      %v6985 = vpop.f32.mrb[0].mxu0
      %v6986 = vpop.f32.mrb[0].mxu0
      %v6987 = vpop.f32.mrb[0].mxu0
      %v6988 = vpop.f32.mrb[0].mxu0
      %6989 = vmatprep.mubr.bf16.mxu0 0
      %6990 = vmatmul.mubr.bf16.gmra.mrb[0].mxu0 %v6871
      %v6991 = vpop.f32.mrb[0].mxu0
      %v6992 = vadd.f32 %v6901, %v6991
      %v6993 = vpop.f32.mrb[0].mxu0
      %v6994 = vpop.f32.mrb[0].mxu0
      %v6995 = vadd.f32 %v6901, %v6994
      %v6996 = vpop.f32.mrb[0].mxu0
      %6997 = vmatprep.mubr.bf16.mxu0 0
      %6998 = vmatmul.mubr.bf16.gmra.mrb[0].mxu0 %v6872
      %v6999 = vpop.f32.mrb[0].mxu0
      %v7000 = vadd.f32 %v6901, %v6999
      %v7001 = vpop.f32.mrb[0].mxu0
      %v7002 = vpop.f32.mrb[0].mxu0
      %v7003 = vadd.f32 %v6901, %v7002
      %v7004 = vpop.f32.mrb[0].mxu0
      %7005 = vmatprep.mubr.bf16.mxu0 0
      %7006 = vmatmul.mubr.bf16.gmra.mrb[0].mxu0 %v6873
      %v7007 = vpop.f32.mrb[0].mxu0
      %v7008 = vadd.f32 %v6901, %v7007
      %v7009 = vpop.f32.mrb[0].mxu0
      %v7010 = vpop.f32.mrb[0].mxu0
      %v7011 = vadd.f32 %v6901, %v7010
      %v7012 = vpop.f32.mrb[0].mxu0
      %7013 = vmatprep.mubr.bf16.mxu0 0
      %7014 = vmatmul.mubr.bf16.gmra.mrb[0].mxu0 %v6874
      %v7015 = vpop.f32.mrb[0].mxu0
      %v7016 = vadd.f32 %v6901, %v7015
      %v7017 = vpop.f32.mrb[0].mxu0
      %v7018 = vpop.f32.mrb[0].mxu0
      %v7019 = vadd.f32 %v6901, %v7018
      %v7020 = vpop.f32.mrb[0].mxu0
      %7021 = vmatprep.mubr.bf16.mxu0 0
      %7022 = vmatmul.mubr.bf16.gmra.mrb[0].mxu0 %v6875
      %v7023 = vpop.f32.mrb[0].mxu0
      %v7024 = vadd.f32 %v6901, %v7023
      %v7025 = vpop.f32.mrb[0].mxu0
      %v7026 = vpop.f32.mrb[0].mxu0
      %v7027 = vadd.f32 %v6901, %v7026
      %v7028 = vpop.f32.mrb[0].mxu0
      %7029 = vmatprep.mubr.bf16.mxu0 0
      %7030 = vmatmul.mubr.bf16.gmra.mrb[0].mxu0 %v6876
      %v7031 = vpop.f32.mrb[0].mxu0
      %v7032 = vadd.f32 %v6901, %v7031
      %v7033 = vpop.f32.mrb[0].mxu0
      %v7034 = vpop.f32.mrb[0].mxu0
      %v7035 = vadd.f32 %v6901, %v7034
      %v7036 = vpop.f32.mrb[0].mxu0
      %7037 = vmatprep.mubr.bf16.mxu0 0
      %7038 = vmatmul.mubr.bf16.gmra.mrb[0].mxu0 %v6877
      %v7039 = vpop.f32.mrb[0].mxu0
      %v7040 = vadd.f32 %v6901, %v7039
      %v7041 = vpop.f32.mrb[0].mxu0
      %v7042 = vpop.f32.mrb[0].mxu0
      %v7043 = vadd.f32 %v6901, %v7042
      %v7044 = vpop.f32.mrb[0].mxu0
      %7045 = vmatprep.mubr.bf16.mxu0 0
      %7046 = vmatmul.mubr.bf16.gmra.mrb[0].mxu0 %v6878
      %v7047 = vpop.f32.mrb[0].mxu0
      %v7048 = vadd.f32 %v6901, %v7047
      %v7049 = vpop.f32.mrb[0].mxu0
      %v7050 = vpop.f32.mrb[0].mxu0
      %v7051 = vadd.f32 %v6901, %v7050
      %v7052 = vpop.f32.mrb[0].mxu0
      %7053 = vmatprep.mubr.bf16.mxu0 0
      %7054 = vmatmul.mubr.bf16.gmra.mrb[0].mxu0 %v6879
      %v7055 = vpop.f32.mrb[0].mxu0
      %v7056 = vpop.f32.mrb[0].mxu0
      %v7057 = vpop.f32.mrb[0].mxu0
      %v7058 = vpop.f32.mrb[0].mxu0
      %7059 = vdwg.mxu0
      %v7060 = vmul.f32 %v6992, %v841
      %v7061 = vmul.f32 %v6995, %v846
      %v7062 = vmul.f32 %v7000, %v851
      %v7063 = vmul.f32 %v7003, %v856
      %v7064 = vmul.f32 %v7008, %v861
      %v7065 = vmul.f32 %v7011, %v866
      %v7066 = vmul.f32 %v7016, %v871
      %v7067 = vmul.f32 %v7019, %v876
      %v7068 = vmul.f32 %v7024, %v881
      %v7069 = vmul.f32 %v7027, %v886
      %v7070 = vmul.f32 %v7032, %v891
      %v7071 = vmul.f32 %v7035, %v896
      %v7072 = vmul.f32 %v7040, %v901
      %v7073 = vmul.f32 %v7043, %v906
      %v7074 = vmul.f32 %v7048, %v911
      %v7075 = vmul.f32 %v7051, %v916
      %7076 = vst [vmem:[%s446] sm:$0xff] %v7060
      %7077 = vst [vmem:[%s446 + $0x8] sm:$0xff] %v7061
      %7078 = vst [vmem:[%s446 + $0x10] sm:$0xff] %v7062
      %7079 = vst [vmem:[%s446 + $0x18] sm:$0xff] %v7063
      %7080 = vst [vmem:[%s446 + $0x20] sm:$0xff] %v7064
      %7081 = vst [vmem:[%s446 + $0x28] sm:$0xff] %v7065
      %7082 = vst [vmem:[%s446 + $0x30] sm:$0xff] %v7066
      %7083 = vst [vmem:[%s446 + $0x38] sm:$0xff] %v7067
      %7084 = vst [vmem:[%s446 + $0x40] sm:$0xff] %v7068
      %7085 = vst [vmem:[%s446 + $0x48] sm:$0xff] %v7069
      %7086 = vst [vmem:[%s446 + $0x50] sm:$0xff] %v7070
      %7087 = vst [vmem:[%s446 + $0x58] sm:$0xff] %v7071
      %7088 = vst [vmem:[%s446 + $0x60] sm:$0xff] %v7072
      %7089 = vst [vmem:[%s446 + $0x68] sm:$0xff] %v7073
      %7090 = vst [vmem:[%s446 + $0x70] sm:$0xff] %v7074
      %7091 = vst [vmem:[%s446 + $0x78] sm:$0xff] %v7075
      %s7092 = smul.u32 16, %s26
      %p7093 = scmp.lt.s32.totalorder %s25, 1
      %s7094 = scalar_select %p7093, %s25, 1
      %p7095 = scmp.lt.s32.totalorder %s7092, 31
      %s7096 = scalar_select %p7095, %s7092, 31
      %s7097 = smul.addr %s7094, 32
      %s7098 = sadd.s32 %s7096, %s7097
      %s7099 = smul.addr %s7098, 8
      %s7100 = scalar_lea.vmem %s10, %s7099
      // Predicated region
      $region61: #{_filter_encoder_jit.1} parent=59 // pred_check
        %p7101 = pneg %p282
      $region62: #{_filter_encoder_jit.1} parent=59 // pred_check_branch
        %7103 = sbr.rel (%p7101) target = $region64
      $region63: #{_filter_encoder_jit.1} parent=59 // pred_region
        %s7104 = smul.u32 16, %s26
      $region64: #{_filter_encoder_jit.1} parent=59 // pred_fallthru
        _
    $region60: #{_filter_encoder_jit.1} parent=5 // pred_fallthru
      _
    %p7105 = scmp.le.s32.totalorder 2, %s16
    // Predicated region
    $region65: #{_filter_encoder_jit.1} parent=5 // pred_check
      %p7106 = pneg %p7105
    $region66: #{_filter_encoder_jit.1} parent=5 // pred_check_branch
      %7108 = sbr.rel (%p7106) target = $region68
    $region67: #{_filter_encoder_jit.1} parent=5 // pred_region
      %s7109 = ssub.s32 %s16, 2
      // Predicated region
      $region69: #{_filter_encoder_jit.1} parent=67 // pred_check
        %p7110 = pneg %p288
      $region70: #{_filter_encoder_jit.1} parent=67 // pred_check_branch
        %7112 = sbr.rel (%p7110) target = $region72
      $region71: #{_filter_encoder_jit.1} parent=67 // pred_region
        %s7113 = smul.u32 16, %s28
        %p7114 = scmp.lt.s32.totalorder %s27, 1
        %s7115 = scalar_select %p7114, %s27, 1
        %p7116 = scmp.lt.s32.totalorder %s7113, 31
        %s7117 = scalar_select %p7116, %s7113, 31
        %s7118 = smul.addr %s7115, 32
        %s7119 = sadd.s32 %s7117, %s7118
        %s7120 = smul.addr %s7119, 8
        %s7121 = scalar_lea.vmem %s10, %s7120
      $region72: #{_filter_encoder_jit.1} parent=67 // pred_fallthru
        _
    $region68: #{_filter_encoder_jit.1} parent=5 // pred_fallthru
      _
  $region6: #{_filter_encoder_jit.1} parent=0 // loop_footer
    %s20 = sadd.s32 1, %s16
  $region7: #{_filter_encoder_jit.1} parent=0 // loop_footer_branch
    %15 = sbr.rel target = $region3
  $region8: #{_filter_encoder_jit.1} parent=0 // loop_exit
    _

</llo_original>
